<compile_context>
chip_gen: v5e
topology: v5e:2x2
jax: 0.10.0
libtpu: 0.0.40
codegen_flags: <defaults>
</compile_context>

<pallas_src>
from functools import partial

import jax
import jax.numpy as jnp
from jax import lax
from jax.experimental import pallas as pl
from jax.experimental.pallas import tpu as pltpu

F32 = jnp.float32
BF16 = jnp.bfloat16


def _vmem():
    return pl.BlockSpec(memory_space=pltpu.MemorySpace.VMEM)


# ---------------------------------------------------------------------------
# Single fused kernel.
# ---------------------------------------------------------------------------
def _merg_kernel(
        nce_ref, te_ref, ahat_ref, pool_ref,          # activations / graph mats
        cpw_ref, cpb_ref, rw_ref, rb_ref,             # pooler + shared reduction
        gw1_ref, gb1_ref, gw2_ref, gb2_ref,           # GCN
        wih0f_ref, wih0b_ref, whh0f_ref, whh0b_ref, b0f_ref, b0b_ref,   # LSTM 0
        wih1f_ref, wih1b_ref, whh1f_ref, whh1b_ref, b1f_ref, b1b_ref,   # LSTM 1
        pw1_ref, pb1_ref, bng_ref, bnb_ref, pw2_ref, pb2_ref,           # pred head
        ctxe_ref, clse_ref, ppw_ref, ppb_ref,         # prompt pooler stand-in
        lwc_ref, lwk_ref, lb_ref, ls_ref,             # prompt Linear + logit scale
        dropg_ref, dropf_ref,                         # host-generated dropout masks
        o_ref,                                        # output (B_pad, num_cls)
        *, T, B, H, B_valid, bn_eps):
    f32 = jnp.float32

    def mmb(a, w):                                    # bf16 MXU, f32 accumulate
        return jnp.dot(a.astype(BF16), w.astype(BF16),
                       preferred_element_type=f32)

    n_pad = nce_ref.shape[0]

    # ---- CodeBERT pooler stand-in ------------------------------------------
    n_embedd = jnp.tanh(mmb(nce_ref[...], cpw_ref[...]) + cpb_ref[...])  # (Np,768)

    # ---- shared reduction: ONE fused matmul over [pooled nodes ; t_emb] ----
    stacked = jnp.concatenate([n_embedd.astype(BF16), te_ref[...]], axis=0)
    reduc = jnp.tanh(jnp.dot(stacked, rw_ref[...],
                             preferred_element_type=f32) + rb_ref[...])
    reduc1 = reduc[:n_pad]                            # (Np, 32)  -> GCN
    reduc2 = reduc[n_pad:]                            # (T*B, 32) -> BiLSTM

    # ---- GCN branch: relu(A(XW)+b) x2 -> dropout(0.2) -> mean pool ---------
    a_hat = ahat_ref[...]                             # (Np, Np) bf16
    h = jnp.maximum(mmb(a_hat, mmb(reduc1, gw1_ref[...])) + gb1_ref[...], 0.0)
    h = jnp.maximum(mmb(a_hat, mmb(h, gw2_ref[...])) + gb2_ref[...], 0.0)
    h = h * dropg_ref[...]
    gcn_out = mmb(pool_ref[...], h)                   # (B, 64)

    # ---- 2-layer bidirectional LSTM (gate order i, f, g, o) ----------------
    # Gate activations at full vreg width: lanes [2H,3H) -> tanh, rest sigmoid.
    lane = lax.broadcasted_iota(jnp.int32, (B, 4 * H), 1)
    g_lane = (lane >= 2 * H) & (lane < 3 * H)

    def lstm_step(xp_row, h_st, c_st, whh):
        g = xp_row + mmb(h_st, whh)                   # (B, 4H) = (8, 128)
        act = jnp.where(g_lane, jnp.tanh(g), jax.nn.sigmoid(g))
        i, f = act[:, 0:H], act[:, H:2 * H]
        gg, o = act[:, 2 * H:3 * H], act[:, 3 * H:4 * H]
        c_st = f * c_st + i * gg
        return o * jnp.tanh(c_st), c_st

    def bilstm_layer(xp_f, xp_b, whh_f, whh_b, collect):
        h_f = h_b = jnp.zeros((B, H), f32)
        c_f = c_b = jnp.zeros((B, H), f32)
        fwd = [None] * T
        bwd = [None] * T
        for t in range(T):                            # fully unrolled, T static
            rt = T - 1 - t
            h_f, c_f = lstm_step(xp_f[t * B:(t + 1) * B], h_f, c_f, whh_f)
            h_b, c_b = lstm_step(xp_b[rt * B:(rt + 1) * B], h_b, c_b, whh_b)
            if collect:                               # carried in registers
                fwd[t] = h_f
                bwd[rt] = h_b
        if collect:                                   # (T*B, 2H), time-major
            return jnp.concatenate(
                [jnp.concatenate(fwd, axis=0), jnp.concatenate(bwd, axis=0)],
                axis=1)
        return jnp.concatenate([h_f, h_b], axis=1)    # cat(h[-2], h[-1])

    # Input projections hoisted out of the recurrence (one matmul each).
    xp0_f = mmb(reduc2, wih0f_ref[...]) + b0f_ref[...]      # (T*B, 4H)
    xp0_b = mmb(reduc2, wih0b_ref[...]) + b0b_ref[...]
    h0 = bilstm_layer(xp0_f, xp0_b, whh0f_ref[...], whh0b_ref[...], True)
    # TODO(synk): nn.LSTM inter-layer dropout (p=0.2) skipped (inference mode).
    xp1_f = mmb(h0, wih1f_ref[...]) + b1f_ref[...]          # (T*B, 4H)
    xp1_b = mmb(h0, wih1b_ref[...]) + b1b_ref[...]
    hlast = bilstm_layer(xp1_f, xp1_b, whh1f_ref[...], whh1b_ref[...], False)
    lstm_out = jnp.maximum(hlast, 0.0)                      # (B, 64)

    # ---- fuse + prediction: dropout(0.4) -> Linear -> BN -> ReLU -> Linear --
    fused = jnp.concatenate([gcn_out, lstm_out], axis=1)    # (B, 128)
    fused = fused * dropf_ref[...]
    ph = mmb(fused, pw1_ref[...]) + pb1_ref[...]            # (B, 64)

    # BatchNorm1d, batch statistics over the VALID rows only.
    row = lax.broadcasted_iota(jnp.int32, (B, 1), 0)
    vmask = (row < B_valid).astype(f32)                     # (B, 1)
    inv_n = 1.0 / float(B_valid)
    mean = jnp.sum(ph * vmask, axis=0, keepdims=True) * inv_n
    cen = (ph - mean) * vmask
    var = jnp.sum(cen * cen, axis=0, keepdims=True) * inv_n
    ph = (ph - mean) * lax.rsqrt(var + bn_eps) * bng_ref[...] + bnb_ref[...]
    ph = jnp.maximum(ph, 0.0)
    xpred = mmb(ph, pw2_ref[...]) + pb2_ref[...]            # (B, out_ch)

    # ---- Prompt head (frozen BERT pooler stand-in + Linear(256, 16)) -------
    prefix = jnp.tanh(mmb(ctxe_ref[...], ppw_ref[...]) + ppb_ref[...])   # (1,128)
    cls_e = jnp.tanh(mmb(clse_ref[...], ppw_ref[...]) + ppb_ref[...])    # (C,128)
    # cat(prefix, cls) @ lin_w == cls @ lin_w[128:] + prefix @ lin_w[:128]
    meta = mmb(cls_e, lwk_ref[...]) + mmb(prefix, lwc_ref[...]) + lb_ref[...]

    # ---- D + log_softmax -----------------------------------------------------
    norm = jnp.sqrt(jnp.sum(meta * meta, axis=1, keepdims=True))
    meta_n = meta / jnp.maximum(norm, 1e-12)
    scale = jnp.exp(ls_ref[...])                            # (1, 1)
    logits = scale * lax.dot_general(                       # xpred @ meta_n.T
        xpred, meta_n, (((1,), (1,)), ((), ())), preferred_element_type=f32)
    m = jnp.max(logits, axis=1, keepdims=True)
    z = logits - m
    o_ref[...] = z - jnp.log(jnp.sum(jnp.exp(z), axis=1, keepdims=True))


# ---------------------------------------------------------------------------
# Host-side glue.
# ---------------------------------------------------------------------------
def normalized_adj(edge_index, num_nodes):
    src, dst = edge_index
    a = jnp.zeros((num_nodes, num_nodes), F32)
    a = a.at[dst, src].set(1.0)
    a = a + jnp.eye(num_nodes, dtype=F32)            # self-loops
    deg = jnp.sum(a, axis=1)
    dinv = 1.0 / jnp.sqrt(jnp.maximum(deg, 1e-12))
    return a * dinv[:, None] * dinv[None, :]


def mean_pool_matrix(batch, num_graphs):
    onehot = (jnp.arange(num_graphs)[:, None] == batch[None, :]).astype(F32)
    counts = jnp.maximum(jnp.sum(onehot, axis=1, keepdims=True), 1.0)
    return onehot / counts


def _pad8(n):
    return max(8, -(-n // 8) * 8)


@jax.jit
def merg_forward(params, n_ids, n_mask, t_ids, t_mask, edge_index, batch,
                 ctx_ids, cls_ids, drop_key):
    p = params
    N = n_ids.shape[0]
    B, T = t_ids.shape
    C = cls_ids.shape[0]
    H = 32
    out_ch = p["pr_w2"].shape[1]
    Np, Bp = _pad8(N), _pad8(B)

    bf = lambda w: w.astype(BF16)

    # CLS-token-only gathers for the pooler stand-ins (masks accepted, unused).
    n_cls_emb = p["emb_code"][n_ids[:, 0]]                       # (N, 768)
    n_cls_emb = bf(jnp.pad(n_cls_emb, ((0, Np - N), (0, 0))))
    # Full-sequence gather only where needed (BiLSTM), time-major, B padded to 8.
    t_emb = jnp.transpose(p["emb_code"][t_ids], (1, 0, 2))       # (T, B, 768)
    t_emb = jnp.pad(t_emb, ((0, 0), (0, Bp - B), (0, 0)))
    t_emb = bf(t_emb.reshape(T * Bp, 768))
    ctx_emb = p["emb_prompt"][ctx_ids[:, 0]]                     # (1, 128)
    cls_emb = p["emb_prompt"][cls_ids[:, 0]]                     # (C, 128)

    a_hat = bf(jnp.pad(normalized_adj(edge_index, N),
                       ((0, Np - N), (0, Np - N))))
    pool = bf(jnp.pad(mean_pool_matrix(batch, B),
                      ((0, Bp - B), (0, Np - N))))

    # Host-generated inverted-dropout masks (F.dropout defaults: training=True).
    kg, kf = jax.random.split(drop_key)
    drop_g = jax.random.bernoulli(kg, 0.8, (Np, 64)).astype(F32) / 0.8
    drop_f = jax.random.bernoulli(kf, 0.6, (Bp, 128)).astype(F32) / 0.6

    # Rough scheduling hints for a single-grid-point, latency-bound kernel.
    flops = 2 * (Np * 768 * 768 + (Np + T * Bp) * 768 * 32
                 + 2 * Np * Np * 64 + Np * 32 * 64 + Np * 64 * 64
                 + Bp * Np * 64
                 + 2 * T * Bp * (32 + 2 * H) * 4 * H
                 + 4 * T * Bp * H * 4 * H
                 + Bp * 128 * 64 + Bp * 64 * out_ch
                 + (C + 1) * 128 * 128 + (C + 1) * 128 * out_ch + Bp * out_ch * C)
    transcendentals = (Np * 768 + (Np + T * Bp) * 32
                       + 4 * T * Bp * 5 * H + (C + 1) * 128 + Bp * C)
    bytes_accessed = (768 * 768 * 2 + (Np + T * Bp) * 768 * 2
                      + 768 * 32 * 2 + 512 * 1024)

    kernel = partial(_merg_kernel, T=T, B=Bp, H=H, B_valid=B, bn_eps=1e-5)
    out = pl.pallas_call(
        kernel,
        out_shape=jax.ShapeDtypeStruct((Bp, C), F32),
        in_specs=[_vmem()] * 40,
        out_specs=_vmem(),
        compiler_params=pltpu.CompilerParams(vmem_limit_bytes=16 * 1024 * 1024),
        cost_estimate=pl.CostEstimate(flops=flops,
                                      transcendentals=transcendentals,
                                      bytes_accessed=bytes_accessed),
    )(n_cls_emb, t_emb, a_hat, pool,
      bf(p["cpool_w"]), p["cpool_b"], bf(p["red_w"]), p["red_b"],
      bf(p["g_w1"]), p["g_b1"], bf(p["g_w2"]), p["g_b2"],
      bf(p["l0f_wih"]), bf(p["l0b_wih"]), bf(p["l0f_whh"]), bf(p["l0b_whh"]),
      p["l0f_b"], p["l0b_b"],
      bf(p["l1f_wih"]), bf(p["l1b_wih"]), bf(p["l1f_whh"]), bf(p["l1b_whh"]),
      p["l1f_b"], p["l1b_b"],
      bf(p["pr_w1"]), p["pr_b1"], p["bn_g"], p["bn_b"],
      bf(p["pr_w2"]), p["pr_b2"],
      ctx_emb, cls_emb, bf(p["ppool_w"]), p["ppool_b"],
      bf(p["lin_w"][:128]), bf(p["lin_w"][128:]), p["lin_b"], p["logit_scale"],
      drop_g, drop_f)
    return out[:B]                                   # drop batch padding rows


def init_params(key, out_channels=16, vocab_c=50, vocab_p=30):
    ks = iter(jax.random.split(key, 40))

    def rnd(shape, scale=0.05):
        return scale * jax.random.normal(next(ks), shape, dtype=F32)

    params = {
        # CodeBERT stand-in
        "emb_code": rnd((vocab_c, 768), 0.02),
        "cpool_w": rnd((768, 768), 0.02), "cpool_b": jnp.zeros((1, 768), F32),
        # reduction: Linear(768, 32) + Tanh
        "red_w": rnd((768, 32)), "red_b": jnp.zeros((1, 32), F32),
        # GCN: GCNConv(32, 64), GCNConv(64, 64)
        "g_w1": rnd((32, 64), 0.1), "g_b1": jnp.zeros((1, 64), F32),
        "g_w2": rnd((64, 64), 0.1), "g_b2": jnp.zeros((1, 64), F32),
        # prediction: Linear(128,64) + BN(64) + ReLU + Linear(64, out_channels)
        "pr_w1": rnd((128, 64), 0.1), "pr_b1": jnp.zeros((1, 64), F32),
        "bn_g": jnp.ones((1, 64), F32), "bn_b": jnp.zeros((1, 64), F32),
        "pr_w2": rnd((64, out_channels), 0.1),
        "pr_b2": jnp.zeros((1, out_channels), F32),
        # Prompt BERT stand-in + Linear(256, 16)
        "emb_prompt": rnd((vocab_p, 128), 0.02),
        "ppool_w": rnd((128, 128), 0.05), "ppool_b": jnp.zeros((1, 128), F32),
        "lin_w": rnd((256, 16), 0.1), "lin_b": jnp.zeros((1, 16), F32),
        # D
        "logit_scale": jnp.full((1, 1), jnp.log(1.0 / 0.07), dtype=F32),
    }
    # BiLSTM (2 layers, bidirectional, hidden=32, input=32 / 64 for layer 1).
    # Note: bias is b_ih + b_hh pre-summed (zeros here).
    h = 32
    for name, in_dim in (("l0f", 32), ("l0b", 32), ("l1f", 2 * h), ("l1b", 2 * h)):
        params[name + "_wih"] = rnd((in_dim, 4 * h), 0.1)
        params[name + "_whh"] = rnd((h, 4 * h), 0.1)
        params[name + "_b"] = jnp.zeros((1, 4 * h), F32)
    return params


if __name__ == "__main__":
    key = jax.random.PRNGKey(0)
    k_param, k_in1, k_in2, k_in3, k_in4 = jax.random.split(key, 5)

    # Small deterministic problem sizes.
    num_nodes, seq_n = 12, 6       # graph nodes tokenized by "codebert"
    num_graphs, seq_t = 4, 8       # sequences for the BiLSTM branch
    num_cls, seq_p = 8, 5          # prompt classes
    out_channels = 16
    vocab_c, vocab_p = 50, 30

    params = init_params(k_param, out_channels, vocab_c, vocab_p)

    n_input_ids = jax.random.randint(k_in1, (num_nodes, seq_n), 0, vocab_c)
    n_attention_mask = jnp.ones((num_nodes, seq_n), jnp.int32)
    t_input_ids = jax.random.randint(k_in2, (num_graphs, seq_t), 0, vocab_c)
    t_attention_mask = jnp.ones((num_graphs, seq_t), jnp.int32)

    # 3 nodes per graph, chain edges within each graph (symmetric).
    batch = jnp.repeat(jnp.arange(num_graphs), 3)
    edges = []
    for g in range(num_graphs):
        base = 3 * g
        for (a, b) in ((base, base + 1), (base + 1, base + 2)):
            edges.append((a, b))
            edges.append((b, a))
    edge_index = jnp.array(edges, dtype=jnp.int32).T       # (2, 16)

    ctx_ids = jax.random.randint(k_in3, (1, seq_p), 0, vocab_p)
    cls_ids = jax.random.randint(k_in4, (num_cls, seq_p), 0, vocab_p)

    drop_key = jax.random.PRNGKey(42)                       # dropout masks

    out = merg_forward(params, n_input_ids, n_attention_mask,
                       t_input_ids, t_attention_mask, edge_index, batch,
                       ctx_ids, cls_ids, drop_key)
    out = jax.block_until_ready(out)
    assert out.shape == (num_graphs, num_cls)
    assert bool(jnp.all(jnp.isfinite(out)))
    print("KERNEL_OK")
</pallas_src>

<mosaic_0001>
module attributes {stable_mosaic.version = 11 : i64} {
  func.func @_merg_kernel(%arg0: memref<16x768xbf16, #tpu.memory_space<vmem>>, %arg1: memref<64x768xbf16, #tpu.memory_space<vmem>>, %arg2: memref<16x16xbf16, #tpu.memory_space<vmem>>, %arg3: memref<8x16xbf16, #tpu.memory_space<vmem>>, %arg4: memref<768x768xbf16, #tpu.memory_space<vmem>>, %arg5: memref<1x768xf32, #tpu.memory_space<vmem>>, %arg6: memref<768x32xbf16, #tpu.memory_space<vmem>>, %arg7: memref<1x32xf32, #tpu.memory_space<vmem>>, %arg8: memref<32x64xbf16, #tpu.memory_space<vmem>>, %arg9: memref<1x64xf32, #tpu.memory_space<vmem>>, %arg10: memref<64x64xbf16, #tpu.memory_space<vmem>>, %arg11: memref<1x64xf32, #tpu.memory_space<vmem>>, %arg12: memref<32x128xbf16, #tpu.memory_space<vmem>>, %arg13: memref<32x128xbf16, #tpu.memory_space<vmem>>, %arg14: memref<32x128xbf16, #tpu.memory_space<vmem>>, %arg15: memref<32x128xbf16, #tpu.memory_space<vmem>>, %arg16: memref<1x128xf32, #tpu.memory_space<vmem>>, %arg17: memref<1x128xf32, #tpu.memory_space<vmem>>, %arg18: memref<64x128xbf16, #tpu.memory_space<vmem>>, %arg19: memref<64x128xbf16, #tpu.memory_space<vmem>>, %arg20: memref<32x128xbf16, #tpu.memory_space<vmem>>, %arg21: memref<32x128xbf16, #tpu.memory_space<vmem>>, %arg22: memref<1x128xf32, #tpu.memory_space<vmem>>, %arg23: memref<1x128xf32, #tpu.memory_space<vmem>>, %arg24: memref<128x64xbf16, #tpu.memory_space<vmem>>, %arg25: memref<1x64xf32, #tpu.memory_space<vmem>>, %arg26: memref<1x64xf32, #tpu.memory_space<vmem>>, %arg27: memref<1x64xf32, #tpu.memory_space<vmem>>, %arg28: memref<64x16xbf16, #tpu.memory_space<vmem>>, %arg29: memref<1x16xf32, #tpu.memory_space<vmem>>, %arg30: memref<1x128xf32, #tpu.memory_space<vmem>>, %arg31: memref<8x128xf32, #tpu.memory_space<vmem>>, %arg32: memref<128x128xbf16, #tpu.memory_space<vmem>>, %arg33: memref<1x128xf32, #tpu.memory_space<vmem>>, %arg34: memref<128x16xbf16, #tpu.memory_space<vmem>>, %arg35: memref<128x16xbf16, #tpu.memory_space<vmem>>, %arg36: memref<1x16xf32, #tpu.memory_space<vmem>>, %arg37: memref<1x1xf32, #tpu.memory_space<vmem>>, %arg38: memref<16x64xf32, #tpu.memory_space<vmem>>, %arg39: memref<8x128xf32, #tpu.memory_space<vmem>>, %arg40: memref<8x8xf32, #tpu.memory_space<vmem>>) attributes {dimension_semantics = [], scalar_prefetch = 0 : i64, scratch_operands = 0 : i64, tpu.core_type = #tpu.core_type<tc>} {
    %c0 = arith.constant 0 : index
    %c0_0 = arith.constant 0 : index
    %0 = vector.load %arg0[%c0, %c0_0] : memref<16x768xbf16, #tpu.memory_space<vmem>>, vector<16x768xbf16>
    %c0_1 = arith.constant 0 : index
    %c0_2 = arith.constant 0 : index
    %1 = vector.load %arg4[%c0_1, %c0_2] : memref<768x768xbf16, #tpu.memory_space<vmem>>, vector<768x768xbf16>
    %cst = arith.constant dense<0.000000e+00> : vector<16x768xf32>
    %2 = tpu.matmul %0, %1, %cst {dimension_numbers = #tpu.dot_dimension_numbers<[1], [0], [0], [1], [0, 0, 1, 1], [], []>} : vector<16x768xbf16>, vector<768x768xbf16>, vector<16x768xf32> -> vector<16x768xf32>
    %c0_3 = arith.constant 0 : index
    %c0_4 = arith.constant 0 : index
    %3 = vector.load %arg5[%c0_3, %c0_4] : memref<1x768xf32, #tpu.memory_space<vmem>>, vector<1x768xf32>
    %4 = vector.broadcast %3 : vector<1x768xf32> to vector<16x768xf32>
    %5 = arith.addf %2, %4 : vector<16x768xf32>
    %6 = math.tanh %5 : vector<16x768xf32>
    %7 = arith.truncf %6 : vector<16x768xf32> to vector<16x768xbf16>
    %c0_5 = arith.constant 0 : index
    %c0_6 = arith.constant 0 : index
    %8 = vector.load %arg1[%c0_5, %c0_6] : memref<64x768xbf16, #tpu.memory_space<vmem>>, vector<64x768xbf16>
    %9 = tpu.concatenate %7, %8 in 0 : vector<16x768xbf16>, vector<64x768xbf16> -> vector<80x768xbf16>
    %c0_7 = arith.constant 0 : index
    %c0_8 = arith.constant 0 : index
    %10 = vector.load %arg6[%c0_7, %c0_8] : memref<768x32xbf16, #tpu.memory_space<vmem>>, vector<768x32xbf16>
    %cst_9 = arith.constant dense<0.000000e+00> : vector<80x32xf32>
    %11 = tpu.matmul %9, %10, %cst_9 {dimension_numbers = #tpu.dot_dimension_numbers<[1], [0], [0], [1], [0, 0, 1, 1], [], []>} : vector<80x768xbf16>, vector<768x32xbf16>, vector<80x32xf32> -> vector<80x32xf32>
    %c0_10 = arith.constant 0 : index
    %c0_11 = arith.constant 0 : index
    %12 = vector.load %arg7[%c0_10, %c0_11] : memref<1x32xf32, #tpu.memory_space<vmem>>, vector<1x32xf32>
    %13 = vector.broadcast %12 : vector<1x32xf32> to vector<80x32xf32>
    %14 = arith.addf %11, %13 : vector<80x32xf32>
    %15 = math.tanh %14 : vector<80x32xf32>
    %16 = vector.extract_strided_slice %15 {offsets = [0, 0], sizes = [16, 32], strides = [1, 1]} : vector<80x32xf32> to vector<16x32xf32>
    %17 = vector.extract_strided_slice %15 {offsets = [16, 0], sizes = [64, 32], strides = [1, 1]} : vector<80x32xf32> to vector<64x32xf32>
    %c0_12 = arith.constant 0 : index
    %c0_13 = arith.constant 0 : index
    %18 = vector.load %arg2[%c0_12, %c0_13] : memref<16x16xbf16, #tpu.memory_space<vmem>>, vector<16x16xbf16>
    %c0_14 = arith.constant 0 : index
    %c0_15 = arith.constant 0 : index
    %19 = vector.load %arg8[%c0_14, %c0_15] : memref<32x64xbf16, #tpu.memory_space<vmem>>, vector<32x64xbf16>
    %20 = arith.truncf %16 : vector<16x32xf32> to vector<16x32xbf16>
    %cst_16 = arith.constant dense<0.000000e+00> : vector<16x64xf32>
    %21 = tpu.matmul %20, %19, %cst_16 {dimension_numbers = #tpu.dot_dimension_numbers<[1], [0], [0], [1], [0, 0, 1, 1], [], []>} : vector<16x32xbf16>, vector<32x64xbf16>, vector<16x64xf32> -> vector<16x64xf32>
    %22 = arith.truncf %21 : vector<16x64xf32> to vector<16x64xbf16>
    %cst_17 = arith.constant dense<0.000000e+00> : vector<16x64xf32>
    %23 = tpu.matmul %18, %22, %cst_17 {dimension_numbers = #tpu.dot_dimension_numbers<[1], [0], [0], [1], [0, 0, 1, 1], [], []>} : vector<16x16xbf16>, vector<16x64xbf16>, vector<16x64xf32> -> vector<16x64xf32>
    %c0_18 = arith.constant 0 : index
    %c0_19 = arith.constant 0 : index
    %24 = vector.load %arg9[%c0_18, %c0_19] : memref<1x64xf32, #tpu.memory_space<vmem>>, vector<1x64xf32>
    %25 = vector.broadcast %24 : vector<1x64xf32> to vector<16x64xf32>
    %26 = arith.addf %23, %25 : vector<16x64xf32>
    %cst_20 = arith.constant 0.000000e+00 : f32
    %27 = vector.broadcast %cst_20 : f32 to vector<16x64xf32>
    %28 = arith.maximumf %26, %27 : vector<16x64xf32>
    %c0_21 = arith.constant 0 : index
    %c0_22 = arith.constant 0 : index
    %29 = vector.load %arg10[%c0_21, %c0_22] : memref<64x64xbf16, #tpu.memory_space<vmem>>, vector<64x64xbf16>
    %30 = arith.truncf %28 : vector<16x64xf32> to vector<16x64xbf16>
    %cst_23 = arith.constant dense<0.000000e+00> : vector<16x64xf32>
    %31 = tpu.matmul %30, %29, %cst_23 {dimension_numbers = #tpu.dot_dimension_numbers<[1], [0], [0], [1], [0, 0, 1, 1], [], []>} : vector<16x64xbf16>, vector<64x64xbf16>, vector<16x64xf32> -> vector<16x64xf32>
    %32 = arith.truncf %31 : vector<16x64xf32> to vector<16x64xbf16>
    %cst_24 = arith.constant dense<0.000000e+00> : vector<16x64xf32>
    %33 = tpu.matmul %18, %32, %cst_24 {dimension_numbers = #tpu.dot_dimension_numbers<[1], [0], [0], [1], [0, 0, 1, 1], [], []>} : vector<16x16xbf16>, vector<16x64xbf16>, vector<16x64xf32> -> vector<16x64xf32>
    %c0_25 = arith.constant 0 : index
    %c0_26 = arith.constant 0 : index
    %34 = vector.load %arg11[%c0_25, %c0_26] : memref<1x64xf32, #tpu.memory_space<vmem>>, vector<1x64xf32>
    %35 = vector.broadcast %34 : vector<1x64xf32> to vector<16x64xf32>
    %36 = arith.addf %33, %35 : vector<16x64xf32>
    %cst_27 = arith.constant 0.000000e+00 : f32
    %37 = vector.broadcast %cst_27 : f32 to vector<16x64xf32>
    %38 = arith.maximumf %36, %37 : vector<16x64xf32>
    %c0_28 = arith.constant 0 : index
    %c0_29 = arith.constant 0 : index
    %39 = vector.load %arg38[%c0_28, %c0_29] : memref<16x64xf32, #tpu.memory_space<vmem>>, vector<16x64xf32>
    %40 = arith.mulf %38, %39 : vector<16x64xf32>
    %c0_30 = arith.constant 0 : index
    %c0_31 = arith.constant 0 : index
    %41 = vector.load %arg3[%c0_30, %c0_31] : memref<8x16xbf16, #tpu.memory_space<vmem>>, vector<8x16xbf16>
    %42 = arith.truncf %40 : vector<16x64xf32> to vector<16x64xbf16>
    %cst_32 = arith.constant dense<0.000000e+00> : vector<8x64xf32>
    %43 = tpu.matmul %41, %42, %cst_32 {dimension_numbers = #tpu.dot_dimension_numbers<[1], [0], [0], [1], [0, 0, 1, 1], [], []>} : vector<8x16xbf16>, vector<16x64xbf16>, vector<8x64xf32> -> vector<8x64xf32>
    %44 = tpu.iota {dimensions = array<i32: 1>} : vector<8x128xi32>
    %c64_i32 = arith.constant 64 : i32
    %45 = vector.broadcast %c64_i32 : i32 to vector<8x128xi32>
    %46 = arith.cmpi sge, %44, %45 : vector<8x128xi32>
    %c96_i32 = arith.constant 96 : i32
    %47 = vector.broadcast %c96_i32 : i32 to vector<8x128xi32>
    %48 = arith.cmpi slt, %44, %47 : vector<8x128xi32>
    %49 = arith.andi %46, %48 : vector<8x128xi1>
    %c0_33 = arith.constant 0 : index
    %c0_34 = arith.constant 0 : index
    %50 = vector.load %arg12[%c0_33, %c0_34] : memref<32x128xbf16, #tpu.memory_space<vmem>>, vector<32x128xbf16>
    %51 = arith.truncf %17 : vector<64x32xf32> to vector<64x32xbf16>
    %cst_35 = arith.constant dense<0.000000e+00> : vector<64x128xf32>
    %52 = tpu.matmul %51, %50, %cst_35 {dimension_numbers = #tpu.dot_dimension_numbers<[1], [0], [0], [1], [0, 0, 1, 1], [], []>} : vector<64x32xbf16>, vector<32x128xbf16>, vector<64x128xf32> -> vector<64x128xf32>
    %c0_36 = arith.constant 0 : index
    %c0_37 = arith.constant 0 : index
    %53 = vector.load %arg16[%c0_36, %c0_37] : memref<1x128xf32, #tpu.memory_space<vmem>>, vector<1x128xf32>
    %54 = vector.broadcast %53 : vector<1x128xf32> to vector<64x128xf32>
    %55 = arith.addf %52, %54 : vector<64x128xf32>
    %c0_38 = arith.constant 0 : index
    %c0_39 = arith.constant 0 : index
    %56 = vector.load %arg13[%c0_38, %c0_39] : memref<32x128xbf16, #tpu.memory_space<vmem>>, vector<32x128xbf16>
    %57 = arith.truncf %17 : vector<64x32xf32> to vector<64x32xbf16>
    %cst_40 = arith.constant dense<0.000000e+00> : vector<64x128xf32>
    %58 = tpu.matmul %57, %56, %cst_40 {dimension_numbers = #tpu.dot_dimension_numbers<[1], [0], [0], [1], [0, 0, 1, 1], [], []>} : vector<64x32xbf16>, vector<32x128xbf16>, vector<64x128xf32> -> vector<64x128xf32>
    %c0_41 = arith.constant 0 : index
    %c0_42 = arith.constant 0 : index
    %59 = vector.load %arg17[%c0_41, %c0_42] : memref<1x128xf32, #tpu.memory_space<vmem>>, vector<1x128xf32>
    %60 = vector.broadcast %59 : vector<1x128xf32> to vector<64x128xf32>
    %61 = arith.addf %58, %60 : vector<64x128xf32>
    %c0_43 = arith.constant 0 : index
    %c0_44 = arith.constant 0 : index
    %62 = vector.load %arg14[%c0_43, %c0_44] : memref<32x128xbf16, #tpu.memory_space<vmem>>, vector<32x128xbf16>
    %c0_45 = arith.constant 0 : index
    %c0_46 = arith.constant 0 : index
    %63 = vector.load %arg15[%c0_45, %c0_46] : memref<32x128xbf16, #tpu.memory_space<vmem>>, vector<32x128xbf16>
    %cst_47 = arith.constant 0.000000e+00 : f32
    %64 = vector.broadcast %cst_47 : f32 to vector<8x32xf32>
    %cst_48 = arith.constant 0.000000e+00 : f32
    %65 = vector.broadcast %cst_48 : f32 to vector<8x32xf32>
    %66 = vector.extract_strided_slice %55 {offsets = [0, 0], sizes = [8, 128], strides = [1, 1]} : vector<64x128xf32> to vector<8x128xf32>
    %67 = arith.truncf %64 : vector<8x32xf32> to vector<8x32xbf16>
    %cst_49 = arith.constant dense<0.000000e+00> : vector<8x128xf32>
    %68 = tpu.matmul %67, %62, %cst_49 {dimension_numbers = #tpu.dot_dimension_numbers<[1], [0], [0], [1], [0, 0, 1, 1], [], []>} : vector<8x32xbf16>, vector<32x128xbf16>, vector<8x128xf32> -> vector<8x128xf32>
    %69 = arith.addf %66, %68 : vector<8x128xf32>
    %70 = math.tanh %69 : vector<8x128xf32>
    %71 = arith.negf %69 : vector<8x128xf32>
    %72 = math.exp %71 : vector<8x128xf32>
    %cst_50 = arith.constant 1.000000e+00 : f32
    %73 = vector.broadcast %cst_50 : f32 to vector<8x128xf32>
    %74 = arith.addf %73, %72 : vector<8x128xf32>
    %75 = arith.divf %73, %74 : vector<8x128xf32>
    %76 = arith.select %49, %70, %75 : vector<8x128xi1>, vector<8x128xf32>
    %77 = vector.extract_strided_slice %76 {offsets = [0, 0], sizes = [8, 32], strides = [1, 1]} : vector<8x128xf32> to vector<8x32xf32>
    %78 = vector.extract_strided_slice %76 {offsets = [0, 32], sizes = [8, 32], strides = [1, 1]} : vector<8x128xf32> to vector<8x32xf32>
    %79 = vector.extract_strided_slice %76 {offsets = [0, 64], sizes = [8, 32], strides = [1, 1]} : vector<8x128xf32> to vector<8x32xf32>
    %80 = vector.extract_strided_slice %76 {offsets = [0, 96], sizes = [8, 32], strides = [1, 1]} : vector<8x128xf32> to vector<8x32xf32>
    %81 = arith.mulf %78, %65 : vector<8x32xf32>
    %82 = arith.mulf %77, %79 : vector<8x32xf32>
    %83 = arith.addf %81, %82 : vector<8x32xf32>
    %84 = math.tanh %83 : vector<8x32xf32>
    %85 = arith.mulf %80, %84 : vector<8x32xf32>
    %86 = vector.extract_strided_slice %61 {offsets = [56, 0], sizes = [8, 128], strides = [1, 1]} : vector<64x128xf32> to vector<8x128xf32>
    %87 = arith.truncf %64 : vector<8x32xf32> to vector<8x32xbf16>
    %cst_51 = arith.constant dense<0.000000e+00> : vector<8x128xf32>
    %88 = tpu.matmul %87, %63, %cst_51 {dimension_numbers = #tpu.dot_dimension_numbers<[1], [0], [0], [1], [0, 0, 1, 1], [], []>} : vector<8x32xbf16>, vector<32x128xbf16>, vector<8x128xf32> -> vector<8x128xf32>
    %89 = arith.addf %86, %88 : vector<8x128xf32>
    %90 = math.tanh %89 : vector<8x128xf32>
    %91 = arith.negf %89 : vector<8x128xf32>
    %92 = math.exp %91 : vector<8x128xf32>
    %cst_52 = arith.constant 1.000000e+00 : f32
    %93 = vector.broadcast %cst_52 : f32 to vector<8x128xf32>
    %94 = arith.addf %93, %92 : vector<8x128xf32>
    %95 = arith.divf %93, %94 : vector<8x128xf32>
    %96 = arith.select %49, %90, %95 : vector<8x128xi1>, vector<8x128xf32>
    %97 = vector.extract_strided_slice %96 {offsets = [0, 0], sizes = [8, 32], strides = [1, 1]} : vector<8x128xf32> to vector<8x32xf32>
    %98 = vector.extract_strided_slice %96 {offsets = [0, 32], sizes = [8, 32], strides = [1, 1]} : vector<8x128xf32> to vector<8x32xf32>
    %99 = vector.extract_strided_slice %96 {offsets = [0, 64], sizes = [8, 32], strides = [1, 1]} : vector<8x128xf32> to vector<8x32xf32>
    %100 = vector.extract_strided_slice %96 {offsets = [0, 96], sizes = [8, 32], strides = [1, 1]} : vector<8x128xf32> to vector<8x32xf32>
    %101 = arith.mulf %98, %65 : vector<8x32xf32>
    %102 = arith.mulf %97, %99 : vector<8x32xf32>
    %103 = arith.addf %101, %102 : vector<8x32xf32>
    %104 = math.tanh %103 : vector<8x32xf32>
    %105 = arith.mulf %100, %104 : vector<8x32xf32>
    %106 = vector.extract_strided_slice %55 {offsets = [8, 0], sizes = [8, 128], strides = [1, 1]} : vector<64x128xf32> to vector<8x128xf32>
    %107 = arith.truncf %85 : vector<8x32xf32> to vector<8x32xbf16>
    %cst_53 = arith.constant dense<0.000000e+00> : vector<8x128xf32>
    %108 = tpu.matmul %107, %62, %cst_53 {dimension_numbers = #tpu.dot_dimension_numbers<[1], [0], [0], [1], [0, 0, 1, 1], [], []>} : vector<8x32xbf16>, vector<32x128xbf16>, vector<8x128xf32> -> vector<8x128xf32>
    %109 = arith.addf %106, %108 : vector<8x128xf32>
    %110 = math.tanh %109 : vector<8x128xf32>
    %111 = arith.negf %109 : vector<8x128xf32>
    %112 = math.exp %111 : vector<8x128xf32>
    %cst_54 = arith.constant 1.000000e+00 : f32
    %113 = vector.broadcast %cst_54 : f32 to vector<8x128xf32>
    %114 = arith.addf %113, %112 : vector<8x128xf32>
    %115 = arith.divf %113, %114 : vector<8x128xf32>
    %116 = arith.select %49, %110, %115 : vector<8x128xi1>, vector<8x128xf32>
    %117 = vector.extract_strided_slice %116 {offsets = [0, 0], sizes = [8, 32], strides = [1, 1]} : vector<8x128xf32> to vector<8x32xf32>
    %118 = vector.extract_strided_slice %116 {offsets = [0, 32], sizes = [8, 32], strides = [1, 1]} : vector<8x128xf32> to vector<8x32xf32>
    %119 = vector.extract_strided_slice %116 {offsets = [0, 64], sizes = [8, 32], strides = [1, 1]} : vector<8x128xf32> to vector<8x32xf32>
    %120 = vector.extract_strided_slice %116 {offsets = [0, 96], sizes = [8, 32], strides = [1, 1]} : vector<8x128xf32> to vector<8x32xf32>
    %121 = arith.mulf %118, %83 : vector<8x32xf32>
    %122 = arith.mulf %117, %119 : vector<8x32xf32>
    %123 = arith.addf %121, %122 : vector<8x32xf32>
    %124 = math.tanh %123 : vector<8x32xf32>
    %125 = arith.mulf %120, %124 : vector<8x32xf32>
    %126 = vector.extract_strided_slice %61 {offsets = [48, 0], sizes = [8, 128], strides = [1, 1]} : vector<64x128xf32> to vector<8x128xf32>
    %127 = arith.truncf %105 : vector<8x32xf32> to vector<8x32xbf16>
    %cst_55 = arith.constant dense<0.000000e+00> : vector<8x128xf32>
    %128 = tpu.matmul %127, %63, %cst_55 {dimension_numbers = #tpu.dot_dimension_numbers<[1], [0], [0], [1], [0, 0, 1, 1], [], []>} : vector<8x32xbf16>, vector<32x128xbf16>, vector<8x128xf32> -> vector<8x128xf32>
    %129 = arith.addf %126, %128 : vector<8x128xf32>
    %130 = math.tanh %129 : vector<8x128xf32>
    %131 = arith.negf %129 : vector<8x128xf32>
    %132 = math.exp %131 : vector<8x128xf32>
    %cst_56 = arith.constant 1.000000e+00 : f32
    %133 = vector.broadcast %cst_56 : f32 to vector<8x128xf32>
    %134 = arith.addf %133, %132 : vector<8x128xf32>
    %135 = arith.divf %133, %134 : vector<8x128xf32>
    %136 = arith.select %49, %130, %135 : vector<8x128xi1>, vector<8x128xf32>
    %137 = vector.extract_strided_slice %136 {offsets = [0, 0], sizes = [8, 32], strides = [1, 1]} : vector<8x128xf32> to vector<8x32xf32>
    %138 = vector.extract_strided_slice %136 {offsets = [0, 32], sizes = [8, 32], strides = [1, 1]} : vector<8x128xf32> to vector<8x32xf32>
    %139 = vector.extract_strided_slice %136 {offsets = [0, 64], sizes = [8, 32], strides = [1, 1]} : vector<8x128xf32> to vector<8x32xf32>
    %140 = vector.extract_strided_slice %136 {offsets = [0, 96], sizes = [8, 32], strides = [1, 1]} : vector<8x128xf32> to vector<8x32xf32>
    %141 = arith.mulf %138, %103 : vector<8x32xf32>
    %142 = arith.mulf %137, %139 : vector<8x32xf32>
    %143 = arith.addf %141, %142 : vector<8x32xf32>
    %144 = math.tanh %143 : vector<8x32xf32>
    %145 = arith.mulf %140, %144 : vector<8x32xf32>
    %146 = vector.extract_strided_slice %55 {offsets = [16, 0], sizes = [8, 128], strides = [1, 1]} : vector<64x128xf32> to vector<8x128xf32>
    %147 = arith.truncf %125 : vector<8x32xf32> to vector<8x32xbf16>
    %cst_57 = arith.constant dense<0.000000e+00> : vector<8x128xf32>
    %148 = tpu.matmul %147, %62, %cst_57 {dimension_numbers = #tpu.dot_dimension_numbers<[1], [0], [0], [1], [0, 0, 1, 1], [], []>} : vector<8x32xbf16>, vector<32x128xbf16>, vector<8x128xf32> -> vector<8x128xf32>
    %149 = arith.addf %146, %148 : vector<8x128xf32>
    %150 = math.tanh %149 : vector<8x128xf32>
    %151 = arith.negf %149 : vector<8x128xf32>
    %152 = math.exp %151 : vector<8x128xf32>
    %cst_58 = arith.constant 1.000000e+00 : f32
    %153 = vector.broadcast %cst_58 : f32 to vector<8x128xf32>
    %154 = arith.addf %153, %152 : vector<8x128xf32>
    %155 = arith.divf %153, %154 : vector<8x128xf32>
    %156 = arith.select %49, %150, %155 : vector<8x128xi1>, vector<8x128xf32>
    %157 = vector.extract_strided_slice %156 {offsets = [0, 0], sizes = [8, 32], strides = [1, 1]} : vector<8x128xf32> to vector<8x32xf32>
    %158 = vector.extract_strided_slice %156 {offsets = [0, 32], sizes = [8, 32], strides = [1, 1]} : vector<8x128xf32> to vector<8x32xf32>
    %159 = vector.extract_strided_slice %156 {offsets = [0, 64], sizes = [8, 32], strides = [1, 1]} : vector<8x128xf32> to vector<8x32xf32>
    %160 = vector.extract_strided_slice %156 {offsets = [0, 96], sizes = [8, 32], strides = [1, 1]} : vector<8x128xf32> to vector<8x32xf32>
    %161 = arith.mulf %158, %123 : vector<8x32xf32>
    %162 = arith.mulf %157, %159 : vector<8x32xf32>
    %163 = arith.addf %161, %162 : vector<8x32xf32>
    %164 = math.tanh %163 : vector<8x32xf32>
    %165 = arith.mulf %160, %164 : vector<8x32xf32>
    %166 = vector.extract_strided_slice %61 {offsets = [40, 0], sizes = [8, 128], strides = [1, 1]} : vector<64x128xf32> to vector<8x128xf32>
    %167 = arith.truncf %145 : vector<8x32xf32> to vector<8x32xbf16>
    %cst_59 = arith.constant dense<0.000000e+00> : vector<8x128xf32>
    %168 = tpu.matmul %167, %63, %cst_59 {dimension_numbers = #tpu.dot_dimension_numbers<[1], [0], [0], [1], [0, 0, 1, 1], [], []>} : vector<8x32xbf16>, vector<32x128xbf16>, vector<8x128xf32> -> vector<8x128xf32>
    %169 = arith.addf %166, %168 : vector<8x128xf32>
    %170 = math.tanh %169 : vector<8x128xf32>
    %171 = arith.negf %169 : vector<8x128xf32>
    %172 = math.exp %171 : vector<8x128xf32>
    %cst_60 = arith.constant 1.000000e+00 : f32
    %173 = vector.broadcast %cst_60 : f32 to vector<8x128xf32>
    %174 = arith.addf %173, %172 : vector<8x128xf32>
    %175 = arith.divf %173, %174 : vector<8x128xf32>
    %176 = arith.select %49, %170, %175 : vector<8x128xi1>, vector<8x128xf32>
    %177 = vector.extract_strided_slice %176 {offsets = [0, 0], sizes = [8, 32], strides = [1, 1]} : vector<8x128xf32> to vector<8x32xf32>
    %178 = vector.extract_strided_slice %176 {offsets = [0, 32], sizes = [8, 32], strides = [1, 1]} : vector<8x128xf32> to vector<8x32xf32>
    %179 = vector.extract_strided_slice %176 {offsets = [0, 64], sizes = [8, 32], strides = [1, 1]} : vector<8x128xf32> to vector<8x32xf32>
    %180 = vector.extract_strided_slice %176 {offsets = [0, 96], sizes = [8, 32], strides = [1, 1]} : vector<8x128xf32> to vector<8x32xf32>
    %181 = arith.mulf %178, %143 : vector<8x32xf32>
    %182 = arith.mulf %177, %179 : vector<8x32xf32>
    %183 = arith.addf %181, %182 : vector<8x32xf32>
    %184 = math.tanh %183 : vector<8x32xf32>
    %185 = arith.mulf %180, %184 : vector<8x32xf32>
    %186 = vector.extract_strided_slice %55 {offsets = [24, 0], sizes = [8, 128], strides = [1, 1]} : vector<64x128xf32> to vector<8x128xf32>
    %187 = arith.truncf %165 : vector<8x32xf32> to vector<8x32xbf16>
    %cst_61 = arith.constant dense<0.000000e+00> : vector<8x128xf32>
    %188 = tpu.matmul %187, %62, %cst_61 {dimension_numbers = #tpu.dot_dimension_numbers<[1], [0], [0], [1], [0, 0, 1, 1], [], []>} : vector<8x32xbf16>, vector<32x128xbf16>, vector<8x128xf32> -> vector<8x128xf32>
    %189 = arith.addf %186, %188 : vector<8x128xf32>
    %190 = math.tanh %189 : vector<8x128xf32>
    %191 = arith.negf %189 : vector<8x128xf32>
    %192 = math.exp %191 : vector<8x128xf32>
    %cst_62 = arith.constant 1.000000e+00 : f32
    %193 = vector.broadcast %cst_62 : f32 to vector<8x128xf32>
    %194 = arith.addf %193, %192 : vector<8x128xf32>
    %195 = arith.divf %193, %194 : vector<8x128xf32>
    %196 = arith.select %49, %190, %195 : vector<8x128xi1>, vector<8x128xf32>
    %197 = vector.extract_strided_slice %196 {offsets = [0, 0], sizes = [8, 32], strides = [1, 1]} : vector<8x128xf32> to vector<8x32xf32>
    %198 = vector.extract_strided_slice %196 {offsets = [0, 32], sizes = [8, 32], strides = [1, 1]} : vector<8x128xf32> to vector<8x32xf32>
    %199 = vector.extract_strided_slice %196 {offsets = [0, 64], sizes = [8, 32], strides = [1, 1]} : vector<8x128xf32> to vector<8x32xf32>
    %200 = vector.extract_strided_slice %196 {offsets = [0, 96], sizes = [8, 32], strides = [1, 1]} : vector<8x128xf32> to vector<8x32xf32>
    %201 = arith.mulf %198, %163 : vector<8x32xf32>
    %202 = arith.mulf %197, %199 : vector<8x32xf32>
    %203 = arith.addf %201, %202 : vector<8x32xf32>
    %204 = math.tanh %203 : vector<8x32xf32>
    %205 = arith.mulf %200, %204 : vector<8x32xf32>
    %206 = vector.extract_strided_slice %61 {offsets = [32, 0], sizes = [8, 128], strides = [1, 1]} : vector<64x128xf32> to vector<8x128xf32>
    %207 = arith.truncf %185 : vector<8x32xf32> to vector<8x32xbf16>
    %cst_63 = arith.constant dense<0.000000e+00> : vector<8x128xf32>
    %208 = tpu.matmul %207, %63, %cst_63 {dimension_numbers = #tpu.dot_dimension_numbers<[1], [0], [0], [1], [0, 0, 1, 1], [], []>} : vector<8x32xbf16>, vector<32x128xbf16>, vector<8x128xf32> -> vector<8x128xf32>
    %209 = arith.addf %206, %208 : vector<8x128xf32>
    %210 = math.tanh %209 : vector<8x128xf32>
    %211 = arith.negf %209 : vector<8x128xf32>
    %212 = math.exp %211 : vector<8x128xf32>
    %cst_64 = arith.constant 1.000000e+00 : f32
    %213 = vector.broadcast %cst_64 : f32 to vector<8x128xf32>
    %214 = arith.addf %213, %212 : vector<8x128xf32>
    %215 = arith.divf %213, %214 : vector<8x128xf32>
    %216 = arith.select %49, %210, %215 : vector<8x128xi1>, vector<8x128xf32>
    %217 = vector.extract_strided_slice %216 {offsets = [0, 0], sizes = [8, 32], strides = [1, 1]} : vector<8x128xf32> to vector<8x32xf32>
    %218 = vector.extract_strided_slice %216 {offsets = [0, 32], sizes = [8, 32], strides = [1, 1]} : vector<8x128xf32> to vector<8x32xf32>
    %219 = vector.extract_strided_slice %216 {offsets = [0, 64], sizes = [8, 32], strides = [1, 1]} : vector<8x128xf32> to vector<8x32xf32>
    %220 = vector.extract_strided_slice %216 {offsets = [0, 96], sizes = [8, 32], strides = [1, 1]} : vector<8x128xf32> to vector<8x32xf32>
    %221 = arith.mulf %218, %183 : vector<8x32xf32>
    %222 = arith.mulf %217, %219 : vector<8x32xf32>
    %223 = arith.addf %221, %222 : vector<8x32xf32>
    %224 = math.tanh %223 : vector<8x32xf32>
    %225 = arith.mulf %220, %224 : vector<8x32xf32>
    %226 = vector.extract_strided_slice %55 {offsets = [32, 0], sizes = [8, 128], strides = [1, 1]} : vector<64x128xf32> to vector<8x128xf32>
    %227 = arith.truncf %205 : vector<8x32xf32> to vector<8x32xbf16>
    %cst_65 = arith.constant dense<0.000000e+00> : vector<8x128xf32>
    %228 = tpu.matmul %227, %62, %cst_65 {dimension_numbers = #tpu.dot_dimension_numbers<[1], [0], [0], [1], [0, 0, 1, 1], [], []>} : vector<8x32xbf16>, vector<32x128xbf16>, vector<8x128xf32> -> vector<8x128xf32>
    %229 = arith.addf %226, %228 : vector<8x128xf32>
    %230 = math.tanh %229 : vector<8x128xf32>
    %231 = arith.negf %229 : vector<8x128xf32>
    %232 = math.exp %231 : vector<8x128xf32>
    %cst_66 = arith.constant 1.000000e+00 : f32
    %233 = vector.broadcast %cst_66 : f32 to vector<8x128xf32>
    %234 = arith.addf %233, %232 : vector<8x128xf32>
    %235 = arith.divf %233, %234 : vector<8x128xf32>
    %236 = arith.select %49, %230, %235 : vector<8x128xi1>, vector<8x128xf32>
    %237 = vector.extract_strided_slice %236 {offsets = [0, 0], sizes = [8, 32], strides = [1, 1]} : vector<8x128xf32> to vector<8x32xf32>
    %238 = vector.extract_strided_slice %236 {offsets = [0, 32], sizes = [8, 32], strides = [1, 1]} : vector<8x128xf32> to vector<8x32xf32>
    %239 = vector.extract_strided_slice %236 {offsets = [0, 64], sizes = [8, 32], strides = [1, 1]} : vector<8x128xf32> to vector<8x32xf32>
    %240 = vector.extract_strided_slice %236 {offsets = [0, 96], sizes = [8, 32], strides = [1, 1]} : vector<8x128xf32> to vector<8x32xf32>
    %241 = arith.mulf %238, %203 : vector<8x32xf32>
    %242 = arith.mulf %237, %239 : vector<8x32xf32>
    %243 = arith.addf %241, %242 : vector<8x32xf32>
    %244 = math.tanh %243 : vector<8x32xf32>
    %245 = arith.mulf %240, %244 : vector<8x32xf32>
    %246 = vector.extract_strided_slice %61 {offsets = [24, 0], sizes = [8, 128], strides = [1, 1]} : vector<64x128xf32> to vector<8x128xf32>
    %247 = arith.truncf %225 : vector<8x32xf32> to vector<8x32xbf16>
    %cst_67 = arith.constant dense<0.000000e+00> : vector<8x128xf32>
    %248 = tpu.matmul %247, %63, %cst_67 {dimension_numbers = #tpu.dot_dimension_numbers<[1], [0], [0], [1], [0, 0, 1, 1], [], []>} : vector<8x32xbf16>, vector<32x128xbf16>, vector<8x128xf32> -> vector<8x128xf32>
    %249 = arith.addf %246, %248 : vector<8x128xf32>
    %250 = math.tanh %249 : vector<8x128xf32>
    %251 = arith.negf %249 : vector<8x128xf32>
    %252 = math.exp %251 : vector<8x128xf32>
    %cst_68 = arith.constant 1.000000e+00 : f32
    %253 = vector.broadcast %cst_68 : f32 to vector<8x128xf32>
    %254 = arith.addf %253, %252 : vector<8x128xf32>
    %255 = arith.divf %253, %254 : vector<8x128xf32>
    %256 = arith.select %49, %250, %255 : vector<8x128xi1>, vector<8x128xf32>
    %257 = vector.extract_strided_slice %256 {offsets = [0, 0], sizes = [8, 32], strides = [1, 1]} : vector<8x128xf32> to vector<8x32xf32>
    %258 = vector.extract_strided_slice %256 {offsets = [0, 32], sizes = [8, 32], strides = [1, 1]} : vector<8x128xf32> to vector<8x32xf32>
    %259 = vector.extract_strided_slice %256 {offsets = [0, 64], sizes = [8, 32], strides = [1, 1]} : vector<8x128xf32> to vector<8x32xf32>
    %260 = vector.extract_strided_slice %256 {offsets = [0, 96], sizes = [8, 32], strides = [1, 1]} : vector<8x128xf32> to vector<8x32xf32>
    %261 = arith.mulf %258, %223 : vector<8x32xf32>
    %262 = arith.mulf %257, %259 : vector<8x32xf32>
    %263 = arith.addf %261, %262 : vector<8x32xf32>
    %264 = math.tanh %263 : vector<8x32xf32>
    %265 = arith.mulf %260, %264 : vector<8x32xf32>
    %266 = vector.extract_strided_slice %55 {offsets = [40, 0], sizes = [8, 128], strides = [1, 1]} : vector<64x128xf32> to vector<8x128xf32>
    %267 = arith.truncf %245 : vector<8x32xf32> to vector<8x32xbf16>
    %cst_69 = arith.constant dense<0.000000e+00> : vector<8x128xf32>
    %268 = tpu.matmul %267, %62, %cst_69 {dimension_numbers = #tpu.dot_dimension_numbers<[1], [0], [0], [1], [0, 0, 1, 1], [], []>} : vector<8x32xbf16>, vector<32x128xbf16>, vector<8x128xf32> -> vector<8x128xf32>
    %269 = arith.addf %266, %268 : vector<8x128xf32>
    %270 = math.tanh %269 : vector<8x128xf32>
    %271 = arith.negf %269 : vector<8x128xf32>
    %272 = math.exp %271 : vector<8x128xf32>
    %cst_70 = arith.constant 1.000000e+00 : f32
    %273 = vector.broadcast %cst_70 : f32 to vector<8x128xf32>
    %274 = arith.addf %273, %272 : vector<8x128xf32>
    %275 = arith.divf %273, %274 : vector<8x128xf32>
    %276 = arith.select %49, %270, %275 : vector<8x128xi1>, vector<8x128xf32>
    %277 = vector.extract_strided_slice %276 {offsets = [0, 0], sizes = [8, 32], strides = [1, 1]} : vector<8x128xf32> to vector<8x32xf32>
    %278 = vector.extract_strided_slice %276 {offsets = [0, 32], sizes = [8, 32], strides = [1, 1]} : vector<8x128xf32> to vector<8x32xf32>
    %279 = vector.extract_strided_slice %276 {offsets = [0, 64], sizes = [8, 32], strides = [1, 1]} : vector<8x128xf32> to vector<8x32xf32>
    %280 = vector.extract_strided_slice %276 {offsets = [0, 96], sizes = [8, 32], strides = [1, 1]} : vector<8x128xf32> to vector<8x32xf32>
    %281 = arith.mulf %278, %243 : vector<8x32xf32>
    %282 = arith.mulf %277, %279 : vector<8x32xf32>
    %283 = arith.addf %281, %282 : vector<8x32xf32>
    %284 = math.tanh %283 : vector<8x32xf32>
    %285 = arith.mulf %280, %284 : vector<8x32xf32>
    %286 = vector.extract_strided_slice %61 {offsets = [16, 0], sizes = [8, 128], strides = [1, 1]} : vector<64x128xf32> to vector<8x128xf32>
    %287 = arith.truncf %265 : vector<8x32xf32> to vector<8x32xbf16>
    %cst_71 = arith.constant dense<0.000000e+00> : vector<8x128xf32>
    %288 = tpu.matmul %287, %63, %cst_71 {dimension_numbers = #tpu.dot_dimension_numbers<[1], [0], [0], [1], [0, 0, 1, 1], [], []>} : vector<8x32xbf16>, vector<32x128xbf16>, vector<8x128xf32> -> vector<8x128xf32>
    %289 = arith.addf %286, %288 : vector<8x128xf32>
    %290 = math.tanh %289 : vector<8x128xf32>
    %291 = arith.negf %289 : vector<8x128xf32>
    %292 = math.exp %291 : vector<8x128xf32>
    %cst_72 = arith.constant 1.000000e+00 : f32
    %293 = vector.broadcast %cst_72 : f32 to vector<8x128xf32>
    %294 = arith.addf %293, %292 : vector<8x128xf32>
    %295 = arith.divf %293, %294 : vector<8x128xf32>
    %296 = arith.select %49, %290, %295 : vector<8x128xi1>, vector<8x128xf32>
    %297 = vector.extract_strided_slice %296 {offsets = [0, 0], sizes = [8, 32], strides = [1, 1]} : vector<8x128xf32> to vector<8x32xf32>
    %298 = vector.extract_strided_slice %296 {offsets = [0, 32], sizes = [8, 32], strides = [1, 1]} : vector<8x128xf32> to vector<8x32xf32>
    %299 = vector.extract_strided_slice %296 {offsets = [0, 64], sizes = [8, 32], strides = [1, 1]} : vector<8x128xf32> to vector<8x32xf32>
    %300 = vector.extract_strided_slice %296 {offsets = [0, 96], sizes = [8, 32], strides = [1, 1]} : vector<8x128xf32> to vector<8x32xf32>
    %301 = arith.mulf %298, %263 : vector<8x32xf32>
    %302 = arith.mulf %297, %299 : vector<8x32xf32>
    %303 = arith.addf %301, %302 : vector<8x32xf32>
    %304 = math.tanh %303 : vector<8x32xf32>
    %305 = arith.mulf %300, %304 : vector<8x32xf32>
    %306 = vector.extract_strided_slice %55 {offsets = [48, 0], sizes = [8, 128], strides = [1, 1]} : vector<64x128xf32> to vector<8x128xf32>
    %307 = arith.truncf %285 : vector<8x32xf32> to vector<8x32xbf16>
    %cst_73 = arith.constant dense<0.000000e+00> : vector<8x128xf32>
    %308 = tpu.matmul %307, %62, %cst_73 {dimension_numbers = #tpu.dot_dimension_numbers<[1], [0], [0], [1], [0, 0, 1, 1], [], []>} : vector<8x32xbf16>, vector<32x128xbf16>, vector<8x128xf32> -> vector<8x128xf32>
    %309 = arith.addf %306, %308 : vector<8x128xf32>
    %310 = math.tanh %309 : vector<8x128xf32>
    %311 = arith.negf %309 : vector<8x128xf32>
    %312 = math.exp %311 : vector<8x128xf32>
    %cst_74 = arith.constant 1.000000e+00 : f32
    %313 = vector.broadcast %cst_74 : f32 to vector<8x128xf32>
    %314 = arith.addf %313, %312 : vector<8x128xf32>
    %315 = arith.divf %313, %314 : vector<8x128xf32>
    %316 = arith.select %49, %310, %315 : vector<8x128xi1>, vector<8x128xf32>
    %317 = vector.extract_strided_slice %316 {offsets = [0, 0], sizes = [8, 32], strides = [1, 1]} : vector<8x128xf32> to vector<8x32xf32>
    %318 = vector.extract_strided_slice %316 {offsets = [0, 32], sizes = [8, 32], strides = [1, 1]} : vector<8x128xf32> to vector<8x32xf32>
    %319 = vector.extract_strided_slice %316 {offsets = [0, 64], sizes = [8, 32], strides = [1, 1]} : vector<8x128xf32> to vector<8x32xf32>
    %320 = vector.extract_strided_slice %316 {offsets = [0, 96], sizes = [8, 32], strides = [1, 1]} : vector<8x128xf32> to vector<8x32xf32>
    %321 = arith.mulf %318, %283 : vector<8x32xf32>
    %322 = arith.mulf %317, %319 : vector<8x32xf32>
    %323 = arith.addf %321, %322 : vector<8x32xf32>
    %324 = math.tanh %323 : vector<8x32xf32>
    %325 = arith.mulf %320, %324 : vector<8x32xf32>
    %326 = vector.extract_strided_slice %61 {offsets = [8, 0], sizes = [8, 128], strides = [1, 1]} : vector<64x128xf32> to vector<8x128xf32>
    %327 = arith.truncf %305 : vector<8x32xf32> to vector<8x32xbf16>
    %cst_75 = arith.constant dense<0.000000e+00> : vector<8x128xf32>
    %328 = tpu.matmul %327, %63, %cst_75 {dimension_numbers = #tpu.dot_dimension_numbers<[1], [0], [0], [1], [0, 0, 1, 1], [], []>} : vector<8x32xbf16>, vector<32x128xbf16>, vector<8x128xf32> -> vector<8x128xf32>
    %329 = arith.addf %326, %328 : vector<8x128xf32>
    %330 = math.tanh %329 : vector<8x128xf32>
    %331 = arith.negf %329 : vector<8x128xf32>
    %332 = math.exp %331 : vector<8x128xf32>
    %cst_76 = arith.constant 1.000000e+00 : f32
    %333 = vector.broadcast %cst_76 : f32 to vector<8x128xf32>
    %334 = arith.addf %333, %332 : vector<8x128xf32>
    %335 = arith.divf %333, %334 : vector<8x128xf32>
    %336 = arith.select %49, %330, %335 : vector<8x128xi1>, vector<8x128xf32>
    %337 = vector.extract_strided_slice %336 {offsets = [0, 0], sizes = [8, 32], strides = [1, 1]} : vector<8x128xf32> to vector<8x32xf32>
    %338 = vector.extract_strided_slice %336 {offsets = [0, 32], sizes = [8, 32], strides = [1, 1]} : vector<8x128xf32> to vector<8x32xf32>
    %339 = vector.extract_strided_slice %336 {offsets = [0, 64], sizes = [8, 32], strides = [1, 1]} : vector<8x128xf32> to vector<8x32xf32>
    %340 = vector.extract_strided_slice %336 {offsets = [0, 96], sizes = [8, 32], strides = [1, 1]} : vector<8x128xf32> to vector<8x32xf32>
    %341 = arith.mulf %338, %303 : vector<8x32xf32>
    %342 = arith.mulf %337, %339 : vector<8x32xf32>
    %343 = arith.addf %341, %342 : vector<8x32xf32>
    %344 = math.tanh %343 : vector<8x32xf32>
    %345 = arith.mulf %340, %344 : vector<8x32xf32>
    %346 = vector.extract_strided_slice %55 {offsets = [56, 0], sizes = [8, 128], strides = [1, 1]} : vector<64x128xf32> to vector<8x128xf32>
    %347 = arith.truncf %325 : vector<8x32xf32> to vector<8x32xbf16>
    %cst_77 = arith.constant dense<0.000000e+00> : vector<8x128xf32>
    %348 = tpu.matmul %347, %62, %cst_77 {dimension_numbers = #tpu.dot_dimension_numbers<[1], [0], [0], [1], [0, 0, 1, 1], [], []>} : vector<8x32xbf16>, vector<32x128xbf16>, vector<8x128xf32> -> vector<8x128xf32>
    %349 = arith.addf %346, %348 : vector<8x128xf32>
    %350 = math.tanh %349 : vector<8x128xf32>
    %351 = arith.negf %349 : vector<8x128xf32>
    %352 = math.exp %351 : vector<8x128xf32>
    %cst_78 = arith.constant 1.000000e+00 : f32
    %353 = vector.broadcast %cst_78 : f32 to vector<8x128xf32>
    %354 = arith.addf %353, %352 : vector<8x128xf32>
    %355 = arith.divf %353, %354 : vector<8x128xf32>
    %356 = arith.select %49, %350, %355 : vector<8x128xi1>, vector<8x128xf32>
    %357 = vector.extract_strided_slice %356 {offsets = [0, 0], sizes = [8, 32], strides = [1, 1]} : vector<8x128xf32> to vector<8x32xf32>
    %358 = vector.extract_strided_slice %356 {offsets = [0, 32], sizes = [8, 32], strides = [1, 1]} : vector<8x128xf32> to vector<8x32xf32>
    %359 = vector.extract_strided_slice %356 {offsets = [0, 64], sizes = [8, 32], strides = [1, 1]} : vector<8x128xf32> to vector<8x32xf32>
    %360 = vector.extract_strided_slice %356 {offsets = [0, 96], sizes = [8, 32], strides = [1, 1]} : vector<8x128xf32> to vector<8x32xf32>
    %361 = arith.mulf %358, %323 : vector<8x32xf32>
    %362 = arith.mulf %357, %359 : vector<8x32xf32>
    %363 = arith.addf %361, %362 : vector<8x32xf32>
    %364 = math.tanh %363 : vector<8x32xf32>
    %365 = arith.mulf %360, %364 : vector<8x32xf32>
    %366 = vector.extract_strided_slice %61 {offsets = [0, 0], sizes = [8, 128], strides = [1, 1]} : vector<64x128xf32> to vector<8x128xf32>
    %367 = arith.truncf %345 : vector<8x32xf32> to vector<8x32xbf16>
    %cst_79 = arith.constant dense<0.000000e+00> : vector<8x128xf32>
    %368 = tpu.matmul %367, %63, %cst_79 {dimension_numbers = #tpu.dot_dimension_numbers<[1], [0], [0], [1], [0, 0, 1, 1], [], []>} : vector<8x32xbf16>, vector<32x128xbf16>, vector<8x128xf32> -> vector<8x128xf32>
    %369 = arith.addf %366, %368 : vector<8x128xf32>
    %370 = math.tanh %369 : vector<8x128xf32>
    %371 = arith.negf %369 : vector<8x128xf32>
    %372 = math.exp %371 : vector<8x128xf32>
    %cst_80 = arith.constant 1.000000e+00 : f32
    %373 = vector.broadcast %cst_80 : f32 to vector<8x128xf32>
    %374 = arith.addf %373, %372 : vector<8x128xf32>
    %375 = arith.divf %373, %374 : vector<8x128xf32>
    %376 = arith.select %49, %370, %375 : vector<8x128xi1>, vector<8x128xf32>
    %377 = vector.extract_strided_slice %376 {offsets = [0, 0], sizes = [8, 32], strides = [1, 1]} : vector<8x128xf32> to vector<8x32xf32>
    %378 = vector.extract_strided_slice %376 {offsets = [0, 32], sizes = [8, 32], strides = [1, 1]} : vector<8x128xf32> to vector<8x32xf32>
    %379 = vector.extract_strided_slice %376 {offsets = [0, 64], sizes = [8, 32], strides = [1, 1]} : vector<8x128xf32> to vector<8x32xf32>
    %380 = vector.extract_strided_slice %376 {offsets = [0, 96], sizes = [8, 32], strides = [1, 1]} : vector<8x128xf32> to vector<8x32xf32>
    %381 = arith.mulf %378, %343 : vector<8x32xf32>
    %382 = arith.mulf %377, %379 : vector<8x32xf32>
    %383 = arith.addf %381, %382 : vector<8x32xf32>
    %384 = math.tanh %383 : vector<8x32xf32>
    %385 = arith.mulf %380, %384 : vector<8x32xf32>
    %386 = tpu.concatenate %85, %125, %165, %205, %245, %285, %325, %365 in 0 : vector<8x32xf32>, vector<8x32xf32>, vector<8x32xf32>, vector<8x32xf32>, vector<8x32xf32>, vector<8x32xf32>, vector<8x32xf32>, vector<8x32xf32> -> vector<64x32xf32>
    %387 = tpu.concatenate %385, %345, %305, %265, %225, %185, %145, %105 in 0 : vector<8x32xf32>, vector<8x32xf32>, vector<8x32xf32>, vector<8x32xf32>, vector<8x32xf32>, vector<8x32xf32>, vector<8x32xf32>, vector<8x32xf32> -> vector<64x32xf32>
    %388 = tpu.concatenate %386, %387 in 1 : vector<64x32xf32>, vector<64x32xf32> -> vector<64x64xf32>
    %c0_81 = arith.constant 0 : index
    %c0_82 = arith.constant 0 : index
    %389 = vector.load %arg18[%c0_81, %c0_82] : memref<64x128xbf16, #tpu.memory_space<vmem>>, vector<64x128xbf16>
    %390 = arith.truncf %388 : vector<64x64xf32> to vector<64x64xbf16>
    %cst_83 = arith.constant dense<0.000000e+00> : vector<64x128xf32>
    %391 = tpu.matmul %390, %389, %cst_83 {dimension_numbers = #tpu.dot_dimension_numbers<[1], [0], [0], [1], [0, 0, 1, 1], [], []>} : vector<64x64xbf16>, vector<64x128xbf16>, vector<64x128xf32> -> vector<64x128xf32>
    %c0_84 = arith.constant 0 : index
    %c0_85 = arith.constant 0 : index
    %392 = vector.load %arg22[%c0_84, %c0_85] : memref<1x128xf32, #tpu.memory_space<vmem>>, vector<1x128xf32>
    %393 = vector.broadcast %392 : vector<1x128xf32> to vector<64x128xf32>
    %394 = arith.addf %391, %393 : vector<64x128xf32>
    %c0_86 = arith.constant 0 : index
    %c0_87 = arith.constant 0 : index
    %395 = vector.load %arg19[%c0_86, %c0_87] : memref<64x128xbf16, #tpu.memory_space<vmem>>, vector<64x128xbf16>
    %396 = arith.truncf %388 : vector<64x64xf32> to vector<64x64xbf16>
    %cst_88 = arith.constant dense<0.000000e+00> : vector<64x128xf32>
    %397 = tpu.matmul %396, %395, %cst_88 {dimension_numbers = #tpu.dot_dimension_numbers<[1], [0], [0], [1], [0, 0, 1, 1], [], []>} : vector<64x64xbf16>, vector<64x128xbf16>, vector<64x128xf32> -> vector<64x128xf32>
    %c0_89 = arith.constant 0 : index
    %c0_90 = arith.constant 0 : index
    %398 = vector.load %arg23[%c0_89, %c0_90] : memref<1x128xf32, #tpu.memory_space<vmem>>, vector<1x128xf32>
    %399 = vector.broadcast %398 : vector<1x128xf32> to vector<64x128xf32>
    %400 = arith.addf %397, %399 : vector<64x128xf32>
    %c0_91 = arith.constant 0 : index
    %c0_92 = arith.constant 0 : index
    %401 = vector.load %arg20[%c0_91, %c0_92] : memref<32x128xbf16, #tpu.memory_space<vmem>>, vector<32x128xbf16>
    %c0_93 = arith.constant 0 : index
    %c0_94 = arith.constant 0 : index
    %402 = vector.load %arg21[%c0_93, %c0_94] : memref<32x128xbf16, #tpu.memory_space<vmem>>, vector<32x128xbf16>
    %cst_95 = arith.constant 0.000000e+00 : f32
    %403 = vector.broadcast %cst_95 : f32 to vector<8x32xf32>
    %cst_96 = arith.constant 0.000000e+00 : f32
    %404 = vector.broadcast %cst_96 : f32 to vector<8x32xf32>
    %405 = vector.extract_strided_slice %394 {offsets = [0, 0], sizes = [8, 128], strides = [1, 1]} : vector<64x128xf32> to vector<8x128xf32>
    %406 = arith.truncf %403 : vector<8x32xf32> to vector<8x32xbf16>
    %cst_97 = arith.constant dense<0.000000e+00> : vector<8x128xf32>
    %407 = tpu.matmul %406, %401, %cst_97 {dimension_numbers = #tpu.dot_dimension_numbers<[1], [0], [0], [1], [0, 0, 1, 1], [], []>} : vector<8x32xbf16>, vector<32x128xbf16>, vector<8x128xf32> -> vector<8x128xf32>
    %408 = arith.addf %405, %407 : vector<8x128xf32>
    %409 = math.tanh %408 : vector<8x128xf32>
    %410 = arith.negf %408 : vector<8x128xf32>
    %411 = math.exp %410 : vector<8x128xf32>
    %cst_98 = arith.constant 1.000000e+00 : f32
    %412 = vector.broadcast %cst_98 : f32 to vector<8x128xf32>
    %413 = arith.addf %412, %411 : vector<8x128xf32>
    %414 = arith.divf %412, %413 : vector<8x128xf32>
    %415 = arith.select %49, %409, %414 : vector<8x128xi1>, vector<8x128xf32>
    %416 = vector.extract_strided_slice %415 {offsets = [0, 0], sizes = [8, 32], strides = [1, 1]} : vector<8x128xf32> to vector<8x32xf32>
    %417 = vector.extract_strided_slice %415 {offsets = [0, 32], sizes = [8, 32], strides = [1, 1]} : vector<8x128xf32> to vector<8x32xf32>
    %418 = vector.extract_strided_slice %415 {offsets = [0, 64], sizes = [8, 32], strides = [1, 1]} : vector<8x128xf32> to vector<8x32xf32>
    %419 = vector.extract_strided_slice %415 {offsets = [0, 96], sizes = [8, 32], strides = [1, 1]} : vector<8x128xf32> to vector<8x32xf32>
    %420 = arith.mulf %417, %404 : vector<8x32xf32>
    %421 = arith.mulf %416, %418 : vector<8x32xf32>
    %422 = arith.addf %420, %421 : vector<8x32xf32>
    %423 = math.tanh %422 : vector<8x32xf32>
    %424 = arith.mulf %419, %423 : vector<8x32xf32>
    %425 = vector.extract_strided_slice %400 {offsets = [56, 0], sizes = [8, 128], strides = [1, 1]} : vector<64x128xf32> to vector<8x128xf32>
    %426 = arith.truncf %403 : vector<8x32xf32> to vector<8x32xbf16>
    %cst_99 = arith.constant dense<0.000000e+00> : vector<8x128xf32>
    %427 = tpu.matmul %426, %402, %cst_99 {dimension_numbers = #tpu.dot_dimension_numbers<[1], [0], [0], [1], [0, 0, 1, 1], [], []>} : vector<8x32xbf16>, vector<32x128xbf16>, vector<8x128xf32> -> vector<8x128xf32>
    %428 = arith.addf %425, %427 : vector<8x128xf32>
    %429 = math.tanh %428 : vector<8x128xf32>
    %430 = arith.negf %428 : vector<8x128xf32>
    %431 = math.exp %430 : vector<8x128xf32>
    %cst_100 = arith.constant 1.000000e+00 : f32
    %432 = vector.broadcast %cst_100 : f32 to vector<8x128xf32>
    %433 = arith.addf %432, %431 : vector<8x128xf32>
    %434 = arith.divf %432, %433 : vector<8x128xf32>
    %435 = arith.select %49, %429, %434 : vector<8x128xi1>, vector<8x128xf32>
    %436 = vector.extract_strided_slice %435 {offsets = [0, 0], sizes = [8, 32], strides = [1, 1]} : vector<8x128xf32> to vector<8x32xf32>
    %437 = vector.extract_strided_slice %435 {offsets = [0, 32], sizes = [8, 32], strides = [1, 1]} : vector<8x128xf32> to vector<8x32xf32>
    %438 = vector.extract_strided_slice %435 {offsets = [0, 64], sizes = [8, 32], strides = [1, 1]} : vector<8x128xf32> to vector<8x32xf32>
    %439 = vector.extract_strided_slice %435 {offsets = [0, 96], sizes = [8, 32], strides = [1, 1]} : vector<8x128xf32> to vector<8x32xf32>
    %440 = arith.mulf %437, %404 : vector<8x32xf32>
    %441 = arith.mulf %436, %438 : vector<8x32xf32>
    %442 = arith.addf %440, %441 : vector<8x32xf32>
    %443 = math.tanh %442 : vector<8x32xf32>
    %444 = arith.mulf %439, %443 : vector<8x32xf32>
    %445 = vector.extract_strided_slice %394 {offsets = [8, 0], sizes = [8, 128], strides = [1, 1]} : vector<64x128xf32> to vector<8x128xf32>
    %446 = arith.truncf %424 : vector<8x32xf32> to vector<8x32xbf16>
    %cst_101 = arith.constant dense<0.000000e+00> : vector<8x128xf32>
    %447 = tpu.matmul %446, %401, %cst_101 {dimension_numbers = #tpu.dot_dimension_numbers<[1], [0], [0], [1], [0, 0, 1, 1], [], []>} : vector<8x32xbf16>, vector<32x128xbf16>, vector<8x128xf32> -> vector<8x128xf32>
    %448 = arith.addf %445, %447 : vector<8x128xf32>
    %449 = math.tanh %448 : vector<8x128xf32>
    %450 = arith.negf %448 : vector<8x128xf32>
    %451 = math.exp %450 : vector<8x128xf32>
    %cst_102 = arith.constant 1.000000e+00 : f32
    %452 = vector.broadcast %cst_102 : f32 to vector<8x128xf32>
    %453 = arith.addf %452, %451 : vector<8x128xf32>
    %454 = arith.divf %452, %453 : vector<8x128xf32>
    %455 = arith.select %49, %449, %454 : vector<8x128xi1>, vector<8x128xf32>
    %456 = vector.extract_strided_slice %455 {offsets = [0, 0], sizes = [8, 32], strides = [1, 1]} : vector<8x128xf32> to vector<8x32xf32>
    %457 = vector.extract_strided_slice %455 {offsets = [0, 32], sizes = [8, 32], strides = [1, 1]} : vector<8x128xf32> to vector<8x32xf32>
    %458 = vector.extract_strided_slice %455 {offsets = [0, 64], sizes = [8, 32], strides = [1, 1]} : vector<8x128xf32> to vector<8x32xf32>
    %459 = vector.extract_strided_slice %455 {offsets = [0, 96], sizes = [8, 32], strides = [1, 1]} : vector<8x128xf32> to vector<8x32xf32>
    %460 = arith.mulf %457, %422 : vector<8x32xf32>
    %461 = arith.mulf %456, %458 : vector<8x32xf32>
    %462 = arith.addf %460, %461 : vector<8x32xf32>
    %463 = math.tanh %462 : vector<8x32xf32>
    %464 = arith.mulf %459, %463 : vector<8x32xf32>
    %465 = vector.extract_strided_slice %400 {offsets = [48, 0], sizes = [8, 128], strides = [1, 1]} : vector<64x128xf32> to vector<8x128xf32>
    %466 = arith.truncf %444 : vector<8x32xf32> to vector<8x32xbf16>
    %cst_103 = arith.constant dense<0.000000e+00> : vector<8x128xf32>
    %467 = tpu.matmul %466, %402, %cst_103 {dimension_numbers = #tpu.dot_dimension_numbers<[1], [0], [0], [1], [0, 0, 1, 1], [], []>} : vector<8x32xbf16>, vector<32x128xbf16>, vector<8x128xf32> -> vector<8x128xf32>
    %468 = arith.addf %465, %467 : vector<8x128xf32>
    %469 = math.tanh %468 : vector<8x128xf32>
    %470 = arith.negf %468 : vector<8x128xf32>
    %471 = math.exp %470 : vector<8x128xf32>
    %cst_104 = arith.constant 1.000000e+00 : f32
    %472 = vector.broadcast %cst_104 : f32 to vector<8x128xf32>
    %473 = arith.addf %472, %471 : vector<8x128xf32>
    %474 = arith.divf %472, %473 : vector<8x128xf32>
    %475 = arith.select %49, %469, %474 : vector<8x128xi1>, vector<8x128xf32>
    %476 = vector.extract_strided_slice %475 {offsets = [0, 0], sizes = [8, 32], strides = [1, 1]} : vector<8x128xf32> to vector<8x32xf32>
    %477 = vector.extract_strided_slice %475 {offsets = [0, 32], sizes = [8, 32], strides = [1, 1]} : vector<8x128xf32> to vector<8x32xf32>
    %478 = vector.extract_strided_slice %475 {offsets = [0, 64], sizes = [8, 32], strides = [1, 1]} : vector<8x128xf32> to vector<8x32xf32>
    %479 = vector.extract_strided_slice %475 {offsets = [0, 96], sizes = [8, 32], strides = [1, 1]} : vector<8x128xf32> to vector<8x32xf32>
    %480 = arith.mulf %477, %442 : vector<8x32xf32>
    %481 = arith.mulf %476, %478 : vector<8x32xf32>
    %482 = arith.addf %480, %481 : vector<8x32xf32>
    %483 = math.tanh %482 : vector<8x32xf32>
    %484 = arith.mulf %479, %483 : vector<8x32xf32>
    %485 = vector.extract_strided_slice %394 {offsets = [16, 0], sizes = [8, 128], strides = [1, 1]} : vector<64x128xf32> to vector<8x128xf32>
    %486 = arith.truncf %464 : vector<8x32xf32> to vector<8x32xbf16>
    %cst_105 = arith.constant dense<0.000000e+00> : vector<8x128xf32>
    %487 = tpu.matmul %486, %401, %cst_105 {dimension_numbers = #tpu.dot_dimension_numbers<[1], [0], [0], [1], [0, 0, 1, 1], [], []>} : vector<8x32xbf16>, vector<32x128xbf16>, vector<8x128xf32> -> vector<8x128xf32>
    %488 = arith.addf %485, %487 : vector<8x128xf32>
    %489 = math.tanh %488 : vector<8x128xf32>
    %490 = arith.negf %488 : vector<8x128xf32>
    %491 = math.exp %490 : vector<8x128xf32>
    %cst_106 = arith.constant 1.000000e+00 : f32
    %492 = vector.broadcast %cst_106 : f32 to vector<8x128xf32>
    %493 = arith.addf %492, %491 : vector<8x128xf32>
    %494 = arith.divf %492, %493 : vector<8x128xf32>
    %495 = arith.select %49, %489, %494 : vector<8x128xi1>, vector<8x128xf32>
    %496 = vector.extract_strided_slice %495 {offsets = [0, 0], sizes = [8, 32], strides = [1, 1]} : vector<8x128xf32> to vector<8x32xf32>
    %497 = vector.extract_strided_slice %495 {offsets = [0, 32], sizes = [8, 32], strides = [1, 1]} : vector<8x128xf32> to vector<8x32xf32>
    %498 = vector.extract_strided_slice %495 {offsets = [0, 64], sizes = [8, 32], strides = [1, 1]} : vector<8x128xf32> to vector<8x32xf32>
    %499 = vector.extract_strided_slice %495 {offsets = [0, 96], sizes = [8, 32], strides = [1, 1]} : vector<8x128xf32> to vector<8x32xf32>
    %500 = arith.mulf %497, %462 : vector<8x32xf32>
    %501 = arith.mulf %496, %498 : vector<8x32xf32>
    %502 = arith.addf %500, %501 : vector<8x32xf32>
    %503 = math.tanh %502 : vector<8x32xf32>
    %504 = arith.mulf %499, %503 : vector<8x32xf32>
    %505 = vector.extract_strided_slice %400 {offsets = [40, 0], sizes = [8, 128], strides = [1, 1]} : vector<64x128xf32> to vector<8x128xf32>
    %506 = arith.truncf %484 : vector<8x32xf32> to vector<8x32xbf16>
    %cst_107 = arith.constant dense<0.000000e+00> : vector<8x128xf32>
    %507 = tpu.matmul %506, %402, %cst_107 {dimension_numbers = #tpu.dot_dimension_numbers<[1], [0], [0], [1], [0, 0, 1, 1], [], []>} : vector<8x32xbf16>, vector<32x128xbf16>, vector<8x128xf32> -> vector<8x128xf32>
    %508 = arith.addf %505, %507 : vector<8x128xf32>
    %509 = math.tanh %508 : vector<8x128xf32>
    %510 = arith.negf %508 : vector<8x128xf32>
    %511 = math.exp %510 : vector<8x128xf32>
    %cst_108 = arith.constant 1.000000e+00 : f32
    %512 = vector.broadcast %cst_108 : f32 to vector<8x128xf32>
    %513 = arith.addf %512, %511 : vector<8x128xf32>
    %514 = arith.divf %512, %513 : vector<8x128xf32>
    %515 = arith.select %49, %509, %514 : vector<8x128xi1>, vector<8x128xf32>
    %516 = vector.extract_strided_slice %515 {offsets = [0, 0], sizes = [8, 32], strides = [1, 1]} : vector<8x128xf32> to vector<8x32xf32>
    %517 = vector.extract_strided_slice %515 {offsets = [0, 32], sizes = [8, 32], strides = [1, 1]} : vector<8x128xf32> to vector<8x32xf32>
    %518 = vector.extract_strided_slice %515 {offsets = [0, 64], sizes = [8, 32], strides = [1, 1]} : vector<8x128xf32> to vector<8x32xf32>
    %519 = vector.extract_strided_slice %515 {offsets = [0, 96], sizes = [8, 32], strides = [1, 1]} : vector<8x128xf32> to vector<8x32xf32>
    %520 = arith.mulf %517, %482 : vector<8x32xf32>
    %521 = arith.mulf %516, %518 : vector<8x32xf32>
    %522 = arith.addf %520, %521 : vector<8x32xf32>
    %523 = math.tanh %522 : vector<8x32xf32>
    %524 = arith.mulf %519, %523 : vector<8x32xf32>
    %525 = vector.extract_strided_slice %394 {offsets = [24, 0], sizes = [8, 128], strides = [1, 1]} : vector<64x128xf32> to vector<8x128xf32>
    %526 = arith.truncf %504 : vector<8x32xf32> to vector<8x32xbf16>
    %cst_109 = arith.constant dense<0.000000e+00> : vector<8x128xf32>
    %527 = tpu.matmul %526, %401, %cst_109 {dimension_numbers = #tpu.dot_dimension_numbers<[1], [0], [0], [1], [0, 0, 1, 1], [], []>} : vector<8x32xbf16>, vector<32x128xbf16>, vector<8x128xf32> -> vector<8x128xf32>
    %528 = arith.addf %525, %527 : vector<8x128xf32>
    %529 = math.tanh %528 : vector<8x128xf32>
    %530 = arith.negf %528 : vector<8x128xf32>
    %531 = math.exp %530 : vector<8x128xf32>
    %cst_110 = arith.constant 1.000000e+00 : f32
    %532 = vector.broadcast %cst_110 : f32 to vector<8x128xf32>
    %533 = arith.addf %532, %531 : vector<8x128xf32>
    %534 = arith.divf %532, %533 : vector<8x128xf32>
    %535 = arith.select %49, %529, %534 : vector<8x128xi1>, vector<8x128xf32>
    %536 = vector.extract_strided_slice %535 {offsets = [0, 0], sizes = [8, 32], strides = [1, 1]} : vector<8x128xf32> to vector<8x32xf32>
    %537 = vector.extract_strided_slice %535 {offsets = [0, 32], sizes = [8, 32], strides = [1, 1]} : vector<8x128xf32> to vector<8x32xf32>
    %538 = vector.extract_strided_slice %535 {offsets = [0, 64], sizes = [8, 32], strides = [1, 1]} : vector<8x128xf32> to vector<8x32xf32>
    %539 = vector.extract_strided_slice %535 {offsets = [0, 96], sizes = [8, 32], strides = [1, 1]} : vector<8x128xf32> to vector<8x32xf32>
    %540 = arith.mulf %537, %502 : vector<8x32xf32>
    %541 = arith.mulf %536, %538 : vector<8x32xf32>
    %542 = arith.addf %540, %541 : vector<8x32xf32>
    %543 = math.tanh %542 : vector<8x32xf32>
    %544 = arith.mulf %539, %543 : vector<8x32xf32>
    %545 = vector.extract_strided_slice %400 {offsets = [32, 0], sizes = [8, 128], strides = [1, 1]} : vector<64x128xf32> to vector<8x128xf32>
    %546 = arith.truncf %524 : vector<8x32xf32> to vector<8x32xbf16>
    %cst_111 = arith.constant dense<0.000000e+00> : vector<8x128xf32>
    %547 = tpu.matmul %546, %402, %cst_111 {dimension_numbers = #tpu.dot_dimension_numbers<[1], [0], [0], [1], [0, 0, 1, 1], [], []>} : vector<8x32xbf16>, vector<32x128xbf16>, vector<8x128xf32> -> vector<8x128xf32>
    %548 = arith.addf %545, %547 : vector<8x128xf32>
    %549 = math.tanh %548 : vector<8x128xf32>
    %550 = arith.negf %548 : vector<8x128xf32>
    %551 = math.exp %550 : vector<8x128xf32>
    %cst_112 = arith.constant 1.000000e+00 : f32
    %552 = vector.broadcast %cst_112 : f32 to vector<8x128xf32>
    %553 = arith.addf %552, %551 : vector<8x128xf32>
    %554 = arith.divf %552, %553 : vector<8x128xf32>
    %555 = arith.select %49, %549, %554 : vector<8x128xi1>, vector<8x128xf32>
    %556 = vector.extract_strided_slice %555 {offsets = [0, 0], sizes = [8, 32], strides = [1, 1]} : vector<8x128xf32> to vector<8x32xf32>
    %557 = vector.extract_strided_slice %555 {offsets = [0, 32], sizes = [8, 32], strides = [1, 1]} : vector<8x128xf32> to vector<8x32xf32>
    %558 = vector.extract_strided_slice %555 {offsets = [0, 64], sizes = [8, 32], strides = [1, 1]} : vector<8x128xf32> to vector<8x32xf32>
    %559 = vector.extract_strided_slice %555 {offsets = [0, 96], sizes = [8, 32], strides = [1, 1]} : vector<8x128xf32> to vector<8x32xf32>
    %560 = arith.mulf %557, %522 : vector<8x32xf32>
    %561 = arith.mulf %556, %558 : vector<8x32xf32>
    %562 = arith.addf %560, %561 : vector<8x32xf32>
    %563 = math.tanh %562 : vector<8x32xf32>
    %564 = arith.mulf %559, %563 : vector<8x32xf32>
    %565 = vector.extract_strided_slice %394 {offsets = [32, 0], sizes = [8, 128], strides = [1, 1]} : vector<64x128xf32> to vector<8x128xf32>
    %566 = arith.truncf %544 : vector<8x32xf32> to vector<8x32xbf16>
    %cst_113 = arith.constant dense<0.000000e+00> : vector<8x128xf32>
    %567 = tpu.matmul %566, %401, %cst_113 {dimension_numbers = #tpu.dot_dimension_numbers<[1], [0], [0], [1], [0, 0, 1, 1], [], []>} : vector<8x32xbf16>, vector<32x128xbf16>, vector<8x128xf32> -> vector<8x128xf32>
    %568 = arith.addf %565, %567 : vector<8x128xf32>
    %569 = math.tanh %568 : vector<8x128xf32>
    %570 = arith.negf %568 : vector<8x128xf32>
    %571 = math.exp %570 : vector<8x128xf32>
    %cst_114 = arith.constant 1.000000e+00 : f32
    %572 = vector.broadcast %cst_114 : f32 to vector<8x128xf32>
    %573 = arith.addf %572, %571 : vector<8x128xf32>
    %574 = arith.divf %572, %573 : vector<8x128xf32>
    %575 = arith.select %49, %569, %574 : vector<8x128xi1>, vector<8x128xf32>
    %576 = vector.extract_strided_slice %575 {offsets = [0, 0], sizes = [8, 32], strides = [1, 1]} : vector<8x128xf32> to vector<8x32xf32>
    %577 = vector.extract_strided_slice %575 {offsets = [0, 32], sizes = [8, 32], strides = [1, 1]} : vector<8x128xf32> to vector<8x32xf32>
    %578 = vector.extract_strided_slice %575 {offsets = [0, 64], sizes = [8, 32], strides = [1, 1]} : vector<8x128xf32> to vector<8x32xf32>
    %579 = vector.extract_strided_slice %575 {offsets = [0, 96], sizes = [8, 32], strides = [1, 1]} : vector<8x128xf32> to vector<8x32xf32>
    %580 = arith.mulf %577, %542 : vector<8x32xf32>
    %581 = arith.mulf %576, %578 : vector<8x32xf32>
    %582 = arith.addf %580, %581 : vector<8x32xf32>
    %583 = math.tanh %582 : vector<8x32xf32>
    %584 = arith.mulf %579, %583 : vector<8x32xf32>
    %585 = vector.extract_strided_slice %400 {offsets = [24, 0], sizes = [8, 128], strides = [1, 1]} : vector<64x128xf32> to vector<8x128xf32>
    %586 = arith.truncf %564 : vector<8x32xf32> to vector<8x32xbf16>
    %cst_115 = arith.constant dense<0.000000e+00> : vector<8x128xf32>
    %587 = tpu.matmul %586, %402, %cst_115 {dimension_numbers = #tpu.dot_dimension_numbers<[1], [0], [0], [1], [0, 0, 1, 1], [], []>} : vector<8x32xbf16>, vector<32x128xbf16>, vector<8x128xf32> -> vector<8x128xf32>
    %588 = arith.addf %585, %587 : vector<8x128xf32>
    %589 = math.tanh %588 : vector<8x128xf32>
    %590 = arith.negf %588 : vector<8x128xf32>
    %591 = math.exp %590 : vector<8x128xf32>
    %cst_116 = arith.constant 1.000000e+00 : f32
    %592 = vector.broadcast %cst_116 : f32 to vector<8x128xf32>
    %593 = arith.addf %592, %591 : vector<8x128xf32>
    %594 = arith.divf %592, %593 : vector<8x128xf32>
    %595 = arith.select %49, %589, %594 : vector<8x128xi1>, vector<8x128xf32>
    %596 = vector.extract_strided_slice %595 {offsets = [0, 0], sizes = [8, 32], strides = [1, 1]} : vector<8x128xf32> to vector<8x32xf32>
    %597 = vector.extract_strided_slice %595 {offsets = [0, 32], sizes = [8, 32], strides = [1, 1]} : vector<8x128xf32> to vector<8x32xf32>
    %598 = vector.extract_strided_slice %595 {offsets = [0, 64], sizes = [8, 32], strides = [1, 1]} : vector<8x128xf32> to vector<8x32xf32>
    %599 = vector.extract_strided_slice %595 {offsets = [0, 96], sizes = [8, 32], strides = [1, 1]} : vector<8x128xf32> to vector<8x32xf32>
    %600 = arith.mulf %597, %562 : vector<8x32xf32>
    %601 = arith.mulf %596, %598 : vector<8x32xf32>
    %602 = arith.addf %600, %601 : vector<8x32xf32>
    %603 = math.tanh %602 : vector<8x32xf32>
    %604 = arith.mulf %599, %603 : vector<8x32xf32>
    %605 = vector.extract_strided_slice %394 {offsets = [40, 0], sizes = [8, 128], strides = [1, 1]} : vector<64x128xf32> to vector<8x128xf32>
    %606 = arith.truncf %584 : vector<8x32xf32> to vector<8x32xbf16>
    %cst_117 = arith.constant dense<0.000000e+00> : vector<8x128xf32>
    %607 = tpu.matmul %606, %401, %cst_117 {dimension_numbers = #tpu.dot_dimension_numbers<[1], [0], [0], [1], [0, 0, 1, 1], [], []>} : vector<8x32xbf16>, vector<32x128xbf16>, vector<8x128xf32> -> vector<8x128xf32>
    %608 = arith.addf %605, %607 : vector<8x128xf32>
    %609 = math.tanh %608 : vector<8x128xf32>
    %610 = arith.negf %608 : vector<8x128xf32>
    %611 = math.exp %610 : vector<8x128xf32>
    %cst_118 = arith.constant 1.000000e+00 : f32
    %612 = vector.broadcast %cst_118 : f32 to vector<8x128xf32>
    %613 = arith.addf %612, %611 : vector<8x128xf32>
    %614 = arith.divf %612, %613 : vector<8x128xf32>
    %615 = arith.select %49, %609, %614 : vector<8x128xi1>, vector<8x128xf32>
    %616 = vector.extract_strided_slice %615 {offsets = [0, 0], sizes = [8, 32], strides = [1, 1]} : vector<8x128xf32> to vector<8x32xf32>
    %617 = vector.extract_strided_slice %615 {offsets = [0, 32], sizes = [8, 32], strides = [1, 1]} : vector<8x128xf32> to vector<8x32xf32>
    %618 = vector.extract_strided_slice %615 {offsets = [0, 64], sizes = [8, 32], strides = [1, 1]} : vector<8x128xf32> to vector<8x32xf32>
    %619 = vector.extract_strided_slice %615 {offsets = [0, 96], sizes = [8, 32], strides = [1, 1]} : vector<8x128xf32> to vector<8x32xf32>
    %620 = arith.mulf %617, %582 : vector<8x32xf32>
    %621 = arith.mulf %616, %618 : vector<8x32xf32>
    %622 = arith.addf %620, %621 : vector<8x32xf32>
    %623 = math.tanh %622 : vector<8x32xf32>
    %624 = arith.mulf %619, %623 : vector<8x32xf32>
    %625 = vector.extract_strided_slice %400 {offsets = [16, 0], sizes = [8, 128], strides = [1, 1]} : vector<64x128xf32> to vector<8x128xf32>
    %626 = arith.truncf %604 : vector<8x32xf32> to vector<8x32xbf16>
    %cst_119 = arith.constant dense<0.000000e+00> : vector<8x128xf32>
    %627 = tpu.matmul %626, %402, %cst_119 {dimension_numbers = #tpu.dot_dimension_numbers<[1], [0], [0], [1], [0, 0, 1, 1], [], []>} : vector<8x32xbf16>, vector<32x128xbf16>, vector<8x128xf32> -> vector<8x128xf32>
    %628 = arith.addf %625, %627 : vector<8x128xf32>
    %629 = math.tanh %628 : vector<8x128xf32>
    %630 = arith.negf %628 : vector<8x128xf32>
    %631 = math.exp %630 : vector<8x128xf32>
    %cst_120 = arith.constant 1.000000e+00 : f32
    %632 = vector.broadcast %cst_120 : f32 to vector<8x128xf32>
    %633 = arith.addf %632, %631 : vector<8x128xf32>
    %634 = arith.divf %632, %633 : vector<8x128xf32>
    %635 = arith.select %49, %629, %634 : vector<8x128xi1>, vector<8x128xf32>
    %636 = vector.extract_strided_slice %635 {offsets = [0, 0], sizes = [8, 32], strides = [1, 1]} : vector<8x128xf32> to vector<8x32xf32>
    %637 = vector.extract_strided_slice %635 {offsets = [0, 32], sizes = [8, 32], strides = [1, 1]} : vector<8x128xf32> to vector<8x32xf32>
    %638 = vector.extract_strided_slice %635 {offsets = [0, 64], sizes = [8, 32], strides = [1, 1]} : vector<8x128xf32> to vector<8x32xf32>
    %639 = vector.extract_strided_slice %635 {offsets = [0, 96], sizes = [8, 32], strides = [1, 1]} : vector<8x128xf32> to vector<8x32xf32>
    %640 = arith.mulf %637, %602 : vector<8x32xf32>
    %641 = arith.mulf %636, %638 : vector<8x32xf32>
    %642 = arith.addf %640, %641 : vector<8x32xf32>
    %643 = math.tanh %642 : vector<8x32xf32>
    %644 = arith.mulf %639, %643 : vector<8x32xf32>
    %645 = vector.extract_strided_slice %394 {offsets = [48, 0], sizes = [8, 128], strides = [1, 1]} : vector<64x128xf32> to vector<8x128xf32>
    %646 = arith.truncf %624 : vector<8x32xf32> to vector<8x32xbf16>
    %cst_121 = arith.constant dense<0.000000e+00> : vector<8x128xf32>
    %647 = tpu.matmul %646, %401, %cst_121 {dimension_numbers = #tpu.dot_dimension_numbers<[1], [0], [0], [1], [0, 0, 1, 1], [], []>} : vector<8x32xbf16>, vector<32x128xbf16>, vector<8x128xf32> -> vector<8x128xf32>
    %648 = arith.addf %645, %647 : vector<8x128xf32>
    %649 = math.tanh %648 : vector<8x128xf32>
    %650 = arith.negf %648 : vector<8x128xf32>
    %651 = math.exp %650 : vector<8x128xf32>
    %cst_122 = arith.constant 1.000000e+00 : f32
    %652 = vector.broadcast %cst_122 : f32 to vector<8x128xf32>
    %653 = arith.addf %652, %651 : vector<8x128xf32>
    %654 = arith.divf %652, %653 : vector<8x128xf32>
    %655 = arith.select %49, %649, %654 : vector<8x128xi1>, vector<8x128xf32>
    %656 = vector.extract_strided_slice %655 {offsets = [0, 0], sizes = [8, 32], strides = [1, 1]} : vector<8x128xf32> to vector<8x32xf32>
    %657 = vector.extract_strided_slice %655 {offsets = [0, 32], sizes = [8, 32], strides = [1, 1]} : vector<8x128xf32> to vector<8x32xf32>
    %658 = vector.extract_strided_slice %655 {offsets = [0, 64], sizes = [8, 32], strides = [1, 1]} : vector<8x128xf32> to vector<8x32xf32>
    %659 = vector.extract_strided_slice %655 {offsets = [0, 96], sizes = [8, 32], strides = [1, 1]} : vector<8x128xf32> to vector<8x32xf32>
    %660 = arith.mulf %657, %622 : vector<8x32xf32>
    %661 = arith.mulf %656, %658 : vector<8x32xf32>
    %662 = arith.addf %660, %661 : vector<8x32xf32>
    %663 = math.tanh %662 : vector<8x32xf32>
    %664 = arith.mulf %659, %663 : vector<8x32xf32>
    %665 = vector.extract_strided_slice %400 {offsets = [8, 0], sizes = [8, 128], strides = [1, 1]} : vector<64x128xf32> to vector<8x128xf32>
    %666 = arith.truncf %644 : vector<8x32xf32> to vector<8x32xbf16>
    %cst_123 = arith.constant dense<0.000000e+00> : vector<8x128xf32>
    %667 = tpu.matmul %666, %402, %cst_123 {dimension_numbers = #tpu.dot_dimension_numbers<[1], [0], [0], [1], [0, 0, 1, 1], [], []>} : vector<8x32xbf16>, vector<32x128xbf16>, vector<8x128xf32> -> vector<8x128xf32>
    %668 = arith.addf %665, %667 : vector<8x128xf32>
    %669 = math.tanh %668 : vector<8x128xf32>
    %670 = arith.negf %668 : vector<8x128xf32>
    %671 = math.exp %670 : vector<8x128xf32>
    %cst_124 = arith.constant 1.000000e+00 : f32
    %672 = vector.broadcast %cst_124 : f32 to vector<8x128xf32>
    %673 = arith.addf %672, %671 : vector<8x128xf32>
    %674 = arith.divf %672, %673 : vector<8x128xf32>
    %675 = arith.select %49, %669, %674 : vector<8x128xi1>, vector<8x128xf32>
    %676 = vector.extract_strided_slice %675 {offsets = [0, 0], sizes = [8, 32], strides = [1, 1]} : vector<8x128xf32> to vector<8x32xf32>
    %677 = vector.extract_strided_slice %675 {offsets = [0, 32], sizes = [8, 32], strides = [1, 1]} : vector<8x128xf32> to vector<8x32xf32>
    %678 = vector.extract_strided_slice %675 {offsets = [0, 64], sizes = [8, 32], strides = [1, 1]} : vector<8x128xf32> to vector<8x32xf32>
    %679 = vector.extract_strided_slice %675 {offsets = [0, 96], sizes = [8, 32], strides = [1, 1]} : vector<8x128xf32> to vector<8x32xf32>
    %680 = arith.mulf %677, %642 : vector<8x32xf32>
    %681 = arith.mulf %676, %678 : vector<8x32xf32>
    %682 = arith.addf %680, %681 : vector<8x32xf32>
    %683 = math.tanh %682 : vector<8x32xf32>
    %684 = arith.mulf %679, %683 : vector<8x32xf32>
    %685 = vector.extract_strided_slice %394 {offsets = [56, 0], sizes = [8, 128], strides = [1, 1]} : vector<64x128xf32> to vector<8x128xf32>
    %686 = arith.truncf %664 : vector<8x32xf32> to vector<8x32xbf16>
    %cst_125 = arith.constant dense<0.000000e+00> : vector<8x128xf32>
    %687 = tpu.matmul %686, %401, %cst_125 {dimension_numbers = #tpu.dot_dimension_numbers<[1], [0], [0], [1], [0, 0, 1, 1], [], []>} : vector<8x32xbf16>, vector<32x128xbf16>, vector<8x128xf32> -> vector<8x128xf32>
    %688 = arith.addf %685, %687 : vector<8x128xf32>
    %689 = math.tanh %688 : vector<8x128xf32>
    %690 = arith.negf %688 : vector<8x128xf32>
    %691 = math.exp %690 : vector<8x128xf32>
    %cst_126 = arith.constant 1.000000e+00 : f32
    %692 = vector.broadcast %cst_126 : f32 to vector<8x128xf32>
    %693 = arith.addf %692, %691 : vector<8x128xf32>
    %694 = arith.divf %692, %693 : vector<8x128xf32>
    %695 = arith.select %49, %689, %694 : vector<8x128xi1>, vector<8x128xf32>
    %696 = vector.extract_strided_slice %695 {offsets = [0, 0], sizes = [8, 32], strides = [1, 1]} : vector<8x128xf32> to vector<8x32xf32>
    %697 = vector.extract_strided_slice %695 {offsets = [0, 32], sizes = [8, 32], strides = [1, 1]} : vector<8x128xf32> to vector<8x32xf32>
    %698 = vector.extract_strided_slice %695 {offsets = [0, 64], sizes = [8, 32], strides = [1, 1]} : vector<8x128xf32> to vector<8x32xf32>
    %699 = vector.extract_strided_slice %695 {offsets = [0, 96], sizes = [8, 32], strides = [1, 1]} : vector<8x128xf32> to vector<8x32xf32>
    %700 = arith.mulf %697, %662 : vector<8x32xf32>
    %701 = arith.mulf %696, %698 : vector<8x32xf32>
    %702 = arith.addf %700, %701 : vector<8x32xf32>
    %703 = math.tanh %702 : vector<8x32xf32>
    %704 = arith.mulf %699, %703 : vector<8x32xf32>
    %705 = vector.extract_strided_slice %400 {offsets = [0, 0], sizes = [8, 128], strides = [1, 1]} : vector<64x128xf32> to vector<8x128xf32>
    %706 = arith.truncf %684 : vector<8x32xf32> to vector<8x32xbf16>
    %cst_127 = arith.constant dense<0.000000e+00> : vector<8x128xf32>
    %707 = tpu.matmul %706, %402, %cst_127 {dimension_numbers = #tpu.dot_dimension_numbers<[1], [0], [0], [1], [0, 0, 1, 1], [], []>} : vector<8x32xbf16>, vector<32x128xbf16>, vector<8x128xf32> -> vector<8x128xf32>
    %708 = arith.addf %705, %707 : vector<8x128xf32>
    %709 = math.tanh %708 : vector<8x128xf32>
    %710 = arith.negf %708 : vector<8x128xf32>
    %711 = math.exp %710 : vector<8x128xf32>
    %cst_128 = arith.constant 1.000000e+00 : f32
    %712 = vector.broadcast %cst_128 : f32 to vector<8x128xf32>
    %713 = arith.addf %712, %711 : vector<8x128xf32>
    %714 = arith.divf %712, %713 : vector<8x128xf32>
    %715 = arith.select %49, %709, %714 : vector<8x128xi1>, vector<8x128xf32>
    %716 = vector.extract_strided_slice %715 {offsets = [0, 0], sizes = [8, 32], strides = [1, 1]} : vector<8x128xf32> to vector<8x32xf32>
    %717 = vector.extract_strided_slice %715 {offsets = [0, 32], sizes = [8, 32], strides = [1, 1]} : vector<8x128xf32> to vector<8x32xf32>
    %718 = vector.extract_strided_slice %715 {offsets = [0, 64], sizes = [8, 32], strides = [1, 1]} : vector<8x128xf32> to vector<8x32xf32>
    %719 = vector.extract_strided_slice %715 {offsets = [0, 96], sizes = [8, 32], strides = [1, 1]} : vector<8x128xf32> to vector<8x32xf32>
    %720 = arith.mulf %717, %682 : vector<8x32xf32>
    %721 = arith.mulf %716, %718 : vector<8x32xf32>
    %722 = arith.addf %720, %721 : vector<8x32xf32>
    %723 = math.tanh %722 : vector<8x32xf32>
    %724 = arith.mulf %719, %723 : vector<8x32xf32>
    %725 = tpu.concatenate %704, %724 in 1 : vector<8x32xf32>, vector<8x32xf32> -> vector<8x64xf32>
    %cst_129 = arith.constant 0.000000e+00 : f32
    %726 = vector.broadcast %cst_129 : f32 to vector<8x64xf32>
    %727 = arith.maximumf %725, %726 : vector<8x64xf32>
    %728 = tpu.concatenate %43, %727 in 1 : vector<8x64xf32>, vector<8x64xf32> -> vector<8x128xf32>
    %c0_130 = arith.constant 0 : index
    %c0_131 = arith.constant 0 : index
    %729 = vector.load %arg39[%c0_130, %c0_131] : memref<8x128xf32, #tpu.memory_space<vmem>>, vector<8x128xf32>
    %730 = arith.mulf %728, %729 : vector<8x128xf32>
    %c0_132 = arith.constant 0 : index
    %c0_133 = arith.constant 0 : index
    %731 = vector.load %arg24[%c0_132, %c0_133] : memref<128x64xbf16, #tpu.memory_space<vmem>>, vector<128x64xbf16>
    %732 = arith.truncf %730 : vector<8x128xf32> to vector<8x128xbf16>
    %cst_134 = arith.constant dense<0.000000e+00> : vector<8x64xf32>
    %733 = tpu.matmul %732, %731, %cst_134 {dimension_numbers = #tpu.dot_dimension_numbers<[1], [0], [0], [1], [0, 0, 1, 1], [], []>} : vector<8x128xbf16>, vector<128x64xbf16>, vector<8x64xf32> -> vector<8x64xf32>
    %c0_135 = arith.constant 0 : index
    %c0_136 = arith.constant 0 : index
    %734 = vector.load %arg25[%c0_135, %c0_136] : memref<1x64xf32, #tpu.memory_space<vmem>>, vector<1x64xf32>
    %735 = vector.broadcast %734 : vector<1x64xf32> to vector<8x64xf32>
    %736 = arith.addf %733, %735 : vector<8x64xf32>
    %737 = tpu.iota {dimensions = array<i32: 0>} : vector<8x1xi32>
    %c4_i32 = arith.constant 4 : i32
    %738 = vector.broadcast %c4_i32 : i32 to vector<8x1xi32>
    %739 = arith.cmpi slt, %737, %738 : vector<8x1xi32>
    %740 = arith.extui %739 : vector<8x1xi1> to vector<8x1xi32>
    %741 = arith.sitofp %740 : vector<8x1xi32> to vector<8x1xf32>
    %742 = vector.broadcast %741 : vector<8x1xf32> to vector<8x64xf32>
    %743 = arith.mulf %736, %742 : vector<8x64xf32>
    %cst_137 = arith.constant dense<0.000000e+00> : vector<64xf32>
    %744 = vector.multi_reduction <add>, %743, %cst_137 [0] : vector<8x64xf32> to vector<64xf32>
    %745 = vector.shape_cast %744 : vector<64xf32> to vector<1x64xf32>
    %cst_138 = arith.constant 2.500000e-01 : f32
    %746 = vector.broadcast %cst_138 : f32 to vector<1x64xf32>
    %747 = arith.mulf %745, %746 : vector<1x64xf32>
    %748 = vector.broadcast %747 : vector<1x64xf32> to vector<8x64xf32>
    %749 = arith.subf %736, %748 : vector<8x64xf32>
    %750 = vector.broadcast %741 : vector<8x1xf32> to vector<8x64xf32>
    %751 = arith.mulf %749, %750 : vector<8x64xf32>
    %752 = arith.mulf %751, %751 : vector<8x64xf32>
    %cst_139 = arith.constant dense<0.000000e+00> : vector<64xf32>
    %753 = vector.multi_reduction <add>, %752, %cst_139 [0] : vector<8x64xf32> to vector<64xf32>
    %754 = vector.shape_cast %753 : vector<64xf32> to vector<1x64xf32>
    %cst_140 = arith.constant 2.500000e-01 : f32
    %755 = vector.broadcast %cst_140 : f32 to vector<1x64xf32>
    %756 = arith.mulf %754, %755 : vector<1x64xf32>
    %757 = vector.broadcast %747 : vector<1x64xf32> to vector<8x64xf32>
    %758 = arith.subf %736, %757 : vector<8x64xf32>
    %cst_141 = arith.constant 9.99999974E-6 : f32
    %759 = vector.broadcast %cst_141 : f32 to vector<1x64xf32>
    %760 = arith.addf %756, %759 : vector<1x64xf32>
    %761 = math.rsqrt %760 : vector<1x64xf32>
    %762 = vector.broadcast %761 : vector<1x64xf32> to vector<8x64xf32>
    %763 = arith.mulf %758, %762 : vector<8x64xf32>
    %c0_142 = arith.constant 0 : index
    %c0_143 = arith.constant 0 : index
    %764 = vector.load %arg26[%c0_142, %c0_143] : memref<1x64xf32, #tpu.memory_space<vmem>>, vector<1x64xf32>
    %765 = vector.broadcast %764 : vector<1x64xf32> to vector<8x64xf32>
    %766 = arith.mulf %763, %765 : vector<8x64xf32>
    %c0_144 = arith.constant 0 : index
    %c0_145 = arith.constant 0 : index
    %767 = vector.load %arg27[%c0_144, %c0_145] : memref<1x64xf32, #tpu.memory_space<vmem>>, vector<1x64xf32>
    %768 = vector.broadcast %767 : vector<1x64xf32> to vector<8x64xf32>
    %769 = arith.addf %766, %768 : vector<8x64xf32>
    %cst_146 = arith.constant 0.000000e+00 : f32
    %770 = vector.broadcast %cst_146 : f32 to vector<8x64xf32>
    %771 = arith.maximumf %769, %770 : vector<8x64xf32>
    %c0_147 = arith.constant 0 : index
    %c0_148 = arith.constant 0 : index
    %772 = vector.load %arg28[%c0_147, %c0_148] : memref<64x16xbf16, #tpu.memory_space<vmem>>, vector<64x16xbf16>
    %773 = arith.truncf %771 : vector<8x64xf32> to vector<8x64xbf16>
    %cst_149 = arith.constant dense<0.000000e+00> : vector<8x16xf32>
    %774 = tpu.matmul %773, %772, %cst_149 {dimension_numbers = #tpu.dot_dimension_numbers<[1], [0], [0], [1], [0, 0, 1, 1], [], []>} : vector<8x64xbf16>, vector<64x16xbf16>, vector<8x16xf32> -> vector<8x16xf32>
    %c0_150 = arith.constant 0 : index
    %c0_151 = arith.constant 0 : index
    %775 = vector.load %arg29[%c0_150, %c0_151] : memref<1x16xf32, #tpu.memory_space<vmem>>, vector<1x16xf32>
    %776 = vector.broadcast %775 : vector<1x16xf32> to vector<8x16xf32>
    %777 = arith.addf %774, %776 : vector<8x16xf32>
    %c0_152 = arith.constant 0 : index
    %c0_153 = arith.constant 0 : index
    %778 = vector.load %arg30[%c0_152, %c0_153] : memref<1x128xf32, #tpu.memory_space<vmem>>, vector<1x128xf32>
    %c0_154 = arith.constant 0 : index
    %c0_155 = arith.constant 0 : index
    %779 = vector.load %arg32[%c0_154, %c0_155] : memref<128x128xbf16, #tpu.memory_space<vmem>>, vector<128x128xbf16>
    %780 = arith.truncf %778 : vector<1x128xf32> to vector<1x128xbf16>
    %cst_156 = arith.constant dense<0.000000e+00> : vector<1x128xf32>
    %781 = tpu.matmul %780, %779, %cst_156 {dimension_numbers = #tpu.dot_dimension_numbers<[1], [0], [0], [1], [0, 0, 1, 1], [], []>} : vector<1x128xbf16>, vector<128x128xbf16>, vector<1x128xf32> -> vector<1x128xf32>
    %c0_157 = arith.constant 0 : index
    %c0_158 = arith.constant 0 : index
    %782 = vector.load %arg33[%c0_157, %c0_158] : memref<1x128xf32, #tpu.memory_space<vmem>>, vector<1x128xf32>
    %783 = arith.addf %781, %782 : vector<1x128xf32>
    %784 = math.tanh %783 : vector<1x128xf32>
    %c0_159 = arith.constant 0 : index
    %c0_160 = arith.constant 0 : index
    %785 = vector.load %arg31[%c0_159, %c0_160] : memref<8x128xf32, #tpu.memory_space<vmem>>, vector<8x128xf32>
    %c0_161 = arith.constant 0 : index
    %c0_162 = arith.constant 0 : index
    %786 = vector.load %arg32[%c0_161, %c0_162] : memref<128x128xbf16, #tpu.memory_space<vmem>>, vector<128x128xbf16>
    %787 = arith.truncf %785 : vector<8x128xf32> to vector<8x128xbf16>
    %cst_163 = arith.constant dense<0.000000e+00> : vector<8x128xf32>
    %788 = tpu.matmul %787, %786, %cst_163 {dimension_numbers = #tpu.dot_dimension_numbers<[1], [0], [0], [1], [0, 0, 1, 1], [], []>} : vector<8x128xbf16>, vector<128x128xbf16>, vector<8x128xf32> -> vector<8x128xf32>
    %c0_164 = arith.constant 0 : index
    %c0_165 = arith.constant 0 : index
    %789 = vector.load %arg33[%c0_164, %c0_165] : memref<1x128xf32, #tpu.memory_space<vmem>>, vector<1x128xf32>
    %790 = vector.broadcast %789 : vector<1x128xf32> to vector<8x128xf32>
    %791 = arith.addf %788, %790 : vector<8x128xf32>
    %792 = math.tanh %791 : vector<8x128xf32>
    %c0_166 = arith.constant 0 : index
    %c0_167 = arith.constant 0 : index
    %793 = vector.load %arg35[%c0_166, %c0_167] : memref<128x16xbf16, #tpu.memory_space<vmem>>, vector<128x16xbf16>
    %794 = arith.truncf %792 : vector<8x128xf32> to vector<8x128xbf16>
    %cst_168 = arith.constant dense<0.000000e+00> : vector<8x16xf32>
    %795 = tpu.matmul %794, %793, %cst_168 {dimension_numbers = #tpu.dot_dimension_numbers<[1], [0], [0], [1], [0, 0, 1, 1], [], []>} : vector<8x128xbf16>, vector<128x16xbf16>, vector<8x16xf32> -> vector<8x16xf32>
    %c0_169 = arith.constant 0 : index
    %c0_170 = arith.constant 0 : index
    %796 = vector.load %arg34[%c0_169, %c0_170] : memref<128x16xbf16, #tpu.memory_space<vmem>>, vector<128x16xbf16>
    %797 = arith.truncf %784 : vector<1x128xf32> to vector<1x128xbf16>
    %cst_171 = arith.constant dense<0.000000e+00> : vector<1x16xf32>
    %798 = tpu.matmul %797, %796, %cst_171 {dimension_numbers = #tpu.dot_dimension_numbers<[1], [0], [0], [1], [0, 0, 1, 1], [], []>} : vector<1x128xbf16>, vector<128x16xbf16>, vector<1x16xf32> -> vector<1x16xf32>
    %799 = vector.broadcast %798 : vector<1x16xf32> to vector<8x16xf32>
    %800 = arith.addf %795, %799 : vector<8x16xf32>
    %c0_172 = arith.constant 0 : index
    %c0_173 = arith.constant 0 : index
    %801 = vector.load %arg36[%c0_172, %c0_173] : memref<1x16xf32, #tpu.memory_space<vmem>>, vector<1x16xf32>
    %802 = vector.broadcast %801 : vector<1x16xf32> to vector<8x16xf32>
    %803 = arith.addf %800, %802 : vector<8x16xf32>
    %804 = arith.mulf %803, %803 : vector<8x16xf32>
    %cst_174 = arith.constant dense<0.000000e+00> : vector<8xf32>
    %805 = vector.multi_reduction <add>, %804, %cst_174 [1] : vector<8x16xf32> to vector<8xf32>
    %806 = vector.shape_cast %805 : vector<8xf32> to vector<8x1xf32>
    %807 = math.sqrt %806 : vector<8x1xf32>
    %cst_175 = arith.constant 9.99999996E-13 : f32
    %808 = vector.broadcast %cst_175 : f32 to vector<8x1xf32>
    %809 = arith.maximumf %807, %808 : vector<8x1xf32>
    %810 = vector.broadcast %809 : vector<8x1xf32> to vector<8x16xf32>
    %811 = arith.divf %803, %810 : vector<8x16xf32>
    %c0_176 = arith.constant 0 : index
    %c0_177 = arith.constant 0 : index
    %812 = vector.load %arg37[%c0_176, %c0_177] : memref<1x1xf32, #tpu.memory_space<vmem>>, vector<1x1xf32>
    %813 = math.exp %812 : vector<1x1xf32>
    %cst_178 = arith.constant dense<0.000000e+00> : vector<8x8xf32>
    %814 = tpu.matmul %777, %811, %cst_178 {dimension_numbers = #tpu.dot_dimension_numbers<[1], [1], [0], [0], [0, 0, 1, 0], [], []>} : vector<8x16xf32>, vector<8x16xf32>, vector<8x8xf32> -> vector<8x8xf32>
    %815 = vector.broadcast %813 : vector<1x1xf32> to vector<8x8xf32>
    %816 = arith.mulf %815, %814 : vector<8x8xf32>
    %cst_179 = arith.constant dense<0xFF800000> : vector<8xf32>
    %817 = vector.multi_reduction <maximumf>, %816, %cst_179 [1] : vector<8x8xf32> to vector<8xf32>
    %818 = vector.shape_cast %817 : vector<8xf32> to vector<8x1xf32>
    %819 = vector.broadcast %818 : vector<8x1xf32> to vector<8x8xf32>
    %820 = arith.subf %816, %819 : vector<8x8xf32>
    %821 = math.exp %820 : vector<8x8xf32>
    %cst_180 = arith.constant dense<0.000000e+00> : vector<8xf32>
    %822 = vector.multi_reduction <add>, %821, %cst_180 [1] : vector<8x8xf32> to vector<8xf32>
    %823 = vector.shape_cast %822 : vector<8xf32> to vector<8x1xf32>
    %824 = math.log %823 : vector<8x1xf32>
    %825 = vector.broadcast %824 : vector<8x1xf32> to vector<8x8xf32>
    %826 = arith.subf %820, %825 : vector<8x8xf32>
    %c0_181 = arith.constant 0 : index
    %c0_182 = arith.constant 0 : index
    %827 = vector.load %arg40[%c0_181, %c0_182] : memref<8x8xf32, #tpu.memory_space<vmem>>, vector<8x8xf32>
    tpu.vector_store %arg40[%c0_181, %c0_182], %826 {strides = array<i32>} : memref<8x8xf32, #tpu.memory_space<vmem>>, vector<8x8xf32>,
    return
  }
}

</mosaic_0001>

<llo_original>
// kernel: merg_forward.1
$region0: #{merg_forward.1}
  #allocation0 [shape = 'u32[]', space=smem, size = 0x4, offset = 0x4, fixed_abs, tag = 'smem constant byte address 0x4 - core index']
  #allocation1 [shape = 'u32[72,128]{1,0:T(1,128)}', space=vmem, size = 0x9000, scoped, tag = 'internal scratch']
  #allocation2 [shape = 'f32[1,1]{1,0:T(1,128)S(1)}', space=vmem, size = 0x200, scoped, tag = 'scoped memory for merg_forward.1']
  %s0 = inlined_call_operand.smem [shape: u32[41], index: -1, kind: input, shape index: {}]
  %s1 = sld [smem:[%s0]]
  %s2 = scalar_lea.smem %s0, 1
  %s3 = sld [smem:[%s2]]
  %s4 = scalar_lea.smem %s0, 2
  %s5 = sld [smem:[%s4]]
  %s6 = scalar_lea.smem %s0, 3
  %s7 = sld [smem:[%s6]]
  %s8 = scalar_lea.smem %s0, 4
  %s9 = sld [smem:[%s8]]
  %s10 = scalar_lea.smem %s0, 5
  %s11 = sld [smem:[%s10]]
  %s12 = scalar_lea.smem %s0, 6
  %s13 = sld [smem:[%s12]]
  %s14 = scalar_lea.smem %s0, 7
  %s15 = sld [smem:[%s14]]
  %s16 = scalar_lea.smem %s0, 8
  %s17 = sld [smem:[%s16]]
  %s18 = scalar_lea.smem %s0, 9
  %s19 = sld [smem:[%s18]]
  %s20 = scalar_lea.smem %s0, 10
  %s21 = sld [smem:[%s20]]
  %s22 = scalar_lea.smem %s0, 11
  %s23 = sld [smem:[%s22]]
  %s24 = scalar_lea.smem %s0, 12
  %s25 = sld [smem:[%s24]]
  %s26 = scalar_lea.smem %s0, 13
  %s27 = sld [smem:[%s26]]
  %s28 = scalar_lea.smem %s0, 14
  %s29 = sld [smem:[%s28]]
  %s30 = scalar_lea.smem %s0, 15
  %s31 = sld [smem:[%s30]]
  %s32 = scalar_lea.smem %s0, 16
  %s33 = sld [smem:[%s32]]
  %s34 = scalar_lea.smem %s0, 17
  %s35 = sld [smem:[%s34]]
  %s36 = scalar_lea.smem %s0, 18
  %s37 = sld [smem:[%s36]]
  %s38 = scalar_lea.smem %s0, 19
  %s39 = sld [smem:[%s38]]
  %s40 = scalar_lea.smem %s0, 20
  %s41 = sld [smem:[%s40]]
  %s42 = scalar_lea.smem %s0, 21
  %s43 = sld [smem:[%s42]]
  %s44 = scalar_lea.smem %s0, 22
  %s45 = sld [smem:[%s44]]
  %s46 = scalar_lea.smem %s0, 23
  %s47 = sld [smem:[%s46]]
  %s48 = scalar_lea.smem %s0, 24
  %s49 = sld [smem:[%s48]]
  %s50 = scalar_lea.smem %s0, 25
  %s51 = sld [smem:[%s50]]
  %s52 = scalar_lea.smem %s0, 26
  %s53 = sld [smem:[%s52]]
  %s54 = scalar_lea.smem %s0, 27
  %s55 = sld [smem:[%s54]]
  %s56 = scalar_lea.smem %s0, 28
  %s57 = sld [smem:[%s56]]
  %s58 = scalar_lea.smem %s0, 29
  %s59 = sld [smem:[%s58]]
  %s60 = scalar_lea.smem %s0, 30
  %s61 = sld [smem:[%s60]]
  %s62 = scalar_lea.smem %s0, 31
  %s63 = sld [smem:[%s62]]
  %s64 = scalar_lea.smem %s0, 32
  %s65 = sld [smem:[%s64]]
  %s66 = scalar_lea.smem %s0, 33
  %s67 = sld [smem:[%s66]]
  %s68 = scalar_lea.smem %s0, 34
  %s69 = sld [smem:[%s68]]
  %s70 = scalar_lea.smem %s0, 35
  %s71 = sld [smem:[%s70]]
  %s72 = scalar_lea.smem %s0, 36
  %s73 = sld [smem:[%s72]]
  %s74 = scalar_lea.smem %s0, 37
  %s75 = sld [smem:[%s74]]
  %s76 = scalar_lea.smem %s0, 38
  %s77 = sld [smem:[%s76]]
  %s78 = scalar_lea.smem %s0, 39
  %s79 = sld [smem:[%s78]]
  %s80 = scalar_lea.smem %s0, 40
  %s81 = sld [smem:[%s80]]
  %s82 = sld [smem:[#allocation0]]
  $region170: #{merg_forward.1} parent=0
    _
  %s84 = ssub.s32 1, %s82
  %s85 = scalar_select 0, %s84, %s82
  %v86 = vstv %s75
  %87 = vst [vmem:[#allocation2] sm:$0x1] %v86
  // Predicated region
  $region2: #{merg_forward.1} parent=0 // pred_check
    _
  $region3: #{merg_forward.1} parent=0 // pred_check_branch
    %89 = sbr.rel (0) target = $region5
  $region4: #{merg_forward.1} parent=0 // pred_region
    _
  $region5: #{merg_forward.1} parent=0 // pred_fallthru
    _
  // Predicated region
  $region6: #{merg_forward.1} parent=0 // pred_check
    _
  $region7: #{merg_forward.1} parent=0 // pred_check_branch
    %91 = sbr.rel (0) target = $region9
  $region8: #{merg_forward.1} parent=0 // pred_region
    _
  $region9: #{merg_forward.1} parent=0 // pred_fallthru
    _
  // Predicated region
  $region10: #{merg_forward.1} parent=0 // pred_check
    _
  $region11: #{merg_forward.1} parent=0 // pred_check_branch
    %93 = sbr.rel (0) target = $region13
  $region12: #{merg_forward.1} parent=0 // pred_region
    _
  $region13: #{merg_forward.1} parent=0 // pred_fallthru
    _
  // Predicated region
  $region14: #{merg_forward.1} parent=0 // pred_check
    _
  $region15: #{merg_forward.1} parent=0 // pred_check_branch
    %95 = sbr.rel (0) target = $region17
  $region16: #{merg_forward.1} parent=0 // pred_region
    _
  $region17: #{merg_forward.1} parent=0 // pred_fallthru
    _
  // Predicated region
  $region18: #{merg_forward.1} parent=0 // pred_check
    _
  $region19: #{merg_forward.1} parent=0 // pred_check_branch
    %97 = sbr.rel (0) target = $region21
  $region20: #{merg_forward.1} parent=0 // pred_region
    _
  $region21: #{merg_forward.1} parent=0 // pred_fallthru
    _
  // Predicated region
  $region22: #{merg_forward.1} parent=0 // pred_check
    _
  $region23: #{merg_forward.1} parent=0 // pred_check_branch
    %99 = sbr.rel (0) target = $region25
  $region24: #{merg_forward.1} parent=0 // pred_region
    _
  $region25: #{merg_forward.1} parent=0 // pred_fallthru
    _
  // Predicated region
  $region26: #{merg_forward.1} parent=0 // pred_check
    _
  $region27: #{merg_forward.1} parent=0 // pred_check_branch
    %101 = sbr.rel (0) target = $region29
  $region28: #{merg_forward.1} parent=0 // pred_region
    _
  $region29: #{merg_forward.1} parent=0 // pred_fallthru
    _
  // Predicated region
  $region30: #{merg_forward.1} parent=0 // pred_check
    _
  $region31: #{merg_forward.1} parent=0 // pred_check_branch
    %103 = sbr.rel (0) target = $region33
  $region32: #{merg_forward.1} parent=0 // pred_region
    _
  $region33: #{merg_forward.1} parent=0 // pred_fallthru
    _
  // Predicated region
  $region34: #{merg_forward.1} parent=0 // pred_check
    _
  $region35: #{merg_forward.1} parent=0 // pred_check_branch
    %105 = sbr.rel (0) target = $region37
  $region36: #{merg_forward.1} parent=0 // pred_region
    _
  $region37: #{merg_forward.1} parent=0 // pred_fallthru
    _
  // Predicated region
  $region38: #{merg_forward.1} parent=0 // pred_check
    _
  $region39: #{merg_forward.1} parent=0 // pred_check_branch
    %107 = sbr.rel (0) target = $region41
  $region40: #{merg_forward.1} parent=0 // pred_region
    _
  $region41: #{merg_forward.1} parent=0 // pred_fallthru
    _
  // Predicated region
  $region42: #{merg_forward.1} parent=0 // pred_check
    _
  $region43: #{merg_forward.1} parent=0 // pred_check_branch
    %109 = sbr.rel (0) target = $region45
  $region44: #{merg_forward.1} parent=0 // pred_region
    _
  $region45: #{merg_forward.1} parent=0 // pred_fallthru
    _
  // Predicated region
  $region46: #{merg_forward.1} parent=0 // pred_check
    _
  $region47: #{merg_forward.1} parent=0 // pred_check_branch
    %111 = sbr.rel (0) target = $region49
  $region48: #{merg_forward.1} parent=0 // pred_region
    _
  $region49: #{merg_forward.1} parent=0 // pred_fallthru
    _
  // Predicated region
  $region50: #{merg_forward.1} parent=0 // pred_check
    _
  $region51: #{merg_forward.1} parent=0 // pred_check_branch
    %113 = sbr.rel (0) target = $region53
  $region52: #{merg_forward.1} parent=0 // pred_region
    _
  $region53: #{merg_forward.1} parent=0 // pred_fallthru
    _
  // Predicated region
  $region54: #{merg_forward.1} parent=0 // pred_check
    _
  $region55: #{merg_forward.1} parent=0 // pred_check_branch
    %115 = sbr.rel (0) target = $region57
  $region56: #{merg_forward.1} parent=0 // pred_region
    _
  $region57: #{merg_forward.1} parent=0 // pred_fallthru
    _
  // Predicated region
  $region58: #{merg_forward.1} parent=0 // pred_check
    _
  $region59: #{merg_forward.1} parent=0 // pred_check_branch
    %117 = sbr.rel (0) target = $region61
  $region60: #{merg_forward.1} parent=0 // pred_region
    _
  $region61: #{merg_forward.1} parent=0 // pred_fallthru
    _
  // Predicated region
  $region62: #{merg_forward.1} parent=0 // pred_check
    _
  $region63: #{merg_forward.1} parent=0 // pred_check_branch
    %119 = sbr.rel (0) target = $region65
  $region64: #{merg_forward.1} parent=0 // pred_region
    _
  $region65: #{merg_forward.1} parent=0 // pred_fallthru
    _
  // Predicated region
  $region66: #{merg_forward.1} parent=0 // pred_check
    _
  $region67: #{merg_forward.1} parent=0 // pred_check_branch
    %121 = sbr.rel (0) target = $region69
  $region68: #{merg_forward.1} parent=0 // pred_region
    _
  $region69: #{merg_forward.1} parent=0 // pred_fallthru
    _
  // Predicated region
  $region70: #{merg_forward.1} parent=0 // pred_check
    _
  $region71: #{merg_forward.1} parent=0 // pred_check_branch
    %123 = sbr.rel (0) target = $region73
  $region72: #{merg_forward.1} parent=0 // pred_region
    _
  $region73: #{merg_forward.1} parent=0 // pred_fallthru
    _
  // Predicated region
  $region74: #{merg_forward.1} parent=0 // pred_check
    _
  $region75: #{merg_forward.1} parent=0 // pred_check_branch
    %125 = sbr.rel (0) target = $region77
  $region76: #{merg_forward.1} parent=0 // pred_region
    _
  $region77: #{merg_forward.1} parent=0 // pred_fallthru
    _
  // Predicated region
  $region78: #{merg_forward.1} parent=0 // pred_check
    _
  $region79: #{merg_forward.1} parent=0 // pred_check_branch
    %127 = sbr.rel (0) target = $region81
  $region80: #{merg_forward.1} parent=0 // pred_region
    _
  $region81: #{merg_forward.1} parent=0 // pred_fallthru
    _
  // Predicated region
  $region82: #{merg_forward.1} parent=0 // pred_check
    _
  $region83: #{merg_forward.1} parent=0 // pred_check_branch
    %129 = sbr.rel (0) target = $region85
  $region84: #{merg_forward.1} parent=0 // pred_region
    _
  $region85: #{merg_forward.1} parent=0 // pred_fallthru
    _
  // Predicated region
  $region86: #{merg_forward.1} parent=0 // pred_check
    _
  $region87: #{merg_forward.1} parent=0 // pred_check_branch
    %131 = sbr.rel (0) target = $region89
  $region88: #{merg_forward.1} parent=0 // pred_region
    _
  $region89: #{merg_forward.1} parent=0 // pred_fallthru
    _
  // Predicated region
  $region90: #{merg_forward.1} parent=0 // pred_check
    _
  $region91: #{merg_forward.1} parent=0 // pred_check_branch
    %133 = sbr.rel (0) target = $region93
  $region92: #{merg_forward.1} parent=0 // pred_region
    _
  $region93: #{merg_forward.1} parent=0 // pred_fallthru
    _
  // Predicated region
  $region94: #{merg_forward.1} parent=0 // pred_check
    _
  $region95: #{merg_forward.1} parent=0 // pred_check_branch
    %135 = sbr.rel (0) target = $region97
  $region96: #{merg_forward.1} parent=0 // pred_region
    _
  $region97: #{merg_forward.1} parent=0 // pred_fallthru
    _
  // Predicated region
  $region98: #{merg_forward.1} parent=0 // pred_check
    _
  $region99: #{merg_forward.1} parent=0 // pred_check_branch
    %137 = sbr.rel (0) target = $region101
  $region100: #{merg_forward.1} parent=0 // pred_region
    _
  $region101: #{merg_forward.1} parent=0 // pred_fallthru
    _
  // Predicated region
  $region102: #{merg_forward.1} parent=0 // pred_check
    _
  $region103: #{merg_forward.1} parent=0 // pred_check_branch
    %139 = sbr.rel (0) target = $region105
  $region104: #{merg_forward.1} parent=0 // pred_region
    _
  $region105: #{merg_forward.1} parent=0 // pred_fallthru
    _
  // Predicated region
  $region106: #{merg_forward.1} parent=0 // pred_check
    _
  $region107: #{merg_forward.1} parent=0 // pred_check_branch
    %141 = sbr.rel (0) target = $region109
  $region108: #{merg_forward.1} parent=0 // pred_region
    _
  $region109: #{merg_forward.1} parent=0 // pred_fallthru
    _
  // Predicated region
  $region110: #{merg_forward.1} parent=0 // pred_check
    _
  $region111: #{merg_forward.1} parent=0 // pred_check_branch
    %143 = sbr.rel (0) target = $region113
  $region112: #{merg_forward.1} parent=0 // pred_region
    _
  $region113: #{merg_forward.1} parent=0 // pred_fallthru
    _
  // Predicated region
  $region114: #{merg_forward.1} parent=0 // pred_check
    _
  $region115: #{merg_forward.1} parent=0 // pred_check_branch
    %145 = sbr.rel (0) target = $region117
  $region116: #{merg_forward.1} parent=0 // pred_region
    _
  $region117: #{merg_forward.1} parent=0 // pred_fallthru
    _
  // Predicated region
  $region118: #{merg_forward.1} parent=0 // pred_check
    _
  $region119: #{merg_forward.1} parent=0 // pred_check_branch
    %147 = sbr.rel (0) target = $region121
  $region120: #{merg_forward.1} parent=0 // pred_region
    _
  $region121: #{merg_forward.1} parent=0 // pred_fallthru
    _
  // Predicated region
  $region122: #{merg_forward.1} parent=0 // pred_check
    _
  $region123: #{merg_forward.1} parent=0 // pred_check_branch
    %149 = sbr.rel (0) target = $region125
  $region124: #{merg_forward.1} parent=0 // pred_region
    _
  $region125: #{merg_forward.1} parent=0 // pred_fallthru
    _
  // Predicated region
  $region126: #{merg_forward.1} parent=0 // pred_check
    _
  $region127: #{merg_forward.1} parent=0 // pred_check_branch
    %151 = sbr.rel (0) target = $region129
  $region128: #{merg_forward.1} parent=0 // pred_region
    _
  $region129: #{merg_forward.1} parent=0 // pred_fallthru
    _
  // Predicated region
  $region130: #{merg_forward.1} parent=0 // pred_check
    _
  $region131: #{merg_forward.1} parent=0 // pred_check_branch
    %153 = sbr.rel (0) target = $region133
  $region132: #{merg_forward.1} parent=0 // pred_region
    _
  $region133: #{merg_forward.1} parent=0 // pred_fallthru
    _
  // Predicated region
  $region134: #{merg_forward.1} parent=0 // pred_check
    _
  $region135: #{merg_forward.1} parent=0 // pred_check_branch
    %155 = sbr.rel (0) target = $region137
  $region136: #{merg_forward.1} parent=0 // pred_region
    _
  $region137: #{merg_forward.1} parent=0 // pred_fallthru
    _
  // Predicated region
  $region138: #{merg_forward.1} parent=0 // pred_check
    _
  $region139: #{merg_forward.1} parent=0 // pred_check_branch
    %157 = sbr.rel (0) target = $region141
  $region140: #{merg_forward.1} parent=0 // pred_region
    _
  $region141: #{merg_forward.1} parent=0 // pred_fallthru
    _
  // Predicated region
  $region142: #{merg_forward.1} parent=0 // pred_check
    _
  $region143: #{merg_forward.1} parent=0 // pred_check_branch
    %159 = sbr.rel (0) target = $region145
  $region144: #{merg_forward.1} parent=0 // pred_region
    _
  $region145: #{merg_forward.1} parent=0 // pred_fallthru
    _
  // Predicated region
  $region146: #{merg_forward.1} parent=0 // pred_check
    _
  $region147: #{merg_forward.1} parent=0 // pred_check_branch
    %161 = sbr.rel (0) target = $region149
  $region148: #{merg_forward.1} parent=0 // pred_region
    _
  $region149: #{merg_forward.1} parent=0 // pred_fallthru
    _
  // Predicated region
  $region150: #{merg_forward.1} parent=0 // pred_check
    _
  $region151: #{merg_forward.1} parent=0 // pred_check_branch
    %163 = sbr.rel (0) target = $region153
  $region152: #{merg_forward.1} parent=0 // pred_region
    _
  $region153: #{merg_forward.1} parent=0 // pred_fallthru
    _
  // Predicated region
  $region154: #{merg_forward.1} parent=0 // pred_check
    _
  $region155: #{merg_forward.1} parent=0 // pred_check_branch
    %165 = sbr.rel (0) target = $region157
  $region156: #{merg_forward.1} parent=0 // pred_region
    _
  $region157: #{merg_forward.1} parent=0 // pred_fallthru
    _
  // Predicated region
  $region158: #{merg_forward.1} parent=0 // pred_check
    _
  $region159: #{merg_forward.1} parent=0 // pred_check_branch
    %167 = sbr.rel (0) target = $region161
  $region160: #{merg_forward.1} parent=0 // pred_region
    _
  $region161: #{merg_forward.1} parent=0 // pred_fallthru
    _
  %v169 = vld [vmem:[%s1] sm:$0xff]
  %v170 = vld [vmem:[%s1 + $0x8] sm:$0xff]
  %v171 = vld [vmem:[%s1 + $0x10] sm:$0xff]
  %v172 = vld [vmem:[%s1 + $0x18] sm:$0xff]
  %v173 = vld [vmem:[%s1 + $0x20] sm:$0xff]
  %v174 = vld [vmem:[%s1 + $0x28] sm:$0xff]
  %v175 = vld [vmem:[%s9] sm:$0xff]
  %v176 = vld [vmem:[%s9 + $0x8] sm:$0xff]
  %v177 = vld [vmem:[%s9 + $0x10] sm:$0xff]
  %v178 = vld [vmem:[%s9 + $0x18] sm:$0xff]
  %v179 = vld [vmem:[%s9 + $0x20] sm:$0xff]
  %v180 = vld [vmem:[%s9 + $0x28] sm:$0xff]
  %v181 = vld [vmem:[%s9 + $0x30] sm:$0xff]
  %v182 = vld [vmem:[%s9 + $0x38] sm:$0xff]
  %v183 = vld [vmem:[%s9 + $0x40] sm:$0xff]
  %v184 = vld [vmem:[%s9 + $0x48] sm:$0xff]
  %v185 = vld [vmem:[%s9 + $0x50] sm:$0xff]
  %v186 = vld [vmem:[%s9 + $0x58] sm:$0xff]
  %v187 = vld [vmem:[%s9 + $0x60] sm:$0xff]
  %v188 = vld [vmem:[%s9 + $0x68] sm:$0xff]
  %v189 = vld [vmem:[%s9 + $0x70] sm:$0xff]
  %v190 = vld [vmem:[%s9 + $0x78] sm:$0xff]
  %v191 = vld [vmem:[%s9 + $0x80] sm:$0xff]
  %v192 = vld [vmem:[%s9 + $0x88] sm:$0xff]
  %v193 = vld [vmem:[%s9 + $0x90] sm:$0xff]
  %v194 = vld [vmem:[%s9 + $0x98] sm:$0xff]
  %v195 = vld [vmem:[%s9 + $0xa0] sm:$0xff]
  %v196 = vld [vmem:[%s9 + $0xa8] sm:$0xff]
  %v197 = vld [vmem:[%s9 + $0xb0] sm:$0xff]
  %v198 = vld [vmem:[%s9 + $0xb8] sm:$0xff]
  %v199 = vld [vmem:[%s9 + $0xc0] sm:$0xff]
  %v200 = vld [vmem:[%s9 + $0xc8] sm:$0xff]
  %v201 = vld [vmem:[%s9 + $0xd0] sm:$0xff]
  %v202 = vld [vmem:[%s9 + $0xd8] sm:$0xff]
  %v203 = vld [vmem:[%s9 + $0xe0] sm:$0xff]
  %v204 = vld [vmem:[%s9 + $0xe8] sm:$0xff]
  %v205 = vld [vmem:[%s9 + $0xf0] sm:$0xff]
  %v206 = vld [vmem:[%s9 + $0xf8] sm:$0xff]
  %v207 = vld [vmem:[%s9 + $0x100] sm:$0xff]
  %v208 = vld [vmem:[%s9 + $0x108] sm:$0xff]
  %v209 = vld [vmem:[%s9 + $0x110] sm:$0xff]
  %v210 = vld [vmem:[%s9 + $0x118] sm:$0xff]
  %v211 = vld [vmem:[%s9 + $0x120] sm:$0xff]
  %v212 = vld [vmem:[%s9 + $0x128] sm:$0xff]
  %v213 = vld [vmem:[%s9 + $0x130] sm:$0xff]
  %v214 = vld [vmem:[%s9 + $0x138] sm:$0xff]
  %v215 = vld [vmem:[%s9 + $0x140] sm:$0xff]
  %v216 = vld [vmem:[%s9 + $0x148] sm:$0xff]
  %v217 = vld [vmem:[%s9 + $0x150] sm:$0xff]
  %v218 = vld [vmem:[%s9 + $0x158] sm:$0xff]
  %v219 = vld [vmem:[%s9 + $0x160] sm:$0xff]
  %v220 = vld [vmem:[%s9 + $0x168] sm:$0xff]
  %v221 = vld [vmem:[%s9 + $0x170] sm:$0xff]
  %v222 = vld [vmem:[%s9 + $0x178] sm:$0xff]
  %v223 = vld [vmem:[%s9 + $0x180] sm:$0xff]
  %v224 = vld [vmem:[%s9 + $0x188] sm:$0xff]
  %v225 = vld [vmem:[%s9 + $0x190] sm:$0xff]
  %v226 = vld [vmem:[%s9 + $0x198] sm:$0xff]
  %v227 = vld [vmem:[%s9 + $0x1a0] sm:$0xff]
  %v228 = vld [vmem:[%s9 + $0x1a8] sm:$0xff]
  %v229 = vld [vmem:[%s9 + $0x1b0] sm:$0xff]
  %v230 = vld [vmem:[%s9 + $0x1b8] sm:$0xff]
  %v231 = vld [vmem:[%s9 + $0x1c0] sm:$0xff]
  %v232 = vld [vmem:[%s9 + $0x1c8] sm:$0xff]
  %v233 = vld [vmem:[%s9 + $0x1d0] sm:$0xff]
  %v234 = vld [vmem:[%s9 + $0x1d8] sm:$0xff]
  %v235 = vld [vmem:[%s9 + $0x1e0] sm:$0xff]
  %v236 = vld [vmem:[%s9 + $0x1e8] sm:$0xff]
  %v237 = vld [vmem:[%s9 + $0x1f0] sm:$0xff]
  %v238 = vld [vmem:[%s9 + $0x1f8] sm:$0xff]
  %v239 = vld [vmem:[%s9 + $0x200] sm:$0xff]
  %v240 = vld [vmem:[%s9 + $0x208] sm:$0xff]
  %v241 = vld [vmem:[%s9 + $0x210] sm:$0xff]
  %v242 = vld [vmem:[%s9 + $0x218] sm:$0xff]
  %v243 = vld [vmem:[%s9 + $0x220] sm:$0xff]
  %v244 = vld [vmem:[%s9 + $0x228] sm:$0xff]
  %v245 = vld [vmem:[%s9 + $0x230] sm:$0xff]
  %v246 = vld [vmem:[%s9 + $0x238] sm:$0xff]
  %v247 = vld [vmem:[%s9 + $0x240] sm:$0xff]
  %v248 = vld [vmem:[%s9 + $0x248] sm:$0xff]
  %v249 = vld [vmem:[%s9 + $0x250] sm:$0xff]
  %v250 = vld [vmem:[%s9 + $0x258] sm:$0xff]
  %v251 = vld [vmem:[%s9 + $0x260] sm:$0xff]
  %v252 = vld [vmem:[%s9 + $0x268] sm:$0xff]
  %v253 = vld [vmem:[%s9 + $0x270] sm:$0xff]
  %v254 = vld [vmem:[%s9 + $0x278] sm:$0xff]
  %v255 = vld [vmem:[%s9 + $0x280] sm:$0xff]
  %v256 = vld [vmem:[%s9 + $0x288] sm:$0xff]
  %v257 = vld [vmem:[%s9 + $0x290] sm:$0xff]
  %v258 = vld [vmem:[%s9 + $0x298] sm:$0xff]
  %v259 = vld [vmem:[%s9 + $0x2a0] sm:$0xff]
  %v260 = vld [vmem:[%s9 + $0x2a8] sm:$0xff]
  %v261 = vld [vmem:[%s9 + $0x2b0] sm:$0xff]
  %v262 = vld [vmem:[%s9 + $0x2b8] sm:$0xff]
  %v263 = vld [vmem:[%s9 + $0x2c0] sm:$0xff]
  %v264 = vld [vmem:[%s9 + $0x2c8] sm:$0xff]
  %v265 = vld [vmem:[%s9 + $0x2d0] sm:$0xff]
  %v266 = vld [vmem:[%s9 + $0x2d8] sm:$0xff]
  %v267 = vld [vmem:[%s9 + $0x2e0] sm:$0xff]
  %v268 = vld [vmem:[%s9 + $0x2e8] sm:$0xff]
  %v269 = vld [vmem:[%s9 + $0x2f0] sm:$0xff]
  %v270 = vld [vmem:[%s9 + $0x2f8] sm:$0xff]
  %v271 = vld [vmem:[%s9 + $0x300] sm:$0xff]
  %v272 = vld [vmem:[%s9 + $0x308] sm:$0xff]
  %v273 = vld [vmem:[%s9 + $0x310] sm:$0xff]
  %v274 = vld [vmem:[%s9 + $0x318] sm:$0xff]
  %v275 = vld [vmem:[%s9 + $0x320] sm:$0xff]
  %v276 = vld [vmem:[%s9 + $0x328] sm:$0xff]
  %v277 = vld [vmem:[%s9 + $0x330] sm:$0xff]
  %v278 = vld [vmem:[%s9 + $0x338] sm:$0xff]
  %v279 = vld [vmem:[%s9 + $0x340] sm:$0xff]
  %v280 = vld [vmem:[%s9 + $0x348] sm:$0xff]
  %v281 = vld [vmem:[%s9 + $0x350] sm:$0xff]
  %v282 = vld [vmem:[%s9 + $0x358] sm:$0xff]
  %v283 = vld [vmem:[%s9 + $0x360] sm:$0xff]
  %v284 = vld [vmem:[%s9 + $0x368] sm:$0xff]
  %v285 = vld [vmem:[%s9 + $0x370] sm:$0xff]
  %v286 = vld [vmem:[%s9 + $0x378] sm:$0xff]
  %v287 = vld [vmem:[%s9 + $0x380] sm:$0xff]
  %v288 = vld [vmem:[%s9 + $0x388] sm:$0xff]
  %v289 = vld [vmem:[%s9 + $0x390] sm:$0xff]
  %v290 = vld [vmem:[%s9 + $0x398] sm:$0xff]
  %v291 = vld [vmem:[%s9 + $0x3a0] sm:$0xff]
  %v292 = vld [vmem:[%s9 + $0x3a8] sm:$0xff]
  %v293 = vld [vmem:[%s9 + $0x3b0] sm:$0xff]
  %v294 = vld [vmem:[%s9 + $0x3b8] sm:$0xff]
  %v295 = vld [vmem:[%s9 + $0x3c0] sm:$0xff]
  %v296 = vld [vmem:[%s9 + $0x3c8] sm:$0xff]
  %v297 = vld [vmem:[%s9 + $0x3d0] sm:$0xff]
  %v298 = vld [vmem:[%s9 + $0x3d8] sm:$0xff]
  %v299 = vld [vmem:[%s9 + $0x3e0] sm:$0xff]
  %v300 = vld [vmem:[%s9 + $0x3e8] sm:$0xff]
  %v301 = vld [vmem:[%s9 + $0x3f0] sm:$0xff]
  %v302 = vld [vmem:[%s9 + $0x3f8] sm:$0xff]
  %v303 = vld [vmem:[%s9 + $0x400] sm:$0xff]
  %v304 = vld [vmem:[%s9 + $0x408] sm:$0xff]
  %v305 = vld [vmem:[%s9 + $0x410] sm:$0xff]
  %v306 = vld [vmem:[%s9 + $0x418] sm:$0xff]
  %v307 = vld [vmem:[%s9 + $0x420] sm:$0xff]
  %v308 = vld [vmem:[%s9 + $0x428] sm:$0xff]
  %v309 = vld [vmem:[%s9 + $0x430] sm:$0xff]
  %v310 = vld [vmem:[%s9 + $0x438] sm:$0xff]
  %v311 = vld [vmem:[%s9 + $0x440] sm:$0xff]
  %v312 = vld [vmem:[%s9 + $0x448] sm:$0xff]
  %v313 = vld [vmem:[%s9 + $0x450] sm:$0xff]
  %v314 = vld [vmem:[%s9 + $0x458] sm:$0xff]
  %v315 = vld [vmem:[%s9 + $0x460] sm:$0xff]
  %v316 = vld [vmem:[%s9 + $0x468] sm:$0xff]
  %v317 = vld [vmem:[%s9 + $0x470] sm:$0xff]
  %v318 = vld [vmem:[%s9 + $0x478] sm:$0xff]
  %v319 = vld [vmem:[%s9 + $0x480] sm:$0xff]
  %v320 = vld [vmem:[%s9 + $0x488] sm:$0xff]
  %v321 = vld [vmem:[%s9 + $0x490] sm:$0xff]
  %v322 = vld [vmem:[%s9 + $0x498] sm:$0xff]
  %v323 = vld [vmem:[%s9 + $0x4a0] sm:$0xff]
  %v324 = vld [vmem:[%s9 + $0x4a8] sm:$0xff]
  %v325 = vld [vmem:[%s9 + $0x4b0] sm:$0xff]
  %v326 = vld [vmem:[%s9 + $0x4b8] sm:$0xff]
  %v327 = vld [vmem:[%s9 + $0x4c0] sm:$0xff]
  %v328 = vld [vmem:[%s9 + $0x4c8] sm:$0xff]
  %v329 = vld [vmem:[%s9 + $0x4d0] sm:$0xff]
  %v330 = vld [vmem:[%s9 + $0x4d8] sm:$0xff]
  %v331 = vld [vmem:[%s9 + $0x4e0] sm:$0xff]
  %v332 = vld [vmem:[%s9 + $0x4e8] sm:$0xff]
  %v333 = vld [vmem:[%s9 + $0x4f0] sm:$0xff]
  %v334 = vld [vmem:[%s9 + $0x4f8] sm:$0xff]
  %v335 = vld [vmem:[%s9 + $0x500] sm:$0xff]
  %v336 = vld [vmem:[%s9 + $0x508] sm:$0xff]
  %v337 = vld [vmem:[%s9 + $0x510] sm:$0xff]
  %v338 = vld [vmem:[%s9 + $0x518] sm:$0xff]
  %v339 = vld [vmem:[%s9 + $0x520] sm:$0xff]
  %v340 = vld [vmem:[%s9 + $0x528] sm:$0xff]
  %v341 = vld [vmem:[%s9 + $0x530] sm:$0xff]
  %v342 = vld [vmem:[%s9 + $0x538] sm:$0xff]
  %v343 = vld [vmem:[%s9 + $0x540] sm:$0xff]
  %v344 = vld [vmem:[%s9 + $0x548] sm:$0xff]
  %v345 = vld [vmem:[%s9 + $0x550] sm:$0xff]
  %v346 = vld [vmem:[%s9 + $0x558] sm:$0xff]
  %v347 = vld [vmem:[%s9 + $0x560] sm:$0xff]
  %v348 = vld [vmem:[%s9 + $0x568] sm:$0xff]
  %v349 = vld [vmem:[%s9 + $0x570] sm:$0xff]
  %v350 = vld [vmem:[%s9 + $0x578] sm:$0xff]
  %v351 = vld [vmem:[%s9 + $0x580] sm:$0xff]
  %v352 = vld [vmem:[%s9 + $0x588] sm:$0xff]
  %v353 = vld [vmem:[%s9 + $0x590] sm:$0xff]
  %v354 = vld [vmem:[%s9 + $0x598] sm:$0xff]
  %v355 = vld [vmem:[%s9 + $0x5a0] sm:$0xff]
  %v356 = vld [vmem:[%s9 + $0x5a8] sm:$0xff]
  %v357 = vld [vmem:[%s9 + $0x5b0] sm:$0xff]
  %v358 = vld [vmem:[%s9 + $0x5b8] sm:$0xff]
  %v359 = vld [vmem:[%s9 + $0x5c0] sm:$0xff]
  %v360 = vld [vmem:[%s9 + $0x5c8] sm:$0xff]
  %v361 = vld [vmem:[%s9 + $0x5d0] sm:$0xff]
  %v362 = vld [vmem:[%s9 + $0x5d8] sm:$0xff]
  %v363 = vld [vmem:[%s9 + $0x5e0] sm:$0xff]
  %v364 = vld [vmem:[%s9 + $0x5e8] sm:$0xff]
  %v365 = vld [vmem:[%s9 + $0x5f0] sm:$0xff]
  %v366 = vld [vmem:[%s9 + $0x5f8] sm:$0xff]
  %v367 = vld [vmem:[%s9 + $0x600] sm:$0xff]
  %v368 = vld [vmem:[%s9 + $0x608] sm:$0xff]
  %v369 = vld [vmem:[%s9 + $0x610] sm:$0xff]
  %v370 = vld [vmem:[%s9 + $0x618] sm:$0xff]
  %v371 = vld [vmem:[%s9 + $0x620] sm:$0xff]
  %v372 = vld [vmem:[%s9 + $0x628] sm:$0xff]
  %v373 = vld [vmem:[%s9 + $0x630] sm:$0xff]
  %v374 = vld [vmem:[%s9 + $0x638] sm:$0xff]
  %v375 = vld [vmem:[%s9 + $0x640] sm:$0xff]
  %v376 = vld [vmem:[%s9 + $0x648] sm:$0xff]
  %v377 = vld [vmem:[%s9 + $0x650] sm:$0xff]
  %v378 = vld [vmem:[%s9 + $0x658] sm:$0xff]
  %v379 = vld [vmem:[%s9 + $0x660] sm:$0xff]
  %v380 = vld [vmem:[%s9 + $0x668] sm:$0xff]
  %v381 = vld [vmem:[%s9 + $0x670] sm:$0xff]
  %v382 = vld [vmem:[%s9 + $0x678] sm:$0xff]
  %v383 = vld [vmem:[%s9 + $0x680] sm:$0xff]
  %v384 = vld [vmem:[%s9 + $0x688] sm:$0xff]
  %v385 = vld [vmem:[%s9 + $0x690] sm:$0xff]
  %v386 = vld [vmem:[%s9 + $0x698] sm:$0xff]
  %v387 = vld [vmem:[%s9 + $0x6a0] sm:$0xff]
  %v388 = vld [vmem:[%s9 + $0x6a8] sm:$0xff]
  %v389 = vld [vmem:[%s9 + $0x6b0] sm:$0xff]
  %v390 = vld [vmem:[%s9 + $0x6b8] sm:$0xff]
  %v391 = vld [vmem:[%s9 + $0x6c0] sm:$0xff]
  %v392 = vld [vmem:[%s9 + $0x6c8] sm:$0xff]
  %v393 = vld [vmem:[%s9 + $0x6d0] sm:$0xff]
  %v394 = vld [vmem:[%s9 + $0x6d8] sm:$0xff]
  %v395 = vld [vmem:[%s9 + $0x6e0] sm:$0xff]
  %v396 = vld [vmem:[%s9 + $0x6e8] sm:$0xff]
  %v397 = vld [vmem:[%s9 + $0x6f0] sm:$0xff]
  %v398 = vld [vmem:[%s9 + $0x6f8] sm:$0xff]
  %v399 = vld [vmem:[%s9 + $0x700] sm:$0xff]
  %v400 = vld [vmem:[%s9 + $0x708] sm:$0xff]
  %v401 = vld [vmem:[%s9 + $0x710] sm:$0xff]
  %v402 = vld [vmem:[%s9 + $0x718] sm:$0xff]
  %v403 = vld [vmem:[%s9 + $0x720] sm:$0xff]
  %v404 = vld [vmem:[%s9 + $0x728] sm:$0xff]
  %v405 = vld [vmem:[%s9 + $0x730] sm:$0xff]
  %v406 = vld [vmem:[%s9 + $0x738] sm:$0xff]
  %v407 = vld [vmem:[%s9 + $0x740] sm:$0xff]
  %v408 = vld [vmem:[%s9 + $0x748] sm:$0xff]
  %v409 = vld [vmem:[%s9 + $0x750] sm:$0xff]
  %v410 = vld [vmem:[%s9 + $0x758] sm:$0xff]
  %v411 = vld [vmem:[%s9 + $0x760] sm:$0xff]
  %v412 = vld [vmem:[%s9 + $0x768] sm:$0xff]
  %v413 = vld [vmem:[%s9 + $0x770] sm:$0xff]
  %v414 = vld [vmem:[%s9 + $0x778] sm:$0xff]
  %v415 = vld [vmem:[%s9 + $0x780] sm:$0xff]
  %v416 = vld [vmem:[%s9 + $0x788] sm:$0xff]
  %v417 = vld [vmem:[%s9 + $0x790] sm:$0xff]
  %v418 = vld [vmem:[%s9 + $0x798] sm:$0xff]
  %v419 = vld [vmem:[%s9 + $0x7a0] sm:$0xff]
  %v420 = vld [vmem:[%s9 + $0x7a8] sm:$0xff]
  %v421 = vld [vmem:[%s9 + $0x7b0] sm:$0xff]
  %v422 = vld [vmem:[%s9 + $0x7b8] sm:$0xff]
  %v423 = vld [vmem:[%s9 + $0x7c0] sm:$0xff]
  %v424 = vld [vmem:[%s9 + $0x7c8] sm:$0xff]
  %v425 = vld [vmem:[%s9 + $0x7d0] sm:$0xff]
  %v426 = vld [vmem:[%s9 + $0x7d8] sm:$0xff]
  %v427 = vld [vmem:[%s9 + $0x7e0] sm:$0xff]
  %v428 = vld [vmem:[%s9 + $0x7e8] sm:$0xff]
  %v429 = vld [vmem:[%s9 + $0x7f0] sm:$0xff]
  %v430 = vld [vmem:[%s9 + $0x7f8] sm:$0xff]
  %v431 = vld [vmem:[%s9 + $0x800] sm:$0xff]
  %v432 = vld [vmem:[%s9 + $0x808] sm:$0xff]
  %v433 = vld [vmem:[%s9 + $0x810] sm:$0xff]
  %v434 = vld [vmem:[%s9 + $0x818] sm:$0xff]
  %v435 = vld [vmem:[%s9 + $0x820] sm:$0xff]
  %v436 = vld [vmem:[%s9 + $0x828] sm:$0xff]
  %v437 = vld [vmem:[%s9 + $0x830] sm:$0xff]
  %v438 = vld [vmem:[%s9 + $0x838] sm:$0xff]
  %v439 = vld [vmem:[%s9 + $0x840] sm:$0xff]
  %v440 = vld [vmem:[%s9 + $0x848] sm:$0xff]
  %v441 = vld [vmem:[%s9 + $0x850] sm:$0xff]
  %v442 = vld [vmem:[%s9 + $0x858] sm:$0xff]
  %v443 = vld [vmem:[%s9 + $0x860] sm:$0xff]
  %v444 = vld [vmem:[%s9 + $0x868] sm:$0xff]
  %v445 = vld [vmem:[%s9 + $0x870] sm:$0xff]
  %v446 = vld [vmem:[%s9 + $0x878] sm:$0xff]
  %v447 = vld [vmem:[%s9 + $0x880] sm:$0xff]
  %v448 = vld [vmem:[%s9 + $0x888] sm:$0xff]
  %v449 = vld [vmem:[%s9 + $0x890] sm:$0xff]
  %v450 = vld [vmem:[%s9 + $0x898] sm:$0xff]
  %v451 = vld [vmem:[%s9 + $0x8a0] sm:$0xff]
  %v452 = vld [vmem:[%s9 + $0x8a8] sm:$0xff]
  %v453 = vld [vmem:[%s9 + $0x8b0] sm:$0xff]
  %v454 = vld [vmem:[%s9 + $0x8b8] sm:$0xff]
  %v455 = vld [vmem:[%s9 + $0x8c0] sm:$0xff]
  %v456 = vld [vmem:[%s9 + $0x8c8] sm:$0xff]
  %v457 = vld [vmem:[%s9 + $0x8d0] sm:$0xff]
  %v458 = vld [vmem:[%s9 + $0x8d8] sm:$0xff]
  %v459 = vld [vmem:[%s9 + $0x8e0] sm:$0xff]
  %v460 = vld [vmem:[%s9 + $0x8e8] sm:$0xff]
  %v461 = vld [vmem:[%s9 + $0x8f0] sm:$0xff]
  %v462 = vld [vmem:[%s9 + $0x8f8] sm:$0xff]
  %v463 = vld [vmem:[%s11] sm:$0x3f]
  %v465 = vperm.slane %v463, 0
  %v466 = vperm.slane %v463, 1
  %v467 = vperm.slane %v463, 2
  %v468 = vperm.slane %v463, 3
  %v469 = vperm.slane %v463, 4
  %v470 = vperm.slane %v463, 5
  %v483 = vunpack.c.l.b16 %v169
  %v484 = vunpack.c.h.b16 %v169
  %v485 = vunpack.c.l.b16 %v170
  %v486 = vunpack.c.h.b16 %v170
  %v487 = vunpack.c.l.b16 %v171
  %v488 = vunpack.c.h.b16 %v171
  %v489 = vunpack.c.l.b16 %v172
  %v490 = vunpack.c.h.b16 %v172
  %v491 = vunpack.c.l.b16 %v173
  %v492 = vunpack.c.h.b16 %v173
  %v493 = vunpack.c.l.b16 %v174
  %v494 = vunpack.c.h.b16 %v174
  %v495 = vpack.c.b16 %v489, %v483
  %v496 = vpack.c.b16 %v490, %v484
  %v497 = vpack.c.b16 %v491, %v485
  %v498 = vpack.c.b16 %v492, %v486
  %v499 = vpack.c.b16 %v493, %v487
  %v500 = vpack.c.b16 %v494, %v488
  %v795 = vunpack.c.l.b16 %v175
  %v796 = vunpack.c.h.b16 %v175
  %v797 = vunpack.c.l.b16 %v176
  %v798 = vunpack.c.h.b16 %v176
  %v799 = vunpack.c.l.b16 %v177
  %v800 = vunpack.c.h.b16 %v177
  %v801 = vunpack.c.l.b16 %v178
  %v802 = vunpack.c.h.b16 %v178
  %v803 = vunpack.c.l.b16 %v179
  %v804 = vunpack.c.h.b16 %v179
  %v805 = vunpack.c.l.b16 %v180
  %v806 = vunpack.c.h.b16 %v180
  %v807 = vunpack.c.l.b16 %v181
  %v808 = vunpack.c.h.b16 %v181
  %v809 = vunpack.c.l.b16 %v182
  %v810 = vunpack.c.h.b16 %v182
  %v811 = vunpack.c.l.b16 %v183
  %v812 = vunpack.c.h.b16 %v183
  %v813 = vunpack.c.l.b16 %v184
  %v814 = vunpack.c.h.b16 %v184
  %v815 = vunpack.c.l.b16 %v185
  %v816 = vunpack.c.h.b16 %v185
  %v817 = vunpack.c.l.b16 %v186
  %v818 = vunpack.c.h.b16 %v186
  %v819 = vunpack.c.l.b16 %v187
  %v820 = vunpack.c.h.b16 %v187
  %v821 = vunpack.c.l.b16 %v188
  %v822 = vunpack.c.h.b16 %v188
  %v823 = vunpack.c.l.b16 %v189
  %v824 = vunpack.c.h.b16 %v189
  %v825 = vunpack.c.l.b16 %v190
  %v826 = vunpack.c.h.b16 %v190
  %v827 = vunpack.c.l.b16 %v191
  %v828 = vunpack.c.h.b16 %v191
  %v829 = vunpack.c.l.b16 %v192
  %v830 = vunpack.c.h.b16 %v192
  %v831 = vunpack.c.l.b16 %v193
  %v832 = vunpack.c.h.b16 %v193
  %v833 = vunpack.c.l.b16 %v194
  %v834 = vunpack.c.h.b16 %v194
  %v835 = vunpack.c.l.b16 %v195
  %v836 = vunpack.c.h.b16 %v195
  %v837 = vunpack.c.l.b16 %v196
  %v838 = vunpack.c.h.b16 %v196
  %v839 = vunpack.c.l.b16 %v197
  %v840 = vunpack.c.h.b16 %v197
  %v841 = vunpack.c.l.b16 %v198
  %v842 = vunpack.c.h.b16 %v198
  %v843 = vunpack.c.l.b16 %v199
  %v844 = vunpack.c.h.b16 %v199
  %v845 = vunpack.c.l.b16 %v200
  %v846 = vunpack.c.h.b16 %v200
  %v847 = vunpack.c.l.b16 %v201
  %v848 = vunpack.c.h.b16 %v201
  %v849 = vunpack.c.l.b16 %v202
  %v850 = vunpack.c.h.b16 %v202
  %v851 = vunpack.c.l.b16 %v203
  %v852 = vunpack.c.h.b16 %v203
  %v853 = vunpack.c.l.b16 %v204
  %v854 = vunpack.c.h.b16 %v204
  %v855 = vunpack.c.l.b16 %v205
  %v856 = vunpack.c.h.b16 %v205
  %v857 = vunpack.c.l.b16 %v206
  %v858 = vunpack.c.h.b16 %v206
  %v859 = vunpack.c.l.b16 %v207
  %v860 = vunpack.c.h.b16 %v207
  %v861 = vunpack.c.l.b16 %v208
  %v862 = vunpack.c.h.b16 %v208
  %v863 = vunpack.c.l.b16 %v209
  %v864 = vunpack.c.h.b16 %v209
  %v865 = vunpack.c.l.b16 %v210
  %v866 = vunpack.c.h.b16 %v210
  %v867 = vunpack.c.l.b16 %v211
  %v868 = vunpack.c.h.b16 %v211
  %v869 = vunpack.c.l.b16 %v212
  %v870 = vunpack.c.h.b16 %v212
  %v871 = vunpack.c.l.b16 %v213
  %v872 = vunpack.c.h.b16 %v213
  %v873 = vunpack.c.l.b16 %v214
  %v874 = vunpack.c.h.b16 %v214
  %v875 = vunpack.c.l.b16 %v215
  %v876 = vunpack.c.h.b16 %v215
  %v877 = vunpack.c.l.b16 %v216
  %v878 = vunpack.c.h.b16 %v216
  %v879 = vunpack.c.l.b16 %v217
  %v880 = vunpack.c.h.b16 %v217
  %v881 = vunpack.c.l.b16 %v218
  %v882 = vunpack.c.h.b16 %v218
  %v883 = vunpack.c.l.b16 %v219
  %v884 = vunpack.c.h.b16 %v219
  %v885 = vunpack.c.l.b16 %v220
  %v886 = vunpack.c.h.b16 %v220
  %v887 = vunpack.c.l.b16 %v221
  %v888 = vunpack.c.h.b16 %v221
  %v889 = vunpack.c.l.b16 %v222
  %v890 = vunpack.c.h.b16 %v222
  %v891 = vunpack.c.l.b16 %v223
  %v892 = vunpack.c.h.b16 %v223
  %v893 = vunpack.c.l.b16 %v224
  %v894 = vunpack.c.h.b16 %v224
  %v895 = vunpack.c.l.b16 %v225
  %v896 = vunpack.c.h.b16 %v225
  %v897 = vunpack.c.l.b16 %v226
  %v898 = vunpack.c.h.b16 %v226
  %v899 = vunpack.c.l.b16 %v227
  %v900 = vunpack.c.h.b16 %v227
  %v901 = vunpack.c.l.b16 %v228
  %v902 = vunpack.c.h.b16 %v228
  %v903 = vunpack.c.l.b16 %v229
  %v904 = vunpack.c.h.b16 %v229
  %v905 = vunpack.c.l.b16 %v230
  %v906 = vunpack.c.h.b16 %v230
  %v907 = vunpack.c.l.b16 %v231
  %v908 = vunpack.c.h.b16 %v231
  %v909 = vunpack.c.l.b16 %v232
  %v910 = vunpack.c.h.b16 %v232
  %v911 = vunpack.c.l.b16 %v233
  %v912 = vunpack.c.h.b16 %v233
  %v913 = vunpack.c.l.b16 %v234
  %v914 = vunpack.c.h.b16 %v234
  %v915 = vunpack.c.l.b16 %v235
  %v916 = vunpack.c.h.b16 %v235
  %v917 = vunpack.c.l.b16 %v236
  %v918 = vunpack.c.h.b16 %v236
  %v919 = vunpack.c.l.b16 %v237
  %v920 = vunpack.c.h.b16 %v237
  %v921 = vunpack.c.l.b16 %v238
  %v922 = vunpack.c.h.b16 %v238
  %v923 = vunpack.c.l.b16 %v239
  %v924 = vunpack.c.h.b16 %v239
  %v925 = vunpack.c.l.b16 %v240
  %v926 = vunpack.c.h.b16 %v240
  %v927 = vunpack.c.l.b16 %v241
  %v928 = vunpack.c.h.b16 %v241
  %v929 = vunpack.c.l.b16 %v242
  %v930 = vunpack.c.h.b16 %v242
  %v931 = vunpack.c.l.b16 %v243
  %v932 = vunpack.c.h.b16 %v243
  %v933 = vunpack.c.l.b16 %v244
  %v934 = vunpack.c.h.b16 %v244
  %v935 = vunpack.c.l.b16 %v245
  %v936 = vunpack.c.h.b16 %v245
  %v937 = vunpack.c.l.b16 %v246
  %v938 = vunpack.c.h.b16 %v246
  %v939 = vunpack.c.l.b16 %v247
  %v940 = vunpack.c.h.b16 %v247
  %v941 = vunpack.c.l.b16 %v248
  %v942 = vunpack.c.h.b16 %v248
  %v943 = vunpack.c.l.b16 %v249
  %v944 = vunpack.c.h.b16 %v249
  %v945 = vunpack.c.l.b16 %v250
  %v946 = vunpack.c.h.b16 %v250
  %v947 = vunpack.c.l.b16 %v251
  %v948 = vunpack.c.h.b16 %v251
  %v949 = vunpack.c.l.b16 %v252
  %v950 = vunpack.c.h.b16 %v252
  %v951 = vunpack.c.l.b16 %v253
  %v952 = vunpack.c.h.b16 %v253
  %v953 = vunpack.c.l.b16 %v254
  %v954 = vunpack.c.h.b16 %v254
  %v955 = vunpack.c.l.b16 %v255
  %v956 = vunpack.c.h.b16 %v255
  %v957 = vunpack.c.l.b16 %v256
  %v958 = vunpack.c.h.b16 %v256
  %v959 = vunpack.c.l.b16 %v257
  %v960 = vunpack.c.h.b16 %v257
  %v961 = vunpack.c.l.b16 %v258
  %v962 = vunpack.c.h.b16 %v258
  %v963 = vunpack.c.l.b16 %v259
  %v964 = vunpack.c.h.b16 %v259
  %v965 = vunpack.c.l.b16 %v260
  %v966 = vunpack.c.h.b16 %v260
  %v967 = vunpack.c.l.b16 %v261
  %v968 = vunpack.c.h.b16 %v261
  %v969 = vunpack.c.l.b16 %v262
  %v970 = vunpack.c.h.b16 %v262
  %v971 = vunpack.c.l.b16 %v263
  %v972 = vunpack.c.h.b16 %v263
  %v973 = vunpack.c.l.b16 %v264
  %v974 = vunpack.c.h.b16 %v264
  %v975 = vunpack.c.l.b16 %v265
  %v976 = vunpack.c.h.b16 %v265
  %v977 = vunpack.c.l.b16 %v266
  %v978 = vunpack.c.h.b16 %v266
  %v979 = vunpack.c.l.b16 %v267
  %v980 = vunpack.c.h.b16 %v267
  %v981 = vunpack.c.l.b16 %v268
  %v982 = vunpack.c.h.b16 %v268
  %v983 = vunpack.c.l.b16 %v269
  %v984 = vunpack.c.h.b16 %v269
  %v985 = vunpack.c.l.b16 %v270
  %v986 = vunpack.c.h.b16 %v270
  %v987 = vunpack.c.l.b16 %v271
  %v988 = vunpack.c.h.b16 %v271
  %v989 = vunpack.c.l.b16 %v272
  %v990 = vunpack.c.h.b16 %v272
  %v991 = vunpack.c.l.b16 %v273
  %v992 = vunpack.c.h.b16 %v273
  %v993 = vunpack.c.l.b16 %v274
  %v994 = vunpack.c.h.b16 %v274
  %v995 = vunpack.c.l.b16 %v275
  %v996 = vunpack.c.h.b16 %v275
  %v997 = vunpack.c.l.b16 %v276
  %v998 = vunpack.c.h.b16 %v276
  %v999 = vunpack.c.l.b16 %v277
  %v1000 = vunpack.c.h.b16 %v277
  %v1001 = vunpack.c.l.b16 %v278
  %v1002 = vunpack.c.h.b16 %v278
  %v1003 = vunpack.c.l.b16 %v279
  %v1004 = vunpack.c.h.b16 %v279
  %v1005 = vunpack.c.l.b16 %v280
  %v1006 = vunpack.c.h.b16 %v280
  %v1007 = vunpack.c.l.b16 %v281
  %v1008 = vunpack.c.h.b16 %v281
  %v1009 = vunpack.c.l.b16 %v282
  %v1010 = vunpack.c.h.b16 %v282
  %v1011 = vunpack.c.l.b16 %v283
  %v1012 = vunpack.c.h.b16 %v283
  %v1013 = vunpack.c.l.b16 %v284
  %v1014 = vunpack.c.h.b16 %v284
  %v1015 = vunpack.c.l.b16 %v285
  %v1016 = vunpack.c.h.b16 %v285
  %v1017 = vunpack.c.l.b16 %v286
  %v1018 = vunpack.c.h.b16 %v286
  %v1019 = vunpack.c.l.b16 %v287
  %v1020 = vunpack.c.h.b16 %v287
  %v1021 = vunpack.c.l.b16 %v288
  %v1022 = vunpack.c.h.b16 %v288
  %v1023 = vunpack.c.l.b16 %v289
  %v1024 = vunpack.c.h.b16 %v289
  %v1025 = vunpack.c.l.b16 %v290
  %v1026 = vunpack.c.h.b16 %v290
  %v1027 = vunpack.c.l.b16 %v291
  %v1028 = vunpack.c.h.b16 %v291
  %v1029 = vunpack.c.l.b16 %v292
  %v1030 = vunpack.c.h.b16 %v292
  %v1031 = vunpack.c.l.b16 %v293
  %v1032 = vunpack.c.h.b16 %v293
  %v1033 = vunpack.c.l.b16 %v294
  %v1034 = vunpack.c.h.b16 %v294
  %v1035 = vunpack.c.l.b16 %v295
  %v1036 = vunpack.c.h.b16 %v295
  %v1037 = vunpack.c.l.b16 %v296
  %v1038 = vunpack.c.h.b16 %v296
  %v1039 = vunpack.c.l.b16 %v297
  %v1040 = vunpack.c.h.b16 %v297
  %v1041 = vunpack.c.l.b16 %v298
  %v1042 = vunpack.c.h.b16 %v298
  %v1043 = vunpack.c.l.b16 %v299
  %v1044 = vunpack.c.h.b16 %v299
  %v1045 = vunpack.c.l.b16 %v300
  %v1046 = vunpack.c.h.b16 %v300
  %v1047 = vunpack.c.l.b16 %v301
  %v1048 = vunpack.c.h.b16 %v301
  %v1049 = vunpack.c.l.b16 %v302
  %v1050 = vunpack.c.h.b16 %v302
  %v1051 = vunpack.c.l.b16 %v303
  %v1052 = vunpack.c.h.b16 %v303
  %v1053 = vunpack.c.l.b16 %v304
  %v1054 = vunpack.c.h.b16 %v304
  %v1055 = vunpack.c.l.b16 %v305
  %v1056 = vunpack.c.h.b16 %v305
  %v1057 = vunpack.c.l.b16 %v306
  %v1058 = vunpack.c.h.b16 %v306
  %v1059 = vunpack.c.l.b16 %v307
  %v1060 = vunpack.c.h.b16 %v307
  %v1061 = vunpack.c.l.b16 %v308
  %v1062 = vunpack.c.h.b16 %v308
  %v1063 = vunpack.c.l.b16 %v309
  %v1064 = vunpack.c.h.b16 %v309
  %v1065 = vunpack.c.l.b16 %v310
  %v1066 = vunpack.c.h.b16 %v310
  %v1067 = vunpack.c.l.b16 %v311
  %v1068 = vunpack.c.h.b16 %v311
  %v1069 = vunpack.c.l.b16 %v312
  %v1070 = vunpack.c.h.b16 %v312
  %v1071 = vunpack.c.l.b16 %v313
  %v1072 = vunpack.c.h.b16 %v313
  %v1073 = vunpack.c.l.b16 %v314
  %v1074 = vunpack.c.h.b16 %v314
  %v1075 = vunpack.c.l.b16 %v315
  %v1076 = vunpack.c.h.b16 %v315
  %v1077 = vunpack.c.l.b16 %v316
  %v1078 = vunpack.c.h.b16 %v316
  %v1079 = vunpack.c.l.b16 %v317
  %v1080 = vunpack.c.h.b16 %v317
  %v1081 = vunpack.c.l.b16 %v318
  %v1082 = vunpack.c.h.b16 %v318
  %v1083 = vunpack.c.l.b16 %v319
  %v1084 = vunpack.c.h.b16 %v319
  %v1085 = vunpack.c.l.b16 %v320
  %v1086 = vunpack.c.h.b16 %v320
  %v1087 = vunpack.c.l.b16 %v321
  %v1088 = vunpack.c.h.b16 %v321
  %v1089 = vunpack.c.l.b16 %v322
  %v1090 = vunpack.c.h.b16 %v322
  %v1091 = vunpack.c.l.b16 %v323
  %v1092 = vunpack.c.h.b16 %v323
  %v1093 = vunpack.c.l.b16 %v324
  %v1094 = vunpack.c.h.b16 %v324
  %v1095 = vunpack.c.l.b16 %v325
  %v1096 = vunpack.c.h.b16 %v325
  %v1097 = vunpack.c.l.b16 %v326
  %v1098 = vunpack.c.h.b16 %v326
  %v1099 = vunpack.c.l.b16 %v327
  %v1100 = vunpack.c.h.b16 %v327
  %v1101 = vunpack.c.l.b16 %v328
  %v1102 = vunpack.c.h.b16 %v328
  %v1103 = vunpack.c.l.b16 %v329
  %v1104 = vunpack.c.h.b16 %v329
  %v1105 = vunpack.c.l.b16 %v330
  %v1106 = vunpack.c.h.b16 %v330
  %v1107 = vunpack.c.l.b16 %v331
  %v1108 = vunpack.c.h.b16 %v331
  %v1109 = vunpack.c.l.b16 %v332
  %v1110 = vunpack.c.h.b16 %v332
  %v1111 = vunpack.c.l.b16 %v333
  %v1112 = vunpack.c.h.b16 %v333
  %v1113 = vunpack.c.l.b16 %v334
  %v1114 = vunpack.c.h.b16 %v334
  %v1115 = vunpack.c.l.b16 %v335
  %v1116 = vunpack.c.h.b16 %v335
  %v1117 = vunpack.c.l.b16 %v336
  %v1118 = vunpack.c.h.b16 %v336
  %v1119 = vunpack.c.l.b16 %v337
  %v1120 = vunpack.c.h.b16 %v337
  %v1121 = vunpack.c.l.b16 %v338
  %v1122 = vunpack.c.h.b16 %v338
  %v1123 = vunpack.c.l.b16 %v339
  %v1124 = vunpack.c.h.b16 %v339
  %v1125 = vunpack.c.l.b16 %v340
  %v1126 = vunpack.c.h.b16 %v340
  %v1127 = vunpack.c.l.b16 %v341
  %v1128 = vunpack.c.h.b16 %v341
  %v1129 = vunpack.c.l.b16 %v342
  %v1130 = vunpack.c.h.b16 %v342
  %v1131 = vunpack.c.l.b16 %v343
  %v1132 = vunpack.c.h.b16 %v343
  %v1133 = vunpack.c.l.b16 %v344
  %v1134 = vunpack.c.h.b16 %v344
  %v1135 = vunpack.c.l.b16 %v345
  %v1136 = vunpack.c.h.b16 %v345
  %v1137 = vunpack.c.l.b16 %v346
  %v1138 = vunpack.c.h.b16 %v346
  %v1139 = vunpack.c.l.b16 %v347
  %v1140 = vunpack.c.h.b16 %v347
  %v1141 = vunpack.c.l.b16 %v348
  %v1142 = vunpack.c.h.b16 %v348
  %v1143 = vunpack.c.l.b16 %v349
  %v1144 = vunpack.c.h.b16 %v349
  %v1145 = vunpack.c.l.b16 %v350
  %v1146 = vunpack.c.h.b16 %v350
  %v1147 = vunpack.c.l.b16 %v351
  %v1148 = vunpack.c.h.b16 %v351
  %v1149 = vunpack.c.l.b16 %v352
  %v1150 = vunpack.c.h.b16 %v352
  %v1151 = vunpack.c.l.b16 %v353
  %v1152 = vunpack.c.h.b16 %v353
  %v1153 = vunpack.c.l.b16 %v354
  %v1154 = vunpack.c.h.b16 %v354
  %v1155 = vunpack.c.l.b16 %v355
  %v1156 = vunpack.c.h.b16 %v355
  %v1157 = vunpack.c.l.b16 %v356
  %v1158 = vunpack.c.h.b16 %v356
  %v1159 = vunpack.c.l.b16 %v357
  %v1160 = vunpack.c.h.b16 %v357
  %v1161 = vunpack.c.l.b16 %v358
  %v1162 = vunpack.c.h.b16 %v358
  %v1163 = vunpack.c.l.b16 %v359
  %v1164 = vunpack.c.h.b16 %v359
  %v1165 = vunpack.c.l.b16 %v360
  %v1166 = vunpack.c.h.b16 %v360
  %v1167 = vunpack.c.l.b16 %v361
  %v1168 = vunpack.c.h.b16 %v361
  %v1169 = vunpack.c.l.b16 %v362
  %v1170 = vunpack.c.h.b16 %v362
  %v1171 = vunpack.c.l.b16 %v363
  %v1172 = vunpack.c.h.b16 %v363
  %v1173 = vunpack.c.l.b16 %v364
  %v1174 = vunpack.c.h.b16 %v364
  %v1175 = vunpack.c.l.b16 %v365
  %v1176 = vunpack.c.h.b16 %v365
  %v1177 = vunpack.c.l.b16 %v366
  %v1178 = vunpack.c.h.b16 %v366
  %v1179 = vunpack.c.l.b16 %v367
  %v1180 = vunpack.c.h.b16 %v367
  %v1181 = vunpack.c.l.b16 %v368
  %v1182 = vunpack.c.h.b16 %v368
  %v1183 = vunpack.c.l.b16 %v369
  %v1184 = vunpack.c.h.b16 %v369
  %v1185 = vunpack.c.l.b16 %v370
  %v1186 = vunpack.c.h.b16 %v370
  %v1187 = vunpack.c.l.b16 %v371
  %v1188 = vunpack.c.h.b16 %v371
  %v1189 = vunpack.c.l.b16 %v372
  %v1190 = vunpack.c.h.b16 %v372
  %v1191 = vunpack.c.l.b16 %v373
  %v1192 = vunpack.c.h.b16 %v373
  %v1193 = vunpack.c.l.b16 %v374
  %v1194 = vunpack.c.h.b16 %v374
  %v1195 = vunpack.c.l.b16 %v375
  %v1196 = vunpack.c.h.b16 %v375
  %v1197 = vunpack.c.l.b16 %v376
  %v1198 = vunpack.c.h.b16 %v376
  %v1199 = vunpack.c.l.b16 %v377
  %v1200 = vunpack.c.h.b16 %v377
  %v1201 = vunpack.c.l.b16 %v378
  %v1202 = vunpack.c.h.b16 %v378
  %v1203 = vunpack.c.l.b16 %v379
  %v1204 = vunpack.c.h.b16 %v379
  %v1205 = vunpack.c.l.b16 %v380
  %v1206 = vunpack.c.h.b16 %v380
  %v1207 = vunpack.c.l.b16 %v381
  %v1208 = vunpack.c.h.b16 %v381
  %v1209 = vunpack.c.l.b16 %v382
  %v1210 = vunpack.c.h.b16 %v382
  %v1211 = vunpack.c.l.b16 %v383
  %v1212 = vunpack.c.h.b16 %v383
  %v1213 = vunpack.c.l.b16 %v384
  %v1214 = vunpack.c.h.b16 %v384
  %v1215 = vunpack.c.l.b16 %v385
  %v1216 = vunpack.c.h.b16 %v385
  %v1217 = vunpack.c.l.b16 %v386
  %v1218 = vunpack.c.h.b16 %v386
  %v1219 = vunpack.c.l.b16 %v387
  %v1220 = vunpack.c.h.b16 %v387
  %v1221 = vunpack.c.l.b16 %v388
  %v1222 = vunpack.c.h.b16 %v388
  %v1223 = vunpack.c.l.b16 %v389
  %v1224 = vunpack.c.h.b16 %v389
  %v1225 = vunpack.c.l.b16 %v390
  %v1226 = vunpack.c.h.b16 %v390
  %v1227 = vunpack.c.l.b16 %v391
  %v1228 = vunpack.c.h.b16 %v391
  %v1229 = vunpack.c.l.b16 %v392
  %v1230 = vunpack.c.h.b16 %v392
  %v1231 = vunpack.c.l.b16 %v393
  %v1232 = vunpack.c.h.b16 %v393
  %v1233 = vunpack.c.l.b16 %v394
  %v1234 = vunpack.c.h.b16 %v394
  %v1235 = vunpack.c.l.b16 %v395
  %v1236 = vunpack.c.h.b16 %v395
  %v1237 = vunpack.c.l.b16 %v396
  %v1238 = vunpack.c.h.b16 %v396
  %v1239 = vunpack.c.l.b16 %v397
  %v1240 = vunpack.c.h.b16 %v397
  %v1241 = vunpack.c.l.b16 %v398
  %v1242 = vunpack.c.h.b16 %v398
  %v1243 = vunpack.c.l.b16 %v399
  %v1244 = vunpack.c.h.b16 %v399
  %v1245 = vunpack.c.l.b16 %v400
  %v1246 = vunpack.c.h.b16 %v400
  %v1247 = vunpack.c.l.b16 %v401
  %v1248 = vunpack.c.h.b16 %v401
  %v1249 = vunpack.c.l.b16 %v402
  %v1250 = vunpack.c.h.b16 %v402
  %v1251 = vunpack.c.l.b16 %v403
  %v1252 = vunpack.c.h.b16 %v403
  %v1253 = vunpack.c.l.b16 %v404
  %v1254 = vunpack.c.h.b16 %v404
  %v1255 = vunpack.c.l.b16 %v405
  %v1256 = vunpack.c.h.b16 %v405
  %v1257 = vunpack.c.l.b16 %v406
  %v1258 = vunpack.c.h.b16 %v406
  %v1259 = vunpack.c.l.b16 %v407
  %v1260 = vunpack.c.h.b16 %v407
  %v1261 = vunpack.c.l.b16 %v408
  %v1262 = vunpack.c.h.b16 %v408
  %v1263 = vunpack.c.l.b16 %v409
  %v1264 = vunpack.c.h.b16 %v409
  %v1265 = vunpack.c.l.b16 %v410
  %v1266 = vunpack.c.h.b16 %v410
  %v1267 = vunpack.c.l.b16 %v411
  %v1268 = vunpack.c.h.b16 %v411
  %v1269 = vunpack.c.l.b16 %v412
  %v1270 = vunpack.c.h.b16 %v412
  %v1271 = vunpack.c.l.b16 %v413
  %v1272 = vunpack.c.h.b16 %v413
  %v1273 = vunpack.c.l.b16 %v414
  %v1274 = vunpack.c.h.b16 %v414
  %v1275 = vunpack.c.l.b16 %v415
  %v1276 = vunpack.c.h.b16 %v415
  %v1277 = vunpack.c.l.b16 %v416
  %v1278 = vunpack.c.h.b16 %v416
  %v1279 = vunpack.c.l.b16 %v417
  %v1280 = vunpack.c.h.b16 %v417
  %v1281 = vunpack.c.l.b16 %v418
  %v1282 = vunpack.c.h.b16 %v418
  %v1283 = vunpack.c.l.b16 %v419
  %v1284 = vunpack.c.h.b16 %v419
  %v1285 = vunpack.c.l.b16 %v420
  %v1286 = vunpack.c.h.b16 %v420
  %v1287 = vunpack.c.l.b16 %v421
  %v1288 = vunpack.c.h.b16 %v421
  %v1289 = vunpack.c.l.b16 %v422
  %v1290 = vunpack.c.h.b16 %v422
  %v1291 = vunpack.c.l.b16 %v423
  %v1292 = vunpack.c.h.b16 %v423
  %v1293 = vunpack.c.l.b16 %v424
  %v1294 = vunpack.c.h.b16 %v424
  %v1295 = vunpack.c.l.b16 %v425
  %v1296 = vunpack.c.h.b16 %v425
  %v1297 = vunpack.c.l.b16 %v426
  %v1298 = vunpack.c.h.b16 %v426
  %v1299 = vunpack.c.l.b16 %v427
  %v1300 = vunpack.c.h.b16 %v427
  %v1301 = vunpack.c.l.b16 %v428
  %v1302 = vunpack.c.h.b16 %v428
  %v1303 = vunpack.c.l.b16 %v429
  %v1304 = vunpack.c.h.b16 %v429
  %v1305 = vunpack.c.l.b16 %v430
  %v1306 = vunpack.c.h.b16 %v430
  %v1307 = vunpack.c.l.b16 %v431
  %v1308 = vunpack.c.h.b16 %v431
  %v1309 = vunpack.c.l.b16 %v432
  %v1310 = vunpack.c.h.b16 %v432
  %v1311 = vunpack.c.l.b16 %v433
  %v1312 = vunpack.c.h.b16 %v433
  %v1313 = vunpack.c.l.b16 %v434
  %v1314 = vunpack.c.h.b16 %v434
  %v1315 = vunpack.c.l.b16 %v435
  %v1316 = vunpack.c.h.b16 %v435
  %v1317 = vunpack.c.l.b16 %v436
  %v1318 = vunpack.c.h.b16 %v436
  %v1319 = vunpack.c.l.b16 %v437
  %v1320 = vunpack.c.h.b16 %v437
  %v1321 = vunpack.c.l.b16 %v438
  %v1322 = vunpack.c.h.b16 %v438
  %v1323 = vunpack.c.l.b16 %v439
  %v1324 = vunpack.c.h.b16 %v439
  %v1325 = vunpack.c.l.b16 %v440
  %v1326 = vunpack.c.h.b16 %v440
  %v1327 = vunpack.c.l.b16 %v441
  %v1328 = vunpack.c.h.b16 %v441
  %v1329 = vunpack.c.l.b16 %v442
  %v1330 = vunpack.c.h.b16 %v442
  %v1331 = vunpack.c.l.b16 %v443
  %v1332 = vunpack.c.h.b16 %v443
  %v1333 = vunpack.c.l.b16 %v444
  %v1334 = vunpack.c.h.b16 %v444
  %v1335 = vunpack.c.l.b16 %v445
  %v1336 = vunpack.c.h.b16 %v445
  %v1337 = vunpack.c.l.b16 %v446
  %v1338 = vunpack.c.h.b16 %v446
  %v1339 = vunpack.c.l.b16 %v447
  %v1340 = vunpack.c.h.b16 %v447
  %v1341 = vunpack.c.l.b16 %v448
  %v1342 = vunpack.c.h.b16 %v448
  %v1343 = vunpack.c.l.b16 %v449
  %v1344 = vunpack.c.h.b16 %v449
  %v1345 = vunpack.c.l.b16 %v450
  %v1346 = vunpack.c.h.b16 %v450
  %v1347 = vunpack.c.l.b16 %v451
  %v1348 = vunpack.c.h.b16 %v451
  %v1349 = vunpack.c.l.b16 %v452
  %v1350 = vunpack.c.h.b16 %v452
  %v1351 = vunpack.c.l.b16 %v453
  %v1352 = vunpack.c.h.b16 %v453
  %v1353 = vunpack.c.l.b16 %v454
  %v1354 = vunpack.c.h.b16 %v454
  %v1355 = vunpack.c.l.b16 %v455
  %v1356 = vunpack.c.h.b16 %v455
  %v1357 = vunpack.c.l.b16 %v456
  %v1358 = vunpack.c.h.b16 %v456
  %v1359 = vunpack.c.l.b16 %v457
  %v1360 = vunpack.c.h.b16 %v457
  %v1361 = vunpack.c.l.b16 %v458
  %v1362 = vunpack.c.h.b16 %v458
  %v1363 = vunpack.c.l.b16 %v459
  %v1364 = vunpack.c.h.b16 %v459
  %v1365 = vunpack.c.l.b16 %v460
  %v1366 = vunpack.c.h.b16 %v460
  %v1367 = vunpack.c.l.b16 %v461
  %v1368 = vunpack.c.h.b16 %v461
  %v1369 = vunpack.c.l.b16 %v462
  %v1370 = vunpack.c.h.b16 %v462
  %v1371 = vpack.c.b16 %v801, %v795
  %v1372 = vpack.c.b16 %v802, %v796
  %v1373 = vpack.c.b16 %v803, %v797
  %v1374 = vpack.c.b16 %v804, %v798
  %v1375 = vpack.c.b16 %v805, %v799
  %v1376 = vpack.c.b16 %v806, %v800
  %v1377 = vpack.c.b16 %v813, %v807
  %v1378 = vpack.c.b16 %v814, %v808
  %v1379 = vpack.c.b16 %v815, %v809
  %v1380 = vpack.c.b16 %v816, %v810
  %v1381 = vpack.c.b16 %v817, %v811
  %v1382 = vpack.c.b16 %v818, %v812
  %v1383 = vpack.c.b16 %v825, %v819
  %v1384 = vpack.c.b16 %v826, %v820
  %v1385 = vpack.c.b16 %v827, %v821
  %v1386 = vpack.c.b16 %v828, %v822
  %v1387 = vpack.c.b16 %v829, %v823
  %v1388 = vpack.c.b16 %v830, %v824
  %v1389 = vpack.c.b16 %v837, %v831
  %v1390 = vpack.c.b16 %v838, %v832
  %v1391 = vpack.c.b16 %v839, %v833
  %v1392 = vpack.c.b16 %v840, %v834
  %v1393 = vpack.c.b16 %v841, %v835
  %v1394 = vpack.c.b16 %v842, %v836
  %v1395 = vpack.c.b16 %v849, %v843
  %v1396 = vpack.c.b16 %v850, %v844
  %v1397 = vpack.c.b16 %v851, %v845
  %v1398 = vpack.c.b16 %v852, %v846
  %v1399 = vpack.c.b16 %v853, %v847
  %v1400 = vpack.c.b16 %v854, %v848
  %v1401 = vpack.c.b16 %v861, %v855
  %v1402 = vpack.c.b16 %v862, %v856
  %v1403 = vpack.c.b16 %v863, %v857
  %v1404 = vpack.c.b16 %v864, %v858
  %v1405 = vpack.c.b16 %v865, %v859
  %v1406 = vpack.c.b16 %v866, %v860
  %v1407 = vpack.c.b16 %v873, %v867
  %v1408 = vpack.c.b16 %v874, %v868
  %v1409 = vpack.c.b16 %v875, %v869
  %v1410 = vpack.c.b16 %v876, %v870
  %v1411 = vpack.c.b16 %v877, %v871
  %v1412 = vpack.c.b16 %v878, %v872
  %v1413 = vpack.c.b16 %v885, %v879
  %v1414 = vpack.c.b16 %v886, %v880
  %v1415 = vpack.c.b16 %v887, %v881
  %v1416 = vpack.c.b16 %v888, %v882
  %v1417 = vpack.c.b16 %v889, %v883
  %v1418 = vpack.c.b16 %v890, %v884
  %v1419 = vpack.c.b16 %v897, %v891
  %v1420 = vpack.c.b16 %v898, %v892
  %v1421 = vpack.c.b16 %v899, %v893
  %v1422 = vpack.c.b16 %v900, %v894
  %v1423 = vpack.c.b16 %v901, %v895
  %v1424 = vpack.c.b16 %v902, %v896
  %v1425 = vpack.c.b16 %v909, %v903
  %v1426 = vpack.c.b16 %v910, %v904
  %v1427 = vpack.c.b16 %v911, %v905
  %v1428 = vpack.c.b16 %v912, %v906
  %v1429 = vpack.c.b16 %v913, %v907
  %v1430 = vpack.c.b16 %v914, %v908
  %v1431 = vpack.c.b16 %v921, %v915
  %v1432 = vpack.c.b16 %v922, %v916
  %v1433 = vpack.c.b16 %v923, %v917
  %v1434 = vpack.c.b16 %v924, %v918
  %v1435 = vpack.c.b16 %v925, %v919
  %v1436 = vpack.c.b16 %v926, %v920
  %v1437 = vpack.c.b16 %v933, %v927
  %v1438 = vpack.c.b16 %v934, %v928
  %v1439 = vpack.c.b16 %v935, %v929
  %v1440 = vpack.c.b16 %v936, %v930
  %v1441 = vpack.c.b16 %v937, %v931
  %v1442 = vpack.c.b16 %v938, %v932
  %v1443 = vpack.c.b16 %v945, %v939
  %v1444 = vpack.c.b16 %v946, %v940
  %v1445 = vpack.c.b16 %v947, %v941
  %v1446 = vpack.c.b16 %v948, %v942
  %v1447 = vpack.c.b16 %v949, %v943
  %v1448 = vpack.c.b16 %v950, %v944
  %v1449 = vpack.c.b16 %v957, %v951
  %v1450 = vpack.c.b16 %v958, %v952
  %v1451 = vpack.c.b16 %v959, %v953
  %v1452 = vpack.c.b16 %v960, %v954
  %v1453 = vpack.c.b16 %v961, %v955
  %v1454 = vpack.c.b16 %v962, %v956
  %v1455 = vpack.c.b16 %v969, %v963
  %v1456 = vpack.c.b16 %v970, %v964
  %v1457 = vpack.c.b16 %v971, %v965
  %v1458 = vpack.c.b16 %v972, %v966
  %v1459 = vpack.c.b16 %v973, %v967
  %v1460 = vpack.c.b16 %v974, %v968
  %v1461 = vpack.c.b16 %v981, %v975
  %v1462 = vpack.c.b16 %v982, %v976
  %v1463 = vpack.c.b16 %v983, %v977
  %v1464 = vpack.c.b16 %v984, %v978
  %v1465 = vpack.c.b16 %v985, %v979
  %v1466 = vpack.c.b16 %v986, %v980
  %v1467 = vpack.c.b16 %v993, %v987
  %v1468 = vpack.c.b16 %v994, %v988
  %v1469 = vpack.c.b16 %v995, %v989
  %v1470 = vpack.c.b16 %v996, %v990
  %v1471 = vpack.c.b16 %v997, %v991
  %v1472 = vpack.c.b16 %v998, %v992
  %v1473 = vpack.c.b16 %v1005, %v999
  %v1474 = vpack.c.b16 %v1006, %v1000
  %v1475 = vpack.c.b16 %v1007, %v1001
  %v1476 = vpack.c.b16 %v1008, %v1002
  %v1477 = vpack.c.b16 %v1009, %v1003
  %v1478 = vpack.c.b16 %v1010, %v1004
  %v1479 = vpack.c.b16 %v1017, %v1011
  %v1480 = vpack.c.b16 %v1018, %v1012
  %v1481 = vpack.c.b16 %v1019, %v1013
  %v1482 = vpack.c.b16 %v1020, %v1014
  %v1483 = vpack.c.b16 %v1021, %v1015
  %v1484 = vpack.c.b16 %v1022, %v1016
  %v1485 = vpack.c.b16 %v1029, %v1023
  %v1486 = vpack.c.b16 %v1030, %v1024
  %v1487 = vpack.c.b16 %v1031, %v1025
  %v1488 = vpack.c.b16 %v1032, %v1026
  %v1489 = vpack.c.b16 %v1033, %v1027
  %v1490 = vpack.c.b16 %v1034, %v1028
  %v1491 = vpack.c.b16 %v1041, %v1035
  %v1492 = vpack.c.b16 %v1042, %v1036
  %v1493 = vpack.c.b16 %v1043, %v1037
  %v1494 = vpack.c.b16 %v1044, %v1038
  %v1495 = vpack.c.b16 %v1045, %v1039
  %v1496 = vpack.c.b16 %v1046, %v1040
  %v1497 = vpack.c.b16 %v1053, %v1047
  %v1498 = vpack.c.b16 %v1054, %v1048
  %v1499 = vpack.c.b16 %v1055, %v1049
  %v1500 = vpack.c.b16 %v1056, %v1050
  %v1501 = vpack.c.b16 %v1057, %v1051
  %v1502 = vpack.c.b16 %v1058, %v1052
  %v1503 = vpack.c.b16 %v1065, %v1059
  %v1504 = vpack.c.b16 %v1066, %v1060
  %v1505 = vpack.c.b16 %v1067, %v1061
  %v1506 = vpack.c.b16 %v1068, %v1062
  %v1507 = vpack.c.b16 %v1069, %v1063
  %v1508 = vpack.c.b16 %v1070, %v1064
  %v1509 = vpack.c.b16 %v1077, %v1071
  %v1510 = vpack.c.b16 %v1078, %v1072
  %v1511 = vpack.c.b16 %v1079, %v1073
  %v1512 = vpack.c.b16 %v1080, %v1074
  %v1513 = vpack.c.b16 %v1081, %v1075
  %v1514 = vpack.c.b16 %v1082, %v1076
  %v1515 = vpack.c.b16 %v1089, %v1083
  %v1516 = vpack.c.b16 %v1090, %v1084
  %v1517 = vpack.c.b16 %v1091, %v1085
  %v1518 = vpack.c.b16 %v1092, %v1086
  %v1519 = vpack.c.b16 %v1093, %v1087
  %v1520 = vpack.c.b16 %v1094, %v1088
  %v1521 = vpack.c.b16 %v1101, %v1095
  %v1522 = vpack.c.b16 %v1102, %v1096
  %v1523 = vpack.c.b16 %v1103, %v1097
  %v1524 = vpack.c.b16 %v1104, %v1098
  %v1525 = vpack.c.b16 %v1105, %v1099
  %v1526 = vpack.c.b16 %v1106, %v1100
  %v1527 = vpack.c.b16 %v1113, %v1107
  %v1528 = vpack.c.b16 %v1114, %v1108
  %v1529 = vpack.c.b16 %v1115, %v1109
  %v1530 = vpack.c.b16 %v1116, %v1110
  %v1531 = vpack.c.b16 %v1117, %v1111
  %v1532 = vpack.c.b16 %v1118, %v1112
  %v1533 = vpack.c.b16 %v1125, %v1119
  %v1534 = vpack.c.b16 %v1126, %v1120
  %v1535 = vpack.c.b16 %v1127, %v1121
  %v1536 = vpack.c.b16 %v1128, %v1122
  %v1537 = vpack.c.b16 %v1129, %v1123
  %v1538 = vpack.c.b16 %v1130, %v1124
  %v1539 = vpack.c.b16 %v1137, %v1131
  %v1540 = vpack.c.b16 %v1138, %v1132
  %v1541 = vpack.c.b16 %v1139, %v1133
  %v1542 = vpack.c.b16 %v1140, %v1134
  %v1543 = vpack.c.b16 %v1141, %v1135
  %v1544 = vpack.c.b16 %v1142, %v1136
  %v1545 = vpack.c.b16 %v1149, %v1143
  %v1546 = vpack.c.b16 %v1150, %v1144
  %v1547 = vpack.c.b16 %v1151, %v1145
  %v1548 = vpack.c.b16 %v1152, %v1146
  %v1549 = vpack.c.b16 %v1153, %v1147
  %v1550 = vpack.c.b16 %v1154, %v1148
  %v1551 = vpack.c.b16 %v1161, %v1155
  %v1552 = vpack.c.b16 %v1162, %v1156
  %v1553 = vpack.c.b16 %v1163, %v1157
  %v1554 = vpack.c.b16 %v1164, %v1158
  %v1555 = vpack.c.b16 %v1165, %v1159
  %v1556 = vpack.c.b16 %v1166, %v1160
  %v1557 = vpack.c.b16 %v1173, %v1167
  %v1558 = vpack.c.b16 %v1174, %v1168
  %v1559 = vpack.c.b16 %v1175, %v1169
  %v1560 = vpack.c.b16 %v1176, %v1170
  %v1561 = vpack.c.b16 %v1177, %v1171
  %v1562 = vpack.c.b16 %v1178, %v1172
  %v1563 = vpack.c.b16 %v1185, %v1179
  %v1564 = vpack.c.b16 %v1186, %v1180
  %v1565 = vpack.c.b16 %v1187, %v1181
  %v1566 = vpack.c.b16 %v1188, %v1182
  %v1567 = vpack.c.b16 %v1189, %v1183
  %v1568 = vpack.c.b16 %v1190, %v1184
  %v1569 = vpack.c.b16 %v1197, %v1191
  %v1570 = vpack.c.b16 %v1198, %v1192
  %v1571 = vpack.c.b16 %v1199, %v1193
  %v1572 = vpack.c.b16 %v1200, %v1194
  %v1573 = vpack.c.b16 %v1201, %v1195
  %v1574 = vpack.c.b16 %v1202, %v1196
  %v1575 = vpack.c.b16 %v1209, %v1203
  %v1576 = vpack.c.b16 %v1210, %v1204
  %v1577 = vpack.c.b16 %v1211, %v1205
  %v1578 = vpack.c.b16 %v1212, %v1206
  %v1579 = vpack.c.b16 %v1213, %v1207
  %v1580 = vpack.c.b16 %v1214, %v1208
  %v1581 = vpack.c.b16 %v1221, %v1215
  %v1582 = vpack.c.b16 %v1222, %v1216
  %v1583 = vpack.c.b16 %v1223, %v1217
  %v1584 = vpack.c.b16 %v1224, %v1218
  %v1585 = vpack.c.b16 %v1225, %v1219
  %v1586 = vpack.c.b16 %v1226, %v1220
  %v1587 = vpack.c.b16 %v1233, %v1227
  %v1588 = vpack.c.b16 %v1234, %v1228
  %v1589 = vpack.c.b16 %v1235, %v1229
  %v1590 = vpack.c.b16 %v1236, %v1230
  %v1591 = vpack.c.b16 %v1237, %v1231
  %v1592 = vpack.c.b16 %v1238, %v1232
  %v1593 = vpack.c.b16 %v1245, %v1239
  %v1594 = vpack.c.b16 %v1246, %v1240
  %v1595 = vpack.c.b16 %v1247, %v1241
  %v1596 = vpack.c.b16 %v1248, %v1242
  %v1597 = vpack.c.b16 %v1249, %v1243
  %v1598 = vpack.c.b16 %v1250, %v1244
  %v1599 = vpack.c.b16 %v1257, %v1251
  %v1600 = vpack.c.b16 %v1258, %v1252
  %v1601 = vpack.c.b16 %v1259, %v1253
  %v1602 = vpack.c.b16 %v1260, %v1254
  %v1603 = vpack.c.b16 %v1261, %v1255
  %v1604 = vpack.c.b16 %v1262, %v1256
  %v1605 = vpack.c.b16 %v1269, %v1263
  %v1606 = vpack.c.b16 %v1270, %v1264
  %v1607 = vpack.c.b16 %v1271, %v1265
  %v1608 = vpack.c.b16 %v1272, %v1266
  %v1609 = vpack.c.b16 %v1273, %v1267
  %v1610 = vpack.c.b16 %v1274, %v1268
  %v1611 = vpack.c.b16 %v1281, %v1275
  %v1612 = vpack.c.b16 %v1282, %v1276
  %v1613 = vpack.c.b16 %v1283, %v1277
  %v1614 = vpack.c.b16 %v1284, %v1278
  %v1615 = vpack.c.b16 %v1285, %v1279
  %v1616 = vpack.c.b16 %v1286, %v1280
  %v1617 = vpack.c.b16 %v1293, %v1287
  %v1618 = vpack.c.b16 %v1294, %v1288
  %v1619 = vpack.c.b16 %v1295, %v1289
  %v1620 = vpack.c.b16 %v1296, %v1290
  %v1621 = vpack.c.b16 %v1297, %v1291
  %v1622 = vpack.c.b16 %v1298, %v1292
  %v1623 = vpack.c.b16 %v1305, %v1299
  %v1624 = vpack.c.b16 %v1306, %v1300
  %v1625 = vpack.c.b16 %v1307, %v1301
  %v1626 = vpack.c.b16 %v1308, %v1302
  %v1627 = vpack.c.b16 %v1309, %v1303
  %v1628 = vpack.c.b16 %v1310, %v1304
  %v1629 = vpack.c.b16 %v1317, %v1311
  %v1630 = vpack.c.b16 %v1318, %v1312
  %v1631 = vpack.c.b16 %v1319, %v1313
  %v1632 = vpack.c.b16 %v1320, %v1314
  %v1633 = vpack.c.b16 %v1321, %v1315
  %v1634 = vpack.c.b16 %v1322, %v1316
  %v1635 = vpack.c.b16 %v1329, %v1323
  %v1636 = vpack.c.b16 %v1330, %v1324
  %v1637 = vpack.c.b16 %v1331, %v1325
  %v1638 = vpack.c.b16 %v1332, %v1326
  %v1639 = vpack.c.b16 %v1333, %v1327
  %v1640 = vpack.c.b16 %v1334, %v1328
  %v1641 = vpack.c.b16 %v1341, %v1335
  %v1642 = vpack.c.b16 %v1342, %v1336
  %v1643 = vpack.c.b16 %v1343, %v1337
  %v1644 = vpack.c.b16 %v1344, %v1338
  %v1645 = vpack.c.b16 %v1345, %v1339
  %v1646 = vpack.c.b16 %v1346, %v1340
  %v1647 = vpack.c.b16 %v1353, %v1347
  %v1648 = vpack.c.b16 %v1354, %v1348
  %v1649 = vpack.c.b16 %v1355, %v1349
  %v1650 = vpack.c.b16 %v1356, %v1350
  %v1651 = vpack.c.b16 %v1357, %v1351
  %v1652 = vpack.c.b16 %v1358, %v1352
  %v1653 = vpack.c.b16 %v1365, %v1359
  %v1654 = vpack.c.b16 %v1366, %v1360
  %v1655 = vpack.c.b16 %v1367, %v1361
  %v1656 = vpack.c.b16 %v1368, %v1362
  %v1657 = vpack.c.b16 %v1369, %v1363
  %v1658 = vpack.c.b16 %v1370, %v1364
  %1947 = vmatpush.bf16.msra.mxu0 %v1413
  %1948 = vmatpush.bf16.msra.mxu0 %v1407
  %1949 = vmatpush.bf16.msra.mxu0 %v1401
  %1950 = vmatpush.bf16.msra.mxu0 %v1395
  %1951 = vmatpush.bf16.msra.mxu0 %v1389
  %1952 = vmatpush.bf16.msra.mxu0 %v1383
  %1953 = vmatpush.bf16.msra.mxu0 %v1377
  %1954 = vmatpush.bf16.msra.mxu0 %v1371
  %1955 = vmatmul.bf16.gmra.mxu0 %v495
  %v1956 = vpop.f32.mrf.mxu0
  %v1957 = vadd.f32 %v465, %v1956
  %v1958 = vpop.f32.mrf.mxu0
  %v1959 = vadd.f32 %v465, %v1958
  %1960 = vdwg.mxu0
  %1961 = vmatpush.bf16.msra.mxu0 %v1461
  %1962 = vmatpush.bf16.msra.mxu0 %v1455
  %1963 = vmatpush.bf16.msra.mxu0 %v1449
  %1964 = vmatpush.bf16.msra.mxu0 %v1443
  %1965 = vmatpush.bf16.msra.mxu0 %v1437
  %1966 = vmatpush.bf16.msra.mxu0 %v1431
  %1967 = vmatpush.bf16.msra.mxu0 %v1425
  %1968 = vmatpush.bf16.msra.mxu0 %v1419
  %1969 = vmatmul.bf16.gmra.mxu0 %v496
  %v1970 = vpop.f32.mrf.mxu0
  %v1971 = vadd.f32 %v1957, %v1970
  %v1972 = vpop.f32.mrf.mxu0
  %v1973 = vadd.f32 %v1959, %v1972
  %1974 = vdwg.mxu0
  %1975 = vmatpush.bf16.msra.mxu0 %v1509
  %1976 = vmatpush.bf16.msra.mxu0 %v1503
  %1977 = vmatpush.bf16.msra.mxu0 %v1497
  %1978 = vmatpush.bf16.msra.mxu0 %v1491
  %1979 = vmatpush.bf16.msra.mxu0 %v1485
  %1980 = vmatpush.bf16.msra.mxu0 %v1479
  %1981 = vmatpush.bf16.msra.mxu0 %v1473
  %1982 = vmatpush.bf16.msra.mxu0 %v1467
  %1983 = vmatmul.bf16.gmra.mxu0 %v497
  %v1984 = vpop.f32.mrf.mxu0
  %v1985 = vadd.f32 %v1971, %v1984
  %v1986 = vpop.f32.mrf.mxu0
  %v1987 = vadd.f32 %v1973, %v1986
  %1988 = vdwg.mxu0
  %1989 = vmatpush.bf16.msra.mxu0 %v1557
  %1990 = vmatpush.bf16.msra.mxu0 %v1551
  %1991 = vmatpush.bf16.msra.mxu0 %v1545
  %1992 = vmatpush.bf16.msra.mxu0 %v1539
  %1993 = vmatpush.bf16.msra.mxu0 %v1533
  %1994 = vmatpush.bf16.msra.mxu0 %v1527
  %1995 = vmatpush.bf16.msra.mxu0 %v1521
  %1996 = vmatpush.bf16.msra.mxu0 %v1515
  %1997 = vmatmul.bf16.gmra.mxu0 %v498
  %v1998 = vpop.f32.mrf.mxu0
  %v1999 = vadd.f32 %v1985, %v1998
  %v2000 = vpop.f32.mrf.mxu0
  %v2001 = vadd.f32 %v1987, %v2000
  %2002 = vdwg.mxu0
  %2003 = vmatpush.bf16.msra.mxu0 %v1605
  %2004 = vmatpush.bf16.msra.mxu0 %v1599
  %2005 = vmatpush.bf16.msra.mxu0 %v1593
  %2006 = vmatpush.bf16.msra.mxu0 %v1587
  %2007 = vmatpush.bf16.msra.mxu0 %v1581
  %2008 = vmatpush.bf16.msra.mxu0 %v1575
  %2009 = vmatpush.bf16.msra.mxu0 %v1569
  %2010 = vmatpush.bf16.msra.mxu0 %v1563
  %2011 = vmatmul.bf16.gmra.mxu0 %v499
  %v2012 = vpop.f32.mrf.mxu0
  %v2013 = vadd.f32 %v1999, %v2012
  %v2014 = vpop.f32.mrf.mxu0
  %v2015 = vadd.f32 %v2001, %v2014
  %2016 = vdwg.mxu0
  %2017 = vmatpush.bf16.msra.mxu0 %v1653
  %2018 = vmatpush.bf16.msra.mxu0 %v1647
  %2019 = vmatpush.bf16.msra.mxu0 %v1641
  %2020 = vmatpush.bf16.msra.mxu0 %v1635
  %2021 = vmatpush.bf16.msra.mxu0 %v1629
  %2022 = vmatpush.bf16.msra.mxu0 %v1623
  %2023 = vmatpush.bf16.msra.mxu0 %v1617
  %2024 = vmatpush.bf16.msra.mxu0 %v1611
  %2025 = vmatmul.bf16.gmra.mxu0 %v500
  %v2026 = vpop.f32.mrf.mxu0
  %v2027 = vadd.f32 %v2013, %v2026
  %v2028 = vpop.f32.mrf.mxu0
  %v2029 = vadd.f32 %v2015, %v2028
  %2030 = vdwg.mxu0
  %2031 = vmatpush.bf16.msra.mxu0 %v1414
  %2032 = vmatpush.bf16.msra.mxu0 %v1408
  %2033 = vmatpush.bf16.msra.mxu0 %v1402
  %2034 = vmatpush.bf16.msra.mxu0 %v1396
  %2035 = vmatpush.bf16.msra.mxu0 %v1390
  %2036 = vmatpush.bf16.msra.mxu0 %v1384
  %2037 = vmatpush.bf16.msra.mxu0 %v1378
  %2038 = vmatpush.bf16.msra.mxu0 %v1372
  %2039 = vmatmul.bf16.gmra.mxu0 %v495
  %v2040 = vpop.f32.mrf.mxu0
  %v2041 = vadd.f32 %v466, %v2040
  %v2042 = vpop.f32.mrf.mxu0
  %v2043 = vadd.f32 %v466, %v2042
  %2044 = vdwg.mxu0
  %2045 = vmatpush.bf16.msra.mxu0 %v1462
  %2046 = vmatpush.bf16.msra.mxu0 %v1456
  %2047 = vmatpush.bf16.msra.mxu0 %v1450
  %2048 = vmatpush.bf16.msra.mxu0 %v1444
  %2049 = vmatpush.bf16.msra.mxu0 %v1438
  %2050 = vmatpush.bf16.msra.mxu0 %v1432
  %2051 = vmatpush.bf16.msra.mxu0 %v1426
  %2052 = vmatpush.bf16.msra.mxu0 %v1420
  %2053 = vmatmul.bf16.gmra.mxu0 %v496
  %v2054 = vpop.f32.mrf.mxu0
  %v2055 = vadd.f32 %v2041, %v2054
  %v2056 = vpop.f32.mrf.mxu0
  %v2057 = vadd.f32 %v2043, %v2056
  %2058 = vdwg.mxu0
  %2059 = vmatpush.bf16.msra.mxu0 %v1510
  %2060 = vmatpush.bf16.msra.mxu0 %v1504
  %2061 = vmatpush.bf16.msra.mxu0 %v1498
  %2062 = vmatpush.bf16.msra.mxu0 %v1492
  %2063 = vmatpush.bf16.msra.mxu0 %v1486
  %2064 = vmatpush.bf16.msra.mxu0 %v1480
  %2065 = vmatpush.bf16.msra.mxu0 %v1474
  %2066 = vmatpush.bf16.msra.mxu0 %v1468
  %2067 = vmatmul.bf16.gmra.mxu0 %v497
  %v2068 = vpop.f32.mrf.mxu0
  %v2069 = vadd.f32 %v2055, %v2068
  %v2070 = vpop.f32.mrf.mxu0
  %v2071 = vadd.f32 %v2057, %v2070
  %2072 = vdwg.mxu0
  %2073 = vmatpush.bf16.msra.mxu0 %v1558
  %2074 = vmatpush.bf16.msra.mxu0 %v1552
  %2075 = vmatpush.bf16.msra.mxu0 %v1546
  %2076 = vmatpush.bf16.msra.mxu0 %v1540
  %2077 = vmatpush.bf16.msra.mxu0 %v1534
  %2078 = vmatpush.bf16.msra.mxu0 %v1528
  %2079 = vmatpush.bf16.msra.mxu0 %v1522
  %2080 = vmatpush.bf16.msra.mxu0 %v1516
  %2081 = vmatmul.bf16.gmra.mxu0 %v498
  %v2082 = vpop.f32.mrf.mxu0
  %v2083 = vadd.f32 %v2069, %v2082
  %v2084 = vpop.f32.mrf.mxu0
  %v2085 = vadd.f32 %v2071, %v2084
  %2086 = vdwg.mxu0
  %2087 = vmatpush.bf16.msra.mxu0 %v1606
  %2088 = vmatpush.bf16.msra.mxu0 %v1600
  %2089 = vmatpush.bf16.msra.mxu0 %v1594
  %2090 = vmatpush.bf16.msra.mxu0 %v1588
  %2091 = vmatpush.bf16.msra.mxu0 %v1582
  %2092 = vmatpush.bf16.msra.mxu0 %v1576
  %2093 = vmatpush.bf16.msra.mxu0 %v1570
  %2094 = vmatpush.bf16.msra.mxu0 %v1564
  %2095 = vmatmul.bf16.gmra.mxu0 %v499
  %v2096 = vpop.f32.mrf.mxu0
  %v2097 = vadd.f32 %v2083, %v2096
  %v2098 = vpop.f32.mrf.mxu0
  %v2099 = vadd.f32 %v2085, %v2098
  %2100 = vdwg.mxu0
  %2101 = vmatpush.bf16.msra.mxu0 %v1654
  %2102 = vmatpush.bf16.msra.mxu0 %v1648
  %2103 = vmatpush.bf16.msra.mxu0 %v1642
  %2104 = vmatpush.bf16.msra.mxu0 %v1636
  %2105 = vmatpush.bf16.msra.mxu0 %v1630
  %2106 = vmatpush.bf16.msra.mxu0 %v1624
  %2107 = vmatpush.bf16.msra.mxu0 %v1618
  %2108 = vmatpush.bf16.msra.mxu0 %v1612
  %2109 = vmatmul.bf16.gmra.mxu0 %v500
  %v2110 = vpop.f32.mrf.mxu0
  %v2111 = vadd.f32 %v2097, %v2110
  %v2112 = vpop.f32.mrf.mxu0
  %v2113 = vadd.f32 %v2099, %v2112
  %2114 = vdwg.mxu0
  %2115 = vmatpush.bf16.msra.mxu0 %v1415
  %2116 = vmatpush.bf16.msra.mxu0 %v1409
  %2117 = vmatpush.bf16.msra.mxu0 %v1403
  %2118 = vmatpush.bf16.msra.mxu0 %v1397
  %2119 = vmatpush.bf16.msra.mxu0 %v1391
  %2120 = vmatpush.bf16.msra.mxu0 %v1385
  %2121 = vmatpush.bf16.msra.mxu0 %v1379
  %2122 = vmatpush.bf16.msra.mxu0 %v1373
  %2123 = vmatmul.bf16.gmra.mxu0 %v495
  %v2124 = vpop.f32.mrf.mxu0
  %v2125 = vadd.f32 %v467, %v2124
  %v2126 = vpop.f32.mrf.mxu0
  %v2127 = vadd.f32 %v467, %v2126
  %2128 = vdwg.mxu0
  %2129 = vmatpush.bf16.msra.mxu0 %v1463
  %2130 = vmatpush.bf16.msra.mxu0 %v1457
  %2131 = vmatpush.bf16.msra.mxu0 %v1451
  %2132 = vmatpush.bf16.msra.mxu0 %v1445
  %2133 = vmatpush.bf16.msra.mxu0 %v1439
  %2134 = vmatpush.bf16.msra.mxu0 %v1433
  %2135 = vmatpush.bf16.msra.mxu0 %v1427
  %2136 = vmatpush.bf16.msra.mxu0 %v1421
  %2137 = vmatmul.bf16.gmra.mxu0 %v496
  %v2138 = vpop.f32.mrf.mxu0
  %v2139 = vadd.f32 %v2125, %v2138
  %v2140 = vpop.f32.mrf.mxu0
  %v2141 = vadd.f32 %v2127, %v2140
  %2142 = vdwg.mxu0
  %2143 = vmatpush.bf16.msra.mxu0 %v1511
  %2144 = vmatpush.bf16.msra.mxu0 %v1505
  %2145 = vmatpush.bf16.msra.mxu0 %v1499
  %2146 = vmatpush.bf16.msra.mxu0 %v1493
  %2147 = vmatpush.bf16.msra.mxu0 %v1487
  %2148 = vmatpush.bf16.msra.mxu0 %v1481
  %2149 = vmatpush.bf16.msra.mxu0 %v1475
  %2150 = vmatpush.bf16.msra.mxu0 %v1469
  %2151 = vmatmul.bf16.gmra.mxu0 %v497
  %v2152 = vpop.f32.mrf.mxu0
  %v2153 = vadd.f32 %v2139, %v2152
  %v2154 = vpop.f32.mrf.mxu0
  %v2155 = vadd.f32 %v2141, %v2154
  %2156 = vdwg.mxu0
  %2157 = vmatpush.bf16.msra.mxu0 %v1559
  %2158 = vmatpush.bf16.msra.mxu0 %v1553
  %2159 = vmatpush.bf16.msra.mxu0 %v1547
  %2160 = vmatpush.bf16.msra.mxu0 %v1541
  %2161 = vmatpush.bf16.msra.mxu0 %v1535
  %2162 = vmatpush.bf16.msra.mxu0 %v1529
  %2163 = vmatpush.bf16.msra.mxu0 %v1523
  %2164 = vmatpush.bf16.msra.mxu0 %v1517
  %2165 = vmatmul.bf16.gmra.mxu0 %v498
  %v2166 = vpop.f32.mrf.mxu0
  %v2167 = vadd.f32 %v2153, %v2166
  %v2168 = vpop.f32.mrf.mxu0
  %v2169 = vadd.f32 %v2155, %v2168
  %2170 = vdwg.mxu0
  %2171 = vmatpush.bf16.msra.mxu0 %v1607
  %2172 = vmatpush.bf16.msra.mxu0 %v1601
  %2173 = vmatpush.bf16.msra.mxu0 %v1595
  %2174 = vmatpush.bf16.msra.mxu0 %v1589
  %2175 = vmatpush.bf16.msra.mxu0 %v1583
  %2176 = vmatpush.bf16.msra.mxu0 %v1577
  %2177 = vmatpush.bf16.msra.mxu0 %v1571
  %2178 = vmatpush.bf16.msra.mxu0 %v1565
  %2179 = vmatmul.bf16.gmra.mxu0 %v499
  %v2180 = vpop.f32.mrf.mxu0
  %v2181 = vadd.f32 %v2167, %v2180
  %v2182 = vpop.f32.mrf.mxu0
  %v2183 = vadd.f32 %v2169, %v2182
  %2184 = vdwg.mxu0
  %2185 = vmatpush.bf16.msra.mxu0 %v1655
  %2186 = vmatpush.bf16.msra.mxu0 %v1649
  %2187 = vmatpush.bf16.msra.mxu0 %v1643
  %2188 = vmatpush.bf16.msra.mxu0 %v1637
  %2189 = vmatpush.bf16.msra.mxu0 %v1631
  %2190 = vmatpush.bf16.msra.mxu0 %v1625
  %2191 = vmatpush.bf16.msra.mxu0 %v1619
  %2192 = vmatpush.bf16.msra.mxu0 %v1613
  %2193 = vmatmul.bf16.gmra.mxu0 %v500
  %v2194 = vpop.f32.mrf.mxu0
  %v2195 = vadd.f32 %v2181, %v2194
  %v2196 = vpop.f32.mrf.mxu0
  %v2197 = vadd.f32 %v2183, %v2196
  %2198 = vdwg.mxu0
  %2199 = vmatpush.bf16.msra.mxu0 %v1416
  %2200 = vmatpush.bf16.msra.mxu0 %v1410
  %2201 = vmatpush.bf16.msra.mxu0 %v1404
  %2202 = vmatpush.bf16.msra.mxu0 %v1398
  %2203 = vmatpush.bf16.msra.mxu0 %v1392
  %2204 = vmatpush.bf16.msra.mxu0 %v1386
  %2205 = vmatpush.bf16.msra.mxu0 %v1380
  %2206 = vmatpush.bf16.msra.mxu0 %v1374
  %2207 = vmatmul.bf16.gmra.mxu0 %v495
  %v2208 = vpop.f32.mrf.mxu0
  %v2209 = vadd.f32 %v468, %v2208
  %v2210 = vpop.f32.mrf.mxu0
  %v2211 = vadd.f32 %v468, %v2210
  %2212 = vdwg.mxu0
  %2213 = vmatpush.bf16.msra.mxu0 %v1464
  %2214 = vmatpush.bf16.msra.mxu0 %v1458
  %2215 = vmatpush.bf16.msra.mxu0 %v1452
  %2216 = vmatpush.bf16.msra.mxu0 %v1446
  %2217 = vmatpush.bf16.msra.mxu0 %v1440
  %2218 = vmatpush.bf16.msra.mxu0 %v1434
  %2219 = vmatpush.bf16.msra.mxu0 %v1428
  %2220 = vmatpush.bf16.msra.mxu0 %v1422
  %2221 = vmatmul.bf16.gmra.mxu0 %v496
  %v2222 = vpop.f32.mrf.mxu0
  %v2223 = vadd.f32 %v2209, %v2222
  %v2224 = vpop.f32.mrf.mxu0
  %v2225 = vadd.f32 %v2211, %v2224
  %2226 = vdwg.mxu0
  %2227 = vmatpush.bf16.msra.mxu0 %v1512
  %2228 = vmatpush.bf16.msra.mxu0 %v1506
  %2229 = vmatpush.bf16.msra.mxu0 %v1500
  %2230 = vmatpush.bf16.msra.mxu0 %v1494
  %2231 = vmatpush.bf16.msra.mxu0 %v1488
  %2232 = vmatpush.bf16.msra.mxu0 %v1482
  %2233 = vmatpush.bf16.msra.mxu0 %v1476
  %2234 = vmatpush.bf16.msra.mxu0 %v1470
  %2235 = vmatmul.bf16.gmra.mxu0 %v497
  %v2236 = vpop.f32.mrf.mxu0
  %v2237 = vadd.f32 %v2223, %v2236
  %v2238 = vpop.f32.mrf.mxu0
  %v2239 = vadd.f32 %v2225, %v2238
  %2240 = vdwg.mxu0
  %2241 = vmatpush.bf16.msra.mxu0 %v1560
  %2242 = vmatpush.bf16.msra.mxu0 %v1554
  %2243 = vmatpush.bf16.msra.mxu0 %v1548
  %2244 = vmatpush.bf16.msra.mxu0 %v1542
  %2245 = vmatpush.bf16.msra.mxu0 %v1536
  %2246 = vmatpush.bf16.msra.mxu0 %v1530
  %2247 = vmatpush.bf16.msra.mxu0 %v1524
  %2248 = vmatpush.bf16.msra.mxu0 %v1518
  %2249 = vmatmul.bf16.gmra.mxu0 %v498
  %v2250 = vpop.f32.mrf.mxu0
  %v2251 = vadd.f32 %v2237, %v2250
  %v2252 = vpop.f32.mrf.mxu0
  %v2253 = vadd.f32 %v2239, %v2252
  %2254 = vdwg.mxu0
  %2255 = vmatpush.bf16.msra.mxu0 %v1608
  %2256 = vmatpush.bf16.msra.mxu0 %v1602
  %2257 = vmatpush.bf16.msra.mxu0 %v1596
  %2258 = vmatpush.bf16.msra.mxu0 %v1590
  %2259 = vmatpush.bf16.msra.mxu0 %v1584
  %2260 = vmatpush.bf16.msra.mxu0 %v1578
  %2261 = vmatpush.bf16.msra.mxu0 %v1572
  %2262 = vmatpush.bf16.msra.mxu0 %v1566
  %2263 = vmatmul.bf16.gmra.mxu0 %v499
  %v2264 = vpop.f32.mrf.mxu0
  %v2265 = vadd.f32 %v2251, %v2264
  %v2266 = vpop.f32.mrf.mxu0
  %v2267 = vadd.f32 %v2253, %v2266
  %2268 = vdwg.mxu0
  %2269 = vmatpush.bf16.msra.mxu0 %v1656
  %2270 = vmatpush.bf16.msra.mxu0 %v1650
  %2271 = vmatpush.bf16.msra.mxu0 %v1644
  %2272 = vmatpush.bf16.msra.mxu0 %v1638
  %2273 = vmatpush.bf16.msra.mxu0 %v1632
  %2274 = vmatpush.bf16.msra.mxu0 %v1626
  %2275 = vmatpush.bf16.msra.mxu0 %v1620
  %2276 = vmatpush.bf16.msra.mxu0 %v1614
  %2277 = vmatmul.bf16.gmra.mxu0 %v500
  %v2278 = vpop.f32.mrf.mxu0
  %v2279 = vadd.f32 %v2265, %v2278
  %v2280 = vpop.f32.mrf.mxu0
  %v2281 = vadd.f32 %v2267, %v2280
  %2282 = vdwg.mxu0
  %2283 = vmatpush.bf16.msra.mxu0 %v1417
  %2284 = vmatpush.bf16.msra.mxu0 %v1411
  %2285 = vmatpush.bf16.msra.mxu0 %v1405
  %2286 = vmatpush.bf16.msra.mxu0 %v1399
  %2287 = vmatpush.bf16.msra.mxu0 %v1393
  %2288 = vmatpush.bf16.msra.mxu0 %v1387
  %2289 = vmatpush.bf16.msra.mxu0 %v1381
  %2290 = vmatpush.bf16.msra.mxu0 %v1375
  %2291 = vmatmul.bf16.gmra.mxu0 %v495
  %v2292 = vpop.f32.mrf.mxu0
  %v2293 = vadd.f32 %v469, %v2292
  %v2294 = vpop.f32.mrf.mxu0
  %v2295 = vadd.f32 %v469, %v2294
  %2296 = vdwg.mxu0
  %2297 = vmatpush.bf16.msra.mxu0 %v1465
  %2298 = vmatpush.bf16.msra.mxu0 %v1459
  %2299 = vmatpush.bf16.msra.mxu0 %v1453
  %2300 = vmatpush.bf16.msra.mxu0 %v1447
  %2301 = vmatpush.bf16.msra.mxu0 %v1441
  %2302 = vmatpush.bf16.msra.mxu0 %v1435
  %2303 = vmatpush.bf16.msra.mxu0 %v1429
  %2304 = vmatpush.bf16.msra.mxu0 %v1423
  %2305 = vmatmul.bf16.gmra.mxu0 %v496
  %v2306 = vpop.f32.mrf.mxu0
  %v2307 = vadd.f32 %v2293, %v2306
  %v2308 = vpop.f32.mrf.mxu0
  %v2309 = vadd.f32 %v2295, %v2308
  %2310 = vdwg.mxu0
  %2311 = vmatpush.bf16.msra.mxu0 %v1513
  %2312 = vmatpush.bf16.msra.mxu0 %v1507
  %2313 = vmatpush.bf16.msra.mxu0 %v1501
  %2314 = vmatpush.bf16.msra.mxu0 %v1495
  %2315 = vmatpush.bf16.msra.mxu0 %v1489
  %2316 = vmatpush.bf16.msra.mxu0 %v1483
  %2317 = vmatpush.bf16.msra.mxu0 %v1477
  %2318 = vmatpush.bf16.msra.mxu0 %v1471
  %2319 = vmatmul.bf16.gmra.mxu0 %v497
  %v2320 = vpop.f32.mrf.mxu0
  %v2321 = vadd.f32 %v2307, %v2320
  %v2322 = vpop.f32.mrf.mxu0
  %v2323 = vadd.f32 %v2309, %v2322
  %2324 = vdwg.mxu0
  %2325 = vmatpush.bf16.msra.mxu0 %v1561
  %2326 = vmatpush.bf16.msra.mxu0 %v1555
  %2327 = vmatpush.bf16.msra.mxu0 %v1549
  %2328 = vmatpush.bf16.msra.mxu0 %v1543
  %2329 = vmatpush.bf16.msra.mxu0 %v1537
  %2330 = vmatpush.bf16.msra.mxu0 %v1531
  %2331 = vmatpush.bf16.msra.mxu0 %v1525
  %2332 = vmatpush.bf16.msra.mxu0 %v1519
  %2333 = vmatmul.bf16.gmra.mxu0 %v498
  %v2334 = vpop.f32.mrf.mxu0
  %v2335 = vadd.f32 %v2321, %v2334
  %v2336 = vpop.f32.mrf.mxu0
  %v2337 = vadd.f32 %v2323, %v2336
  %2338 = vdwg.mxu0
  %2339 = vmatpush.bf16.msra.mxu0 %v1609
  %2340 = vmatpush.bf16.msra.mxu0 %v1603
  %2341 = vmatpush.bf16.msra.mxu0 %v1597
  %2342 = vmatpush.bf16.msra.mxu0 %v1591
  %2343 = vmatpush.bf16.msra.mxu0 %v1585
  %2344 = vmatpush.bf16.msra.mxu0 %v1579
  %2345 = vmatpush.bf16.msra.mxu0 %v1573
  %2346 = vmatpush.bf16.msra.mxu0 %v1567
  %2347 = vmatmul.bf16.gmra.mxu0 %v499
  %v2348 = vpop.f32.mrf.mxu0
  %v2349 = vadd.f32 %v2335, %v2348
  %v2350 = vpop.f32.mrf.mxu0
  %v2351 = vadd.f32 %v2337, %v2350
  %2352 = vdwg.mxu0
  %2353 = vmatpush.bf16.msra.mxu0 %v1657
  %2354 = vmatpush.bf16.msra.mxu0 %v1651
  %2355 = vmatpush.bf16.msra.mxu0 %v1645
  %2356 = vmatpush.bf16.msra.mxu0 %v1639
  %2357 = vmatpush.bf16.msra.mxu0 %v1633
  %2358 = vmatpush.bf16.msra.mxu0 %v1627
  %2359 = vmatpush.bf16.msra.mxu0 %v1621
  %2360 = vmatpush.bf16.msra.mxu0 %v1615
  %2361 = vmatmul.bf16.gmra.mxu0 %v500
  %v2362 = vpop.f32.mrf.mxu0
  %v2363 = vadd.f32 %v2349, %v2362
  %v2364 = vpop.f32.mrf.mxu0
  %v2365 = vadd.f32 %v2351, %v2364
  %2366 = vdwg.mxu0
  %2367 = vmatpush.bf16.msra.mxu0 %v1418
  %2368 = vmatpush.bf16.msra.mxu0 %v1412
  %2369 = vmatpush.bf16.msra.mxu0 %v1406
  %2370 = vmatpush.bf16.msra.mxu0 %v1400
  %2371 = vmatpush.bf16.msra.mxu0 %v1394
  %2372 = vmatpush.bf16.msra.mxu0 %v1388
  %2373 = vmatpush.bf16.msra.mxu0 %v1382
  %2374 = vmatpush.bf16.msra.mxu0 %v1376
  %2375 = vmatmul.bf16.gmra.mxu0 %v495
  %v2376 = vpop.f32.mrf.mxu0
  %v2377 = vadd.f32 %v470, %v2376
  %v2378 = vpop.f32.mrf.mxu0
  %v2379 = vadd.f32 %v470, %v2378
  %2380 = vdwg.mxu0
  %2381 = vmatpush.bf16.msra.mxu0 %v1466
  %2382 = vmatpush.bf16.msra.mxu0 %v1460
  %2383 = vmatpush.bf16.msra.mxu0 %v1454
  %2384 = vmatpush.bf16.msra.mxu0 %v1448
  %2385 = vmatpush.bf16.msra.mxu0 %v1442
  %2386 = vmatpush.bf16.msra.mxu0 %v1436
  %2387 = vmatpush.bf16.msra.mxu0 %v1430
  %2388 = vmatpush.bf16.msra.mxu0 %v1424
  %2389 = vmatmul.bf16.gmra.mxu0 %v496
  %v2390 = vpop.f32.mrf.mxu0
  %v2391 = vadd.f32 %v2377, %v2390
  %v2392 = vpop.f32.mrf.mxu0
  %v2393 = vadd.f32 %v2379, %v2392
  %2394 = vdwg.mxu0
  %2395 = vmatpush.bf16.msra.mxu0 %v1514
  %2396 = vmatpush.bf16.msra.mxu0 %v1508
  %2397 = vmatpush.bf16.msra.mxu0 %v1502
  %2398 = vmatpush.bf16.msra.mxu0 %v1496
  %2399 = vmatpush.bf16.msra.mxu0 %v1490
  %2400 = vmatpush.bf16.msra.mxu0 %v1484
  %2401 = vmatpush.bf16.msra.mxu0 %v1478
  %2402 = vmatpush.bf16.msra.mxu0 %v1472
  %2403 = vmatmul.bf16.gmra.mxu0 %v497
  %v2404 = vpop.f32.mrf.mxu0
  %v2405 = vadd.f32 %v2391, %v2404
  %v2406 = vpop.f32.mrf.mxu0
  %v2407 = vadd.f32 %v2393, %v2406
  %2408 = vdwg.mxu0
  %2409 = vmatpush.bf16.msra.mxu0 %v1562
  %2410 = vmatpush.bf16.msra.mxu0 %v1556
  %2411 = vmatpush.bf16.msra.mxu0 %v1550
  %2412 = vmatpush.bf16.msra.mxu0 %v1544
  %2413 = vmatpush.bf16.msra.mxu0 %v1538
  %2414 = vmatpush.bf16.msra.mxu0 %v1532
  %2415 = vmatpush.bf16.msra.mxu0 %v1526
  %2416 = vmatpush.bf16.msra.mxu0 %v1520
  %2417 = vmatmul.bf16.gmra.mxu0 %v498
  %v2418 = vpop.f32.mrf.mxu0
  %v2419 = vadd.f32 %v2405, %v2418
  %v2420 = vpop.f32.mrf.mxu0
  %v2421 = vadd.f32 %v2407, %v2420
  %2422 = vdwg.mxu0
  %2423 = vmatpush.bf16.msra.mxu0 %v1610
  %2424 = vmatpush.bf16.msra.mxu0 %v1604
  %2425 = vmatpush.bf16.msra.mxu0 %v1598
  %2426 = vmatpush.bf16.msra.mxu0 %v1592
  %2427 = vmatpush.bf16.msra.mxu0 %v1586
  %2428 = vmatpush.bf16.msra.mxu0 %v1580
  %2429 = vmatpush.bf16.msra.mxu0 %v1574
  %2430 = vmatpush.bf16.msra.mxu0 %v1568
  %2431 = vmatmul.bf16.gmra.mxu0 %v499
  %v2432 = vpop.f32.mrf.mxu0
  %v2433 = vadd.f32 %v2419, %v2432
  %v2434 = vpop.f32.mrf.mxu0
  %v2435 = vadd.f32 %v2421, %v2434
  %2436 = vdwg.mxu0
  %2437 = vmatpush.bf16.msra.mxu0 %v1658
  %2438 = vmatpush.bf16.msra.mxu0 %v1652
  %2439 = vmatpush.bf16.msra.mxu0 %v1646
  %2440 = vmatpush.bf16.msra.mxu0 %v1640
  %2441 = vmatpush.bf16.msra.mxu0 %v1634
  %2442 = vmatpush.bf16.msra.mxu0 %v1628
  %2443 = vmatpush.bf16.msra.mxu0 %v1622
  %2444 = vmatpush.bf16.msra.mxu0 %v1616
  %2445 = vmatmul.bf16.gmra.mxu0 %v500
  %v2446 = vpop.f32.mrf.mxu0
  %v2447 = vadd.f32 %v2433, %v2446
  %v2448 = vpop.f32.mrf.mxu0
  %v2449 = vadd.f32 %v2435, %v2448
  %2450 = vdwg.mxu0
  %v2451 = vtanh.pop %v2027
  %v2452 = vtanh.pop %v2111
  %v2453 = vtanh.pop %v2195
  %v2454 = vtanh.pop %v2279
  %v2455 = vtanh.pop %v2363
  %v2456 = vtanh.pop %v2447
  %v2457 = vtanh.pop %v2029
  %v2458 = vtanh.pop %v2113
  %v2459 = vtanh.pop %v2197
  %v2460 = vtanh.pop %v2281
  %v2461 = vtanh.pop %v2365
  %v2462 = vtanh.pop %v2449
  %v2463 = vpack.c.bf16 %v2452, %v2451
  %v2464 = vpack.c.bf16 %v2454, %v2453
  %v2465 = vpack.c.bf16 %v2456, %v2455
  %v2466 = vpack.c.bf16 %v2458, %v2457
  %v2467 = vpack.c.bf16 %v2460, %v2459
  %v2468 = vpack.c.bf16 %v2462, %v2461
  %v2469 = vld [vmem:[%s3] sm:$0xff]
  %v2470 = vld [vmem:[%s3 + $0x8] sm:$0xff]
  %v2471 = vld [vmem:[%s3 + $0x10] sm:$0xff]
  %v2472 = vld [vmem:[%s3 + $0x18] sm:$0xff]
  %v2473 = vld [vmem:[%s3 + $0x20] sm:$0xff]
  %v2474 = vld [vmem:[%s3 + $0x28] sm:$0xff]
  %v2475 = vld [vmem:[%s3 + $0x30] sm:$0xff]
  %v2476 = vld [vmem:[%s3 + $0x38] sm:$0xff]
  %v2477 = vld [vmem:[%s3 + $0x40] sm:$0xff]
  %v2478 = vld [vmem:[%s3 + $0x48] sm:$0xff]
  %v2479 = vld [vmem:[%s3 + $0x50] sm:$0xff]
  %v2480 = vld [vmem:[%s3 + $0x58] sm:$0xff]
  %v2481 = vld [vmem:[%s3 + $0x60] sm:$0xff]
  %v2482 = vld [vmem:[%s3 + $0x68] sm:$0xff]
  %v2483 = vld [vmem:[%s3 + $0x70] sm:$0xff]
  %v2484 = vld [vmem:[%s3 + $0x78] sm:$0xff]
  %v2485 = vld [vmem:[%s3 + $0x80] sm:$0xff]
  %v2486 = vld [vmem:[%s3 + $0x88] sm:$0xff]
  %v2487 = vld [vmem:[%s3 + $0x90] sm:$0xff]
  %v2488 = vld [vmem:[%s3 + $0x98] sm:$0xff]
  %v2489 = vld [vmem:[%s3 + $0xa0] sm:$0xff]
  %v2490 = vld [vmem:[%s3 + $0xa8] sm:$0xff]
  %v2491 = vld [vmem:[%s3 + $0xb0] sm:$0xff]
  %v2492 = vld [vmem:[%s3 + $0xb8] sm:$0xff]
  %v2499 = vunpack.c.l.b16 %v2463
  %v2500 = vunpack.c.h.b16 %v2463
  %v2501 = vunpack.c.l.b16 %v2464
  %v2502 = vunpack.c.h.b16 %v2464
  %v2503 = vunpack.c.l.b16 %v2465
  %v2504 = vunpack.c.h.b16 %v2465
  %v2505 = vunpack.c.l.b16 %v2466
  %v2506 = vunpack.c.h.b16 %v2466
  %v2507 = vunpack.c.l.b16 %v2467
  %v2508 = vunpack.c.h.b16 %v2467
  %v2509 = vunpack.c.l.b16 %v2468
  %v2510 = vunpack.c.h.b16 %v2468
  %v2511 = vpack.c.b16 %v2505, %v2499
  %v2512 = vpack.c.b16 %v2506, %v2500
  %v2513 = vpack.c.b16 %v2507, %v2501
  %v2514 = vpack.c.b16 %v2508, %v2502
  %v2515 = vpack.c.b16 %v2509, %v2503
  %v2516 = vpack.c.b16 %v2510, %v2504
  %v2547 = vunpack.c.l.b16 %v2469
  %v2548 = vunpack.c.h.b16 %v2469
  %v2549 = vunpack.c.l.b16 %v2470
  %v2550 = vunpack.c.h.b16 %v2470
  %v2551 = vunpack.c.l.b16 %v2471
  %v2552 = vunpack.c.h.b16 %v2471
  %v2553 = vunpack.c.l.b16 %v2472
  %v2554 = vunpack.c.h.b16 %v2472
  %v2555 = vunpack.c.l.b16 %v2473
  %v2556 = vunpack.c.h.b16 %v2473
  %v2557 = vunpack.c.l.b16 %v2474
  %v2558 = vunpack.c.h.b16 %v2474
  %v2559 = vunpack.c.l.b16 %v2475
  %v2560 = vunpack.c.h.b16 %v2475
  %v2561 = vunpack.c.l.b16 %v2476
  %v2562 = vunpack.c.h.b16 %v2476
  %v2563 = vunpack.c.l.b16 %v2477
  %v2564 = vunpack.c.h.b16 %v2477
  %v2565 = vunpack.c.l.b16 %v2478
  %v2566 = vunpack.c.h.b16 %v2478
  %v2567 = vunpack.c.l.b16 %v2479
  %v2568 = vunpack.c.h.b16 %v2479
  %v2569 = vunpack.c.l.b16 %v2480
  %v2570 = vunpack.c.h.b16 %v2480
  %v2571 = vunpack.c.l.b16 %v2481
  %v2572 = vunpack.c.h.b16 %v2481
  %v2573 = vunpack.c.l.b16 %v2482
  %v2574 = vunpack.c.h.b16 %v2482
  %v2575 = vunpack.c.l.b16 %v2483
  %v2576 = vunpack.c.h.b16 %v2483
  %v2577 = vunpack.c.l.b16 %v2484
  %v2578 = vunpack.c.h.b16 %v2484
  %v2579 = vunpack.c.l.b16 %v2485
  %v2580 = vunpack.c.h.b16 %v2485
  %v2581 = vunpack.c.l.b16 %v2486
  %v2582 = vunpack.c.h.b16 %v2486
  %v2583 = vunpack.c.l.b16 %v2487
  %v2584 = vunpack.c.h.b16 %v2487
  %v2585 = vunpack.c.l.b16 %v2488
  %v2586 = vunpack.c.h.b16 %v2488
  %v2587 = vunpack.c.l.b16 %v2489
  %v2588 = vunpack.c.h.b16 %v2489
  %v2589 = vunpack.c.l.b16 %v2490
  %v2590 = vunpack.c.h.b16 %v2490
  %v2591 = vunpack.c.l.b16 %v2491
  %v2592 = vunpack.c.h.b16 %v2491
  %v2593 = vunpack.c.l.b16 %v2492
  %v2594 = vunpack.c.h.b16 %v2492
  %v2595 = vpack.c.b16 %v2553, %v2547
  %v2596 = vpack.c.b16 %v2554, %v2548
  %v2597 = vpack.c.b16 %v2555, %v2549
  %v2598 = vpack.c.b16 %v2556, %v2550
  %v2599 = vpack.c.b16 %v2557, %v2551
  %v2600 = vpack.c.b16 %v2558, %v2552
  %v2601 = vpack.c.b16 %v2565, %v2559
  %v2602 = vpack.c.b16 %v2566, %v2560
  %v2603 = vpack.c.b16 %v2567, %v2561
  %v2604 = vpack.c.b16 %v2568, %v2562
  %v2605 = vpack.c.b16 %v2569, %v2563
  %v2606 = vpack.c.b16 %v2570, %v2564
  %v2607 = vpack.c.b16 %v2577, %v2571
  %v2608 = vpack.c.b16 %v2578, %v2572
  %v2609 = vpack.c.b16 %v2579, %v2573
  %v2610 = vpack.c.b16 %v2580, %v2574
  %v2611 = vpack.c.b16 %v2581, %v2575
  %v2612 = vpack.c.b16 %v2582, %v2576
  %v2613 = vpack.c.b16 %v2589, %v2583
  %v2614 = vpack.c.b16 %v2590, %v2584
  %v2615 = vpack.c.b16 %v2591, %v2585
  %v2616 = vpack.c.b16 %v2592, %v2586
  %v2617 = vpack.c.b16 %v2593, %v2587
  %v2618 = vpack.c.b16 %v2594, %v2588
  %v2643 = vld [vmem:[%s13] sm:$0xf]
  %v2644 = vld [vmem:[%s13 + $0x4] sm:$0xf]
  %v2645 = vld [vmem:[%s13 + $0x8] sm:$0xf]
  %v2646 = vld [vmem:[%s13 + $0xc] sm:$0xf]
  %v2647 = vld [vmem:[%s13 + $0x10] sm:$0xf]
  %v2648 = vld [vmem:[%s13 + $0x14] sm:$0xf]
  %v2649 = vld [vmem:[%s13 + $0x18] sm:$0xf]
  %v2650 = vld [vmem:[%s13 + $0x1c] sm:$0xf]
  %v2651 = vld [vmem:[%s13 + $0x20] sm:$0xf]
  %v2652 = vld [vmem:[%s13 + $0x24] sm:$0xf]
  %v2653 = vld [vmem:[%s13 + $0x28] sm:$0xf]
  %v2654 = vld [vmem:[%s13 + $0x2c] sm:$0xf]
  %v2655 = vld [vmem:[%s13 + $0x30] sm:$0xf]
  %v2656 = vld [vmem:[%s13 + $0x34] sm:$0xf]
  %v2657 = vld [vmem:[%s13 + $0x38] sm:$0xf]
  %v2658 = vld [vmem:[%s13 + $0x3c] sm:$0xf]
  %v2659 = vld [vmem:[%s13 + $0x40] sm:$0xf]
  %v2660 = vld [vmem:[%s13 + $0x44] sm:$0xf]
  %v2661 = vld [vmem:[%s13 + $0x48] sm:$0xf]
  %v2662 = vld [vmem:[%s13 + $0x4c] sm:$0xf]
  %v2663 = vld [vmem:[%s13 + $0x50] sm:$0xf]
  %v2664 = vld [vmem:[%s13 + $0x54] sm:$0xf]
  %v2665 = vld [vmem:[%s13 + $0x58] sm:$0xf]
  %v2666 = vld [vmem:[%s13 + $0x5c] sm:$0xf]
  %v2667 = vld [vmem:[%s13 + $0x60] sm:$0xf]
  %v2668 = vld [vmem:[%s13 + $0x64] sm:$0xf]
  %v2669 = vld [vmem:[%s13 + $0x68] sm:$0xf]
  %v2670 = vld [vmem:[%s13 + $0x6c] sm:$0xf]
  %v2671 = vld [vmem:[%s13 + $0x70] sm:$0xf]
  %v2672 = vld [vmem:[%s13 + $0x74] sm:$0xf]
  %v2673 = vld [vmem:[%s13 + $0x78] sm:$0xf]
  %v2674 = vld [vmem:[%s13 + $0x7c] sm:$0xf]
  %v2675 = vld [vmem:[%s13 + $0x80] sm:$0xf]
  %v2676 = vld [vmem:[%s13 + $0x84] sm:$0xf]
  %v2677 = vld [vmem:[%s13 + $0x88] sm:$0xf]
  %v2678 = vld [vmem:[%s13 + $0x8c] sm:$0xf]
  %v2679 = vld [vmem:[%s13 + $0x90] sm:$0xf]
  %v2680 = vld [vmem:[%s13 + $0x94] sm:$0xf]
  %v2681 = vld [vmem:[%s13 + $0x98] sm:$0xf]
  %v2682 = vld [vmem:[%s13 + $0x9c] sm:$0xf]
  %v2683 = vld [vmem:[%s13 + $0xa0] sm:$0xf]
  %v2684 = vld [vmem:[%s13 + $0xa4] sm:$0xf]
  %v2685 = vld [vmem:[%s13 + $0xa8] sm:$0xf]
  %v2686 = vld [vmem:[%s13 + $0xac] sm:$0xf]
  %v2687 = vld [vmem:[%s13 + $0xb0] sm:$0xf]
  %v2688 = vld [vmem:[%s13 + $0xb4] sm:$0xf]
  %v2689 = vld [vmem:[%s13 + $0xb8] sm:$0xf]
  %v2690 = vld [vmem:[%s13 + $0xbc] sm:$0xf]
  %v2691 = vld [vmem:[%s13 + $0xc0] sm:$0xf]
  %v2692 = vld [vmem:[%s13 + $0xc4] sm:$0xf]
  %v2693 = vld [vmem:[%s13 + $0xc8] sm:$0xf]
  %v2694 = vld [vmem:[%s13 + $0xcc] sm:$0xf]
  %v2695 = vld [vmem:[%s13 + $0xd0] sm:$0xf]
  %v2696 = vld [vmem:[%s13 + $0xd4] sm:$0xf]
  %v2697 = vld [vmem:[%s13 + $0xd8] sm:$0xf]
  %v2698 = vld [vmem:[%s13 + $0xdc] sm:$0xf]
  %v2699 = vld [vmem:[%s13 + $0xe0] sm:$0xf]
  %v2700 = vld [vmem:[%s13 + $0xe4] sm:$0xf]
  %v2701 = vld [vmem:[%s13 + $0xe8] sm:$0xf]
  %v2702 = vld [vmem:[%s13 + $0xec] sm:$0xf]
  %v2703 = vld [vmem:[%s13 + $0xf0] sm:$0xf]
  %v2704 = vld [vmem:[%s13 + $0xf4] sm:$0xf]
  %v2705 = vld [vmem:[%s13 + $0xf8] sm:$0xf]
  %v2706 = vld [vmem:[%s13 + $0xfc] sm:$0xf]
  %v2707 = vld [vmem:[%s13 + $0x100] sm:$0xf]
  %v2708 = vld [vmem:[%s13 + $0x104] sm:$0xf]
  %v2709 = vld [vmem:[%s13 + $0x108] sm:$0xf]
  %v2710 = vld [vmem:[%s13 + $0x10c] sm:$0xf]
  %v2711 = vld [vmem:[%s13 + $0x110] sm:$0xf]
  %v2712 = vld [vmem:[%s13 + $0x114] sm:$0xf]
  %v2713 = vld [vmem:[%s13 + $0x118] sm:$0xf]
  %v2714 = vld [vmem:[%s13 + $0x11c] sm:$0xf]
  %v2715 = vld [vmem:[%s13 + $0x120] sm:$0xf]
  %v2716 = vld [vmem:[%s13 + $0x124] sm:$0xf]
  %v2717 = vld [vmem:[%s13 + $0x128] sm:$0xf]
  %v2718 = vld [vmem:[%s13 + $0x12c] sm:$0xf]
  %v2719 = vld [vmem:[%s13 + $0x130] sm:$0xf]
  %v2720 = vld [vmem:[%s13 + $0x134] sm:$0xf]
  %v2721 = vld [vmem:[%s13 + $0x138] sm:$0xf]
  %v2722 = vld [vmem:[%s13 + $0x13c] sm:$0xf]
  %v2723 = vld [vmem:[%s13 + $0x140] sm:$0xf]
  %v2724 = vld [vmem:[%s13 + $0x144] sm:$0xf]
  %v2725 = vld [vmem:[%s13 + $0x148] sm:$0xf]
  %v2726 = vld [vmem:[%s13 + $0x14c] sm:$0xf]
  %v2727 = vld [vmem:[%s13 + $0x150] sm:$0xf]
  %v2728 = vld [vmem:[%s13 + $0x154] sm:$0xf]
  %v2729 = vld [vmem:[%s13 + $0x158] sm:$0xf]
  %v2730 = vld [vmem:[%s13 + $0x15c] sm:$0xf]
  %v2731 = vld [vmem:[%s13 + $0x160] sm:$0xf]
  %v2732 = vld [vmem:[%s13 + $0x164] sm:$0xf]
  %v2733 = vld [vmem:[%s13 + $0x168] sm:$0xf]
  %v2734 = vld [vmem:[%s13 + $0x16c] sm:$0xf]
  %v2735 = vld [vmem:[%s13 + $0x170] sm:$0xf]
  %v2736 = vld [vmem:[%s13 + $0x174] sm:$0xf]
  %v2737 = vld [vmem:[%s13 + $0x178] sm:$0xf]
  %v2738 = vld [vmem:[%s13 + $0x17c] sm:$0xf]
  %v2739 = vld [vmem:[%s15] sm:$0x1]
  %v2741 = vperm.slane %v2739, 0
  %v2839 = vunpack.c.l.b16 %v2643
  %v2840 = vunpack.c.l.b16 %v2644
  %v2841 = vunpack.c.l.b16 %v2645
  %v2842 = vunpack.c.l.b16 %v2646
  %v2843 = vunpack.c.l.b16 %v2647
  %v2844 = vunpack.c.l.b16 %v2648
  %v2845 = vunpack.c.l.b16 %v2649
  %v2846 = vunpack.c.l.b16 %v2650
  %v2847 = vunpack.c.l.b16 %v2651
  %v2848 = vunpack.c.l.b16 %v2652
  %v2849 = vunpack.c.l.b16 %v2653
  %v2850 = vunpack.c.l.b16 %v2654
  %v2851 = vunpack.c.l.b16 %v2655
  %v2852 = vunpack.c.l.b16 %v2656
  %v2853 = vunpack.c.l.b16 %v2657
  %v2854 = vunpack.c.l.b16 %v2658
  %v2855 = vunpack.c.l.b16 %v2659
  %v2856 = vunpack.c.l.b16 %v2660
  %v2857 = vunpack.c.l.b16 %v2661
  %v2858 = vunpack.c.l.b16 %v2662
  %v2859 = vunpack.c.l.b16 %v2663
  %v2860 = vunpack.c.l.b16 %v2664
  %v2861 = vunpack.c.l.b16 %v2665
  %v2862 = vunpack.c.l.b16 %v2666
  %v2863 = vunpack.c.l.b16 %v2667
  %v2864 = vunpack.c.l.b16 %v2668
  %v2865 = vunpack.c.l.b16 %v2669
  %v2866 = vunpack.c.l.b16 %v2670
  %v2867 = vunpack.c.l.b16 %v2671
  %v2868 = vunpack.c.l.b16 %v2672
  %v2869 = vunpack.c.l.b16 %v2673
  %v2870 = vunpack.c.l.b16 %v2674
  %v2871 = vunpack.c.l.b16 %v2675
  %v2872 = vunpack.c.l.b16 %v2676
  %v2873 = vunpack.c.l.b16 %v2677
  %v2874 = vunpack.c.l.b16 %v2678
  %v2875 = vunpack.c.l.b16 %v2679
  %v2876 = vunpack.c.l.b16 %v2680
  %v2877 = vunpack.c.l.b16 %v2681
  %v2878 = vunpack.c.l.b16 %v2682
  %v2879 = vunpack.c.l.b16 %v2683
  %v2880 = vunpack.c.l.b16 %v2684
  %v2881 = vunpack.c.l.b16 %v2685
  %v2882 = vunpack.c.l.b16 %v2686
  %v2883 = vunpack.c.l.b16 %v2687
  %v2884 = vunpack.c.l.b16 %v2688
  %v2885 = vunpack.c.l.b16 %v2689
  %v2886 = vunpack.c.l.b16 %v2690
  %v2887 = vunpack.c.l.b16 %v2691
  %v2888 = vunpack.c.l.b16 %v2692
  %v2889 = vunpack.c.l.b16 %v2693
  %v2890 = vunpack.c.l.b16 %v2694
  %v2891 = vunpack.c.l.b16 %v2695
  %v2892 = vunpack.c.l.b16 %v2696
  %v2893 = vunpack.c.l.b16 %v2697
  %v2894 = vunpack.c.l.b16 %v2698
  %v2895 = vunpack.c.l.b16 %v2699
  %v2896 = vunpack.c.l.b16 %v2700
  %v2897 = vunpack.c.l.b16 %v2701
  %v2898 = vunpack.c.l.b16 %v2702
  %v2899 = vunpack.c.l.b16 %v2703
  %v2900 = vunpack.c.l.b16 %v2704
  %v2901 = vunpack.c.l.b16 %v2705
  %v2902 = vunpack.c.l.b16 %v2706
  %v2903 = vunpack.c.l.b16 %v2707
  %v2904 = vunpack.c.l.b16 %v2708
  %v2905 = vunpack.c.l.b16 %v2709
  %v2906 = vunpack.c.l.b16 %v2710
  %v2907 = vunpack.c.l.b16 %v2711
  %v2908 = vunpack.c.l.b16 %v2712
  %v2909 = vunpack.c.l.b16 %v2713
  %v2910 = vunpack.c.l.b16 %v2714
  %v2911 = vunpack.c.l.b16 %v2715
  %v2912 = vunpack.c.l.b16 %v2716
  %v2913 = vunpack.c.l.b16 %v2717
  %v2914 = vunpack.c.l.b16 %v2718
  %v2915 = vunpack.c.l.b16 %v2719
  %v2916 = vunpack.c.l.b16 %v2720
  %v2917 = vunpack.c.l.b16 %v2721
  %v2918 = vunpack.c.l.b16 %v2722
  %v2919 = vunpack.c.l.b16 %v2723
  %v2920 = vunpack.c.l.b16 %v2724
  %v2921 = vunpack.c.l.b16 %v2725
  %v2922 = vunpack.c.l.b16 %v2726
  %v2923 = vunpack.c.l.b16 %v2727
  %v2924 = vunpack.c.l.b16 %v2728
  %v2925 = vunpack.c.l.b16 %v2729
  %v2926 = vunpack.c.l.b16 %v2730
  %v2927 = vunpack.c.l.b16 %v2731
  %v2928 = vunpack.c.l.b16 %v2732
  %v2929 = vunpack.c.l.b16 %v2733
  %v2930 = vunpack.c.l.b16 %v2734
  %v2931 = vunpack.c.l.b16 %v2735
  %v2932 = vunpack.c.l.b16 %v2736
  %v2933 = vunpack.c.l.b16 %v2737
  %v2934 = vunpack.c.l.b16 %v2738
  %v2935 = vpack.c.b16 %v2840, %v2839
  %v2936 = vpack.c.b16 %v2842, %v2841
  %v2937 = vpack.c.b16 %v2844, %v2843
  %v2938 = vpack.c.b16 %v2846, %v2845
  %v2939 = vpack.c.b16 %v2848, %v2847
  %v2940 = vpack.c.b16 %v2850, %v2849
  %v2941 = vpack.c.b16 %v2852, %v2851
  %v2942 = vpack.c.b16 %v2854, %v2853
  %v2943 = vpack.c.b16 %v2856, %v2855
  %v2944 = vpack.c.b16 %v2858, %v2857
  %v2945 = vpack.c.b16 %v2860, %v2859
  %v2946 = vpack.c.b16 %v2862, %v2861
  %v2947 = vpack.c.b16 %v2864, %v2863
  %v2948 = vpack.c.b16 %v2866, %v2865
  %v2949 = vpack.c.b16 %v2868, %v2867
  %v2950 = vpack.c.b16 %v2870, %v2869
  %v2951 = vpack.c.b16 %v2872, %v2871
  %v2952 = vpack.c.b16 %v2874, %v2873
  %v2953 = vpack.c.b16 %v2876, %v2875
  %v2954 = vpack.c.b16 %v2878, %v2877
  %v2955 = vpack.c.b16 %v2880, %v2879
  %v2956 = vpack.c.b16 %v2882, %v2881
  %v2957 = vpack.c.b16 %v2884, %v2883
  %v2958 = vpack.c.b16 %v2886, %v2885
  %v2959 = vpack.c.b16 %v2888, %v2887
  %v2960 = vpack.c.b16 %v2890, %v2889
  %v2961 = vpack.c.b16 %v2892, %v2891
  %v2962 = vpack.c.b16 %v2894, %v2893
  %v2963 = vpack.c.b16 %v2896, %v2895
  %v2964 = vpack.c.b16 %v2898, %v2897
  %v2965 = vpack.c.b16 %v2900, %v2899
  %v2966 = vpack.c.b16 %v2902, %v2901
  %v2967 = vpack.c.b16 %v2904, %v2903
  %v2968 = vpack.c.b16 %v2906, %v2905
  %v2969 = vpack.c.b16 %v2908, %v2907
  %v2970 = vpack.c.b16 %v2910, %v2909
  %v2971 = vpack.c.b16 %v2912, %v2911
  %v2972 = vpack.c.b16 %v2914, %v2913
  %v2973 = vpack.c.b16 %v2916, %v2915
  %v2974 = vpack.c.b16 %v2918, %v2917
  %v2975 = vpack.c.b16 %v2920, %v2919
  %v2976 = vpack.c.b16 %v2922, %v2921
  %v2977 = vpack.c.b16 %v2924, %v2923
  %v2978 = vpack.c.b16 %v2926, %v2925
  %v2979 = vpack.c.b16 %v2928, %v2927
  %v2980 = vpack.c.b16 %v2930, %v2929
  %v2981 = vpack.c.b16 %v2932, %v2931
  %v2982 = vpack.c.b16 %v2934, %v2933
  %3031 = vmatpush.bf16.msra.mxu0 %v2942
  %3032 = vmatpush.bf16.msra.mxu0 %v2941
  %3033 = vmatpush.bf16.msra.mxu0 %v2940
  %3034 = vmatpush.bf16.msra.mxu0 %v2939
  %3035 = vmatpush.bf16.msra.mxu0 %v2938
  %3036 = vmatpush.bf16.msra.mxu0 %v2937
  %3037 = vmatpush.bf16.msra.mxu0 %v2936
  %3038 = vmatpush.bf16.msra.mxu0 %v2935
  %3039 = vmatmul.bf16.gmra.mxu0 %v2511
  %v3040 = vpop.f32.mrf.mxu0
  %v3041 = vadd.f32 %v2741, %v3040
  %v3042 = vpop.f32.mrf.mxu0
  %v3043 = vadd.f32 %v2741, %v3042
  %3044 = vmatmul.bf16.gmra.mxu0 %v2595
  %v3045 = vpop.f32.mrf.mxu0
  %v3046 = vadd.f32 %v2741, %v3045
  %v3047 = vpop.f32.mrf.mxu0
  %v3048 = vadd.f32 %v2741, %v3047
  %3049 = vmatmul.bf16.gmra.mxu0 %v2601
  %v3050 = vpop.f32.mrf.mxu0
  %v3051 = vadd.f32 %v2741, %v3050
  %v3052 = vpop.f32.mrf.mxu0
  %v3053 = vadd.f32 %v2741, %v3052
  %3054 = vmatmul.bf16.gmra.mxu0 %v2607
  %v3055 = vpop.f32.mrf.mxu0
  %v3056 = vadd.f32 %v2741, %v3055
  %v3057 = vpop.f32.mrf.mxu0
  %v3058 = vadd.f32 %v2741, %v3057
  %3059 = vmatmul.bf16.gmra.mxu0 %v2613
  %v3060 = vpop.f32.mrf.mxu0
  %v3061 = vadd.f32 %v2741, %v3060
  %v3062 = vpop.f32.mrf.mxu0
  %v3063 = vadd.f32 %v2741, %v3062
  %3064 = vdwg.mxu0
  %3065 = vmatpush.bf16.msra.mxu0 %v2950
  %3066 = vmatpush.bf16.msra.mxu0 %v2949
  %3067 = vmatpush.bf16.msra.mxu0 %v2948
  %3068 = vmatpush.bf16.msra.mxu0 %v2947
  %3069 = vmatpush.bf16.msra.mxu0 %v2946
  %3070 = vmatpush.bf16.msra.mxu0 %v2945
  %3071 = vmatpush.bf16.msra.mxu0 %v2944
  %3072 = vmatpush.bf16.msra.mxu0 %v2943
  %3073 = vmatmul.bf16.gmra.mxu0 %v2512
  %v3074 = vpop.f32.mrf.mxu0
  %v3075 = vadd.f32 %v3041, %v3074
  %v3076 = vpop.f32.mrf.mxu0
  %v3077 = vadd.f32 %v3043, %v3076
  %3078 = vmatmul.bf16.gmra.mxu0 %v2596
  %v3079 = vpop.f32.mrf.mxu0
  %v3080 = vadd.f32 %v3046, %v3079
  %v3081 = vpop.f32.mrf.mxu0
  %v3082 = vadd.f32 %v3048, %v3081
  %3083 = vmatmul.bf16.gmra.mxu0 %v2602
  %v3084 = vpop.f32.mrf.mxu0
  %v3085 = vadd.f32 %v3051, %v3084
  %v3086 = vpop.f32.mrf.mxu0
  %v3087 = vadd.f32 %v3053, %v3086
  %3088 = vmatmul.bf16.gmra.mxu0 %v2608
  %v3089 = vpop.f32.mrf.mxu0
  %v3090 = vadd.f32 %v3056, %v3089
  %v3091 = vpop.f32.mrf.mxu0
  %v3092 = vadd.f32 %v3058, %v3091
  %3093 = vmatmul.bf16.gmra.mxu0 %v2614
  %v3094 = vpop.f32.mrf.mxu0
  %v3095 = vadd.f32 %v3061, %v3094
  %v3096 = vpop.f32.mrf.mxu0
  %v3097 = vadd.f32 %v3063, %v3096
  %3098 = vdwg.mxu0
  %3099 = vmatpush.bf16.msra.mxu0 %v2958
  %3100 = vmatpush.bf16.msra.mxu0 %v2957
  %3101 = vmatpush.bf16.msra.mxu0 %v2956
  %3102 = vmatpush.bf16.msra.mxu0 %v2955
  %3103 = vmatpush.bf16.msra.mxu0 %v2954
  %3104 = vmatpush.bf16.msra.mxu0 %v2953
  %3105 = vmatpush.bf16.msra.mxu0 %v2952
  %3106 = vmatpush.bf16.msra.mxu0 %v2951
  %3107 = vmatmul.bf16.gmra.mxu0 %v2513
  %v3108 = vpop.f32.mrf.mxu0
  %v3109 = vadd.f32 %v3075, %v3108
  %v3110 = vpop.f32.mrf.mxu0
  %v3111 = vadd.f32 %v3077, %v3110
  %3112 = vmatmul.bf16.gmra.mxu0 %v2597
  %v3113 = vpop.f32.mrf.mxu0
  %v3114 = vadd.f32 %v3080, %v3113
  %v3115 = vpop.f32.mrf.mxu0
  %v3116 = vadd.f32 %v3082, %v3115
  %3117 = vmatmul.bf16.gmra.mxu0 %v2603
  %v3118 = vpop.f32.mrf.mxu0
  %v3119 = vadd.f32 %v3085, %v3118
  %v3120 = vpop.f32.mrf.mxu0
  %v3121 = vadd.f32 %v3087, %v3120
  %3122 = vmatmul.bf16.gmra.mxu0 %v2609
  %v3123 = vpop.f32.mrf.mxu0
  %v3124 = vadd.f32 %v3090, %v3123
  %v3125 = vpop.f32.mrf.mxu0
  %v3126 = vadd.f32 %v3092, %v3125
  %3127 = vmatmul.bf16.gmra.mxu0 %v2615
  %v3128 = vpop.f32.mrf.mxu0
  %v3129 = vadd.f32 %v3095, %v3128
  %v3130 = vpop.f32.mrf.mxu0
  %v3131 = vadd.f32 %v3097, %v3130
  %3132 = vdwg.mxu0
  %3133 = vmatpush.bf16.msra.mxu0 %v2966
  %3134 = vmatpush.bf16.msra.mxu0 %v2965
  %3135 = vmatpush.bf16.msra.mxu0 %v2964
  %3136 = vmatpush.bf16.msra.mxu0 %v2963
  %3137 = vmatpush.bf16.msra.mxu0 %v2962
  %3138 = vmatpush.bf16.msra.mxu0 %v2961
  %3139 = vmatpush.bf16.msra.mxu0 %v2960
  %3140 = vmatpush.bf16.msra.mxu0 %v2959
  %3141 = vmatmul.bf16.gmra.mxu0 %v2514
  %v3142 = vpop.f32.mrf.mxu0
  %v3143 = vadd.f32 %v3109, %v3142
  %v3144 = vpop.f32.mrf.mxu0
  %v3145 = vadd.f32 %v3111, %v3144
  %3146 = vmatmul.bf16.gmra.mxu0 %v2598
  %v3147 = vpop.f32.mrf.mxu0
  %v3148 = vadd.f32 %v3114, %v3147
  %v3149 = vpop.f32.mrf.mxu0
  %v3150 = vadd.f32 %v3116, %v3149
  %3151 = vmatmul.bf16.gmra.mxu0 %v2604
  %v3152 = vpop.f32.mrf.mxu0
  %v3153 = vadd.f32 %v3119, %v3152
  %v3154 = vpop.f32.mrf.mxu0
  %v3155 = vadd.f32 %v3121, %v3154
  %3156 = vmatmul.bf16.gmra.mxu0 %v2610
  %v3157 = vpop.f32.mrf.mxu0
  %v3158 = vadd.f32 %v3124, %v3157
  %v3159 = vpop.f32.mrf.mxu0
  %v3160 = vadd.f32 %v3126, %v3159
  %3161 = vmatmul.bf16.gmra.mxu0 %v2616
  %v3162 = vpop.f32.mrf.mxu0
  %v3163 = vadd.f32 %v3129, %v3162
  %v3164 = vpop.f32.mrf.mxu0
  %v3165 = vadd.f32 %v3131, %v3164
  %3166 = vdwg.mxu0
  %3167 = vmatpush.bf16.msra.mxu0 %v2974
  %3168 = vmatpush.bf16.msra.mxu0 %v2973
  %3169 = vmatpush.bf16.msra.mxu0 %v2972
  %3170 = vmatpush.bf16.msra.mxu0 %v2971
  %3171 = vmatpush.bf16.msra.mxu0 %v2970
  %3172 = vmatpush.bf16.msra.mxu0 %v2969
  %3173 = vmatpush.bf16.msra.mxu0 %v2968
  %3174 = vmatpush.bf16.msra.mxu0 %v2967
  %3175 = vmatmul.bf16.gmra.mxu0 %v2515
  %v3176 = vpop.f32.mrf.mxu0
  %v3177 = vadd.f32 %v3143, %v3176
  %v3178 = vpop.f32.mrf.mxu0
  %v3179 = vadd.f32 %v3145, %v3178
  %3180 = vmatmul.bf16.gmra.mxu0 %v2599
  %v3181 = vpop.f32.mrf.mxu0
  %v3182 = vadd.f32 %v3148, %v3181
  %v3183 = vpop.f32.mrf.mxu0
  %v3184 = vadd.f32 %v3150, %v3183
  %3185 = vmatmul.bf16.gmra.mxu0 %v2605
  %v3186 = vpop.f32.mrf.mxu0
  %v3187 = vadd.f32 %v3153, %v3186
  %v3188 = vpop.f32.mrf.mxu0
  %v3189 = vadd.f32 %v3155, %v3188
  %3190 = vmatmul.bf16.gmra.mxu0 %v2611
  %v3191 = vpop.f32.mrf.mxu0
  %v3192 = vadd.f32 %v3158, %v3191
  %v3193 = vpop.f32.mrf.mxu0
  %v3194 = vadd.f32 %v3160, %v3193
  %3195 = vmatmul.bf16.gmra.mxu0 %v2617
  %v3196 = vpop.f32.mrf.mxu0
  %v3197 = vadd.f32 %v3163, %v3196
  %v3198 = vpop.f32.mrf.mxu0
  %v3199 = vadd.f32 %v3165, %v3198
  %3200 = vdwg.mxu0
  %3201 = vmatpush.bf16.msra.mxu0 %v2982
  %3202 = vmatpush.bf16.msra.mxu0 %v2981
  %3203 = vmatpush.bf16.msra.mxu0 %v2980
  %3204 = vmatpush.bf16.msra.mxu0 %v2979
  %3205 = vmatpush.bf16.msra.mxu0 %v2978
  %3206 = vmatpush.bf16.msra.mxu0 %v2977
  %3207 = vmatpush.bf16.msra.mxu0 %v2976
  %3208 = vmatpush.bf16.msra.mxu0 %v2975
  %3209 = vmatmul.bf16.gmra.mxu0 %v2516
  %v3210 = vpop.f32.mrf.mxu0
  %v3211 = vadd.f32 %v3177, %v3210
  %v3212 = vpop.f32.mrf.mxu0
  %v3213 = vadd.f32 %v3179, %v3212
  %3214 = vmatmul.bf16.gmra.mxu0 %v2600
  %v3215 = vpop.f32.mrf.mxu0
  %v3216 = vadd.f32 %v3182, %v3215
  %v3217 = vpop.f32.mrf.mxu0
  %v3218 = vadd.f32 %v3184, %v3217
  %3219 = vmatmul.bf16.gmra.mxu0 %v2606
  %v3220 = vpop.f32.mrf.mxu0
  %v3221 = vadd.f32 %v3187, %v3220
  %v3222 = vpop.f32.mrf.mxu0
  %v3223 = vadd.f32 %v3189, %v3222
  %3224 = vmatmul.bf16.gmra.mxu0 %v2612
  %v3225 = vpop.f32.mrf.mxu0
  %v3226 = vadd.f32 %v3192, %v3225
  %v3227 = vpop.f32.mrf.mxu0
  %v3228 = vadd.f32 %v3194, %v3227
  %3229 = vmatmul.bf16.gmra.mxu0 %v2618
  %v3230 = vpop.f32.mrf.mxu0
  %v3231 = vadd.f32 %v3197, %v3230
  %v3232 = vpop.f32.mrf.mxu0
  %v3233 = vadd.f32 %v3199, %v3232
  %3234 = vdwg.mxu0
  %v3235 = vtanh.pop %v3211
  %v3236 = vtanh.pop %v3213
  %v3237 = vtanh.pop %v3216
  %v3238 = vtanh.pop %v3218
  %v3239 = vtanh.pop %v3221
  %v3240 = vtanh.pop %v3223
  %v3241 = vtanh.pop %v3226
  %v3242 = vtanh.pop %v3228
  %v3243 = vtanh.pop %v3231
  %v3244 = vtanh.pop %v3233
  %v3245 = vld [vmem:[%s5] sm:$0xf]
  %v3246 = vld [vmem:[%s5 + $0x4] sm:$0xf]
  %v3247 = vld [vmem:[%s17] sm:$0xf]
  %v3248 = vld [vmem:[%s17 + $0x4] sm:$0xf]
  %v3249 = vld [vmem:[%s17 + $0x8] sm:$0xf]
  %v3250 = vld [vmem:[%s17 + $0xc] sm:$0xf]
  %v3251 = vpack.c.bf16 %v3236, %v3235
  %v3256 = vunpack.c.l.b16 %v3247
  %v3257 = vunpack.c.l.b16 %v3248
  %v3258 = vunpack.c.l.b16 %v3249
  %v3259 = vunpack.c.l.b16 %v3250
  %v3260 = vpack.c.b16 %v3257, %v3256
  %v3261 = vpack.c.b16 %v3259, %v3258
  %vm3264 = vcmask 261120
  %v3266 = vsel %vm3264, %v3251, 0
  %3268 = vmatpush.bf16.msra.mxu0 0
  %3269 = vmatpush.bf16.msra.mxu0 0
  %3270 = vmatpush.bf16.msra.mxu0 0
  %3271 = vmatpush.bf16.msra.mxu0 0
  %3272 = vmatpush.bf16.msra.mxu0 0
  %3273 = vmatpush.bf16.msra.mxu0 0
  %3274 = vmatpush.bf16.msra.mxu0 %v3261
  %3275 = vmatpush.bf16.msra.mxu0 %v3260
  %3276 = vmatmul.bf16.gmra.mxu0 %v3266
  %v3277 = vpop.f32.mrf.mxu0
  %v3278 = vadd.f32 0.0, %v3277
  %v3279 = vpop.f32.mrf.mxu0
  %v3280 = vadd.f32 0.0, %v3279
  %3281 = vdwg.mxu0
  %v3282 = vpack.c.bf16 %v3280, %v3278
  %v3283 = vld [vmem:[%s19] sm:$0x1]
  %v3285 = vperm.slane %v3283, 0
  %v3289 = vunpack.c.l.b16 %v3245
  %v3290 = vunpack.c.l.b16 %v3246
  %v3291 = vpack.c.b16 %v3290, %v3289
  %vm3292 = vcmask 130048
  %v3294 = vsel %vm3292, %v3291, 0
  %3296 = vmatpush.bf16.msra.mxu0 0
  %3297 = vmatpush.bf16.msra.mxu0 0
  %3298 = vmatpush.bf16.msra.mxu0 0
  %3299 = vmatpush.bf16.msra.mxu0 0
  %3300 = vmatpush.bf16.msra.mxu0 0
  %3301 = vmatpush.bf16.msra.mxu0 0
  %3302 = vmatpush.bf16.msra.mxu0 0
  %3303 = vmatpush.bf16.msra.mxu0 %v3282
  %3304 = vmatmul.bf16.gmra.mxu0 %v3294
  %v3305 = vpop.f32.mrf.mxu0
  %v3306 = vadd.f32 %v3285, %v3305
  %v3307 = vpop.f32.mrf.mxu0
  %v3308 = vadd.f32 %v3285, %v3307
  %3309 = vdwg.mxu0
  %v3310 = vmax.f32 %v3306, 0.0
  %v3311 = vmax.f32 %v3308, 0.0
  %v3312 = vld [vmem:[%s21] sm:$0xf]
  %v3313 = vld [vmem:[%s21 + $0x4] sm:$0xf]
  %v3314 = vld [vmem:[%s21 + $0x8] sm:$0xf]
  %v3315 = vld [vmem:[%s21 + $0xc] sm:$0xf]
  %v3316 = vld [vmem:[%s21 + $0x10] sm:$0xf]
  %v3317 = vld [vmem:[%s21 + $0x14] sm:$0xf]
  %v3318 = vld [vmem:[%s21 + $0x18] sm:$0xf]
  %v3319 = vld [vmem:[%s21 + $0x1c] sm:$0xf]
  %v3320 = vpack.c.bf16 %v3311, %v3310
  %v3329 = vunpack.c.l.b16 %v3312
  %v3330 = vunpack.c.l.b16 %v3313
  %v3331 = vunpack.c.l.b16 %v3314
  %v3332 = vunpack.c.l.b16 %v3315
  %v3333 = vunpack.c.l.b16 %v3316
  %v3334 = vunpack.c.l.b16 %v3317
  %v3335 = vunpack.c.l.b16 %v3318
  %v3336 = vunpack.c.l.b16 %v3319
  %v3337 = vpack.c.b16 %v3330, %v3329
  %v3338 = vpack.c.b16 %v3332, %v3331
  %v3339 = vpack.c.b16 %v3334, %v3333
  %v3340 = vpack.c.b16 %v3336, %v3335
  %vm3345 = vcmask 523264
  %v3347 = vsel %vm3345, %v3320, 0
  %3349 = vmatpush.bf16.msra.mxu0 0
  %3350 = vmatpush.bf16.msra.mxu0 0
  %3351 = vmatpush.bf16.msra.mxu0 0
  %3352 = vmatpush.bf16.msra.mxu0 0
  %3353 = vmatpush.bf16.msra.mxu0 %v3340
  %3354 = vmatpush.bf16.msra.mxu0 %v3339
  %3355 = vmatpush.bf16.msra.mxu0 %v3338
  %3356 = vmatpush.bf16.msra.mxu0 %v3337
  %3357 = vmatmul.bf16.gmra.mxu0 %v3347
  %v3358 = vpop.f32.mrf.mxu0
  %v3359 = vadd.f32 0.0, %v3358
  %v3360 = vpop.f32.mrf.mxu0
  %v3361 = vadd.f32 0.0, %v3360
  %3362 = vdwg.mxu0
  %v3363 = vpack.c.bf16 %v3361, %v3359
  %v3364 = vld [vmem:[%s23] sm:$0x1]
  %v3366 = vperm.slane %v3364, 0
  %3368 = vmatpush.bf16.msra.mxu0 0
  %3369 = vmatpush.bf16.msra.mxu0 0
  %3370 = vmatpush.bf16.msra.mxu0 0
  %3371 = vmatpush.bf16.msra.mxu0 0
  %3372 = vmatpush.bf16.msra.mxu0 0
  %3373 = vmatpush.bf16.msra.mxu0 0
  %3374 = vmatpush.bf16.msra.mxu0 0
  %3375 = vmatpush.bf16.msra.mxu0 %v3363
  %3376 = vmatmul.bf16.gmra.mxu0 %v3294
  %v3377 = vpop.f32.mrf.mxu0
  %v3378 = vadd.f32 %v3366, %v3377
  %v3379 = vpop.f32.mrf.mxu0
  %v3380 = vadd.f32 %v3366, %v3379
  %3381 = vdwg.mxu0
  %v3382 = vmax.f32 %v3378, 0.0
  %v3383 = vmax.f32 %v3380, 0.0
  %v3384 = vld [vmem:[%s77] sm:$0xff]
  %v3385 = vld [vmem:[%s77 + $0x8] sm:$0xff]
  %v3386 = vmul.f32 %v3382, %v3384
  %v3387 = vmul.f32 %v3383, %v3385
  %v3388 = vld [vmem:[%s7] sm:$0xf]
  %v3389 = vpack.c.bf16 %v3387, %v3386
  %v3391 = vsel %vm3292, %v3388, 0
  %3393 = vmatpush.bf16.msra.mxu0 0
  %3394 = vmatpush.bf16.msra.mxu0 0
  %3395 = vmatpush.bf16.msra.mxu0 0
  %3396 = vmatpush.bf16.msra.mxu0 0
  %3397 = vmatpush.bf16.msra.mxu0 0
  %3398 = vmatpush.bf16.msra.mxu0 0
  %3399 = vmatpush.bf16.msra.mxu0 0
  %3400 = vmatpush.bf16.msra.mxu0 %v3389
  %3401 = vmatmul.bf16.gmra.mxu0 %v3391
  %v3402 = vpop.f32.mrf.mxu0
  %v3403 = vadd.f32 0.0, %v3402
  %v3404 = vpop.f32.mrf.mxu0
  %3405 = vdwg.mxu0
  %v3406 = vlaneseq
  %v3407 = vand.u32 %v3406, 127
  %vm3408 = vcmp.ge.s32.totalorder %v3407, 64
  %vm3409 = vcmp.lt.s32.totalorder %v3407, 96
  %vm3410 = vmand %vm3408, %vm3409
  %v3411 = vld [vmem:[%s25] sm:$0xf]
  %v3412 = vld [vmem:[%s25 + $0x4] sm:$0xf]
  %v3413 = vld [vmem:[%s25 + $0x8] sm:$0xf]
  %v3414 = vld [vmem:[%s25 + $0xc] sm:$0xf]
  %v3415 = vpack.c.bf16 %v3238, %v3237
  %v3416 = vpack.c.bf16 %v3240, %v3239
  %v3417 = vpack.c.bf16 %v3242, %v3241
  %v3418 = vpack.c.bf16 %v3244, %v3243
  %v3419 = vld [vmem:[%s33] sm:$0x1]
  %v3421 = vperm.slane %v3419, 0
  %v3427 = vunpack.c.l.b16 %v3411
  %v3428 = vunpack.c.l.b16 %v3412
  %v3429 = vunpack.c.l.b16 %v3413
  %v3430 = vunpack.c.l.b16 %v3414
  %v3431 = vpack.c.b16 %v3428, %v3427
  %v3432 = vpack.c.b16 %v3430, %v3429
  %v3436 = vsel %vm3264, %v3415, 0
  %v3439 = vsel %vm3264, %v3416, 0
  %v3442 = vsel %vm3264, %v3417, 0
  %v3445 = vsel %vm3264, %v3418, 0
  %3447 = vmatpush.bf16.msra.mxu0 0
  %3448 = vmatpush.bf16.msra.mxu0 0
  %3449 = vmatpush.bf16.msra.mxu0 0
  %3450 = vmatpush.bf16.msra.mxu0 0
  %3451 = vmatpush.bf16.msra.mxu0 0
  %3452 = vmatpush.bf16.msra.mxu0 0
  %3453 = vmatpush.bf16.msra.mxu0 %v3432
  %3454 = vmatpush.bf16.msra.mxu0 %v3431
  %3455 = vmatmul.bf16.gmra.mxu0 %v3436
  %v3456 = vpop.f32.mrf.mxu0
  %v3457 = vadd.f32 %v3421, %v3456
  %v3458 = vpop.f32.mrf.mxu0
  %v3459 = vadd.f32 %v3421, %v3458
  %3460 = vmatmul.bf16.gmra.mxu0 %v3439
  %v3461 = vpop.f32.mrf.mxu0
  %v3462 = vadd.f32 %v3421, %v3461
  %v3463 = vpop.f32.mrf.mxu0
  %v3464 = vadd.f32 %v3421, %v3463
  %3465 = vmatmul.bf16.gmra.mxu0 %v3442
  %v3466 = vpop.f32.mrf.mxu0
  %v3467 = vadd.f32 %v3421, %v3466
  %v3468 = vpop.f32.mrf.mxu0
  %v3469 = vadd.f32 %v3421, %v3468
  %3470 = vmatmul.bf16.gmra.mxu0 %v3445
  %v3471 = vpop.f32.mrf.mxu0
  %v3472 = vadd.f32 %v3421, %v3471
  %v3473 = vpop.f32.mrf.mxu0
  %v3474 = vadd.f32 %v3421, %v3473
  %3475 = vdwg.mxu0
  %v3476 = vld [vmem:[%s27] sm:$0xf]
  %v3477 = vld [vmem:[%s27 + $0x4] sm:$0xf]
  %v3478 = vld [vmem:[%s27 + $0x8] sm:$0xf]
  %v3479 = vld [vmem:[%s27 + $0xc] sm:$0xf]
  %v3480 = vld [vmem:[%s35] sm:$0x1]
  %v3482 = vperm.slane %v3480, 0
  %v3488 = vunpack.c.l.b16 %v3476
  %v3489 = vunpack.c.l.b16 %v3477
  %v3490 = vunpack.c.l.b16 %v3478
  %v3491 = vunpack.c.l.b16 %v3479
  %v3492 = vpack.c.b16 %v3489, %v3488
  %v3493 = vpack.c.b16 %v3491, %v3490
  %3496 = vmatpush.bf16.msra.mxu0 0
  %3497 = vmatpush.bf16.msra.mxu0 0
  %3498 = vmatpush.bf16.msra.mxu0 0
  %3499 = vmatpush.bf16.msra.mxu0 0
  %3500 = vmatpush.bf16.msra.mxu0 0
  %3501 = vmatpush.bf16.msra.mxu0 0
  %3502 = vmatpush.bf16.msra.mxu0 %v3493
  %3503 = vmatpush.bf16.msra.mxu0 %v3492
  %3504 = vmatmul.bf16.gmra.mxu0 %v3436
  %v3505 = vpop.f32.mrf.mxu0
  %v3506 = vadd.f32 %v3482, %v3505
  %v3507 = vpop.f32.mrf.mxu0
  %v3508 = vadd.f32 %v3482, %v3507
  %3509 = vmatmul.bf16.gmra.mxu0 %v3439
  %v3510 = vpop.f32.mrf.mxu0
  %v3511 = vadd.f32 %v3482, %v3510
  %v3512 = vpop.f32.mrf.mxu0
  %v3513 = vadd.f32 %v3482, %v3512
  %3514 = vmatmul.bf16.gmra.mxu0 %v3442
  %v3515 = vpop.f32.mrf.mxu0
  %v3516 = vadd.f32 %v3482, %v3515
  %v3517 = vpop.f32.mrf.mxu0
  %v3518 = vadd.f32 %v3482, %v3517
  %3519 = vmatmul.bf16.gmra.mxu0 %v3445
  %v3520 = vpop.f32.mrf.mxu0
  %v3521 = vadd.f32 %v3482, %v3520
  %v3522 = vpop.f32.mrf.mxu0
  %v3523 = vadd.f32 %v3482, %v3522
  %3524 = vdwg.mxu0
  %v3525 = vld [vmem:[%s29] sm:$0xf]
  %v3526 = vld [vmem:[%s29 + $0x4] sm:$0xf]
  %v3527 = vld [vmem:[%s29 + $0x8] sm:$0xf]
  %v3528 = vld [vmem:[%s29 + $0xc] sm:$0xf]
  %v3529 = vld [vmem:[%s31] sm:$0xf]
  %v3530 = vld [vmem:[%s31 + $0x4] sm:$0xf]
  %v3531 = vld [vmem:[%s31 + $0x8] sm:$0xf]
  %v3532 = vld [vmem:[%s31 + $0xc] sm:$0xf]
  %v3537 = vunpack.c.l.b16 %v3525
  %v3538 = vunpack.c.l.b16 %v3526
  %v3539 = vunpack.c.l.b16 %v3527
  %v3540 = vunpack.c.l.b16 %v3528
  %v3541 = vpack.c.b16 %v3538, %v3537
  %v3542 = vpack.c.b16 %v3540, %v3539
  %v3546 = vsel %vm3264, 0, 0
  %3548 = vmatpush.bf16.msra.mxu0 0
  %3549 = vmatpush.bf16.msra.mxu0 0
  %3550 = vmatpush.bf16.msra.mxu0 0
  %3551 = vmatpush.bf16.msra.mxu0 0
  %3552 = vmatpush.bf16.msra.mxu0 0
  %3553 = vmatpush.bf16.msra.mxu0 0
  %3554 = vmatpush.bf16.msra.mxu0 %v3542
  %3555 = vmatpush.bf16.msra.mxu0 %v3541
  %3556 = vmatmul.bf16.gmra.mxu0 %v3546
  %v3557 = vpop.f32.mrf.mxu0
  %v3558 = vadd.f32 0.0, %v3557
  %v3559 = vpop.f32.mrf.mxu0
  %3560 = vdwg.mxu0
  %v3561 = vadd.f32 %v3457, %v3558
  %v3562 = vtanh.pop %v3561
  %v3563 = vxor.u32 %v3561, 2147483648
  %v3564 = vmul.f32 %v3563, 1.442695
  %v3565 = vpow.pop %v3564
  %v3566 = vadd.f32 %v3565, 1.0
  %v3567 = vrcp.pop %v3566
  %v3568 = vmul.f32 %v3566, %v3567
  %v3569 = vsub.f32 1.0, %v3568
  %v3570 = vmul.f32 %v3567, %v3569
  %v3571 = vadd.f32 %v3567, %v3570
  %vm3572 = vweird.f32 %v3566
  %vm3573 = vweird.f32 %v3567
  %vm3574 = vmor %vm3572, %vm3573
  %v3575 = vsel %vm3574, %v3567, %v3571
  %v3576 = vand.u32 2147483647, %v3566
  %vm3577 = vcmp.eq.f32.partialorder %v3576, 8.507059e+37
  %v3578 = vand.u32 %v3566, 2147483648
  %v3579 = vor.u32 1.1754944e-38, %v3578
  %v3580 = vsel %vm3577, %v3579, %v3575
  %v3581 = vmul.f32 1.0, %v3580
  %v3582 = vsel %vm3410, %v3562, %v3581
  %v3583 = vmul.f32 %v3582, 0.0
  %3585 = vrot.lane.b32.xlu0 %v3582, 64
  %v3586 = vpop.permute.xlu0 %3585
  %v3588 = vmul.f32 %v3582, %v3586
  %3590 = vrot.lane.b32.xlu0 %v3588, 32
  %v3591 = vpop.permute.xlu0 %3590
  %v3593 = vadd.f32 %v3583, %v3591
  %v3594 = vtanh.pop %v3593
  %3596 = vrot.lane.b32.xlu0 %v3594, 64
  %v3597 = vpop.permute.xlu0 %3596
  %v3599 = vmul.f32 %v3582, %v3597
  %v3604 = vunpack.c.l.b16 %v3529
  %v3605 = vunpack.c.l.b16 %v3530
  %v3606 = vunpack.c.l.b16 %v3531
  %v3607 = vunpack.c.l.b16 %v3532
  %v3608 = vpack.c.b16 %v3605, %v3604
  %v3609 = vpack.c.b16 %v3607, %v3606
  %3612 = vmatpush.bf16.msra.mxu0 0
  %3613 = vmatpush.bf16.msra.mxu0 0
  %3614 = vmatpush.bf16.msra.mxu0 0
  %3615 = vmatpush.bf16.msra.mxu0 0
  %3616 = vmatpush.bf16.msra.mxu0 0
  %3617 = vmatpush.bf16.msra.mxu0 0
  %3618 = vmatpush.bf16.msra.mxu0 %v3609
  %3619 = vmatpush.bf16.msra.mxu0 %v3608
  %3620 = vmatmul.bf16.gmra.mxu0 %v3546
  %v3621 = vpop.f32.mrf.mxu0
  %v3622 = vadd.f32 0.0, %v3621
  %v3623 = vpop.f32.mrf.mxu0
  %3624 = vdwg.mxu0
  %v3625 = vadd.f32 %v3523, %v3622
  %v3626 = vtanh.pop %v3625
  %v3627 = vxor.u32 %v3625, 2147483648
  %v3628 = vmul.f32 %v3627, 1.442695
  %v3629 = vpow.pop %v3628
  %v3630 = vadd.f32 %v3629, 1.0
  %v3631 = vrcp.pop %v3630
  %v3632 = vmul.f32 %v3630, %v3631
  %v3633 = vsub.f32 1.0, %v3632
  %v3634 = vmul.f32 %v3631, %v3633
  %v3635 = vadd.f32 %v3631, %v3634
  %vm3636 = vweird.f32 %v3630
  %vm3637 = vweird.f32 %v3631
  %vm3638 = vmor %vm3636, %vm3637
  %v3639 = vsel %vm3638, %v3631, %v3635
  %v3640 = vand.u32 2147483647, %v3630
  %vm3641 = vcmp.eq.f32.partialorder %v3640, 8.507059e+37
  %v3642 = vand.u32 %v3630, 2147483648
  %v3643 = vor.u32 1.1754944e-38, %v3642
  %v3644 = vsel %vm3641, %v3643, %v3639
  %v3645 = vmul.f32 1.0, %v3644
  %v3646 = vsel %vm3410, %v3626, %v3645
  %v3647 = vmul.f32 %v3646, 0.0
  %3649 = vrot.lane.b32.xlu0 %v3646, 64
  %v3650 = vpop.permute.xlu0 %3649
  %v3652 = vmul.f32 %v3646, %v3650
  %3654 = vrot.lane.b32.xlu0 %v3652, 32
  %v3655 = vpop.permute.xlu0 %3654
  %v3657 = vadd.f32 %v3647, %v3655
  %v3658 = vtanh.pop %v3657
  %3660 = vrot.lane.b32.xlu0 %v3658, 64
  %v3661 = vpop.permute.xlu0 %3660
  %v3663 = vmul.f32 %v3646, %v3661
  %v3664 = vpack.c.bf16 %v3599, %v3599
  %3666 = vrot.lane.b32.xlu0 %v3664, 32
  %v3667 = vpop.permute.xlu0 %3666
  %v3669 = vsel %vm3264, %v3667, 0
  %3671 = vmatpush.bf16.msra.mxu0 0
  %3672 = vmatpush.bf16.msra.mxu0 0
  %3673 = vmatpush.bf16.msra.mxu0 0
  %3674 = vmatpush.bf16.msra.mxu0 0
  %3675 = vmatpush.bf16.msra.mxu0 0
  %3676 = vmatpush.bf16.msra.mxu0 0
  %3677 = vmatpush.bf16.msra.mxu0 %v3542
  %3678 = vmatpush.bf16.msra.mxu0 %v3541
  %3679 = vmatmul.bf16.gmra.mxu0 %v3669
  %v3680 = vpop.f32.mrf.mxu0
  %v3681 = vadd.f32 0.0, %v3680
  %v3682 = vpop.f32.mrf.mxu0
  %3683 = vdwg.mxu0
  %v3684 = vadd.f32 %v3459, %v3681
  %v3685 = vtanh.pop %v3684
  %v3686 = vxor.u32 %v3684, 2147483648
  %v3687 = vmul.f32 %v3686, 1.442695
  %v3688 = vpow.pop %v3687
  %v3689 = vadd.f32 %v3688, 1.0
  %v3690 = vrcp.pop %v3689
  %v3691 = vmul.f32 %v3689, %v3690
  %v3692 = vsub.f32 1.0, %v3691
  %v3693 = vmul.f32 %v3690, %v3692
  %v3694 = vadd.f32 %v3690, %v3693
  %vm3695 = vweird.f32 %v3689
  %vm3696 = vweird.f32 %v3690
  %vm3697 = vmor %vm3695, %vm3696
  %v3698 = vsel %vm3697, %v3690, %v3694
  %v3699 = vand.u32 2147483647, %v3689
  %vm3700 = vcmp.eq.f32.partialorder %v3699, 8.507059e+37
  %v3701 = vand.u32 %v3689, 2147483648
  %v3702 = vor.u32 1.1754944e-38, %v3701
  %v3703 = vsel %vm3700, %v3702, %v3698
  %v3704 = vmul.f32 1.0, %v3703
  %v3705 = vsel %vm3410, %v3685, %v3704
  %v3706 = vmul.f32 %v3705, %v3593
  %3708 = vrot.lane.b32.xlu0 %v3705, 64
  %v3709 = vpop.permute.xlu0 %3708
  %v3711 = vmul.f32 %v3705, %v3709
  %3713 = vrot.lane.b32.xlu0 %v3711, 32
  %v3714 = vpop.permute.xlu0 %3713
  %v3716 = vadd.f32 %v3706, %v3714
  %v3717 = vtanh.pop %v3716
  %3719 = vrot.lane.b32.xlu0 %v3717, 64
  %v3720 = vpop.permute.xlu0 %3719
  %v3722 = vmul.f32 %v3705, %v3720
  %v3723 = vpack.c.bf16 %v3663, %v3663
  %3725 = vrot.lane.b32.xlu0 %v3723, 32
  %v3726 = vpop.permute.xlu0 %3725
  %v3728 = vsel %vm3264, %v3726, 0
  %3730 = vmatpush.bf16.msra.mxu0 0
  %3731 = vmatpush.bf16.msra.mxu0 0
  %3732 = vmatpush.bf16.msra.mxu0 0
  %3733 = vmatpush.bf16.msra.mxu0 0
  %3734 = vmatpush.bf16.msra.mxu0 0
  %3735 = vmatpush.bf16.msra.mxu0 0
  %3736 = vmatpush.bf16.msra.mxu0 %v3609
  %3737 = vmatpush.bf16.msra.mxu0 %v3608
  %3738 = vmatmul.bf16.gmra.mxu0 %v3728
  %v3739 = vpop.f32.mrf.mxu0
  %v3740 = vadd.f32 0.0, %v3739
  %v3741 = vpop.f32.mrf.mxu0
  %3742 = vdwg.mxu0
  %v3743 = vadd.f32 %v3521, %v3740
  %v3744 = vtanh.pop %v3743
  %v3745 = vxor.u32 %v3743, 2147483648
  %v3746 = vmul.f32 %v3745, 1.442695
  %v3747 = vpow.pop %v3746
  %v3748 = vadd.f32 %v3747, 1.0
  %v3749 = vrcp.pop %v3748
  %v3750 = vmul.f32 %v3748, %v3749
  %v3751 = vsub.f32 1.0, %v3750
  %v3752 = vmul.f32 %v3749, %v3751
  %v3753 = vadd.f32 %v3749, %v3752
  %vm3754 = vweird.f32 %v3748
  %vm3755 = vweird.f32 %v3749
  %vm3756 = vmor %vm3754, %vm3755
  %v3757 = vsel %vm3756, %v3749, %v3753
  %v3758 = vand.u32 2147483647, %v3748
  %vm3759 = vcmp.eq.f32.partialorder %v3758, 8.507059e+37
  %v3760 = vand.u32 %v3748, 2147483648
  %v3761 = vor.u32 1.1754944e-38, %v3760
  %v3762 = vsel %vm3759, %v3761, %v3757
  %v3763 = vmul.f32 1.0, %v3762
  %v3764 = vsel %vm3410, %v3744, %v3763
  %v3765 = vmul.f32 %v3764, %v3657
  %3767 = vrot.lane.b32.xlu0 %v3764, 64
  %v3768 = vpop.permute.xlu0 %3767
  %v3770 = vmul.f32 %v3764, %v3768
  %3772 = vrot.lane.b32.xlu0 %v3770, 32
  %v3773 = vpop.permute.xlu0 %3772
  %v3775 = vadd.f32 %v3765, %v3773
  %v3776 = vtanh.pop %v3775
  %3778 = vrot.lane.b32.xlu0 %v3776, 64
  %v3779 = vpop.permute.xlu0 %3778
  %v3781 = vmul.f32 %v3764, %v3779
  %v3782 = vpack.c.bf16 %v3722, %v3722
  %3784 = vrot.lane.b32.xlu0 %v3782, 32
  %v3785 = vpop.permute.xlu0 %3784
  %v3787 = vsel %vm3264, %v3785, 0
  %3789 = vmatpush.bf16.msra.mxu0 0
  %3790 = vmatpush.bf16.msra.mxu0 0
  %3791 = vmatpush.bf16.msra.mxu0 0
  %3792 = vmatpush.bf16.msra.mxu0 0
  %3793 = vmatpush.bf16.msra.mxu0 0
  %3794 = vmatpush.bf16.msra.mxu0 0
  %3795 = vmatpush.bf16.msra.mxu0 %v3542
  %3796 = vmatpush.bf16.msra.mxu0 %v3541
  %3797 = vmatmul.bf16.gmra.mxu0 %v3787
  %v3798 = vpop.f32.mrf.mxu0
  %v3799 = vadd.f32 0.0, %v3798
  %v3800 = vpop.f32.mrf.mxu0
  %3801 = vdwg.mxu0
  %v3802 = vadd.f32 %v3462, %v3799
  %v3803 = vtanh.pop %v3802
  %v3804 = vxor.u32 %v3802, 2147483648
  %v3805 = vmul.f32 %v3804, 1.442695
  %v3806 = vpow.pop %v3805
  %v3807 = vadd.f32 %v3806, 1.0
  %v3808 = vrcp.pop %v3807
  %v3809 = vmul.f32 %v3807, %v3808
  %v3810 = vsub.f32 1.0, %v3809
  %v3811 = vmul.f32 %v3808, %v3810
  %v3812 = vadd.f32 %v3808, %v3811
  %vm3813 = vweird.f32 %v3807
  %vm3814 = vweird.f32 %v3808
  %vm3815 = vmor %vm3813, %vm3814
  %v3816 = vsel %vm3815, %v3808, %v3812
  %v3817 = vand.u32 2147483647, %v3807
  %vm3818 = vcmp.eq.f32.partialorder %v3817, 8.507059e+37
  %v3819 = vand.u32 %v3807, 2147483648
  %v3820 = vor.u32 1.1754944e-38, %v3819
  %v3821 = vsel %vm3818, %v3820, %v3816
  %v3822 = vmul.f32 1.0, %v3821
  %v3823 = vsel %vm3410, %v3803, %v3822
  %v3824 = vmul.f32 %v3823, %v3716
  %3826 = vrot.lane.b32.xlu0 %v3823, 64
  %v3827 = vpop.permute.xlu0 %3826
  %v3829 = vmul.f32 %v3823, %v3827
  %3831 = vrot.lane.b32.xlu0 %v3829, 32
  %v3832 = vpop.permute.xlu0 %3831
  %v3834 = vadd.f32 %v3824, %v3832
  %v3835 = vtanh.pop %v3834
  %3837 = vrot.lane.b32.xlu0 %v3835, 64
  %v3838 = vpop.permute.xlu0 %3837
  %v3840 = vmul.f32 %v3823, %v3838
  %v3841 = vpack.c.bf16 %v3781, %v3781
  %3843 = vrot.lane.b32.xlu0 %v3841, 32
  %v3844 = vpop.permute.xlu0 %3843
  %v3846 = vsel %vm3264, %v3844, 0
  %3848 = vmatpush.bf16.msra.mxu0 0
  %3849 = vmatpush.bf16.msra.mxu0 0
  %3850 = vmatpush.bf16.msra.mxu0 0
  %3851 = vmatpush.bf16.msra.mxu0 0
  %3852 = vmatpush.bf16.msra.mxu0 0
  %3853 = vmatpush.bf16.msra.mxu0 0
  %3854 = vmatpush.bf16.msra.mxu0 %v3609
  %3855 = vmatpush.bf16.msra.mxu0 %v3608
  %3856 = vmatmul.bf16.gmra.mxu0 %v3846
  %v3857 = vpop.f32.mrf.mxu0
  %v3858 = vadd.f32 0.0, %v3857
  %v3859 = vpop.f32.mrf.mxu0
  %3860 = vdwg.mxu0
  %v3861 = vadd.f32 %v3518, %v3858
  %v3862 = vtanh.pop %v3861
  %v3863 = vxor.u32 %v3861, 2147483648
  %v3864 = vmul.f32 %v3863, 1.442695
  %v3865 = vpow.pop %v3864
  %v3866 = vadd.f32 %v3865, 1.0
  %v3867 = vrcp.pop %v3866
  %v3868 = vmul.f32 %v3866, %v3867
  %v3869 = vsub.f32 1.0, %v3868
  %v3870 = vmul.f32 %v3867, %v3869
  %v3871 = vadd.f32 %v3867, %v3870
  %vm3872 = vweird.f32 %v3866
  %vm3873 = vweird.f32 %v3867
  %vm3874 = vmor %vm3872, %vm3873
  %v3875 = vsel %vm3874, %v3867, %v3871
  %v3876 = vand.u32 2147483647, %v3866
  %vm3877 = vcmp.eq.f32.partialorder %v3876, 8.507059e+37
  %v3878 = vand.u32 %v3866, 2147483648
  %v3879 = vor.u32 1.1754944e-38, %v3878
  %v3880 = vsel %vm3877, %v3879, %v3875
  %v3881 = vmul.f32 1.0, %v3880
  %v3882 = vsel %vm3410, %v3862, %v3881
  %v3883 = vmul.f32 %v3882, %v3775
  %3885 = vrot.lane.b32.xlu0 %v3882, 64
  %v3886 = vpop.permute.xlu0 %3885
  %v3888 = vmul.f32 %v3882, %v3886
  %3890 = vrot.lane.b32.xlu0 %v3888, 32
  %v3891 = vpop.permute.xlu0 %3890
  %v3893 = vadd.f32 %v3883, %v3891
  %v3894 = vtanh.pop %v3893
  %3896 = vrot.lane.b32.xlu0 %v3894, 64
  %v3897 = vpop.permute.xlu0 %3896
  %v3899 = vmul.f32 %v3882, %v3897
  %v3900 = vpack.c.bf16 %v3840, %v3840
  %3902 = vrot.lane.b32.xlu0 %v3900, 32
  %v3903 = vpop.permute.xlu0 %3902
  %v3905 = vsel %vm3264, %v3903, 0
  %3907 = vmatpush.bf16.msra.mxu0 0
  %3908 = vmatpush.bf16.msra.mxu0 0
  %3909 = vmatpush.bf16.msra.mxu0 0
  %3910 = vmatpush.bf16.msra.mxu0 0
  %3911 = vmatpush.bf16.msra.mxu0 0
  %3912 = vmatpush.bf16.msra.mxu0 0
  %3913 = vmatpush.bf16.msra.mxu0 %v3542
  %3914 = vmatpush.bf16.msra.mxu0 %v3541
  %3915 = vmatmul.bf16.gmra.mxu0 %v3905
  %v3916 = vpop.f32.mrf.mxu0
  %v3917 = vadd.f32 0.0, %v3916
  %v3918 = vpop.f32.mrf.mxu0
  %3919 = vdwg.mxu0
  %v3920 = vadd.f32 %v3464, %v3917
  %v3921 = vtanh.pop %v3920
  %v3922 = vxor.u32 %v3920, 2147483648
  %v3923 = vmul.f32 %v3922, 1.442695
  %v3924 = vpow.pop %v3923
  %v3925 = vadd.f32 %v3924, 1.0
  %v3926 = vrcp.pop %v3925
  %v3927 = vmul.f32 %v3925, %v3926
  %v3928 = vsub.f32 1.0, %v3927
  %v3929 = vmul.f32 %v3926, %v3928
  %v3930 = vadd.f32 %v3926, %v3929
  %vm3931 = vweird.f32 %v3925
  %vm3932 = vweird.f32 %v3926
  %vm3933 = vmor %vm3931, %vm3932
  %v3934 = vsel %vm3933, %v3926, %v3930
  %v3935 = vand.u32 2147483647, %v3925
  %vm3936 = vcmp.eq.f32.partialorder %v3935, 8.507059e+37
  %v3937 = vand.u32 %v3925, 2147483648
  %v3938 = vor.u32 1.1754944e-38, %v3937
  %v3939 = vsel %vm3936, %v3938, %v3934
  %v3940 = vmul.f32 1.0, %v3939
  %v3941 = vsel %vm3410, %v3921, %v3940
  %v3942 = vmul.f32 %v3941, %v3834
  %3944 = vrot.lane.b32.xlu0 %v3941, 64
  %v3945 = vpop.permute.xlu0 %3944
  %v3947 = vmul.f32 %v3941, %v3945
  %3949 = vrot.lane.b32.xlu0 %v3947, 32
  %v3950 = vpop.permute.xlu0 %3949
  %v3952 = vadd.f32 %v3942, %v3950
  %v3953 = vtanh.pop %v3952
  %3955 = vrot.lane.b32.xlu0 %v3953, 64
  %v3956 = vpop.permute.xlu0 %3955
  %v3958 = vmul.f32 %v3941, %v3956
  %v3959 = vpack.c.bf16 %v3899, %v3899
  %3961 = vrot.lane.b32.xlu0 %v3959, 32
  %v3962 = vpop.permute.xlu0 %3961
  %v3964 = vsel %vm3264, %v3962, 0
  %3966 = vmatpush.bf16.msra.mxu0 0
  %3967 = vmatpush.bf16.msra.mxu0 0
  %3968 = vmatpush.bf16.msra.mxu0 0
  %3969 = vmatpush.bf16.msra.mxu0 0
  %3970 = vmatpush.bf16.msra.mxu0 0
  %3971 = vmatpush.bf16.msra.mxu0 0
  %3972 = vmatpush.bf16.msra.mxu0 %v3609
  %3973 = vmatpush.bf16.msra.mxu0 %v3608
  %3974 = vmatmul.bf16.gmra.mxu0 %v3964
  %v3975 = vpop.f32.mrf.mxu0
  %v3976 = vadd.f32 0.0, %v3975
  %v3977 = vpop.f32.mrf.mxu0
  %3978 = vdwg.mxu0
  %v3979 = vadd.f32 %v3516, %v3976
  %v3980 = vtanh.pop %v3979
  %v3981 = vxor.u32 %v3979, 2147483648
  %v3982 = vmul.f32 %v3981, 1.442695
  %v3983 = vpow.pop %v3982
  %v3984 = vadd.f32 %v3983, 1.0
  %v3985 = vrcp.pop %v3984
  %v3986 = vmul.f32 %v3984, %v3985
  %v3987 = vsub.f32 1.0, %v3986
  %v3988 = vmul.f32 %v3985, %v3987
  %v3989 = vadd.f32 %v3985, %v3988
  %vm3990 = vweird.f32 %v3984
  %vm3991 = vweird.f32 %v3985
  %vm3992 = vmor %vm3990, %vm3991
  %v3993 = vsel %vm3992, %v3985, %v3989
  %v3994 = vand.u32 2147483647, %v3984
  %vm3995 = vcmp.eq.f32.partialorder %v3994, 8.507059e+37
  %v3996 = vand.u32 %v3984, 2147483648
  %v3997 = vor.u32 1.1754944e-38, %v3996
  %v3998 = vsel %vm3995, %v3997, %v3993
  %v3999 = vmul.f32 1.0, %v3998
  %v4000 = vsel %vm3410, %v3980, %v3999
  %v4001 = vmul.f32 %v4000, %v3893
  %4003 = vrot.lane.b32.xlu0 %v4000, 64
  %v4004 = vpop.permute.xlu0 %4003
  %v4006 = vmul.f32 %v4000, %v4004
  %4008 = vrot.lane.b32.xlu0 %v4006, 32
  %v4009 = vpop.permute.xlu0 %4008
  %v4011 = vadd.f32 %v4001, %v4009
  %v4012 = vtanh.pop %v4011
  %4014 = vrot.lane.b32.xlu0 %v4012, 64
  %v4015 = vpop.permute.xlu0 %4014
  %v4017 = vmul.f32 %v4000, %v4015
  %v4018 = vpack.c.bf16 %v3958, %v3958
  %4020 = vrot.lane.b32.xlu0 %v4018, 32
  %v4021 = vpop.permute.xlu0 %4020
  %v4023 = vsel %vm3264, %v4021, 0
  %4025 = vmatpush.bf16.msra.mxu0 0
  %4026 = vmatpush.bf16.msra.mxu0 0
  %4027 = vmatpush.bf16.msra.mxu0 0
  %4028 = vmatpush.bf16.msra.mxu0 0
  %4029 = vmatpush.bf16.msra.mxu0 0
  %4030 = vmatpush.bf16.msra.mxu0 0
  %4031 = vmatpush.bf16.msra.mxu0 %v3542
  %4032 = vmatpush.bf16.msra.mxu0 %v3541
  %4033 = vmatmul.bf16.gmra.mxu0 %v4023
  %v4034 = vpop.f32.mrf.mxu0
  %v4035 = vadd.f32 0.0, %v4034
  %v4036 = vpop.f32.mrf.mxu0
  %4037 = vdwg.mxu0
  %v4038 = vadd.f32 %v3467, %v4035
  %v4039 = vtanh.pop %v4038
  %v4040 = vxor.u32 %v4038, 2147483648
  %v4041 = vmul.f32 %v4040, 1.442695
  %v4042 = vpow.pop %v4041
  %v4043 = vadd.f32 %v4042, 1.0
  %v4044 = vrcp.pop %v4043
  %v4045 = vmul.f32 %v4043, %v4044
  %v4046 = vsub.f32 1.0, %v4045
  %v4047 = vmul.f32 %v4044, %v4046
  %v4048 = vadd.f32 %v4044, %v4047
  %vm4049 = vweird.f32 %v4043
  %vm4050 = vweird.f32 %v4044
  %vm4051 = vmor %vm4049, %vm4050
  %v4052 = vsel %vm4051, %v4044, %v4048
  %v4053 = vand.u32 2147483647, %v4043
  %vm4054 = vcmp.eq.f32.partialorder %v4053, 8.507059e+37
  %v4055 = vand.u32 %v4043, 2147483648
  %v4056 = vor.u32 1.1754944e-38, %v4055
  %v4057 = vsel %vm4054, %v4056, %v4052
  %v4058 = vmul.f32 1.0, %v4057
  %v4059 = vsel %vm3410, %v4039, %v4058
  %v4060 = vmul.f32 %v4059, %v3952
  %4062 = vrot.lane.b32.xlu0 %v4059, 64
  %v4063 = vpop.permute.xlu0 %4062
  %v4065 = vmul.f32 %v4059, %v4063
  %4067 = vrot.lane.b32.xlu0 %v4065, 32
  %v4068 = vpop.permute.xlu0 %4067
  %v4070 = vadd.f32 %v4060, %v4068
  %v4071 = vtanh.pop %v4070
  %4073 = vrot.lane.b32.xlu0 %v4071, 64
  %v4074 = vpop.permute.xlu0 %4073
  %v4076 = vmul.f32 %v4059, %v4074
  %v4077 = vpack.c.bf16 %v4017, %v4017
  %4079 = vrot.lane.b32.xlu0 %v4077, 32
  %v4080 = vpop.permute.xlu0 %4079
  %v4082 = vsel %vm3264, %v4080, 0
  %4084 = vmatpush.bf16.msra.mxu0 0
  %4085 = vmatpush.bf16.msra.mxu0 0
  %4086 = vmatpush.bf16.msra.mxu0 0
  %4087 = vmatpush.bf16.msra.mxu0 0
  %4088 = vmatpush.bf16.msra.mxu0 0
  %4089 = vmatpush.bf16.msra.mxu0 0
  %4090 = vmatpush.bf16.msra.mxu0 %v3609
  %4091 = vmatpush.bf16.msra.mxu0 %v3608
  %4092 = vmatmul.bf16.gmra.mxu0 %v4082
  %v4093 = vpop.f32.mrf.mxu0
  %v4094 = vadd.f32 0.0, %v4093
  %v4095 = vpop.f32.mrf.mxu0
  %4096 = vdwg.mxu0
  %v4097 = vadd.f32 %v3513, %v4094
  %v4098 = vtanh.pop %v4097
  %v4099 = vxor.u32 %v4097, 2147483648
  %v4100 = vmul.f32 %v4099, 1.442695
  %v4101 = vpow.pop %v4100
  %v4102 = vadd.f32 %v4101, 1.0
  %v4103 = vrcp.pop %v4102
  %v4104 = vmul.f32 %v4102, %v4103
  %v4105 = vsub.f32 1.0, %v4104
  %v4106 = vmul.f32 %v4103, %v4105
  %v4107 = vadd.f32 %v4103, %v4106
  %vm4108 = vweird.f32 %v4102
  %vm4109 = vweird.f32 %v4103
  %vm4110 = vmor %vm4108, %vm4109
  %v4111 = vsel %vm4110, %v4103, %v4107
  %v4112 = vand.u32 2147483647, %v4102
  %vm4113 = vcmp.eq.f32.partialorder %v4112, 8.507059e+37
  %v4114 = vand.u32 %v4102, 2147483648
  %v4115 = vor.u32 1.1754944e-38, %v4114
  %v4116 = vsel %vm4113, %v4115, %v4111
  %v4117 = vmul.f32 1.0, %v4116
  %v4118 = vsel %vm3410, %v4098, %v4117
  %v4119 = vmul.f32 %v4118, %v4011
  %4121 = vrot.lane.b32.xlu0 %v4118, 64
  %v4122 = vpop.permute.xlu0 %4121
  %v4124 = vmul.f32 %v4118, %v4122
  %4126 = vrot.lane.b32.xlu0 %v4124, 32
  %v4127 = vpop.permute.xlu0 %4126
  %v4129 = vadd.f32 %v4119, %v4127
  %v4130 = vtanh.pop %v4129
  %4132 = vrot.lane.b32.xlu0 %v4130, 64
  %v4133 = vpop.permute.xlu0 %4132
  %v4135 = vmul.f32 %v4118, %v4133
  %v4136 = vpack.c.bf16 %v4076, %v4076
  %4138 = vrot.lane.b32.xlu0 %v4136, 32
  %v4139 = vpop.permute.xlu0 %4138
  %v4141 = vsel %vm3264, %v4139, 0
  %4143 = vmatpush.bf16.msra.mxu0 0
  %4144 = vmatpush.bf16.msra.mxu0 0
  %4145 = vmatpush.bf16.msra.mxu0 0
  %4146 = vmatpush.bf16.msra.mxu0 0
  %4147 = vmatpush.bf16.msra.mxu0 0
  %4148 = vmatpush.bf16.msra.mxu0 0
  %4149 = vmatpush.bf16.msra.mxu0 %v3542
  %4150 = vmatpush.bf16.msra.mxu0 %v3541
  %4151 = vmatmul.bf16.gmra.mxu0 %v4141
  %v4152 = vpop.f32.mrf.mxu0
  %v4153 = vadd.f32 0.0, %v4152
  %v4154 = vpop.f32.mrf.mxu0
  %4155 = vdwg.mxu0
  %v4156 = vadd.f32 %v3469, %v4153
  %v4157 = vtanh.pop %v4156
  %v4158 = vxor.u32 %v4156, 2147483648
  %v4159 = vmul.f32 %v4158, 1.442695
  %v4160 = vpow.pop %v4159
  %v4161 = vadd.f32 %v4160, 1.0
  %v4162 = vrcp.pop %v4161
  %v4163 = vmul.f32 %v4161, %v4162
  %v4164 = vsub.f32 1.0, %v4163
  %v4165 = vmul.f32 %v4162, %v4164
  %v4166 = vadd.f32 %v4162, %v4165
  %vm4167 = vweird.f32 %v4161
  %vm4168 = vweird.f32 %v4162
  %vm4169 = vmor %vm4167, %vm4168
  %v4170 = vsel %vm4169, %v4162, %v4166
  %v4171 = vand.u32 2147483647, %v4161
  %vm4172 = vcmp.eq.f32.partialorder %v4171, 8.507059e+37
  %v4173 = vand.u32 %v4161, 2147483648
  %v4174 = vor.u32 1.1754944e-38, %v4173
  %v4175 = vsel %vm4172, %v4174, %v4170
  %v4176 = vmul.f32 1.0, %v4175
  %v4177 = vsel %vm3410, %v4157, %v4176
  %v4178 = vmul.f32 %v4177, %v4070
  %4180 = vrot.lane.b32.xlu0 %v4177, 64
  %v4181 = vpop.permute.xlu0 %4180
  %v4183 = vmul.f32 %v4177, %v4181
  %4185 = vrot.lane.b32.xlu0 %v4183, 32
  %v4186 = vpop.permute.xlu0 %4185
  %v4188 = vadd.f32 %v4178, %v4186
  %v4189 = vtanh.pop %v4188
  %4191 = vrot.lane.b32.xlu0 %v4189, 64
  %v4192 = vpop.permute.xlu0 %4191
  %v4194 = vmul.f32 %v4177, %v4192
  %v4195 = vpack.c.bf16 %v4135, %v4135
  %4197 = vrot.lane.b32.xlu0 %v4195, 32
  %v4198 = vpop.permute.xlu0 %4197
  %v4200 = vsel %vm3264, %v4198, 0
  %4202 = vmatpush.bf16.msra.mxu0 0
  %4203 = vmatpush.bf16.msra.mxu0 0
  %4204 = vmatpush.bf16.msra.mxu0 0
  %4205 = vmatpush.bf16.msra.mxu0 0
  %4206 = vmatpush.bf16.msra.mxu0 0
  %4207 = vmatpush.bf16.msra.mxu0 0
  %4208 = vmatpush.bf16.msra.mxu0 %v3609
  %4209 = vmatpush.bf16.msra.mxu0 %v3608
  %4210 = vmatmul.bf16.gmra.mxu0 %v4200
  %v4211 = vpop.f32.mrf.mxu0
  %v4212 = vadd.f32 0.0, %v4211
  %v4213 = vpop.f32.mrf.mxu0
  %4214 = vdwg.mxu0
  %v4215 = vadd.f32 %v3511, %v4212
  %v4216 = vtanh.pop %v4215
  %v4217 = vxor.u32 %v4215, 2147483648
  %v4218 = vmul.f32 %v4217, 1.442695
  %v4219 = vpow.pop %v4218
  %v4220 = vadd.f32 %v4219, 1.0
  %v4221 = vrcp.pop %v4220
  %v4222 = vmul.f32 %v4220, %v4221
  %v4223 = vsub.f32 1.0, %v4222
  %v4224 = vmul.f32 %v4221, %v4223
  %v4225 = vadd.f32 %v4221, %v4224
  %vm4226 = vweird.f32 %v4220
  %vm4227 = vweird.f32 %v4221
  %vm4228 = vmor %vm4226, %vm4227
  %v4229 = vsel %vm4228, %v4221, %v4225
  %v4230 = vand.u32 2147483647, %v4220
  %vm4231 = vcmp.eq.f32.partialorder %v4230, 8.507059e+37
  %v4232 = vand.u32 %v4220, 2147483648
  %v4233 = vor.u32 1.1754944e-38, %v4232
  %v4234 = vsel %vm4231, %v4233, %v4229
  %v4235 = vmul.f32 1.0, %v4234
  %v4236 = vsel %vm3410, %v4216, %v4235
  %v4237 = vmul.f32 %v4236, %v4129
  %4239 = vrot.lane.b32.xlu0 %v4236, 64
  %v4240 = vpop.permute.xlu0 %4239
  %v4242 = vmul.f32 %v4236, %v4240
  %4244 = vrot.lane.b32.xlu0 %v4242, 32
  %v4245 = vpop.permute.xlu0 %4244
  %v4247 = vadd.f32 %v4237, %v4245
  %v4248 = vtanh.pop %v4247
  %4250 = vrot.lane.b32.xlu0 %v4248, 64
  %v4251 = vpop.permute.xlu0 %4250
  %v4253 = vmul.f32 %v4236, %v4251
  %v4254 = vpack.c.bf16 %v4194, %v4194
  %4256 = vrot.lane.b32.xlu0 %v4254, 32
  %v4257 = vpop.permute.xlu0 %4256
  %v4259 = vsel %vm3264, %v4257, 0
  %4261 = vmatpush.bf16.msra.mxu0 0
  %4262 = vmatpush.bf16.msra.mxu0 0
  %4263 = vmatpush.bf16.msra.mxu0 0
  %4264 = vmatpush.bf16.msra.mxu0 0
  %4265 = vmatpush.bf16.msra.mxu0 0
  %4266 = vmatpush.bf16.msra.mxu0 0
  %4267 = vmatpush.bf16.msra.mxu0 %v3542
  %4268 = vmatpush.bf16.msra.mxu0 %v3541
  %4269 = vmatmul.bf16.gmra.mxu0 %v4259
  %v4270 = vpop.f32.mrf.mxu0
  %v4271 = vadd.f32 0.0, %v4270
  %v4272 = vpop.f32.mrf.mxu0
  %4273 = vdwg.mxu0
  %v4274 = vadd.f32 %v3472, %v4271
  %v4275 = vtanh.pop %v4274
  %v4276 = vxor.u32 %v4274, 2147483648
  %v4277 = vmul.f32 %v4276, 1.442695
  %v4278 = vpow.pop %v4277
  %v4279 = vadd.f32 %v4278, 1.0
  %v4280 = vrcp.pop %v4279
  %v4281 = vmul.f32 %v4279, %v4280
  %v4282 = vsub.f32 1.0, %v4281
  %v4283 = vmul.f32 %v4280, %v4282
  %v4284 = vadd.f32 %v4280, %v4283
  %vm4285 = vweird.f32 %v4279
  %vm4286 = vweird.f32 %v4280
  %vm4287 = vmor %vm4285, %vm4286
  %v4288 = vsel %vm4287, %v4280, %v4284
  %v4289 = vand.u32 2147483647, %v4279
  %vm4290 = vcmp.eq.f32.partialorder %v4289, 8.507059e+37
  %v4291 = vand.u32 %v4279, 2147483648
  %v4292 = vor.u32 1.1754944e-38, %v4291
  %v4293 = vsel %vm4290, %v4292, %v4288
  %v4294 = vmul.f32 1.0, %v4293
  %v4295 = vsel %vm3410, %v4275, %v4294
  %v4296 = vmul.f32 %v4295, %v4188
  %4298 = vrot.lane.b32.xlu0 %v4295, 64
  %v4299 = vpop.permute.xlu0 %4298
  %v4301 = vmul.f32 %v4295, %v4299
  %4303 = vrot.lane.b32.xlu0 %v4301, 32
  %v4304 = vpop.permute.xlu0 %4303
  %v4306 = vadd.f32 %v4296, %v4304
  %v4307 = vtanh.pop %v4306
  %4309 = vrot.lane.b32.xlu0 %v4307, 64
  %v4310 = vpop.permute.xlu0 %4309
  %v4312 = vmul.f32 %v4295, %v4310
  %v4313 = vpack.c.bf16 %v4253, %v4253
  %4315 = vrot.lane.b32.xlu0 %v4313, 32
  %v4316 = vpop.permute.xlu0 %4315
  %v4318 = vsel %vm3264, %v4316, 0
  %4320 = vmatpush.bf16.msra.mxu0 0
  %4321 = vmatpush.bf16.msra.mxu0 0
  %4322 = vmatpush.bf16.msra.mxu0 0
  %4323 = vmatpush.bf16.msra.mxu0 0
  %4324 = vmatpush.bf16.msra.mxu0 0
  %4325 = vmatpush.bf16.msra.mxu0 0
  %4326 = vmatpush.bf16.msra.mxu0 %v3609
  %4327 = vmatpush.bf16.msra.mxu0 %v3608
  %4328 = vmatmul.bf16.gmra.mxu0 %v4318
  %v4329 = vpop.f32.mrf.mxu0
  %v4330 = vadd.f32 0.0, %v4329
  %v4331 = vpop.f32.mrf.mxu0
  %4332 = vdwg.mxu0
  %v4333 = vadd.f32 %v3508, %v4330
  %v4334 = vtanh.pop %v4333
  %v4335 = vxor.u32 %v4333, 2147483648
  %v4336 = vmul.f32 %v4335, 1.442695
  %v4337 = vpow.pop %v4336
  %v4338 = vadd.f32 %v4337, 1.0
  %v4339 = vrcp.pop %v4338
  %v4340 = vmul.f32 %v4338, %v4339
  %v4341 = vsub.f32 1.0, %v4340
  %v4342 = vmul.f32 %v4339, %v4341
  %v4343 = vadd.f32 %v4339, %v4342
  %vm4344 = vweird.f32 %v4338
  %vm4345 = vweird.f32 %v4339
  %vm4346 = vmor %vm4344, %vm4345
  %v4347 = vsel %vm4346, %v4339, %v4343
  %v4348 = vand.u32 2147483647, %v4338
  %vm4349 = vcmp.eq.f32.partialorder %v4348, 8.507059e+37
  %v4350 = vand.u32 %v4338, 2147483648
  %v4351 = vor.u32 1.1754944e-38, %v4350
  %v4352 = vsel %vm4349, %v4351, %v4347
  %v4353 = vmul.f32 1.0, %v4352
  %v4354 = vsel %vm3410, %v4334, %v4353
  %v4355 = vmul.f32 %v4354, %v4247
  %4357 = vrot.lane.b32.xlu0 %v4354, 64
  %v4358 = vpop.permute.xlu0 %4357
  %v4360 = vmul.f32 %v4354, %v4358
  %4362 = vrot.lane.b32.xlu0 %v4360, 32
  %v4363 = vpop.permute.xlu0 %4362
  %v4365 = vadd.f32 %v4355, %v4363
  %v4366 = vtanh.pop %v4365
  %4368 = vrot.lane.b32.xlu0 %v4366, 64
  %v4369 = vpop.permute.xlu0 %4368
  %v4371 = vmul.f32 %v4354, %v4369
  %v4372 = vpack.c.bf16 %v4312, %v4312
  %4374 = vrot.lane.b32.xlu0 %v4372, 32
  %v4375 = vpop.permute.xlu0 %4374
  %v4377 = vsel %vm3264, %v4375, 0
  %4379 = vmatpush.bf16.msra.mxu0 0
  %4380 = vmatpush.bf16.msra.mxu0 0
  %4381 = vmatpush.bf16.msra.mxu0 0
  %4382 = vmatpush.bf16.msra.mxu0 0
  %4383 = vmatpush.bf16.msra.mxu0 0
  %4384 = vmatpush.bf16.msra.mxu0 0
  %4385 = vmatpush.bf16.msra.mxu0 %v3542
  %4386 = vmatpush.bf16.msra.mxu0 %v3541
  %4387 = vmatmul.bf16.gmra.mxu0 %v4377
  %v4388 = vpop.f32.mrf.mxu0
  %v4389 = vadd.f32 0.0, %v4388
  %v4390 = vpop.f32.mrf.mxu0
  %4391 = vdwg.mxu0
  %v4392 = vadd.f32 %v3474, %v4389
  %v4393 = vtanh.pop %v4392
  %v4394 = vxor.u32 %v4392, 2147483648
  %v4395 = vmul.f32 %v4394, 1.442695
  %v4396 = vpow.pop %v4395
  %v4397 = vadd.f32 %v4396, 1.0
  %v4398 = vrcp.pop %v4397
  %v4399 = vmul.f32 %v4397, %v4398
  %v4400 = vsub.f32 1.0, %v4399
  %v4401 = vmul.f32 %v4398, %v4400
  %v4402 = vadd.f32 %v4398, %v4401
  %vm4403 = vweird.f32 %v4397
  %vm4404 = vweird.f32 %v4398
  %vm4405 = vmor %vm4403, %vm4404
  %v4406 = vsel %vm4405, %v4398, %v4402
  %v4407 = vand.u32 2147483647, %v4397
  %vm4408 = vcmp.eq.f32.partialorder %v4407, 8.507059e+37
  %v4409 = vand.u32 %v4397, 2147483648
  %v4410 = vor.u32 1.1754944e-38, %v4409
  %v4411 = vsel %vm4408, %v4410, %v4406
  %v4412 = vmul.f32 1.0, %v4411
  %v4413 = vsel %vm3410, %v4393, %v4412
  %v4414 = vmul.f32 %v4413, %v4306
  %4416 = vrot.lane.b32.xlu0 %v4413, 64
  %v4417 = vpop.permute.xlu0 %4416
  %v4419 = vmul.f32 %v4413, %v4417
  %4421 = vrot.lane.b32.xlu0 %v4419, 32
  %v4422 = vpop.permute.xlu0 %4421
  %v4424 = vadd.f32 %v4414, %v4422
  %v4425 = vtanh.pop %v4424
  %4427 = vrot.lane.b32.xlu0 %v4425, 64
  %v4428 = vpop.permute.xlu0 %4427
  %v4430 = vmul.f32 %v4413, %v4428
  %v4431 = vpack.c.bf16 %v4371, %v4371
  %4433 = vrot.lane.b32.xlu0 %v4431, 32
  %v4434 = vpop.permute.xlu0 %4433
  %v4436 = vsel %vm3264, %v4434, 0
  %4438 = vmatpush.bf16.msra.mxu0 0
  %4439 = vmatpush.bf16.msra.mxu0 0
  %4440 = vmatpush.bf16.msra.mxu0 0
  %4441 = vmatpush.bf16.msra.mxu0 0
  %4442 = vmatpush.bf16.msra.mxu0 0
  %4443 = vmatpush.bf16.msra.mxu0 0
  %4444 = vmatpush.bf16.msra.mxu0 %v3609
  %4445 = vmatpush.bf16.msra.mxu0 %v3608
  %4446 = vmatmul.bf16.gmra.mxu0 %v4436
  %v4447 = vpop.f32.mrf.mxu0
  %v4448 = vadd.f32 0.0, %v4447
  %v4449 = vpop.f32.mrf.mxu0
  %4450 = vdwg.mxu0
  %v4451 = vadd.f32 %v3506, %v4448
  %v4452 = vtanh.pop %v4451
  %v4453 = vxor.u32 %v4451, 2147483648
  %v4454 = vmul.f32 %v4453, 1.442695
  %v4455 = vpow.pop %v4454
  %v4456 = vadd.f32 %v4455, 1.0
  %v4457 = vrcp.pop %v4456
  %v4458 = vmul.f32 %v4456, %v4457
  %v4459 = vsub.f32 1.0, %v4458
  %v4460 = vmul.f32 %v4457, %v4459
  %v4461 = vadd.f32 %v4457, %v4460
  %vm4462 = vweird.f32 %v4456
  %vm4463 = vweird.f32 %v4457
  %vm4464 = vmor %vm4462, %vm4463
  %v4465 = vsel %vm4464, %v4457, %v4461
  %v4466 = vand.u32 2147483647, %v4456
  %vm4467 = vcmp.eq.f32.partialorder %v4466, 8.507059e+37
  %v4468 = vand.u32 %v4456, 2147483648
  %v4469 = vor.u32 1.1754944e-38, %v4468
  %v4470 = vsel %vm4467, %v4469, %v4465
  %v4471 = vmul.f32 1.0, %v4470
  %v4472 = vsel %vm3410, %v4452, %v4471
  %v4473 = vmul.f32 %v4472, %v4365
  %4475 = vrot.lane.b32.xlu0 %v4472, 64
  %v4476 = vpop.permute.xlu0 %4475
  %v4478 = vmul.f32 %v4472, %v4476
  %4480 = vrot.lane.b32.xlu0 %v4478, 32
  %v4481 = vpop.permute.xlu0 %4480
  %v4483 = vadd.f32 %v4473, %v4481
  %v4484 = vtanh.pop %v4483
  %4486 = vrot.lane.b32.xlu0 %v4484, 64
  %v4487 = vpop.permute.xlu0 %4486
  %v4489 = vmul.f32 %v4472, %v4487
  %4498 = vrot.lane.b32.xlu0 %v3599, 32
  %v4499 = vpop.permute.xlu0 %4498
  %4500 = vrot.lane.b32.xlu0 %v3722, 32
  %v4501 = vpop.permute.xlu0 %4500
  %4502 = vrot.lane.b32.xlu0 %v3840, 32
  %v4503 = vpop.permute.xlu0 %4502
  %4504 = vrot.lane.b32.xlu0 %v3958, 32
  %v4505 = vpop.permute.xlu0 %4504
  %4506 = vrot.lane.b32.xlu0 %v4076, 32
  %v4507 = vpop.permute.xlu0 %4506
  %4508 = vrot.lane.b32.xlu0 %v4194, 32
  %v4509 = vpop.permute.xlu0 %4508
  %4510 = vrot.lane.b32.xlu0 %v4312, 32
  %v4511 = vpop.permute.xlu0 %4510
  %4512 = vrot.lane.b32.xlu0 %v4430, 32
  %v4513 = vpop.permute.xlu0 %4512
  %4530 = vrot.lane.b32.xlu0 %v4489, 64
  %v4531 = vpop.permute.xlu0 %4530
  %4532 = vrot.lane.b32.xlu0 %v4371, 64
  %v4533 = vpop.permute.xlu0 %4532
  %4534 = vrot.lane.b32.xlu0 %v4253, 64
  %v4535 = vpop.permute.xlu0 %4534
  %4536 = vrot.lane.b32.xlu0 %v4135, 64
  %v4537 = vpop.permute.xlu0 %4536
  %4538 = vrot.lane.b32.xlu0 %v4017, 64
  %v4539 = vpop.permute.xlu0 %4538
  %4540 = vrot.lane.b32.xlu0 %v3899, 64
  %v4541 = vpop.permute.xlu0 %4540
  %4542 = vrot.lane.b32.xlu0 %v3781, 64
  %v4543 = vpop.permute.xlu0 %4542
  %4544 = vrot.lane.b32.xlu0 %v3663, 64
  %v4545 = vpop.permute.xlu0 %4544
  %v4554 = vsel %vm3264, %v4499, %v4531
  %v4555 = vsel %vm3264, %v4501, %v4533
  %v4556 = vsel %vm3264, %v4503, %v4535
  %v4557 = vsel %vm3264, %v4505, %v4537
  %v4558 = vsel %vm3264, %v4507, %v4539
  %v4559 = vsel %vm3264, %v4509, %v4541
  %v4560 = vsel %vm3264, %v4511, %v4543
  %v4561 = vsel %vm3264, %v4513, %v4545
  %v4562 = vld [vmem:[%s37] sm:$0xf]
  %v4563 = vld [vmem:[%s37 + $0x4] sm:$0xf]
  %v4564 = vld [vmem:[%s37 + $0x8] sm:$0xf]
  %v4565 = vld [vmem:[%s37 + $0xc] sm:$0xf]
  %v4566 = vld [vmem:[%s37 + $0x10] sm:$0xf]
  %v4567 = vld [vmem:[%s37 + $0x14] sm:$0xf]
  %v4568 = vld [vmem:[%s37 + $0x18] sm:$0xf]
  %v4569 = vld [vmem:[%s37 + $0x1c] sm:$0xf]
  %v4570 = vpack.c.bf16 %v4555, %v4554
  %v4571 = vpack.c.bf16 %v4557, %v4556
  %v4572 = vpack.c.bf16 %v4559, %v4558
  %v4573 = vpack.c.bf16 %v4561, %v4560
  %v4574 = vld [vmem:[%s45] sm:$0x1]
  %v4576 = vperm.slane %v4574, 0
  %v4586 = vunpack.c.l.b16 %v4562
  %v4587 = vunpack.c.l.b16 %v4563
  %v4588 = vunpack.c.l.b16 %v4564
  %v4589 = vunpack.c.l.b16 %v4565
  %v4590 = vunpack.c.l.b16 %v4566
  %v4591 = vunpack.c.l.b16 %v4567
  %v4592 = vunpack.c.l.b16 %v4568
  %v4593 = vunpack.c.l.b16 %v4569
  %v4594 = vpack.c.b16 %v4587, %v4586
  %v4595 = vpack.c.b16 %v4589, %v4588
  %v4596 = vpack.c.b16 %v4591, %v4590
  %v4597 = vpack.c.b16 %v4593, %v4592
  %v4603 = vsel %vm3345, %v4570, 0
  %v4606 = vsel %vm3345, %v4571, 0
  %v4609 = vsel %vm3345, %v4572, 0
  %v4612 = vsel %vm3345, %v4573, 0
  %4614 = vmatpush.bf16.msra.mxu0 0
  %4615 = vmatpush.bf16.msra.mxu0 0
  %4616 = vmatpush.bf16.msra.mxu0 0
  %4617 = vmatpush.bf16.msra.mxu0 0
  %4618 = vmatpush.bf16.msra.mxu0 %v4597
  %4619 = vmatpush.bf16.msra.mxu0 %v4596
  %4620 = vmatpush.bf16.msra.mxu0 %v4595
  %4621 = vmatpush.bf16.msra.mxu0 %v4594
  %4622 = vmatmul.bf16.gmra.mxu0 %v4603
  %v4623 = vpop.f32.mrf.mxu0
  %v4624 = vadd.f32 %v4576, %v4623
  %v4625 = vpop.f32.mrf.mxu0
  %v4626 = vadd.f32 %v4576, %v4625
  %4627 = vmatmul.bf16.gmra.mxu0 %v4606
  %v4628 = vpop.f32.mrf.mxu0
  %v4629 = vadd.f32 %v4576, %v4628
  %v4630 = vpop.f32.mrf.mxu0
  %v4631 = vadd.f32 %v4576, %v4630
  %4632 = vmatmul.bf16.gmra.mxu0 %v4609
  %v4633 = vpop.f32.mrf.mxu0
  %v4634 = vadd.f32 %v4576, %v4633
  %v4635 = vpop.f32.mrf.mxu0
  %v4636 = vadd.f32 %v4576, %v4635
  %4637 = vmatmul.bf16.gmra.mxu0 %v4612
  %v4638 = vpop.f32.mrf.mxu0
  %v4639 = vadd.f32 %v4576, %v4638
  %v4640 = vpop.f32.mrf.mxu0
  %v4641 = vadd.f32 %v4576, %v4640
  %4642 = vdwg.mxu0
  %v4643 = vld [vmem:[%s39] sm:$0xf]
  %v4644 = vld [vmem:[%s39 + $0x4] sm:$0xf]
  %v4645 = vld [vmem:[%s39 + $0x8] sm:$0xf]
  %v4646 = vld [vmem:[%s39 + $0xc] sm:$0xf]
  %v4647 = vld [vmem:[%s39 + $0x10] sm:$0xf]
  %v4648 = vld [vmem:[%s39 + $0x14] sm:$0xf]
  %v4649 = vld [vmem:[%s39 + $0x18] sm:$0xf]
  %v4650 = vld [vmem:[%s39 + $0x1c] sm:$0xf]
  %v4651 = vld [vmem:[%s47] sm:$0x1]
  %v4653 = vperm.slane %v4651, 0
  %v4663 = vunpack.c.l.b16 %v4643
  %v4664 = vunpack.c.l.b16 %v4644
  %v4665 = vunpack.c.l.b16 %v4645
  %v4666 = vunpack.c.l.b16 %v4646
  %v4667 = vunpack.c.l.b16 %v4647
  %v4668 = vunpack.c.l.b16 %v4648
  %v4669 = vunpack.c.l.b16 %v4649
  %v4670 = vunpack.c.l.b16 %v4650
  %v4671 = vpack.c.b16 %v4664, %v4663
  %v4672 = vpack.c.b16 %v4666, %v4665
  %v4673 = vpack.c.b16 %v4668, %v4667
  %v4674 = vpack.c.b16 %v4670, %v4669
  %4679 = vmatpush.bf16.msra.mxu0 0
  %4680 = vmatpush.bf16.msra.mxu0 0
  %4681 = vmatpush.bf16.msra.mxu0 0
  %4682 = vmatpush.bf16.msra.mxu0 0
  %4683 = vmatpush.bf16.msra.mxu0 %v4674
  %4684 = vmatpush.bf16.msra.mxu0 %v4673
  %4685 = vmatpush.bf16.msra.mxu0 %v4672
  %4686 = vmatpush.bf16.msra.mxu0 %v4671
  %4687 = vmatmul.bf16.gmra.mxu0 %v4603
  %v4688 = vpop.f32.mrf.mxu0
  %v4689 = vadd.f32 %v4653, %v4688
  %v4690 = vpop.f32.mrf.mxu0
  %v4691 = vadd.f32 %v4653, %v4690
  %4692 = vmatmul.bf16.gmra.mxu0 %v4606
  %v4693 = vpop.f32.mrf.mxu0
  %v4694 = vadd.f32 %v4653, %v4693
  %v4695 = vpop.f32.mrf.mxu0
  %v4696 = vadd.f32 %v4653, %v4695
  %4697 = vmatmul.bf16.gmra.mxu0 %v4609
  %v4698 = vpop.f32.mrf.mxu0
  %v4699 = vadd.f32 %v4653, %v4698
  %v4700 = vpop.f32.mrf.mxu0
  %v4701 = vadd.f32 %v4653, %v4700
  %4702 = vmatmul.bf16.gmra.mxu0 %v4612
  %v4703 = vpop.f32.mrf.mxu0
  %v4704 = vadd.f32 %v4653, %v4703
  %v4705 = vpop.f32.mrf.mxu0
  %v4706 = vadd.f32 %v4653, %v4705
  %4707 = vdwg.mxu0
  %v4708 = vld [vmem:[%s41] sm:$0xf]
  %v4709 = vld [vmem:[%s41 + $0x4] sm:$0xf]
  %v4710 = vld [vmem:[%s41 + $0x8] sm:$0xf]
  %v4711 = vld [vmem:[%s41 + $0xc] sm:$0xf]
  %v4712 = vld [vmem:[%s43] sm:$0xf]
  %v4713 = vld [vmem:[%s43 + $0x4] sm:$0xf]
  %v4714 = vld [vmem:[%s43 + $0x8] sm:$0xf]
  %v4715 = vld [vmem:[%s43 + $0xc] sm:$0xf]
  %v4720 = vunpack.c.l.b16 %v4708
  %v4721 = vunpack.c.l.b16 %v4709
  %v4722 = vunpack.c.l.b16 %v4710
  %v4723 = vunpack.c.l.b16 %v4711
  %v4724 = vpack.c.b16 %v4721, %v4720
  %v4725 = vpack.c.b16 %v4723, %v4722
  %4728 = vmatpush.bf16.msra.mxu0 0
  %4729 = vmatpush.bf16.msra.mxu0 0
  %4730 = vmatpush.bf16.msra.mxu0 0
  %4731 = vmatpush.bf16.msra.mxu0 0
  %4732 = vmatpush.bf16.msra.mxu0 0
  %4733 = vmatpush.bf16.msra.mxu0 0
  %4734 = vmatpush.bf16.msra.mxu0 %v4725
  %4735 = vmatpush.bf16.msra.mxu0 %v4724
  %4736 = vmatmul.bf16.gmra.mxu0 %v3546
  %v4737 = vpop.f32.mrf.mxu0
  %v4738 = vadd.f32 0.0, %v4737
  %v4739 = vpop.f32.mrf.mxu0
  %4740 = vdwg.mxu0
  %v4741 = vadd.f32 %v4624, %v4738
  %v4742 = vtanh.pop %v4741
  %v4743 = vxor.u32 %v4741, 2147483648
  %v4744 = vmul.f32 %v4743, 1.442695
  %v4745 = vpow.pop %v4744
  %v4746 = vadd.f32 %v4745, 1.0
  %v4747 = vrcp.pop %v4746
  %v4748 = vmul.f32 %v4746, %v4747
  %v4749 = vsub.f32 1.0, %v4748
  %v4750 = vmul.f32 %v4747, %v4749
  %v4751 = vadd.f32 %v4747, %v4750
  %vm4752 = vweird.f32 %v4746
  %vm4753 = vweird.f32 %v4747
  %vm4754 = vmor %vm4752, %vm4753
  %v4755 = vsel %vm4754, %v4747, %v4751
  %v4756 = vand.u32 2147483647, %v4746
  %vm4757 = vcmp.eq.f32.partialorder %v4756, 8.507059e+37
  %v4758 = vand.u32 %v4746, 2147483648
  %v4759 = vor.u32 1.1754944e-38, %v4758
  %v4760 = vsel %vm4757, %v4759, %v4755
  %v4761 = vmul.f32 1.0, %v4760
  %v4762 = vsel %vm3410, %v4742, %v4761
  %v4763 = vmul.f32 %v4762, 0.0
  %4765 = vrot.lane.b32.xlu0 %v4762, 64
  %v4766 = vpop.permute.xlu0 %4765
  %v4768 = vmul.f32 %v4762, %v4766
  %4770 = vrot.lane.b32.xlu0 %v4768, 32
  %v4771 = vpop.permute.xlu0 %4770
  %v4773 = vadd.f32 %v4763, %v4771
  %v4774 = vtanh.pop %v4773
  %4776 = vrot.lane.b32.xlu0 %v4774, 64
  %v4777 = vpop.permute.xlu0 %4776
  %v4779 = vmul.f32 %v4762, %v4777
  %v4784 = vunpack.c.l.b16 %v4712
  %v4785 = vunpack.c.l.b16 %v4713
  %v4786 = vunpack.c.l.b16 %v4714
  %v4787 = vunpack.c.l.b16 %v4715
  %v4788 = vpack.c.b16 %v4785, %v4784
  %v4789 = vpack.c.b16 %v4787, %v4786
  %4792 = vmatpush.bf16.msra.mxu0 0
  %4793 = vmatpush.bf16.msra.mxu0 0
  %4794 = vmatpush.bf16.msra.mxu0 0
  %4795 = vmatpush.bf16.msra.mxu0 0
  %4796 = vmatpush.bf16.msra.mxu0 0
  %4797 = vmatpush.bf16.msra.mxu0 0
  %4798 = vmatpush.bf16.msra.mxu0 %v4789
  %4799 = vmatpush.bf16.msra.mxu0 %v4788
  %4800 = vmatmul.bf16.gmra.mxu0 %v3546
  %v4801 = vpop.f32.mrf.mxu0
  %v4802 = vadd.f32 0.0, %v4801
  %v4803 = vpop.f32.mrf.mxu0
  %4804 = vdwg.mxu0
  %v4805 = vadd.f32 %v4706, %v4802
  %v4806 = vtanh.pop %v4805
  %v4807 = vxor.u32 %v4805, 2147483648
  %v4808 = vmul.f32 %v4807, 1.442695
  %v4809 = vpow.pop %v4808
  %v4810 = vadd.f32 %v4809, 1.0
  %v4811 = vrcp.pop %v4810
  %v4812 = vmul.f32 %v4810, %v4811
  %v4813 = vsub.f32 1.0, %v4812
  %v4814 = vmul.f32 %v4811, %v4813
  %v4815 = vadd.f32 %v4811, %v4814
  %vm4816 = vweird.f32 %v4810
  %vm4817 = vweird.f32 %v4811
  %vm4818 = vmor %vm4816, %vm4817
  %v4819 = vsel %vm4818, %v4811, %v4815
  %v4820 = vand.u32 2147483647, %v4810
  %vm4821 = vcmp.eq.f32.partialorder %v4820, 8.507059e+37
  %v4822 = vand.u32 %v4810, 2147483648
  %v4823 = vor.u32 1.1754944e-38, %v4822
  %v4824 = vsel %vm4821, %v4823, %v4819
  %v4825 = vmul.f32 1.0, %v4824
  %v4826 = vsel %vm3410, %v4806, %v4825
  %v4827 = vmul.f32 %v4826, 0.0
  %4829 = vrot.lane.b32.xlu0 %v4826, 64
  %v4830 = vpop.permute.xlu0 %4829
  %v4832 = vmul.f32 %v4826, %v4830
  %4834 = vrot.lane.b32.xlu0 %v4832, 32
  %v4835 = vpop.permute.xlu0 %4834
  %v4837 = vadd.f32 %v4827, %v4835
  %v4838 = vtanh.pop %v4837
  %4840 = vrot.lane.b32.xlu0 %v4838, 64
  %v4841 = vpop.permute.xlu0 %4840
  %v4843 = vmul.f32 %v4826, %v4841
  %v4844 = vpack.c.bf16 %v4779, %v4779
  %4846 = vrot.lane.b32.xlu0 %v4844, 32
  %v4847 = vpop.permute.xlu0 %4846
  %v4849 = vsel %vm3264, %v4847, 0
  %4851 = vmatpush.bf16.msra.mxu0 0
  %4852 = vmatpush.bf16.msra.mxu0 0
  %4853 = vmatpush.bf16.msra.mxu0 0
  %4854 = vmatpush.bf16.msra.mxu0 0
  %4855 = vmatpush.bf16.msra.mxu0 0
  %4856 = vmatpush.bf16.msra.mxu0 0
  %4857 = vmatpush.bf16.msra.mxu0 %v4725
  %4858 = vmatpush.bf16.msra.mxu0 %v4724
  %4859 = vmatmul.bf16.gmra.mxu0 %v4849
  %v4860 = vpop.f32.mrf.mxu0
  %v4861 = vadd.f32 0.0, %v4860
  %v4862 = vpop.f32.mrf.mxu0
  %4863 = vdwg.mxu0
  %v4864 = vadd.f32 %v4626, %v4861
  %v4865 = vtanh.pop %v4864
  %v4866 = vxor.u32 %v4864, 2147483648
  %v4867 = vmul.f32 %v4866, 1.442695
  %v4868 = vpow.pop %v4867
  %v4869 = vadd.f32 %v4868, 1.0
  %v4870 = vrcp.pop %v4869
  %v4871 = vmul.f32 %v4869, %v4870
  %v4872 = vsub.f32 1.0, %v4871
  %v4873 = vmul.f32 %v4870, %v4872
  %v4874 = vadd.f32 %v4870, %v4873
  %vm4875 = vweird.f32 %v4869
  %vm4876 = vweird.f32 %v4870
  %vm4877 = vmor %vm4875, %vm4876
  %v4878 = vsel %vm4877, %v4870, %v4874
  %v4879 = vand.u32 2147483647, %v4869
  %vm4880 = vcmp.eq.f32.partialorder %v4879, 8.507059e+37
  %v4881 = vand.u32 %v4869, 2147483648
  %v4882 = vor.u32 1.1754944e-38, %v4881
  %v4883 = vsel %vm4880, %v4882, %v4878
  %v4884 = vmul.f32 1.0, %v4883
  %v4885 = vsel %vm3410, %v4865, %v4884
  %v4886 = vmul.f32 %v4885, %v4773
  %4888 = vrot.lane.b32.xlu0 %v4885, 64
  %v4889 = vpop.permute.xlu0 %4888
  %v4891 = vmul.f32 %v4885, %v4889
  %4893 = vrot.lane.b32.xlu0 %v4891, 32
  %v4894 = vpop.permute.xlu0 %4893
  %v4896 = vadd.f32 %v4886, %v4894
  %v4897 = vtanh.pop %v4896
  %4899 = vrot.lane.b32.xlu0 %v4897, 64
  %v4900 = vpop.permute.xlu0 %4899
  %v4902 = vmul.f32 %v4885, %v4900
  %v4903 = vpack.c.bf16 %v4843, %v4843
  %4905 = vrot.lane.b32.xlu0 %v4903, 32
  %v4906 = vpop.permute.xlu0 %4905
  %v4908 = vsel %vm3264, %v4906, 0
  %4910 = vmatpush.bf16.msra.mxu0 0
  %4911 = vmatpush.bf16.msra.mxu0 0
  %4912 = vmatpush.bf16.msra.mxu0 0
  %4913 = vmatpush.bf16.msra.mxu0 0
  %4914 = vmatpush.bf16.msra.mxu0 0
  %4915 = vmatpush.bf16.msra.mxu0 0
  %4916 = vmatpush.bf16.msra.mxu0 %v4789
  %4917 = vmatpush.bf16.msra.mxu0 %v4788
  %4918 = vmatmul.bf16.gmra.mxu0 %v4908
  %v4919 = vpop.f32.mrf.mxu0
  %v4920 = vadd.f32 0.0, %v4919
  %v4921 = vpop.f32.mrf.mxu0
  %4922 = vdwg.mxu0
  %v4923 = vadd.f32 %v4704, %v4920
  %v4924 = vtanh.pop %v4923
  %v4925 = vxor.u32 %v4923, 2147483648
  %v4926 = vmul.f32 %v4925, 1.442695
  %v4927 = vpow.pop %v4926
  %v4928 = vadd.f32 %v4927, 1.0
  %v4929 = vrcp.pop %v4928
  %v4930 = vmul.f32 %v4928, %v4929
  %v4931 = vsub.f32 1.0, %v4930
  %v4932 = vmul.f32 %v4929, %v4931
  %v4933 = vadd.f32 %v4929, %v4932
  %vm4934 = vweird.f32 %v4928
  %vm4935 = vweird.f32 %v4929
  %vm4936 = vmor %vm4934, %vm4935
  %v4937 = vsel %vm4936, %v4929, %v4933
  %v4938 = vand.u32 2147483647, %v4928
  %vm4939 = vcmp.eq.f32.partialorder %v4938, 8.507059e+37
  %v4940 = vand.u32 %v4928, 2147483648
  %v4941 = vor.u32 1.1754944e-38, %v4940
  %v4942 = vsel %vm4939, %v4941, %v4937
  %v4943 = vmul.f32 1.0, %v4942
  %v4944 = vsel %vm3410, %v4924, %v4943
  %v4945 = vmul.f32 %v4944, %v4837
  %4947 = vrot.lane.b32.xlu0 %v4944, 64
  %v4948 = vpop.permute.xlu0 %4947
  %v4950 = vmul.f32 %v4944, %v4948
  %4952 = vrot.lane.b32.xlu0 %v4950, 32
  %v4953 = vpop.permute.xlu0 %4952
  %v4955 = vadd.f32 %v4945, %v4953
  %v4956 = vtanh.pop %v4955
  %4958 = vrot.lane.b32.xlu0 %v4956, 64
  %v4959 = vpop.permute.xlu0 %4958
  %v4961 = vmul.f32 %v4944, %v4959
  %v4962 = vpack.c.bf16 %v4902, %v4902
  %4964 = vrot.lane.b32.xlu0 %v4962, 32
  %v4965 = vpop.permute.xlu0 %4964
  %v4967 = vsel %vm3264, %v4965, 0
  %4969 = vmatpush.bf16.msra.mxu0 0
  %4970 = vmatpush.bf16.msra.mxu0 0
  %4971 = vmatpush.bf16.msra.mxu0 0
  %4972 = vmatpush.bf16.msra.mxu0 0
  %4973 = vmatpush.bf16.msra.mxu0 0
  %4974 = vmatpush.bf16.msra.mxu0 0
  %4975 = vmatpush.bf16.msra.mxu0 %v4725
  %4976 = vmatpush.bf16.msra.mxu0 %v4724
  %4977 = vmatmul.bf16.gmra.mxu0 %v4967
  %v4978 = vpop.f32.mrf.mxu0
  %v4979 = vadd.f32 0.0, %v4978
  %v4980 = vpop.f32.mrf.mxu0
  %4981 = vdwg.mxu0
  %v4982 = vadd.f32 %v4629, %v4979
  %v4983 = vtanh.pop %v4982
  %v4984 = vxor.u32 %v4982, 2147483648
  %v4985 = vmul.f32 %v4984, 1.442695
  %v4986 = vpow.pop %v4985
  %v4987 = vadd.f32 %v4986, 1.0
  %v4988 = vrcp.pop %v4987
  %v4989 = vmul.f32 %v4987, %v4988
  %v4990 = vsub.f32 1.0, %v4989
  %v4991 = vmul.f32 %v4988, %v4990
  %v4992 = vadd.f32 %v4988, %v4991
  %vm4993 = vweird.f32 %v4987
  %vm4994 = vweird.f32 %v4988
  %vm4995 = vmor %vm4993, %vm4994
  %v4996 = vsel %vm4995, %v4988, %v4992
  %v4997 = vand.u32 2147483647, %v4987
  %vm4998 = vcmp.eq.f32.partialorder %v4997, 8.507059e+37
  %v4999 = vand.u32 %v4987, 2147483648
  %v5000 = vor.u32 1.1754944e-38, %v4999
  %v5001 = vsel %vm4998, %v5000, %v4996
  %v5002 = vmul.f32 1.0, %v5001
  %v5003 = vsel %vm3410, %v4983, %v5002
  %v5004 = vmul.f32 %v5003, %v4896
  %5006 = vrot.lane.b32.xlu0 %v5003, 64
  %v5007 = vpop.permute.xlu0 %5006
  %v5009 = vmul.f32 %v5003, %v5007
  %5011 = vrot.lane.b32.xlu0 %v5009, 32
  %v5012 = vpop.permute.xlu0 %5011
  %v5014 = vadd.f32 %v5004, %v5012
  %v5015 = vtanh.pop %v5014
  %5017 = vrot.lane.b32.xlu0 %v5015, 64
  %v5018 = vpop.permute.xlu0 %5017
  %v5020 = vmul.f32 %v5003, %v5018
  %v5021 = vpack.c.bf16 %v4961, %v4961
  %5023 = vrot.lane.b32.xlu0 %v5021, 32
  %v5024 = vpop.permute.xlu0 %5023
  %v5026 = vsel %vm3264, %v5024, 0
  %5028 = vmatpush.bf16.msra.mxu0 0
  %5029 = vmatpush.bf16.msra.mxu0 0
  %5030 = vmatpush.bf16.msra.mxu0 0
  %5031 = vmatpush.bf16.msra.mxu0 0
  %5032 = vmatpush.bf16.msra.mxu0 0
  %5033 = vmatpush.bf16.msra.mxu0 0
  %5034 = vmatpush.bf16.msra.mxu0 %v4789
  %5035 = vmatpush.bf16.msra.mxu0 %v4788
  %5036 = vmatmul.bf16.gmra.mxu0 %v5026
  %v5037 = vpop.f32.mrf.mxu0
  %v5038 = vadd.f32 0.0, %v5037
  %v5039 = vpop.f32.mrf.mxu0
  %5040 = vdwg.mxu0
  %v5041 = vadd.f32 %v4701, %v5038
  %v5042 = vtanh.pop %v5041
  %v5043 = vxor.u32 %v5041, 2147483648
  %v5044 = vmul.f32 %v5043, 1.442695
  %v5045 = vpow.pop %v5044
  %v5046 = vadd.f32 %v5045, 1.0
  %v5047 = vrcp.pop %v5046
  %v5048 = vmul.f32 %v5046, %v5047
  %v5049 = vsub.f32 1.0, %v5048
  %v5050 = vmul.f32 %v5047, %v5049
  %v5051 = vadd.f32 %v5047, %v5050
  %vm5052 = vweird.f32 %v5046
  %vm5053 = vweird.f32 %v5047
  %vm5054 = vmor %vm5052, %vm5053
  %v5055 = vsel %vm5054, %v5047, %v5051
  %v5056 = vand.u32 2147483647, %v5046
  %vm5057 = vcmp.eq.f32.partialorder %v5056, 8.507059e+37
  %v5058 = vand.u32 %v5046, 2147483648
  %v5059 = vor.u32 1.1754944e-38, %v5058
  %v5060 = vsel %vm5057, %v5059, %v5055
  %v5061 = vmul.f32 1.0, %v5060
  %v5062 = vsel %vm3410, %v5042, %v5061
  %v5063 = vmul.f32 %v5062, %v4955
  %5065 = vrot.lane.b32.xlu0 %v5062, 64
  %v5066 = vpop.permute.xlu0 %5065
  %v5068 = vmul.f32 %v5062, %v5066
  %5070 = vrot.lane.b32.xlu0 %v5068, 32
  %v5071 = vpop.permute.xlu0 %5070
  %v5073 = vadd.f32 %v5063, %v5071
  %v5074 = vtanh.pop %v5073
  %5076 = vrot.lane.b32.xlu0 %v5074, 64
  %v5077 = vpop.permute.xlu0 %5076
  %v5079 = vmul.f32 %v5062, %v5077
  %v5080 = vpack.c.bf16 %v5020, %v5020
  %5082 = vrot.lane.b32.xlu0 %v5080, 32
  %v5083 = vpop.permute.xlu0 %5082
  %v5085 = vsel %vm3264, %v5083, 0
  %5087 = vmatpush.bf16.msra.mxu0 0
  %5088 = vmatpush.bf16.msra.mxu0 0
  %5089 = vmatpush.bf16.msra.mxu0 0
  %5090 = vmatpush.bf16.msra.mxu0 0
  %5091 = vmatpush.bf16.msra.mxu0 0
  %5092 = vmatpush.bf16.msra.mxu0 0
  %5093 = vmatpush.bf16.msra.mxu0 %v4725
  %5094 = vmatpush.bf16.msra.mxu0 %v4724
  %5095 = vmatmul.bf16.gmra.mxu0 %v5085
  %v5096 = vpop.f32.mrf.mxu0
  %v5097 = vadd.f32 0.0, %v5096
  %v5098 = vpop.f32.mrf.mxu0
  %5099 = vdwg.mxu0
  %v5100 = vadd.f32 %v4631, %v5097
  %v5101 = vtanh.pop %v5100
  %v5102 = vxor.u32 %v5100, 2147483648
  %v5103 = vmul.f32 %v5102, 1.442695
  %v5104 = vpow.pop %v5103
  %v5105 = vadd.f32 %v5104, 1.0
  %v5106 = vrcp.pop %v5105
  %v5107 = vmul.f32 %v5105, %v5106
  %v5108 = vsub.f32 1.0, %v5107
  %v5109 = vmul.f32 %v5106, %v5108
  %v5110 = vadd.f32 %v5106, %v5109
  %vm5111 = vweird.f32 %v5105
  %vm5112 = vweird.f32 %v5106
  %vm5113 = vmor %vm5111, %vm5112
  %v5114 = vsel %vm5113, %v5106, %v5110
  %v5115 = vand.u32 2147483647, %v5105
  %vm5116 = vcmp.eq.f32.partialorder %v5115, 8.507059e+37
  %v5117 = vand.u32 %v5105, 2147483648
  %v5118 = vor.u32 1.1754944e-38, %v5117
  %v5119 = vsel %vm5116, %v5118, %v5114
  %v5120 = vmul.f32 1.0, %v5119
  %v5121 = vsel %vm3410, %v5101, %v5120
  %v5122 = vmul.f32 %v5121, %v5014
  %5124 = vrot.lane.b32.xlu0 %v5121, 64
  %v5125 = vpop.permute.xlu0 %5124
  %v5127 = vmul.f32 %v5121, %v5125
  %5129 = vrot.lane.b32.xlu0 %v5127, 32
  %v5130 = vpop.permute.xlu0 %5129
  %v5132 = vadd.f32 %v5122, %v5130
  %v5133 = vtanh.pop %v5132
  %5135 = vrot.lane.b32.xlu0 %v5133, 64
  %v5136 = vpop.permute.xlu0 %5135
  %v5138 = vmul.f32 %v5121, %v5136
  %v5139 = vpack.c.bf16 %v5079, %v5079
  %5141 = vrot.lane.b32.xlu0 %v5139, 32
  %v5142 = vpop.permute.xlu0 %5141
  %v5144 = vsel %vm3264, %v5142, 0
  %5146 = vmatpush.bf16.msra.mxu0 0
  %5147 = vmatpush.bf16.msra.mxu0 0
  %5148 = vmatpush.bf16.msra.mxu0 0
  %5149 = vmatpush.bf16.msra.mxu0 0
  %5150 = vmatpush.bf16.msra.mxu0 0
  %5151 = vmatpush.bf16.msra.mxu0 0
  %5152 = vmatpush.bf16.msra.mxu0 %v4789
  %5153 = vmatpush.bf16.msra.mxu0 %v4788
  %5154 = vmatmul.bf16.gmra.mxu0 %v5144
  %v5155 = vpop.f32.mrf.mxu0
  %v5156 = vadd.f32 0.0, %v5155
  %v5157 = vpop.f32.mrf.mxu0
  %5158 = vdwg.mxu0
  %v5159 = vadd.f32 %v4699, %v5156
  %v5160 = vtanh.pop %v5159
  %v5161 = vxor.u32 %v5159, 2147483648
  %v5162 = vmul.f32 %v5161, 1.442695
  %v5163 = vpow.pop %v5162
  %v5164 = vadd.f32 %v5163, 1.0
  %v5165 = vrcp.pop %v5164
  %v5166 = vmul.f32 %v5164, %v5165
  %v5167 = vsub.f32 1.0, %v5166
  %v5168 = vmul.f32 %v5165, %v5167
  %v5169 = vadd.f32 %v5165, %v5168
  %vm5170 = vweird.f32 %v5164
  %vm5171 = vweird.f32 %v5165
  %vm5172 = vmor %vm5170, %vm5171
  %v5173 = vsel %vm5172, %v5165, %v5169
  %v5174 = vand.u32 2147483647, %v5164
  %vm5175 = vcmp.eq.f32.partialorder %v5174, 8.507059e+37
  %v5176 = vand.u32 %v5164, 2147483648
  %v5177 = vor.u32 1.1754944e-38, %v5176
  %v5178 = vsel %vm5175, %v5177, %v5173
  %v5179 = vmul.f32 1.0, %v5178
  %v5180 = vsel %vm3410, %v5160, %v5179
  %v5181 = vmul.f32 %v5180, %v5073
  %5183 = vrot.lane.b32.xlu0 %v5180, 64
  %v5184 = vpop.permute.xlu0 %5183
  %v5186 = vmul.f32 %v5180, %v5184
  %5188 = vrot.lane.b32.xlu0 %v5186, 32
  %v5189 = vpop.permute.xlu0 %5188
  %v5191 = vadd.f32 %v5181, %v5189
  %v5192 = vtanh.pop %v5191
  %5194 = vrot.lane.b32.xlu0 %v5192, 64
  %v5195 = vpop.permute.xlu0 %5194
  %v5197 = vmul.f32 %v5180, %v5195
  %v5198 = vpack.c.bf16 %v5138, %v5138
  %5200 = vrot.lane.b32.xlu0 %v5198, 32
  %v5201 = vpop.permute.xlu0 %5200
  %v5203 = vsel %vm3264, %v5201, 0
  %5205 = vmatpush.bf16.msra.mxu0 0
  %5206 = vmatpush.bf16.msra.mxu0 0
  %5207 = vmatpush.bf16.msra.mxu0 0
  %5208 = vmatpush.bf16.msra.mxu0 0
  %5209 = vmatpush.bf16.msra.mxu0 0
  %5210 = vmatpush.bf16.msra.mxu0 0
  %5211 = vmatpush.bf16.msra.mxu0 %v4725
  %5212 = vmatpush.bf16.msra.mxu0 %v4724
  %5213 = vmatmul.bf16.gmra.mxu0 %v5203
  %v5214 = vpop.f32.mrf.mxu0
  %v5215 = vadd.f32 0.0, %v5214
  %v5216 = vpop.f32.mrf.mxu0
  %5217 = vdwg.mxu0
  %v5218 = vadd.f32 %v4634, %v5215
  %v5219 = vtanh.pop %v5218
  %v5220 = vxor.u32 %v5218, 2147483648
  %v5221 = vmul.f32 %v5220, 1.442695
  %v5222 = vpow.pop %v5221
  %v5223 = vadd.f32 %v5222, 1.0
  %v5224 = vrcp.pop %v5223
  %v5225 = vmul.f32 %v5223, %v5224
  %v5226 = vsub.f32 1.0, %v5225
  %v5227 = vmul.f32 %v5224, %v5226
  %v5228 = vadd.f32 %v5224, %v5227
  %vm5229 = vweird.f32 %v5223
  %vm5230 = vweird.f32 %v5224
  %vm5231 = vmor %vm5229, %vm5230
  %v5232 = vsel %vm5231, %v5224, %v5228
  %v5233 = vand.u32 2147483647, %v5223
  %vm5234 = vcmp.eq.f32.partialorder %v5233, 8.507059e+37
  %v5235 = vand.u32 %v5223, 2147483648
  %v5236 = vor.u32 1.1754944e-38, %v5235
  %v5237 = vsel %vm5234, %v5236, %v5232
  %v5238 = vmul.f32 1.0, %v5237
  %v5239 = vsel %vm3410, %v5219, %v5238
  %v5240 = vmul.f32 %v5239, %v5132
  %5242 = vrot.lane.b32.xlu0 %v5239, 64
  %v5243 = vpop.permute.xlu0 %5242
  %v5245 = vmul.f32 %v5239, %v5243
  %5247 = vrot.lane.b32.xlu0 %v5245, 32
  %v5248 = vpop.permute.xlu0 %5247
  %v5250 = vadd.f32 %v5240, %v5248
  %v5251 = vtanh.pop %v5250
  %5253 = vrot.lane.b32.xlu0 %v5251, 64
  %v5254 = vpop.permute.xlu0 %5253
  %v5256 = vmul.f32 %v5239, %v5254
  %v5257 = vpack.c.bf16 %v5197, %v5197
  %5259 = vrot.lane.b32.xlu0 %v5257, 32
  %v5260 = vpop.permute.xlu0 %5259
  %v5262 = vsel %vm3264, %v5260, 0
  %5264 = vmatpush.bf16.msra.mxu0 0
  %5265 = vmatpush.bf16.msra.mxu0 0
  %5266 = vmatpush.bf16.msra.mxu0 0
  %5267 = vmatpush.bf16.msra.mxu0 0
  %5268 = vmatpush.bf16.msra.mxu0 0
  %5269 = vmatpush.bf16.msra.mxu0 0
  %5270 = vmatpush.bf16.msra.mxu0 %v4789
  %5271 = vmatpush.bf16.msra.mxu0 %v4788
  %5272 = vmatmul.bf16.gmra.mxu0 %v5262
  %v5273 = vpop.f32.mrf.mxu0
  %v5274 = vadd.f32 0.0, %v5273
  %v5275 = vpop.f32.mrf.mxu0
  %5276 = vdwg.mxu0
  %v5277 = vadd.f32 %v4696, %v5274
  %v5278 = vtanh.pop %v5277
  %v5279 = vxor.u32 %v5277, 2147483648
  %v5280 = vmul.f32 %v5279, 1.442695
  %v5281 = vpow.pop %v5280
  %v5282 = vadd.f32 %v5281, 1.0
  %v5283 = vrcp.pop %v5282
  %v5284 = vmul.f32 %v5282, %v5283
  %v5285 = vsub.f32 1.0, %v5284
  %v5286 = vmul.f32 %v5283, %v5285
  %v5287 = vadd.f32 %v5283, %v5286
  %vm5288 = vweird.f32 %v5282
  %vm5289 = vweird.f32 %v5283
  %vm5290 = vmor %vm5288, %vm5289
  %v5291 = vsel %vm5290, %v5283, %v5287
  %v5292 = vand.u32 2147483647, %v5282
  %vm5293 = vcmp.eq.f32.partialorder %v5292, 8.507059e+37
  %v5294 = vand.u32 %v5282, 2147483648
  %v5295 = vor.u32 1.1754944e-38, %v5294
  %v5296 = vsel %vm5293, %v5295, %v5291
  %v5297 = vmul.f32 1.0, %v5296
  %v5298 = vsel %vm3410, %v5278, %v5297
  %v5299 = vmul.f32 %v5298, %v5191
  %5301 = vrot.lane.b32.xlu0 %v5298, 64
  %v5302 = vpop.permute.xlu0 %5301
  %v5304 = vmul.f32 %v5298, %v5302
  %5306 = vrot.lane.b32.xlu0 %v5304, 32
  %v5307 = vpop.permute.xlu0 %5306
  %v5309 = vadd.f32 %v5299, %v5307
  %v5310 = vtanh.pop %v5309
  %5312 = vrot.lane.b32.xlu0 %v5310, 64
  %v5313 = vpop.permute.xlu0 %5312
  %v5315 = vmul.f32 %v5298, %v5313
  %v5316 = vpack.c.bf16 %v5256, %v5256
  %5318 = vrot.lane.b32.xlu0 %v5316, 32
  %v5319 = vpop.permute.xlu0 %5318
  %v5321 = vsel %vm3264, %v5319, 0
  %5323 = vmatpush.bf16.msra.mxu0 0
  %5324 = vmatpush.bf16.msra.mxu0 0
  %5325 = vmatpush.bf16.msra.mxu0 0
  %5326 = vmatpush.bf16.msra.mxu0 0
  %5327 = vmatpush.bf16.msra.mxu0 0
  %5328 = vmatpush.bf16.msra.mxu0 0
  %5329 = vmatpush.bf16.msra.mxu0 %v4725
  %5330 = vmatpush.bf16.msra.mxu0 %v4724
  %5331 = vmatmul.bf16.gmra.mxu0 %v5321
  %v5332 = vpop.f32.mrf.mxu0
  %v5333 = vadd.f32 0.0, %v5332
  %v5334 = vpop.f32.mrf.mxu0
  %5335 = vdwg.mxu0
  %v5336 = vadd.f32 %v4636, %v5333
  %v5337 = vtanh.pop %v5336
  %v5338 = vxor.u32 %v5336, 2147483648
  %v5339 = vmul.f32 %v5338, 1.442695
  %v5340 = vpow.pop %v5339
  %v5341 = vadd.f32 %v5340, 1.0
  %v5342 = vrcp.pop %v5341
  %v5343 = vmul.f32 %v5341, %v5342
  %v5344 = vsub.f32 1.0, %v5343
  %v5345 = vmul.f32 %v5342, %v5344
  %v5346 = vadd.f32 %v5342, %v5345
  %vm5347 = vweird.f32 %v5341
  %vm5348 = vweird.f32 %v5342
  %vm5349 = vmor %vm5347, %vm5348
  %v5350 = vsel %vm5349, %v5342, %v5346
  %v5351 = vand.u32 2147483647, %v5341
  %vm5352 = vcmp.eq.f32.partialorder %v5351, 8.507059e+37
  %v5353 = vand.u32 %v5341, 2147483648
  %v5354 = vor.u32 1.1754944e-38, %v5353
  %v5355 = vsel %vm5352, %v5354, %v5350
  %v5356 = vmul.f32 1.0, %v5355
  %v5357 = vsel %vm3410, %v5337, %v5356
  %v5358 = vmul.f32 %v5357, %v5250
  %5360 = vrot.lane.b32.xlu0 %v5357, 64
  %v5361 = vpop.permute.xlu0 %5360
  %v5363 = vmul.f32 %v5357, %v5361
  %5365 = vrot.lane.b32.xlu0 %v5363, 32
  %v5366 = vpop.permute.xlu0 %5365
  %v5368 = vadd.f32 %v5358, %v5366
  %v5369 = vtanh.pop %v5368
  %5371 = vrot.lane.b32.xlu0 %v5369, 64
  %v5372 = vpop.permute.xlu0 %5371
  %v5374 = vmul.f32 %v5357, %v5372
  %v5375 = vpack.c.bf16 %v5315, %v5315
  %5377 = vrot.lane.b32.xlu0 %v5375, 32
  %v5378 = vpop.permute.xlu0 %5377
  %v5380 = vsel %vm3264, %v5378, 0
  %5382 = vmatpush.bf16.msra.mxu0 0
  %5383 = vmatpush.bf16.msra.mxu0 0
  %5384 = vmatpush.bf16.msra.mxu0 0
  %5385 = vmatpush.bf16.msra.mxu0 0
  %5386 = vmatpush.bf16.msra.mxu0 0
  %5387 = vmatpush.bf16.msra.mxu0 0
  %5388 = vmatpush.bf16.msra.mxu0 %v4789
  %5389 = vmatpush.bf16.msra.mxu0 %v4788
  %5390 = vmatmul.bf16.gmra.mxu0 %v5380
  %v5391 = vpop.f32.mrf.mxu0
  %v5392 = vadd.f32 0.0, %v5391
  %v5393 = vpop.f32.mrf.mxu0
  %5394 = vdwg.mxu0
  %v5395 = vadd.f32 %v4694, %v5392
  %v5396 = vtanh.pop %v5395
  %v5397 = vxor.u32 %v5395, 2147483648
  %v5398 = vmul.f32 %v5397, 1.442695
  %v5399 = vpow.pop %v5398
  %v5400 = vadd.f32 %v5399, 1.0
  %v5401 = vrcp.pop %v5400
  %v5402 = vmul.f32 %v5400, %v5401
  %v5403 = vsub.f32 1.0, %v5402
  %v5404 = vmul.f32 %v5401, %v5403
  %v5405 = vadd.f32 %v5401, %v5404
  %vm5406 = vweird.f32 %v5400
  %vm5407 = vweird.f32 %v5401
  %vm5408 = vmor %vm5406, %vm5407
  %v5409 = vsel %vm5408, %v5401, %v5405
  %v5410 = vand.u32 2147483647, %v5400
  %vm5411 = vcmp.eq.f32.partialorder %v5410, 8.507059e+37
  %v5412 = vand.u32 %v5400, 2147483648
  %v5413 = vor.u32 1.1754944e-38, %v5412
  %v5414 = vsel %vm5411, %v5413, %v5409
  %v5415 = vmul.f32 1.0, %v5414
  %v5416 = vsel %vm3410, %v5396, %v5415
  %v5417 = vmul.f32 %v5416, %v5309
  %5419 = vrot.lane.b32.xlu0 %v5416, 64
  %v5420 = vpop.permute.xlu0 %5419
  %v5422 = vmul.f32 %v5416, %v5420
  %5424 = vrot.lane.b32.xlu0 %v5422, 32
  %v5425 = vpop.permute.xlu0 %5424
  %v5427 = vadd.f32 %v5417, %v5425
  %v5428 = vtanh.pop %v5427
  %5430 = vrot.lane.b32.xlu0 %v5428, 64
  %v5431 = vpop.permute.xlu0 %5430
  %v5433 = vmul.f32 %v5416, %v5431
  %v5434 = vpack.c.bf16 %v5374, %v5374
  %5436 = vrot.lane.b32.xlu0 %v5434, 32
  %v5437 = vpop.permute.xlu0 %5436
  %v5439 = vsel %vm3264, %v5437, 0
  %5441 = vmatpush.bf16.msra.mxu0 0
  %5442 = vmatpush.bf16.msra.mxu0 0
  %5443 = vmatpush.bf16.msra.mxu0 0
  %5444 = vmatpush.bf16.msra.mxu0 0
  %5445 = vmatpush.bf16.msra.mxu0 0
  %5446 = vmatpush.bf16.msra.mxu0 0
  %5447 = vmatpush.bf16.msra.mxu0 %v4725
  %5448 = vmatpush.bf16.msra.mxu0 %v4724
  %5449 = vmatmul.bf16.gmra.mxu0 %v5439
  %v5450 = vpop.f32.mrf.mxu0
  %v5451 = vadd.f32 0.0, %v5450
  %v5452 = vpop.f32.mrf.mxu0
  %5453 = vdwg.mxu0
  %v5454 = vadd.f32 %v4639, %v5451
  %v5455 = vtanh.pop %v5454
  %v5456 = vxor.u32 %v5454, 2147483648
  %v5457 = vmul.f32 %v5456, 1.442695
  %v5458 = vpow.pop %v5457
  %v5459 = vadd.f32 %v5458, 1.0
  %v5460 = vrcp.pop %v5459
  %v5461 = vmul.f32 %v5459, %v5460
  %v5462 = vsub.f32 1.0, %v5461
  %v5463 = vmul.f32 %v5460, %v5462
  %v5464 = vadd.f32 %v5460, %v5463
  %vm5465 = vweird.f32 %v5459
  %vm5466 = vweird.f32 %v5460
  %vm5467 = vmor %vm5465, %vm5466
  %v5468 = vsel %vm5467, %v5460, %v5464
  %v5469 = vand.u32 2147483647, %v5459
  %vm5470 = vcmp.eq.f32.partialorder %v5469, 8.507059e+37
  %v5471 = vand.u32 %v5459, 2147483648
  %v5472 = vor.u32 1.1754944e-38, %v5471
  %v5473 = vsel %vm5470, %v5472, %v5468
  %v5474 = vmul.f32 1.0, %v5473
  %v5475 = vsel %vm3410, %v5455, %v5474
  %v5476 = vmul.f32 %v5475, %v5368
  %5478 = vrot.lane.b32.xlu0 %v5475, 64
  %v5479 = vpop.permute.xlu0 %5478
  %v5481 = vmul.f32 %v5475, %v5479
  %5483 = vrot.lane.b32.xlu0 %v5481, 32
  %v5484 = vpop.permute.xlu0 %5483
  %v5486 = vadd.f32 %v5476, %v5484
  %v5487 = vtanh.pop %v5486
  %5489 = vrot.lane.b32.xlu0 %v5487, 64
  %v5490 = vpop.permute.xlu0 %5489
  %v5492 = vmul.f32 %v5475, %v5490
  %v5493 = vpack.c.bf16 %v5433, %v5433
  %5495 = vrot.lane.b32.xlu0 %v5493, 32
  %v5496 = vpop.permute.xlu0 %5495
  %v5498 = vsel %vm3264, %v5496, 0
  %5500 = vmatpush.bf16.msra.mxu0 0
  %5501 = vmatpush.bf16.msra.mxu0 0
  %5502 = vmatpush.bf16.msra.mxu0 0
  %5503 = vmatpush.bf16.msra.mxu0 0
  %5504 = vmatpush.bf16.msra.mxu0 0
  %5505 = vmatpush.bf16.msra.mxu0 0
  %5506 = vmatpush.bf16.msra.mxu0 %v4789
  %5507 = vmatpush.bf16.msra.mxu0 %v4788
  %5508 = vmatmul.bf16.gmra.mxu0 %v5498
  %v5509 = vpop.f32.mrf.mxu0
  %v5510 = vadd.f32 0.0, %v5509
  %v5511 = vpop.f32.mrf.mxu0
  %5512 = vdwg.mxu0
  %v5513 = vadd.f32 %v4691, %v5510
  %v5514 = vtanh.pop %v5513
  %v5515 = vxor.u32 %v5513, 2147483648
  %v5516 = vmul.f32 %v5515, 1.442695
  %v5517 = vpow.pop %v5516
  %v5518 = vadd.f32 %v5517, 1.0
  %v5519 = vrcp.pop %v5518
  %v5520 = vmul.f32 %v5518, %v5519
  %v5521 = vsub.f32 1.0, %v5520
  %v5522 = vmul.f32 %v5519, %v5521
  %v5523 = vadd.f32 %v5519, %v5522
  %vm5524 = vweird.f32 %v5518
  %vm5525 = vweird.f32 %v5519
  %vm5526 = vmor %vm5524, %vm5525
  %v5527 = vsel %vm5526, %v5519, %v5523
  %v5528 = vand.u32 2147483647, %v5518
  %vm5529 = vcmp.eq.f32.partialorder %v5528, 8.507059e+37
  %v5530 = vand.u32 %v5518, 2147483648
  %v5531 = vor.u32 1.1754944e-38, %v5530
  %v5532 = vsel %vm5529, %v5531, %v5527
  %v5533 = vmul.f32 1.0, %v5532
  %v5534 = vsel %vm3410, %v5514, %v5533
  %v5535 = vmul.f32 %v5534, %v5427
  %5537 = vrot.lane.b32.xlu0 %v5534, 64
  %v5538 = vpop.permute.xlu0 %5537
  %v5540 = vmul.f32 %v5534, %v5538
  %5542 = vrot.lane.b32.xlu0 %v5540, 32
  %v5543 = vpop.permute.xlu0 %5542
  %v5545 = vadd.f32 %v5535, %v5543
  %v5546 = vtanh.pop %v5545
  %5548 = vrot.lane.b32.xlu0 %v5546, 64
  %v5549 = vpop.permute.xlu0 %5548
  %v5551 = vmul.f32 %v5534, %v5549
  %v5552 = vpack.c.bf16 %v5492, %v5492
  %5554 = vrot.lane.b32.xlu0 %v5552, 32
  %v5555 = vpop.permute.xlu0 %5554
  %v5557 = vsel %vm3264, %v5555, 0
  %5559 = vmatpush.bf16.msra.mxu0 0
  %5560 = vmatpush.bf16.msra.mxu0 0
  %5561 = vmatpush.bf16.msra.mxu0 0
  %5562 = vmatpush.bf16.msra.mxu0 0
  %5563 = vmatpush.bf16.msra.mxu0 0
  %5564 = vmatpush.bf16.msra.mxu0 0
  %5565 = vmatpush.bf16.msra.mxu0 %v4725
  %5566 = vmatpush.bf16.msra.mxu0 %v4724
  %5567 = vmatmul.bf16.gmra.mxu0 %v5557
  %v5568 = vpop.f32.mrf.mxu0
  %v5569 = vadd.f32 0.0, %v5568
  %v5570 = vpop.f32.mrf.mxu0
  %5571 = vdwg.mxu0
  %v5572 = vadd.f32 %v4641, %v5569
  %v5573 = vtanh.pop %v5572
  %v5574 = vxor.u32 %v5572, 2147483648
  %v5575 = vmul.f32 %v5574, 1.442695
  %v5576 = vpow.pop %v5575
  %v5577 = vadd.f32 %v5576, 1.0
  %v5578 = vrcp.pop %v5577
  %v5579 = vmul.f32 %v5577, %v5578
  %v5580 = vsub.f32 1.0, %v5579
  %v5581 = vmul.f32 %v5578, %v5580
  %v5582 = vadd.f32 %v5578, %v5581
  %vm5583 = vweird.f32 %v5577
  %vm5584 = vweird.f32 %v5578
  %vm5585 = vmor %vm5583, %vm5584
  %v5586 = vsel %vm5585, %v5578, %v5582
  %v5587 = vand.u32 2147483647, %v5577
  %vm5588 = vcmp.eq.f32.partialorder %v5587, 8.507059e+37
  %v5589 = vand.u32 %v5577, 2147483648
  %v5590 = vor.u32 1.1754944e-38, %v5589
  %v5591 = vsel %vm5588, %v5590, %v5586
  %v5592 = vmul.f32 1.0, %v5591
  %v5593 = vsel %vm3410, %v5573, %v5592
  %v5594 = vmul.f32 %v5593, %v5486
  %5596 = vrot.lane.b32.xlu0 %v5593, 64
  %v5597 = vpop.permute.xlu0 %5596
  %v5599 = vmul.f32 %v5593, %v5597
  %5601 = vrot.lane.b32.xlu0 %v5599, 32
  %v5602 = vpop.permute.xlu0 %5601
  %v5604 = vadd.f32 %v5594, %v5602
  %v5605 = vtanh.pop %v5604
  %5607 = vrot.lane.b32.xlu0 %v5605, 64
  %v5608 = vpop.permute.xlu0 %5607
  %v5610 = vmul.f32 %v5593, %v5608
  %v5611 = vpack.c.bf16 %v5551, %v5551
  %5613 = vrot.lane.b32.xlu0 %v5611, 32
  %v5614 = vpop.permute.xlu0 %5613
  %v5616 = vsel %vm3264, %v5614, 0
  %5618 = vmatpush.bf16.msra.mxu0 0
  %5619 = vmatpush.bf16.msra.mxu0 0
  %5620 = vmatpush.bf16.msra.mxu0 0
  %5621 = vmatpush.bf16.msra.mxu0 0
  %5622 = vmatpush.bf16.msra.mxu0 0
  %5623 = vmatpush.bf16.msra.mxu0 0
  %5624 = vmatpush.bf16.msra.mxu0 %v4789
  %5625 = vmatpush.bf16.msra.mxu0 %v4788
  %5626 = vmatmul.bf16.gmra.mxu0 %v5616
  %v5627 = vpop.f32.mrf.mxu0
  %v5628 = vadd.f32 0.0, %v5627
  %v5629 = vpop.f32.mrf.mxu0
  %5630 = vdwg.mxu0
  %v5631 = vadd.f32 %v4689, %v5628
  %v5632 = vtanh.pop %v5631
  %v5633 = vxor.u32 %v5631, 2147483648
  %v5634 = vmul.f32 %v5633, 1.442695
  %v5635 = vpow.pop %v5634
  %v5636 = vadd.f32 %v5635, 1.0
  %v5637 = vrcp.pop %v5636
  %v5638 = vmul.f32 %v5636, %v5637
  %v5639 = vsub.f32 1.0, %v5638
  %v5640 = vmul.f32 %v5637, %v5639
  %v5641 = vadd.f32 %v5637, %v5640
  %vm5642 = vweird.f32 %v5636
  %vm5643 = vweird.f32 %v5637
  %vm5644 = vmor %vm5642, %vm5643
  %v5645 = vsel %vm5644, %v5637, %v5641
  %v5646 = vand.u32 2147483647, %v5636
  %vm5647 = vcmp.eq.f32.partialorder %v5646, 8.507059e+37
  %v5648 = vand.u32 %v5636, 2147483648
  %v5649 = vor.u32 1.1754944e-38, %v5648
  %v5650 = vsel %vm5647, %v5649, %v5645
  %v5651 = vmul.f32 1.0, %v5650
  %v5652 = vsel %vm3410, %v5632, %v5651
  %v5653 = vmul.f32 %v5652, %v5545
  %5655 = vrot.lane.b32.xlu0 %v5652, 64
  %v5656 = vpop.permute.xlu0 %5655
  %v5658 = vmul.f32 %v5652, %v5656
  %5660 = vrot.lane.b32.xlu0 %v5658, 32
  %v5661 = vpop.permute.xlu0 %5660
  %v5663 = vadd.f32 %v5653, %v5661
  %v5664 = vtanh.pop %v5663
  %5666 = vrot.lane.b32.xlu0 %v5664, 64
  %v5667 = vpop.permute.xlu0 %5666
  %v5669 = vmul.f32 %v5652, %v5667
  %5671 = vrot.lane.b32.xlu0 %v5610, 32
  %v5672 = vpop.permute.xlu0 %5671
  %5675 = vrot.lane.b32.xlu0 %v5669, 64
  %v5676 = vpop.permute.xlu0 %5675
  %v5678 = vsel %vm3264, %v5672, %v5676
  %v5679 = vmax.f32 %v5678, 0.0
  %5681 = vrot.lane.b32.xlu0 %v5679, 64
  %v5682 = vpop.permute.xlu0 %5681
  %v5684 = vsel %vm3345, %v3403, %v5682
  %v5685 = vld [vmem:[%s79] sm:$0xff]
  %v5686 = vmul.f32 %v5684, %v5685
  %v5687 = vld [vmem:[%s49] sm:$0xf]
  %v5688 = vld [vmem:[%s49 + $0x4] sm:$0xf]
  %v5689 = vld [vmem:[%s49 + $0x8] sm:$0xf]
  %v5690 = vld [vmem:[%s49 + $0xc] sm:$0xf]
  %v5691 = vld [vmem:[%s49 + $0x10] sm:$0xf]
  %v5692 = vld [vmem:[%s49 + $0x14] sm:$0xf]
  %v5693 = vld [vmem:[%s49 + $0x18] sm:$0xf]
  %v5694 = vld [vmem:[%s49 + $0x1c] sm:$0xf]
  %v5695 = vld [vmem:[%s49 + $0x20] sm:$0xf]
  %v5696 = vld [vmem:[%s49 + $0x24] sm:$0xf]
  %v5697 = vld [vmem:[%s49 + $0x28] sm:$0xf]
  %v5698 = vld [vmem:[%s49 + $0x2c] sm:$0xf]
  %v5699 = vld [vmem:[%s49 + $0x30] sm:$0xf]
  %v5700 = vld [vmem:[%s49 + $0x34] sm:$0xf]
  %v5701 = vld [vmem:[%s49 + $0x38] sm:$0xf]
  %v5702 = vld [vmem:[%s49 + $0x3c] sm:$0xf]
  %v5703 = vpack.c.bf16 %v5686, %v5686
  %v5704 = vld [vmem:[%s51] sm:$0x1]
  %v5706 = vperm.slane %v5704, 0
  %v5724 = vunpack.c.l.b16 %v5687
  %v5725 = vunpack.c.l.b16 %v5688
  %v5726 = vunpack.c.l.b16 %v5689
  %v5727 = vunpack.c.l.b16 %v5690
  %v5728 = vunpack.c.l.b16 %v5691
  %v5729 = vunpack.c.l.b16 %v5692
  %v5730 = vunpack.c.l.b16 %v5693
  %v5731 = vunpack.c.l.b16 %v5694
  %v5732 = vunpack.c.l.b16 %v5695
  %v5733 = vunpack.c.l.b16 %v5696
  %v5734 = vunpack.c.l.b16 %v5697
  %v5735 = vunpack.c.l.b16 %v5698
  %v5736 = vunpack.c.l.b16 %v5699
  %v5737 = vunpack.c.l.b16 %v5700
  %v5738 = vunpack.c.l.b16 %v5701
  %v5739 = vunpack.c.l.b16 %v5702
  %v5740 = vpack.c.b16 %v5725, %v5724
  %v5741 = vpack.c.b16 %v5727, %v5726
  %v5742 = vpack.c.b16 %v5729, %v5728
  %v5743 = vpack.c.b16 %v5731, %v5730
  %v5744 = vpack.c.b16 %v5733, %v5732
  %v5745 = vpack.c.b16 %v5735, %v5734
  %v5746 = vpack.c.b16 %v5737, %v5736
  %v5747 = vpack.c.b16 %v5739, %v5738
  %5756 = vmatpush.bf16.msra.mxu0 %v5747
  %5757 = vmatpush.bf16.msra.mxu0 %v5746
  %5758 = vmatpush.bf16.msra.mxu0 %v5745
  %5759 = vmatpush.bf16.msra.mxu0 %v5744
  %5760 = vmatpush.bf16.msra.mxu0 %v5743
  %5761 = vmatpush.bf16.msra.mxu0 %v5742
  %5762 = vmatpush.bf16.msra.mxu0 %v5741
  %5763 = vmatpush.bf16.msra.mxu0 %v5740
  %5764 = vmatmul.bf16.gmra.mxu0 %v5703
  %v5765 = vpop.f32.mrf.mxu0
  %v5766 = vadd.f32 %v5706, %v5765
  %v5767 = vpop.f32.mrf.mxu0
  %5768 = vdwg.mxu0
  %v5769 = vlaneseq
  %v5770 = vshrl.u32 %v5769, 7
  %vm5771 = vcmp.lt.s32.totalorder %v5770, 4
  %v5772 = vsel %vm5771, 1, 0
  %v5773 = vcvt.s32.f32 %v5772
  %v5774 = vmul.f32 %v5766, %v5773
  %v5775 = vsel %vm3345, %v5774, 0.0
  %v5776 = vrot.slane %v5775, 4
  %v5777 = vadd.f32 %v5775, %v5776
  %v5778 = vrot.slane %v5777, 2
  %v5779 = vadd.f32 %v5777, %v5778
  %v5780 = vrot.slane %v5779, 1
  %v5781 = vadd.f32 %v5779, %v5780
  %v5782 = vmul.f32 %v5781, 0.25
  %v5783 = vsub.f32 %v5766, %v5782
  %v5784 = vmul.f32 %v5783, %v5773
  %v5785 = vmul.f32 %v5784, %v5784
  %v5786 = vsel %vm3345, %v5785, 0.0
  %v5787 = vrot.slane %v5786, 4
  %v5788 = vadd.f32 %v5786, %v5787
  %v5789 = vrot.slane %v5788, 2
  %v5790 = vadd.f32 %v5788, %v5789
  %v5791 = vrot.slane %v5790, 1
  %v5792 = vadd.f32 %v5790, %v5791
  %v5793 = vmul.f32 %v5792, 0.25
  %v5794 = vadd.f32 %v5793, 1e-05
  %v5795 = vrsqrt.pop %v5794
  %v5796 = vmul.f32 %v5795, %v5794
  %v5797 = vmul.f32 %v5796, %v5795
  %v5798 = vmul.f32 0.5, %v5797
  %v5799 = vsub.f32 1.5, %v5798
  %v5800 = vmul.f32 %v5795, %v5799
  %vm5801 = vweird.f32 %v5794
  %vm5802 = vweird.f32 %v5795
  %vm5803 = vmor %vm5801, %vm5802
  %v5804 = vsel %vm5803, %v5795, %v5800
  %v5805 = vmul.f32 %v5783, %v5804
  %v5806 = vld [vmem:[%s53] sm:$0x1]
  %v5808 = vperm.slane %v5806, 0
  %v5810 = vmul.f32 %v5805, %v5808
  %v5811 = vld [vmem:[%s55] sm:$0x1]
  %v5813 = vperm.slane %v5811, 0
  %v5815 = vadd.f32 %v5810, %v5813
  %v5816 = vmax.f32 %v5815, 0.0
  %v5817 = vld [vmem:[%s57] sm:$0xf]
  %v5818 = vld [vmem:[%s57 + $0x4] sm:$0xf]
  %v5819 = vld [vmem:[%s57 + $0x8] sm:$0xf]
  %v5820 = vld [vmem:[%s57 + $0xc] sm:$0xf]
  %v5821 = vld [vmem:[%s57 + $0x10] sm:$0xf]
  %v5822 = vld [vmem:[%s57 + $0x14] sm:$0xf]
  %v5823 = vld [vmem:[%s57 + $0x18] sm:$0xf]
  %v5824 = vld [vmem:[%s57 + $0x1c] sm:$0xf]
  %v5825 = vpack.c.bf16 %v5816, %v5816
  %v5826 = vld [vmem:[%s59] sm:$0x1]
  %v5828 = vperm.slane %v5826, 0
  %v5838 = vunpack.c.l.b16 %v5817
  %v5839 = vunpack.c.l.b16 %v5818
  %v5840 = vunpack.c.l.b16 %v5819
  %v5841 = vunpack.c.l.b16 %v5820
  %v5842 = vunpack.c.l.b16 %v5821
  %v5843 = vunpack.c.l.b16 %v5822
  %v5844 = vunpack.c.l.b16 %v5823
  %v5845 = vunpack.c.l.b16 %v5824
  %v5846 = vpack.c.b16 %v5839, %v5838
  %v5847 = vpack.c.b16 %v5841, %v5840
  %v5848 = vpack.c.b16 %v5843, %v5842
  %v5849 = vpack.c.b16 %v5845, %v5844
  %v5855 = vsel %vm3345, %v5825, 0
  %5857 = vmatpush.bf16.msra.mxu0 0
  %5858 = vmatpush.bf16.msra.mxu0 0
  %5859 = vmatpush.bf16.msra.mxu0 0
  %5860 = vmatpush.bf16.msra.mxu0 0
  %5861 = vmatpush.bf16.msra.mxu0 %v5849
  %5862 = vmatpush.bf16.msra.mxu0 %v5848
  %5863 = vmatpush.bf16.msra.mxu0 %v5847
  %5864 = vmatpush.bf16.msra.mxu0 %v5846
  %5865 = vmatmul.bf16.gmra.mxu0 %v5855
  %v5866 = vpop.f32.mrf.mxu0
  %v5867 = vadd.f32 %v5828, %v5866
  %v5868 = vpop.f32.mrf.mxu0
  %5869 = vdwg.mxu0
  %v5870 = vld [vmem:[%s61] sm:$0x1]
  %v5871 = vld [vmem:[%s65] sm:$0xf]
  %v5872 = vld [vmem:[%s65 + $0x4] sm:$0xf]
  %v5873 = vld [vmem:[%s65 + $0x8] sm:$0xf]
  %v5874 = vld [vmem:[%s65 + $0xc] sm:$0xf]
  %v5875 = vld [vmem:[%s65 + $0x10] sm:$0xf]
  %v5876 = vld [vmem:[%s65 + $0x14] sm:$0xf]
  %v5877 = vld [vmem:[%s65 + $0x18] sm:$0xf]
  %v5878 = vld [vmem:[%s65 + $0x1c] sm:$0xf]
  %v5879 = vld [vmem:[%s65 + $0x20] sm:$0xf]
  %v5880 = vld [vmem:[%s65 + $0x24] sm:$0xf]
  %v5881 = vld [vmem:[%s65 + $0x28] sm:$0xf]
  %v5882 = vld [vmem:[%s65 + $0x2c] sm:$0xf]
  %v5883 = vld [vmem:[%s65 + $0x30] sm:$0xf]
  %v5884 = vld [vmem:[%s65 + $0x34] sm:$0xf]
  %v5885 = vld [vmem:[%s65 + $0x38] sm:$0xf]
  %v5886 = vld [vmem:[%s65 + $0x3c] sm:$0xf]
  %v5887 = vpack.c.bf16 %v5870, %v5870
  %v5888 = vld [vmem:[%s67] sm:$0x1]
  %v5905 = vunpack.c.l.b16 %v5871
  %v5906 = vunpack.c.l.b16 %v5872
  %v5907 = vunpack.c.l.b16 %v5873
  %v5908 = vunpack.c.l.b16 %v5874
  %v5909 = vunpack.c.l.b16 %v5875
  %v5910 = vunpack.c.l.b16 %v5876
  %v5911 = vunpack.c.l.b16 %v5877
  %v5912 = vunpack.c.l.b16 %v5878
  %v5913 = vunpack.c.l.b16 %v5879
  %v5914 = vunpack.c.l.b16 %v5880
  %v5915 = vunpack.c.l.b16 %v5881
  %v5916 = vunpack.c.l.b16 %v5882
  %v5917 = vunpack.c.l.b16 %v5883
  %v5918 = vunpack.c.l.b16 %v5884
  %v5919 = vunpack.c.l.b16 %v5885
  %v5920 = vunpack.c.l.b16 %v5886
  %v5921 = vpack.c.b16 %v5906, %v5905
  %v5922 = vpack.c.b16 %v5908, %v5907
  %v5923 = vpack.c.b16 %v5910, %v5909
  %v5924 = vpack.c.b16 %v5912, %v5911
  %v5925 = vpack.c.b16 %v5914, %v5913
  %v5926 = vpack.c.b16 %v5916, %v5915
  %v5927 = vpack.c.b16 %v5918, %v5917
  %v5928 = vpack.c.b16 %v5920, %v5919
  %5937 = vmatpush.bf16.msra.mxu0 %v5928
  %5938 = vmatpush.bf16.msra.mxu0 %v5927
  %5939 = vmatpush.bf16.msra.mxu0 %v5926
  %5940 = vmatpush.bf16.msra.mxu0 %v5925
  %5941 = vmatpush.bf16.msra.mxu0 %v5924
  %5942 = vmatpush.bf16.msra.mxu0 %v5923
  %5943 = vmatpush.bf16.msra.mxu0 %v5922
  %5944 = vmatpush.bf16.msra.mxu0 %v5921
  %5945 = vmatmul.bf16.gmra.mxu0 %v5887
  %v5946 = vpop.f32.mrf.mxu0
  %v5947 = vadd.f32 %v5888, %v5946
  %v5948 = vpop.f32.mrf.mxu0
  %5949 = vdwg.mxu0
  %v5950 = vtanh.pop %v5947
  %v5951 = vld [vmem:[%s63] sm:$0xff]
  %v5952 = vpack.c.bf16 %v5951, %v5951
  %v5954 = vperm.slane %v5888, 0
  %5956 = vmatpush.bf16.msra.mxu0 %v5928
  %5957 = vmatpush.bf16.msra.mxu0 %v5927
  %5958 = vmatpush.bf16.msra.mxu0 %v5926
  %5959 = vmatpush.bf16.msra.mxu0 %v5925
  %5960 = vmatpush.bf16.msra.mxu0 %v5924
  %5961 = vmatpush.bf16.msra.mxu0 %v5923
  %5962 = vmatpush.bf16.msra.mxu0 %v5922
  %5963 = vmatpush.bf16.msra.mxu0 %v5921
  %5964 = vmatmul.bf16.gmra.mxu0 %v5952
  %v5965 = vpop.f32.mrf.mxu0
  %v5966 = vadd.f32 %v5954, %v5965
  %v5967 = vpop.f32.mrf.mxu0
  %5968 = vdwg.mxu0
  %v5969 = vtanh.pop %v5966
  %v5970 = vld [vmem:[%s71] sm:$0xf]
  %v5971 = vld [vmem:[%s71 + $0x4] sm:$0xf]
  %v5972 = vld [vmem:[%s71 + $0x8] sm:$0xf]
  %v5973 = vld [vmem:[%s71 + $0xc] sm:$0xf]
  %v5974 = vld [vmem:[%s71 + $0x10] sm:$0xf]
  %v5975 = vld [vmem:[%s71 + $0x14] sm:$0xf]
  %v5976 = vld [vmem:[%s71 + $0x18] sm:$0xf]
  %v5977 = vld [vmem:[%s71 + $0x1c] sm:$0xf]
  %v5978 = vld [vmem:[%s71 + $0x20] sm:$0xf]
  %v5979 = vld [vmem:[%s71 + $0x24] sm:$0xf]
  %v5980 = vld [vmem:[%s71 + $0x28] sm:$0xf]
  %v5981 = vld [vmem:[%s71 + $0x2c] sm:$0xf]
  %v5982 = vld [vmem:[%s71 + $0x30] sm:$0xf]
  %v5983 = vld [vmem:[%s71 + $0x34] sm:$0xf]
  %v5984 = vld [vmem:[%s71 + $0x38] sm:$0xf]
  %v5985 = vld [vmem:[%s71 + $0x3c] sm:$0xf]
  %v5986 = vpack.c.bf16 %v5969, %v5969
  %v5987 = vld [vmem:[%s69] sm:$0xf]
  %v5988 = vld [vmem:[%s69 + $0x4] sm:$0xf]
  %v5989 = vld [vmem:[%s69 + $0x8] sm:$0xf]
  %v5990 = vld [vmem:[%s69 + $0xc] sm:$0xf]
  %v5991 = vld [vmem:[%s69 + $0x10] sm:$0xf]
  %v5992 = vld [vmem:[%s69 + $0x14] sm:$0xf]
  %v5993 = vld [vmem:[%s69 + $0x18] sm:$0xf]
  %v5994 = vld [vmem:[%s69 + $0x1c] sm:$0xf]
  %v5995 = vld [vmem:[%s69 + $0x20] sm:$0xf]
  %v5996 = vld [vmem:[%s69 + $0x24] sm:$0xf]
  %v5997 = vld [vmem:[%s69 + $0x28] sm:$0xf]
  %v5998 = vld [vmem:[%s69 + $0x2c] sm:$0xf]
  %v5999 = vld [vmem:[%s69 + $0x30] sm:$0xf]
  %v6000 = vld [vmem:[%s69 + $0x34] sm:$0xf]
  %v6001 = vld [vmem:[%s69 + $0x38] sm:$0xf]
  %v6002 = vld [vmem:[%s69 + $0x3c] sm:$0xf]
  %v6003 = vpack.c.bf16 %v5950, %v5950
  %v6020 = vunpack.c.l.b16 %v5987
  %v6021 = vunpack.c.l.b16 %v5988
  %v6022 = vunpack.c.l.b16 %v5989
  %v6023 = vunpack.c.l.b16 %v5990
  %v6024 = vunpack.c.l.b16 %v5991
  %v6025 = vunpack.c.l.b16 %v5992
  %v6026 = vunpack.c.l.b16 %v5993
  %v6027 = vunpack.c.l.b16 %v5994
  %v6028 = vunpack.c.l.b16 %v5995
  %v6029 = vunpack.c.l.b16 %v5996
  %v6030 = vunpack.c.l.b16 %v5997
  %v6031 = vunpack.c.l.b16 %v5998
  %v6032 = vunpack.c.l.b16 %v5999
  %v6033 = vunpack.c.l.b16 %v6000
  %v6034 = vunpack.c.l.b16 %v6001
  %v6035 = vunpack.c.l.b16 %v6002
  %v6036 = vpack.c.b16 %v6021, %v6020
  %v6037 = vpack.c.b16 %v6023, %v6022
  %v6038 = vpack.c.b16 %v6025, %v6024
  %v6039 = vpack.c.b16 %v6027, %v6026
  %v6040 = vpack.c.b16 %v6029, %v6028
  %v6041 = vpack.c.b16 %v6031, %v6030
  %v6042 = vpack.c.b16 %v6033, %v6032
  %v6043 = vpack.c.b16 %v6035, %v6034
  %6052 = vmatpush.bf16.msra.mxu0 %v6043
  %6053 = vmatpush.bf16.msra.mxu0 %v6042
  %6054 = vmatpush.bf16.msra.mxu0 %v6041
  %6055 = vmatpush.bf16.msra.mxu0 %v6040
  %6056 = vmatpush.bf16.msra.mxu0 %v6039
  %6057 = vmatpush.bf16.msra.mxu0 %v6038
  %6058 = vmatpush.bf16.msra.mxu0 %v6037
  %6059 = vmatpush.bf16.msra.mxu0 %v6036
  %6060 = vmatmul.bf16.gmra.mxu0 %v6003
  %v6061 = vpop.f32.mrf.mxu0
  %v6062 = vadd.f32 0.0, %v6061
  %v6063 = vpop.f32.mrf.mxu0
  %6064 = vdwg.mxu0
  %v6065 = vperm.slane %v6062, 0
  %v6082 = vunpack.c.l.b16 %v5970
  %v6083 = vunpack.c.l.b16 %v5971
  %v6084 = vunpack.c.l.b16 %v5972
  %v6085 = vunpack.c.l.b16 %v5973
  %v6086 = vunpack.c.l.b16 %v5974
  %v6087 = vunpack.c.l.b16 %v5975
  %v6088 = vunpack.c.l.b16 %v5976
  %v6089 = vunpack.c.l.b16 %v5977
  %v6090 = vunpack.c.l.b16 %v5978
  %v6091 = vunpack.c.l.b16 %v5979
  %v6092 = vunpack.c.l.b16 %v5980
  %v6093 = vunpack.c.l.b16 %v5981
  %v6094 = vunpack.c.l.b16 %v5982
  %v6095 = vunpack.c.l.b16 %v5983
  %v6096 = vunpack.c.l.b16 %v5984
  %v6097 = vunpack.c.l.b16 %v5985
  %v6098 = vpack.c.b16 %v6083, %v6082
  %v6099 = vpack.c.b16 %v6085, %v6084
  %v6100 = vpack.c.b16 %v6087, %v6086
  %v6101 = vpack.c.b16 %v6089, %v6088
  %v6102 = vpack.c.b16 %v6091, %v6090
  %v6103 = vpack.c.b16 %v6093, %v6092
  %v6104 = vpack.c.b16 %v6095, %v6094
  %v6105 = vpack.c.b16 %v6097, %v6096
  %6114 = vmatpush.bf16.msra.mxu0 %v6105
  %6115 = vmatpush.bf16.msra.mxu0 %v6104
  %6116 = vmatpush.bf16.msra.mxu0 %v6103
  %6117 = vmatpush.bf16.msra.mxu0 %v6102
  %6118 = vmatpush.bf16.msra.mxu0 %v6101
  %6119 = vmatpush.bf16.msra.mxu0 %v6100
  %6120 = vmatpush.bf16.msra.mxu0 %v6099
  %6121 = vmatpush.bf16.msra.mxu0 %v6098
  %6122 = vmatmul.bf16.gmra.mxu0 %v5986
  %v6123 = vpop.f32.mrf.mxu0
  %v6124 = vadd.f32 %v6065, %v6123
  %v6125 = vpop.f32.mrf.mxu0
  %6126 = vdwg.mxu0
  %v6127 = vld [vmem:[%s73] sm:$0x1]
  %v6129 = vperm.slane %v6127, 0
  %v6131 = vadd.f32 %v6124, %v6129
  %v6132 = vmul.f32 %v6131, %v6131
  %v6133 = vsel %vm3292, %v6132, 0.0
  %6134 = vadd.xlane.f32.xlu0 %v6133
  %v6135 = vpop.xlane.xlu0 %6134
  %v6136 = vrsqrt.pop %v6135
  %v6137 = vmul.f32 %v6136, %v6135
  %v6138 = vmul.f32 %v6137, %v6136
  %v6139 = vmul.f32 0.5, %v6138
  %v6140 = vsub.f32 1.5, %v6139
  %v6141 = vmul.f32 %v6136, %v6140
  %v6142 = vmul.f32 %v6135, %v6141
  %vm6143 = vcmp.eq.f32.partialorder %v6135, inf
  %v6144 = vsel %vm6143, %v6135, %v6142
  %vm6145 = vcmp.eq.f32.partialorder %v6135, 0.0
  %v6146 = vand.u32 %v6135, 2147483648
  %v6147 = vsel %vm6145, %v6146, %v6144
  %v6148 = vmax.f32 %v6147, 1e-12
  %v6149 = vrcp.pop %v6148
  %v6150 = vmul.f32 %v6148, %v6149
  %v6151 = vsub.f32 1.0, %v6150
  %v6152 = vmul.f32 %v6149, %v6151
  %v6153 = vadd.f32 %v6149, %v6152
  %vm6154 = vweird.f32 %v6148
  %vm6155 = vweird.f32 %v6149
  %vm6156 = vmor %vm6154, %vm6155
  %v6157 = vsel %vm6156, %v6149, %v6153
  %v6158 = vand.u32 2147483647, %v6148
  %vm6159 = vcmp.eq.f32.partialorder %v6158, 8.507059e+37
  %v6160 = vand.u32 %v6148, 2147483648
  %v6161 = vor.u32 1.1754944e-38, %v6160
  %v6162 = vsel %vm6159, %v6161, %v6157
  %v6163 = vmul.f32 %v6131, %v6162
  %v6164 = vld [vmem:[#allocation2] sm:$0x1]
  %v6165 = vmul.f32 %v6164, 1.442695
  %v6166 = vpow.pop %v6165
  %v6168 = vsel %vm3292, %v5867, 0
  %v6171 = vsel %vm3292, %v6163, 0
  %6173 = vmatpush.xpose.msra.mxu0 0.0
  %6174 = vmatpush.xpose.msra.mxu0 0.0
  %6175 = vmatpush.xpose.msra.mxu0 0.0
  %6176 = vmatpush.xpose.msra.mxu0 0.0
  %6177 = vmatpush.xpose.msra.mxu0 0.0
  %6178 = vmatpush.xpose.msra.mxu0 0.0
  %6179 = vmatpush.xpose.msra.mxu0 0.0
  %6180 = vmatpush.xpose.msra.mxu0 0.0
  %6181 = vmatpush.xpose.msra.mxu0 0.0
  %6182 = vmatpush.xpose.msra.mxu0 0.0
  %6183 = vmatpush.xpose.msra.mxu0 0.0
  %6184 = vmatpush.xpose.msra.mxu0 0.0
  %6185 = vmatpush.xpose.msra.mxu0 0.0
  %6186 = vmatpush.xpose.msra.mxu0 0.0
  %6187 = vmatpush.xpose.msra.mxu0 0.0
  %6188 = vmatpush.xpose.msra.mxu0 %v6171
  %6189 = vmatmul.f32.gmra.mxu0 %v6168
  %v6190 = vpop.f32.mrf.mxu0
  %v6191 = vadd.f32 0.0, %v6190
  %6192 = vdwg.mxu0
  %v6194 = vperm.slane %v6166, 0
  %6195 = vset.pattern.permute.xlu0 0
  %6196 = vperm.xlu0 %6195, %v6194
  %v6197 = vpop.permute.xlu0 %6196
  %v6199 = vmul.f32 %v6197, %v6191
  %vm6200 = vcmask 64512
  %v6201 = vsel %vm6200, %v6199, -inf
  %6202 = vmax.xlane.f32.xlu0 %v6201
  %v6203 = vpop.xlane.xlu0 %6202
  %v6204 = vsub.f32 %v6199, %v6203
  %v6205 = vmul.f32 %v6204, 1.442695
  %v6206 = vpow.pop %v6205
  %v6207 = vsel %vm6200, %v6206, 0.0
  %6208 = vadd.xlane.f32.xlu0 %v6207
  %v6209 = vpop.xlane.xlu0 %6208
  %v6210 = vlog2.pop %v6209
  %v6211 = vmul.f32 %v6210, 0.6931472
  %v6212 = vsub.f32 %v6204, %v6211
  %6213 = vst.msk [vmem:[%s81] sm:$0xff] %vm6200, %v6212
  // Predicated region
  $region162: #{merg_forward.1} parent=0 // pred_check
    _
  $region163: #{merg_forward.1} parent=0 // pred_check_branch
    %6215 = sbr.rel (0) target = $region165
  $region164: #{merg_forward.1} parent=0 // pred_region
    _
  $region165: #{merg_forward.1} parent=0 // pred_fallthru
    _
  // Predicated region
  $region166: #{merg_forward.1} parent=0 // pred_check
    _
  $region167: #{merg_forward.1} parent=0 // pred_check_branch
    %6217 = sbr.rel (0) target = $region169
  $region168: #{merg_forward.1} parent=0 // pred_region
    _
  $region169: #{merg_forward.1} parent=0 // pred_fallthru
    _

</llo_original>
